<compile_context>
chip_gen: v7x
topology: tpu7x:2x2x1
jax: 0.10.0
libtpu: 0.0.40
codegen_flags: <defaults>
</compile_context>

<pallas_src>
import jax
import jax.numpy as jnp
from jax.experimental import pallas as pl
from jax.experimental.pallas import tpu as pltpu


def _round_up(x, m):
    return ((x + m - 1) // m) * m


def _local2d_kernel(patch_ref, w_ref, out_ref):
    # (TP, B, CKK) @ (TP, CKK, O) -> (TP, B, O), f32 accumulation on the MXU.
    out_ref[...] = jnp.einsum(
        "pbc,pco->pbo", patch_ref[...], w_ref[...],
        preferred_element_type=jnp.float32,
    ).astype(out_ref.dtype)


def _local2d_bias_kernel(patch_ref, w_ref, bias_ref, out_ref):
    acc = jnp.einsum(
        "pbc,pco->pbo", patch_ref[...], w_ref[...],
        preferred_element_type=jnp.float32,
    )
    out_ref[...] = (acc + bias_ref[...][:, None, :]).astype(out_ref.dtype)


def _vmem_capacity_bytes():
    try:
        cap = getattr(pltpu.get_tpu_info(), "vmem_capacity_bytes", None)
        if cap:
            return int(cap)
    except Exception:
        pass
    return 64 * 1024 * 1024  # conservative fallback (v7x per-TensorCore VMEM)


def local2d_forward(x, weight, bias=None, stride=1, padding=0):
    """Forward of Local2d.  x: (B, C, H, W); weight: (O, Hout, Wout, C, K, K);
    bias: (O, Hout, Wout) or None.  Returns (B, O, Hout, Wout) float32."""
    B, C, H_in, W_in = x.shape
    O, H_out, W_out, _, K, _ = weight.shape
    P = H_out * W_out
    CKK = C * K * K

    # ---- im2col (fused, no Python loop).  Feature dim is channel-major
    # (C, kh, kw), matching the weight's (C, K, K) flattening.
    patches = jax.lax.conv_general_dilated_patches(
        x,
        filter_shape=(K, K),
        window_strides=(stride, stride),
        padding=((padding, padding), (padding, padding)),
        dimension_numbers=("NCHW", "OIHW", "NCHW"),
    )                                                           # (B, CKK, Ho, Wo)
    patches = (patches.reshape(B, CKK, P).transpose(2, 0, 1)
               .astype(jnp.bfloat16))                           # (P, B, CKK) bf16

    # ---- per-position weights: (P, CKK, O), bf16 (no padding copies).
    w_p = (jnp.transpose(weight, (1, 2, 3, 4, 5, 0))
           .reshape(P, CKK, O).astype(jnp.bfloat16))

    has_bias = bias is not None
    if has_bias:
        b_p = jnp.transpose(bias, (1, 2, 0)).reshape(P, O).astype(jnp.float32)

    # ---- grid / tile sizing from tiled-VMEM footprint (double-buffered).
    vmem_cap = _vmem_capacity_bytes()
    block_budget = int(vmem_cap * 0.30)
    vmem_limit = int(vmem_cap * 0.70)
    per_pos = (_round_up(B, 16) * _round_up(CKK, 128) * 2       # patches bf16
               + _round_up(CKK, 16) * _round_up(O, 128) * 2     # weights bf16
               + _round_up(B, 8) * _round_up(O, 128) * 4)       # output  f32
    if has_bias:
        per_pos += _round_up(O, 128) * 4                        # bias f32 (amortized)
    tp_cap = max(8, (block_budget // (2 * per_pos)) // 8 * 8)
    want_blocks = 2 if P >= 16 else 1     # keep both v7x TensorCores busy
    n_blocks = max(want_blocks, pl.cdiv(P, tp_cap))
    TP = _round_up(pl.cdiv(P, n_blocks), 8)
    n_blocks = pl.cdiv(P, TP)
    P_pad = n_blocks * TP
    if P_pad != P:
        patches = jnp.pad(patches, ((0, P_pad - P), (0, 0), (0, 0)))
        w_p = jnp.pad(w_p, ((0, P_pad - P), (0, 0), (0, 0)))
        if has_bias:
            b_p = jnp.pad(b_p, ((0, P_pad - P), (0, 0)))

    in_specs = [
        pl.BlockSpec((TP, B, CKK), lambda p: (p, 0, 0)),
        pl.BlockSpec((TP, CKK, O), lambda p: (p, 0, 0)),
    ]
    args = [patches, w_p]
    kernel = _local2d_kernel
    if has_bias:
        in_specs.append(pl.BlockSpec((TP, O), lambda p: (p, 0)))
        args.append(b_p)
        kernel = _local2d_bias_kernel

    flops = 2 * P_pad * B * CKK * O
    bytes_accessed = (patches.size * 2 + w_p.size * 2 + P_pad * B * O * 4
                      + (b_p.size * 4 if has_bias else 0))

    out_pbo = pl.pallas_call(
        kernel,
        out_shape=jax.ShapeDtypeStruct((P_pad, B, O), jnp.float32),
        grid=(n_blocks,),
        in_specs=in_specs,
        out_specs=pl.BlockSpec((TP, B, O), lambda p: (p, 0, 0)),
        compiler_params=pltpu.CompilerParams(
            dimension_semantics=("parallel",),
            vmem_limit_bytes=vmem_limit,
        ),
        cost_estimate=pl.CostEstimate(
            flops=flops, transcendentals=0, bytes_accessed=bytes_accessed),
    )(*args)

    out = out_pbo[:P]                                             # (P, B, O)
    return out.reshape(H_out, W_out, B, O).transpose(2, 3, 0, 1)  # (B, O, Ho, Wo)


def local2d_reference(x, weight, bias=None, stride=1, padding=0):
    """Pure-JAX transcription of lc_forward (independent of the kernel path)."""
    O, H_out, W_out, _, K, _ = weight.shape
    xp = (jnp.pad(x, ((0, 0), (0, 0), (padding, padding), (padding, padding)))
          if padding > 0 else x)
    ii = (jnp.arange(H_out) * stride)[:, None] + jnp.arange(K)[None, :]   # (Ho, K)
    jj = (jnp.arange(W_out) * stride)[:, None] + jnp.arange(K)[None, :]   # (Wo, K)
    win = xp[:, :, ii[:, None, :, None], jj[None, :, None, :]]            # (B,C,Ho,Wo,K,K)
    out = jnp.einsum("omnckl,bcmnkl->bomn", weight, win)
    if bias is not None:
        out = out + bias[None]
    return out.astype(jnp.float32)


if __name__ == "__main__":
    # Module config (matches Local2d.__init__)
    B, C_in, H_in, W_in = 2, 4, 16, 16
    O, K, stride, padding = 4, 3, 1, 1
    H_out = (H_in + 2 * padding - K) // stride + 1
    W_out = (W_in + 2 * padding - K) // stride + 1

    key = jax.random.PRNGKey(0)
    kx, kw, kb = jax.random.split(key, 3)
    x = jax.random.normal(kx, (B, C_in, H_in, W_in), dtype=jnp.float32)

    fan_in = C_in * K * K
    weight = (jax.random.normal(kw, (O, H_out, W_out, C_in, K, K), dtype=jnp.float32)
              / jnp.sqrt(float(fan_in)))
    # Non-zero bias so the in-kernel bias add is actually exercised.
    bias = 0.1 * jax.random.normal(kb, (O, H_out, W_out), dtype=jnp.float32)

    out = jax.block_until_ready(
        local2d_forward(x, weight, bias, stride=stride, padding=padding))
    ref = local2d_reference(x, weight, bias, stride=stride, padding=padding)
    assert out.shape == (B, O, H_out, W_out), out.shape
    # bf16 inputs with f32 accumulation -> loosen tolerance vs f32 reference.
    assert jnp.allclose(out, ref, atol=5e-2, rtol=5e-2), "mismatch vs reference (bias)"

    out_nb = jax.block_until_ready(
        local2d_forward(x, weight, None, stride=stride, padding=padding))
    ref_nb = local2d_reference(x, weight, None, stride=stride, padding=padding)
    assert jnp.allclose(out_nb, ref_nb, atol=5e-2, rtol=5e-2), "mismatch vs reference (no bias)"

    print("KERNEL_OK")
</pallas_src>

<mosaic_0001>
module attributes {stable_mosaic.version = 11 : i64} {
  func.func @_local2d_bias_kernel(%arg0: i32, %arg1: memref<128x2x36xbf16, #tpu.memory_space<vmem>>, %arg2: memref<128x36x4xbf16, #tpu.memory_space<vmem>>, %arg3: memref<128x4xf32, #tpu.memory_space<vmem>>, %arg4: memref<128x2x4xf32, #tpu.memory_space<vmem>>) attributes {dimension_semantics = [#tpu.dimension_semantics<parallel>], iteration_bounds = array<i64: 2>, scalar_prefetch = 0 : i64, scratch_operands = 0 : i64, tpu.core_type = #tpu.core_type<tc>, window_params = [{transform_indices = @transform_0, window_bounds = array<i64: 128, 2, 36>}, {transform_indices = @transform_1, window_bounds = array<i64: 128, 36, 4>}, {transform_indices = @transform_2, window_bounds = array<i64: 128, 4>}, {transform_indices = @transform_3, window_bounds = array<i64: 128, 2, 4>}]} {
    %c0 = arith.constant 0 : index
    %c0_0 = arith.constant 0 : index
    %c0_1 = arith.constant 0 : index
    %0 = vector.load %arg1[%c0, %c0_0, %c0_1] : memref<128x2x36xbf16, #tpu.memory_space<vmem>>, vector<128x2x36xbf16>
    %c0_2 = arith.constant 0 : index
    %c0_3 = arith.constant 0 : index
    %c0_4 = arith.constant 0 : index
    %1 = vector.load %arg2[%c0_2, %c0_3, %c0_4] : memref<128x36x4xbf16, #tpu.memory_space<vmem>>, vector<128x36x4xbf16>
    "tpu.trace_start"() <{level = 10 : i32, message = "pbc,pco->pbo"}> : () -> ()
    %cst = arith.constant dense<0.000000e+00> : vector<128x2x4xf32>
    %2 = tpu.matmul %0, %1, %cst {dimension_numbers = #tpu.dot_dimension_numbers<[2], [1], [1], [2], [0, 0, 0, 1, 1, 2], [0], [0]>} : vector<128x2x36xbf16>, vector<128x36x4xbf16>, vector<128x2x4xf32> -> vector<128x2x4xf32>
    "tpu.trace_stop"() : () -> ()
    %c0_5 = arith.constant 0 : index
    %c0_6 = arith.constant 0 : index
    %3 = vector.load %arg3[%c0_5, %c0_6] : memref<128x4xf32, #tpu.memory_space<vmem>>, vector<128x4xf32>
    %4 = vector.shape_cast %3 : vector<128x4xf32> to vector<128x1x4xf32>
    %5 = vector.broadcast %4 : vector<128x1x4xf32> to vector<128x2x4xf32>
    %6 = arith.addf %2, %5 : vector<128x2x4xf32>
    %c0_7 = arith.constant 0 : index
    %c0_8 = arith.constant 0 : index
    %c0_9 = arith.constant 0 : index
    %7 = vector.load %arg4[%c0_7, %c0_8, %c0_9] : memref<128x2x4xf32, #tpu.memory_space<vmem>>, vector<128x2x4xf32>
    tpu.vector_store %arg4[%c0_7, %c0_8, %c0_9], %6 {strides = array<i32>} : memref<128x2x4xf32, #tpu.memory_space<vmem>>, vector<128x2x4xf32>,
    return
  }
  func.func @transform_0(%arg0: i32) -> (i32, i32, i32) {
    %c0_i32 = arith.constant 0 : i32
    %c0_i32_0 = arith.constant 0 : i32
    %c0_i32_1 = arith.constant 0 : i32
    return %arg0, %c0_i32, %c0_i32_0 : i32, i32, i32
  }
  func.func @transform_1(%arg0: i32) -> (i32, i32, i32) {
    %c0_i32 = arith.constant 0 : i32
    %c0_i32_0 = arith.constant 0 : i32
    %c0_i32_1 = arith.constant 0 : i32
    return %arg0, %c0_i32, %c0_i32_0 : i32, i32, i32
  }
  func.func @transform_2(%arg0: i32) -> (i32, i32) {
    %c0_i32 = arith.constant 0 : i32
    %c0_i32_0 = arith.constant 0 : i32
    return %arg0, %c0_i32 : i32, i32
  }
  func.func @transform_3(%arg0: i32) -> (i32, i32, i32) {
    %c0_i32 = arith.constant 0 : i32
    %c0_i32_0 = arith.constant 0 : i32
    %c0_i32_1 = arith.constant 0 : i32
    return %arg0, %c0_i32, %c0_i32_0 : i32, i32, i32
  }
}

</mosaic_0001>

<llo_original>
// kernel: tpu_custom_call.1
$region0: #{tpu_custom_call.1}
  #allocation0 [shape = 'u32[]', space=smem, size = 0x4, offset = 0x4, fixed_abs, tag = 'smem constant byte address 0x4 - core index']
  #allocation1 [shape = 'u32[144,128]{1,0:T(1,128)}', space=vmem, size = 0x12000, scoped, tag = 'internal scratch']
  %s0 = inlined_call_operand.vmem [shape: bf16[256,2,36], index: 0, kind: input, shape index: {}]
  %s1 = inlined_call_operand.vmem [shape: bf16[256,36,4], index: 1, kind: input, shape index: {}]
  %s2 = inlined_call_operand.vmem [shape: f32[256,4], index: 2, kind: input, shape index: {}]
  %s3 = inlined_call_operand.vmem [shape: f32[256,2,4], index: 3, kind: output, shape index: {}]
  %s4 = sld [smem:[#allocation0]]
  $region45: #{tpu_custom_call.1} parent=0
    _
  %s6 = ssub.s32 1, %s4
  %s7 = scalar_select 0, %s6, %s4
  loop: start=0, step=1, limit=4
  $region2: #{tpu_custom_call.1} parent=0 // loop_pre_header
    _
  $region3: #{tpu_custom_call.1} parent=0 // loop_header
    %s9 = sphi 0, %s13
    %p10 = scmp.ge.s32.totalorder %s9, 4
    %s19 = sphi 0, %s21
    %s22 = sphi 0, %s19
    %s23 = sphi 0, %s22
    %s39 = sphi 0, %s23
    %s45 = sphi 0, %s47
    %s48 = sphi 0, %s45
    %s49 = sphi 0, %s48
    %s65 = sphi 0, %s49
    %s71 = sphi 0, %s73
    %s74 = sphi 0, %s71
    %s75 = sphi 0, %s74
    %s91 = sphi 0, %s75
    %s97 = sphi 0, %s99
    %s100 = sphi 0, %s97
    %s101 = sphi 0, %s100
    %s117 = sphi 0, %s101
  $region4: #{tpu_custom_call.1} parent=0 // loop_header_branch
    %12 = sbr.rel (%p10) target = $region8
  $region5: #{tpu_custom_call.1} parent=0 // loop_body
    %s14 = ssub.s32 %s9, 1
    %s15 = ssub.s32 %s9, 2
    %s16 = sadd.s32 %s9, 1
    %s17 = ssub.s32 %s9, %s16
    %p18 = scmp.eq.s32.totalorder %s17, 0
    %s20 = sadd.s32 %s19, 1
    %s21 = scalar_select %p18, %s19, %s20
    %p24 = pneg %p18
    %p25 = scmp.eq.s32.totalorder %s9, 1
    %p26 = por %p24, %p25
    %p27 = scmp.ne.s32.totalorder %s19, %s22
    %p28 = scmp.eq.s32.totalorder %s9, 0
    %p29 = por %p27, %p28
    %p30 = scmp.ne.s32.totalorder %s19, %s22
    %p31 = scmp.eq.s32.totalorder %s14, 1
    %p32 = por %p30, %p31
    %p33 = scmp.ne.s32.totalorder %s22, %s23
    %p34 = scmp.eq.s32.totalorder %s14, 0
    %p35 = por %p33, %p34
    %p36 = scmp.ne.s32.totalorder %s22, %s23
    %p37 = scmp.eq.s32.totalorder %s15, 1
    %p38 = por %p36, %p37
    %p40 = scmp.ne.s32.totalorder %s23, %s39
    %p41 = scmp.eq.s32.totalorder %s15, 0
    %p42 = por %p40, %p41
    %s43 = ssub.s32 %s9, %s16
    %p44 = scmp.eq.s32.totalorder %s43, 0
    %s46 = sadd.s32 %s45, 1
    %s47 = scalar_select %p44, %s45, %s46
    %p50 = pneg %p44
    %p51 = scmp.eq.s32.totalorder %s9, 1
    %p52 = por %p50, %p51
    %p53 = scmp.ne.s32.totalorder %s45, %s48
    %p54 = scmp.eq.s32.totalorder %s9, 0
    %p55 = por %p53, %p54
    %p56 = scmp.ne.s32.totalorder %s45, %s48
    %p57 = scmp.eq.s32.totalorder %s14, 1
    %p58 = por %p56, %p57
    %p59 = scmp.ne.s32.totalorder %s48, %s49
    %p60 = scmp.eq.s32.totalorder %s14, 0
    %p61 = por %p59, %p60
    %p62 = scmp.ne.s32.totalorder %s48, %s49
    %p63 = scmp.eq.s32.totalorder %s15, 1
    %p64 = por %p62, %p63
    %p66 = scmp.ne.s32.totalorder %s49, %s65
    %p67 = scmp.eq.s32.totalorder %s15, 0
    %p68 = por %p66, %p67
    %s69 = ssub.s32 %s9, %s16
    %p70 = scmp.eq.s32.totalorder %s69, 0
    %s72 = sadd.s32 %s71, 1
    %s73 = scalar_select %p70, %s71, %s72
    %p76 = pneg %p70
    %p77 = scmp.eq.s32.totalorder %s9, 1
    %p78 = por %p76, %p77
    %p79 = scmp.ne.s32.totalorder %s71, %s74
    %p80 = scmp.eq.s32.totalorder %s9, 0
    %p81 = por %p79, %p80
    %p82 = scmp.ne.s32.totalorder %s71, %s74
    %p83 = scmp.eq.s32.totalorder %s14, 1
    %p84 = por %p82, %p83
    %p85 = scmp.ne.s32.totalorder %s74, %s75
    %p86 = scmp.eq.s32.totalorder %s14, 0
    %p87 = por %p85, %p86
    %p88 = scmp.ne.s32.totalorder %s74, %s75
    %p89 = scmp.eq.s32.totalorder %s15, 1
    %p90 = por %p88, %p89
    %p92 = scmp.ne.s32.totalorder %s75, %s91
    %p93 = scmp.eq.s32.totalorder %s15, 0
    %p94 = por %p92, %p93
    %s95 = ssub.s32 %s9, %s16
    %p96 = scmp.eq.s32.totalorder %s95, 0
    %s98 = sadd.s32 %s97, 1
    %s99 = scalar_select %p96, %s97, %s98
    %p102 = pneg %p96
    %p103 = scmp.eq.s32.totalorder %s9, 1
    %p104 = por %p102, %p103
    %p105 = scmp.ne.s32.totalorder %s97, %s100
    %p106 = scmp.eq.s32.totalorder %s9, 0
    %p107 = por %p105, %p106
    %p108 = scmp.ne.s32.totalorder %s97, %s100
    %p109 = scmp.eq.s32.totalorder %s14, 1
    %p110 = por %p108, %p109
    %p111 = scmp.ne.s32.totalorder %s100, %s101
    %p112 = scmp.eq.s32.totalorder %s14, 0
    %p113 = por %p111, %p112
    %p114 = scmp.ne.s32.totalorder %s100, %s101
    %p115 = scmp.eq.s32.totalorder %s15, 1
    %p116 = por %p114, %p115
    %p118 = scmp.ne.s32.totalorder %s101, %s117
    %p119 = scmp.eq.s32.totalorder %s15, 0
    %p120 = por %p118, %p119
    %p121 = scmp.le.s32.totalorder 1, %s9
    %p122 = scmp.lt.s32.totalorder %s9, 3
    %p123 = pnand %p121, %p122
    %p124 = pneg %p123
    // Predicated region
    $region9: #{tpu_custom_call.1} parent=5 // pred_check
      _
    $region10: #{tpu_custom_call.1} parent=5 // pred_check_branch
      %126 = sbr.rel (%p123) target = $region12
    $region11: #{tpu_custom_call.1} parent=5 // pred_region
      %s127 = ssub.s32 %s9, 1
    $region12: #{tpu_custom_call.1} parent=5 // pred_fallthru
      _
    %p128 = scmp.lt.s32.totalorder %s9, 2
    // Predicated region
    $region13: #{tpu_custom_call.1} parent=5 // pred_check
      %p129 = pneg %p128
    $region14: #{tpu_custom_call.1} parent=5 // pred_check_branch
      %131 = sbr.rel (%p129) target = $region16
    $region15: #{tpu_custom_call.1} parent=5 // pred_region
      // Predicated region
      $region17: #{tpu_custom_call.1} parent=15 // pred_check
        %p132 = pneg %p29
      $region18: #{tpu_custom_call.1} parent=15 // pred_check_branch
        %134 = sbr.rel (%p132) target = $region20
      $region19: #{tpu_custom_call.1} parent=15 // pred_region
        %s135 = smul.u32 128, %s9
        %p136 = scmp.lt.s32.totalorder %s135, 255
        %s137 = scalar_select %p136, %s135, 255
        %s138 = scalar_lea.vmem %s0, %s137
        %s139 = smul.u32 128, %s9
      $region20: #{tpu_custom_call.1} parent=15 // pred_fallthru
        _
      // Predicated region
      $region21: #{tpu_custom_call.1} parent=15 // pred_check
        %p140 = pneg %p55
      $region22: #{tpu_custom_call.1} parent=15 // pred_check_branch
        %142 = sbr.rel (%p140) target = $region24
      $region23: #{tpu_custom_call.1} parent=15 // pred_region
        %s143 = smul.u32 128, %s9
        %p144 = scmp.lt.s32.totalorder %s143, 255
        %s145 = scalar_select %p144, %s143, 255
        %s146 = smul.addr %s145, 5
        %s147 = smul.addr %s146, 4
        %s148 = scalar_lea.vmem %s1, %s147
        %s149 = smul.u32 128, %s9
      $region24: #{tpu_custom_call.1} parent=15 // pred_fallthru
        _
      // Predicated region
      $region25: #{tpu_custom_call.1} parent=15 // pred_check
        %p150 = pneg %p81
      $region26: #{tpu_custom_call.1} parent=15 // pred_check_branch
        %152 = sbr.rel (%p150) target = $region28
      $region27: #{tpu_custom_call.1} parent=15 // pred_region
        %s153 = smul.u32 16, %s9
        %p154 = scmp.lt.s32.totalorder %s153, 31
        %s155 = scalar_select %p154, %s153, 31
        %s156 = smul.addr %s155, 8
        %s157 = scalar_lea.vmem %s2, %s156
        %s158 = smul.u32 16, %s9
      $region28: #{tpu_custom_call.1} parent=15 // pred_fallthru
        _
    $region16: #{tpu_custom_call.1} parent=5 // pred_fallthru
      _
    %p159 = scmp.le.s32.totalorder 1, %s9
    %p160 = scmp.lt.s32.totalorder %s9, 3
    %p161 = pnand %p159, %p160
    %p162 = pneg %p161
    // Predicated region
    $region29: #{tpu_custom_call.1} parent=5 // pred_check
      _
    $region30: #{tpu_custom_call.1} parent=5 // pred_check_branch
      %164 = sbr.rel (%p161) target = $region32
    $region31: #{tpu_custom_call.1} parent=5 // pred_region
      %s165 = ssub.s32 %s9, 1
      %s166 = smul.u32 128, %s14
      %p167 = scmp.lt.s32.totalorder %s166, 255
      %s168 = scalar_select %p167, %s166, 255
      %s169 = scalar_lea.vmem %s0, %s168
      %p170 = pneg %p35
      %p171 = pneg %p32
      %s172 = smul.u32 128, %s14
      %p173 = scmp.lt.s32.totalorder %s172, 255
      %s174 = scalar_select %p173, %s172, 255
      %s175 = smul.addr %s174, 5
      %s176 = smul.addr %s175, 4
      %s177 = scalar_lea.vmem %s1, %s176
      %p178 = pneg %p61
      %p179 = pneg %p58
      %s180 = smul.u32 16, %s14
      %p181 = scmp.lt.s32.totalorder %s180, 31
      %s182 = scalar_select %p181, %s180, 31
      %s183 = smul.addr %s182, 8
      %s184 = scalar_lea.vmem %s2, %s183
      %p185 = pneg %p87
      %p186 = pneg %p84
      %p187 = pneg %p113
      %p188 = pneg %p110
      %s189 = smul.u32 128, %s14
      %p190 = scmp.lt.s32.totalorder %s189, 255
      %s191 = scalar_select %p190, %s189, 255
      %s192 = smul.addr %s191, 2
      %s193 = scalar_lea.vmem %s3, %s192
      %s194 = smul.u32 128, %s14
      %p195 = scmp.lt.s32.totalorder %s194, 255
      %s196 = scalar_select %p195, %s194, 255
      %s197 = scalar_lea.vmem %s0, %s196
      %s198 = smul.u32 128, %s14
      %s199 = smul.u32 128, %s14
      %p200 = scmp.lt.s32.totalorder %s199, 255
      %s201 = scalar_select %p200, %s199, 255
      %s202 = smul.addr %s201, 5
      %s203 = smul.addr %s202, 4
      %s204 = scalar_lea.vmem %s1, %s203
      %s205 = smul.u32 128, %s14
      %s206 = smul.u32 16, %s14
      %p207 = scmp.lt.s32.totalorder %s206, 31
      %s208 = scalar_select %p207, %s206, 31
      %s209 = smul.addr %s208, 8
      %s210 = scalar_lea.vmem %s2, %s209
      %s211 = smul.u32 16, %s14
      %s212 = smul.u32 128, %s14
      %p213 = scmp.lt.s32.totalorder %s212, 255
      %s214 = scalar_select %p213, %s212, 255
      %s215 = smul.addr %s214, 2
      %s216 = scalar_lea.vmem %s3, %s215
      %s217 = smul.u32 128, %s14
      %v219 = vld [vmem:[%s197] sm:$0x1]
      %v220 = vld [vmem:[%s197 + $0x1] sm:$0x1]
      %v221 = vld [vmem:[%s197 + $0x2] sm:$0x1]
      %v222 = vld [vmem:[%s197 + $0x3] sm:$0x1]
      %v223 = vld [vmem:[%s197 + $0x4] sm:$0x1]
      %v224 = vld [vmem:[%s197 + $0x5] sm:$0x1]
      %v225 = vld [vmem:[%s197 + $0x6] sm:$0x1]
      %v226 = vld [vmem:[%s197 + $0x7] sm:$0x1]
      %v227 = vld [vmem:[%s197 + $0x8] sm:$0x1]
      %v228 = vld [vmem:[%s197 + $0x9] sm:$0x1]
      %v229 = vld [vmem:[%s197 + $0xa] sm:$0x1]
      %v230 = vld [vmem:[%s197 + $0xb] sm:$0x1]
      %v231 = vld [vmem:[%s197 + $0xc] sm:$0x1]
      %v232 = vld [vmem:[%s197 + $0xd] sm:$0x1]
      %v233 = vld [vmem:[%s197 + $0xe] sm:$0x1]
      %v234 = vld [vmem:[%s197 + $0xf] sm:$0x1]
      %v235 = vld [vmem:[%s197 + $0x10] sm:$0x1]
      %v236 = vld [vmem:[%s197 + $0x11] sm:$0x1]
      %v237 = vld [vmem:[%s197 + $0x12] sm:$0x1]
      %v238 = vld [vmem:[%s197 + $0x13] sm:$0x1]
      %v239 = vld [vmem:[%s197 + $0x14] sm:$0x1]
      %v240 = vld [vmem:[%s197 + $0x15] sm:$0x1]
      %v241 = vld [vmem:[%s197 + $0x16] sm:$0x1]
      %v242 = vld [vmem:[%s197 + $0x17] sm:$0x1]
      %v243 = vld [vmem:[%s197 + $0x18] sm:$0x1]
      %v244 = vld [vmem:[%s197 + $0x19] sm:$0x1]
      %v245 = vld [vmem:[%s197 + $0x1a] sm:$0x1]
      %v246 = vld [vmem:[%s197 + $0x1b] sm:$0x1]
      %v247 = vld [vmem:[%s197 + $0x1c] sm:$0x1]
      %v248 = vld [vmem:[%s197 + $0x1d] sm:$0x1]
      %v249 = vld [vmem:[%s197 + $0x1e] sm:$0x1]
      %v250 = vld [vmem:[%s197 + $0x1f] sm:$0x1]
      %v251 = vld [vmem:[%s197 + $0x20] sm:$0x1]
      %v252 = vld [vmem:[%s197 + $0x21] sm:$0x1]
      %v253 = vld [vmem:[%s197 + $0x22] sm:$0x1]
      %v254 = vld [vmem:[%s197 + $0x23] sm:$0x1]
      %v255 = vld [vmem:[%s197 + $0x24] sm:$0x1]
      %v256 = vld [vmem:[%s197 + $0x25] sm:$0x1]
      %v257 = vld [vmem:[%s197 + $0x26] sm:$0x1]
      %v258 = vld [vmem:[%s197 + $0x27] sm:$0x1]
      %v259 = vld [vmem:[%s197 + $0x28] sm:$0x1]
      %v260 = vld [vmem:[%s197 + $0x29] sm:$0x1]
      %v261 = vld [vmem:[%s197 + $0x2a] sm:$0x1]
      %v262 = vld [vmem:[%s197 + $0x2b] sm:$0x1]
      %v263 = vld [vmem:[%s197 + $0x2c] sm:$0x1]
      %v264 = vld [vmem:[%s197 + $0x2d] sm:$0x1]
      %v265 = vld [vmem:[%s197 + $0x2e] sm:$0x1]
      %v266 = vld [vmem:[%s197 + $0x2f] sm:$0x1]
      %v267 = vld [vmem:[%s197 + $0x30] sm:$0x1]
      %v268 = vld [vmem:[%s197 + $0x31] sm:$0x1]
      %v269 = vld [vmem:[%s197 + $0x32] sm:$0x1]
      %v270 = vld [vmem:[%s197 + $0x33] sm:$0x1]
      %v271 = vld [vmem:[%s197 + $0x34] sm:$0x1]
      %v272 = vld [vmem:[%s197 + $0x35] sm:$0x1]
      %v273 = vld [vmem:[%s197 + $0x36] sm:$0x1]
      %v274 = vld [vmem:[%s197 + $0x37] sm:$0x1]
      %v275 = vld [vmem:[%s197 + $0x38] sm:$0x1]
      %v276 = vld [vmem:[%s197 + $0x39] sm:$0x1]
      %v277 = vld [vmem:[%s197 + $0x3a] sm:$0x1]
      %v278 = vld [vmem:[%s197 + $0x3b] sm:$0x1]
      %v279 = vld [vmem:[%s197 + $0x3c] sm:$0x1]
      %v280 = vld [vmem:[%s197 + $0x3d] sm:$0x1]
      %v281 = vld [vmem:[%s197 + $0x3e] sm:$0x1]
      %v282 = vld [vmem:[%s197 + $0x3f] sm:$0x1]
      %v283 = vld [vmem:[%s197 + $0x40] sm:$0x1]
      %v284 = vld [vmem:[%s197 + $0x41] sm:$0x1]
      %v285 = vld [vmem:[%s197 + $0x42] sm:$0x1]
      %v286 = vld [vmem:[%s197 + $0x43] sm:$0x1]
      %v287 = vld [vmem:[%s197 + $0x44] sm:$0x1]
      %v288 = vld [vmem:[%s197 + $0x45] sm:$0x1]
      %v289 = vld [vmem:[%s197 + $0x46] sm:$0x1]
      %v290 = vld [vmem:[%s197 + $0x47] sm:$0x1]
      %v291 = vld [vmem:[%s197 + $0x48] sm:$0x1]
      %v292 = vld [vmem:[%s197 + $0x49] sm:$0x1]
      %v293 = vld [vmem:[%s197 + $0x4a] sm:$0x1]
      %v294 = vld [vmem:[%s197 + $0x4b] sm:$0x1]
      %v295 = vld [vmem:[%s197 + $0x4c] sm:$0x1]
      %v296 = vld [vmem:[%s197 + $0x4d] sm:$0x1]
      %v297 = vld [vmem:[%s197 + $0x4e] sm:$0x1]
      %v298 = vld [vmem:[%s197 + $0x4f] sm:$0x1]
      %v299 = vld [vmem:[%s197 + $0x50] sm:$0x1]
      %v300 = vld [vmem:[%s197 + $0x51] sm:$0x1]
      %v301 = vld [vmem:[%s197 + $0x52] sm:$0x1]
      %v302 = vld [vmem:[%s197 + $0x53] sm:$0x1]
      %v303 = vld [vmem:[%s197 + $0x54] sm:$0x1]
      %v304 = vld [vmem:[%s197 + $0x55] sm:$0x1]
      %v305 = vld [vmem:[%s197 + $0x56] sm:$0x1]
      %v306 = vld [vmem:[%s197 + $0x57] sm:$0x1]
      %v307 = vld [vmem:[%s197 + $0x58] sm:$0x1]
      %v308 = vld [vmem:[%s197 + $0x59] sm:$0x1]
      %v309 = vld [vmem:[%s197 + $0x5a] sm:$0x1]
      %v310 = vld [vmem:[%s197 + $0x5b] sm:$0x1]
      %v311 = vld [vmem:[%s197 + $0x5c] sm:$0x1]
      %v312 = vld [vmem:[%s197 + $0x5d] sm:$0x1]
      %v313 = vld [vmem:[%s197 + $0x5e] sm:$0x1]
      %v314 = vld [vmem:[%s197 + $0x5f] sm:$0x1]
      %v315 = vld [vmem:[%s197 + $0x60] sm:$0x1]
      %v316 = vld [vmem:[%s197 + $0x61] sm:$0x1]
      %v317 = vld [vmem:[%s197 + $0x62] sm:$0x1]
      %v318 = vld [vmem:[%s197 + $0x63] sm:$0x1]
      %v319 = vld [vmem:[%s197 + $0x64] sm:$0x1]
      %v320 = vld [vmem:[%s197 + $0x65] sm:$0x1]
      %v321 = vld [vmem:[%s197 + $0x66] sm:$0x1]
      %v322 = vld [vmem:[%s197 + $0x67] sm:$0x1]
      %v323 = vld [vmem:[%s197 + $0x68] sm:$0x1]
      %v324 = vld [vmem:[%s197 + $0x69] sm:$0x1]
      %v325 = vld [vmem:[%s197 + $0x6a] sm:$0x1]
      %v326 = vld [vmem:[%s197 + $0x6b] sm:$0x1]
      %v327 = vld [vmem:[%s197 + $0x6c] sm:$0x1]
      %v328 = vld [vmem:[%s197 + $0x6d] sm:$0x1]
      %v329 = vld [vmem:[%s197 + $0x6e] sm:$0x1]
      %v330 = vld [vmem:[%s197 + $0x6f] sm:$0x1]
      %v331 = vld [vmem:[%s197 + $0x70] sm:$0x1]
      %v332 = vld [vmem:[%s197 + $0x71] sm:$0x1]
      %v333 = vld [vmem:[%s197 + $0x72] sm:$0x1]
      %v334 = vld [vmem:[%s197 + $0x73] sm:$0x1]
      %v335 = vld [vmem:[%s197 + $0x74] sm:$0x1]
      %v336 = vld [vmem:[%s197 + $0x75] sm:$0x1]
      %v337 = vld [vmem:[%s197 + $0x76] sm:$0x1]
      %v338 = vld [vmem:[%s197 + $0x77] sm:$0x1]
      %v339 = vld [vmem:[%s197 + $0x78] sm:$0x1]
      %v340 = vld [vmem:[%s197 + $0x79] sm:$0x1]
      %v341 = vld [vmem:[%s197 + $0x7a] sm:$0x1]
      %v342 = vld [vmem:[%s197 + $0x7b] sm:$0x1]
      %v343 = vld [vmem:[%s197 + $0x7c] sm:$0x1]
      %v344 = vld [vmem:[%s197 + $0x7d] sm:$0x1]
      %v345 = vld [vmem:[%s197 + $0x7e] sm:$0x1]
      %v346 = vld [vmem:[%s197 + $0x7f] sm:$0x1]
      %v347 = vld [vmem:[%s204] sm:$0xf]
      %v348 = vld [vmem:[%s204 + $0x4] sm:$0xf]
      %v349 = vld [vmem:[%s204 + $0x8] sm:$0xf]
      %v350 = vld [vmem:[%s204 + $0xc] sm:$0xf]
      %v351 = vld [vmem:[%s204 + $0x10] sm:$0x3]
      %v352 = vld [vmem:[%s204 + $0x14] sm:$0xf]
      %v353 = vld [vmem:[%s204 + $0x18] sm:$0xf]
      %v354 = vld [vmem:[%s204 + $0x1c] sm:$0xf]
      %v355 = vld [vmem:[%s204 + $0x20] sm:$0xf]
      %v356 = vld [vmem:[%s204 + $0x24] sm:$0x3]
      %v357 = vld [vmem:[%s204 + $0x28] sm:$0xf]
      %v358 = vld [vmem:[%s204 + $0x2c] sm:$0xf]
      %v359 = vld [vmem:[%s204 + $0x30] sm:$0xf]
      %v360 = vld [vmem:[%s204 + $0x34] sm:$0xf]
      %v361 = vld [vmem:[%s204 + $0x38] sm:$0x3]
      %v362 = vld [vmem:[%s204 + $0x3c] sm:$0xf]
      %v363 = vld [vmem:[%s204 + $0x40] sm:$0xf]
      %v364 = vld [vmem:[%s204 + $0x44] sm:$0xf]
      %v365 = vld [vmem:[%s204 + $0x48] sm:$0xf]
      %v366 = vld [vmem:[%s204 + $0x4c] sm:$0x3]
      %v367 = vld [vmem:[%s204 + $0x50] sm:$0xf]
      %v368 = vld [vmem:[%s204 + $0x54] sm:$0xf]
      %v369 = vld [vmem:[%s204 + $0x58] sm:$0xf]
      %v370 = vld [vmem:[%s204 + $0x5c] sm:$0xf]
      %v371 = vld [vmem:[%s204 + $0x60] sm:$0x3]
      %v372 = vld [vmem:[%s204 + $0x64] sm:$0xf]
      %v373 = vld [vmem:[%s204 + $0x68] sm:$0xf]
      %v374 = vld [vmem:[%s204 + $0x6c] sm:$0xf]
      %v375 = vld [vmem:[%s204 + $0x70] sm:$0xf]
      %v376 = vld [vmem:[%s204 + $0x74] sm:$0x3]
      %v377 = vld [vmem:[%s204 + $0x78] sm:$0xf]
      %v378 = vld [vmem:[%s204 + $0x7c] sm:$0xf]
      %v379 = vld [vmem:[%s204 + $0x80] sm:$0xf]
      %v380 = vld [vmem:[%s204 + $0x84] sm:$0xf]
      %v381 = vld [vmem:[%s204 + $0x88] sm:$0x3]
      %v382 = vld [vmem:[%s204 + $0x8c] sm:$0xf]
      %v383 = vld [vmem:[%s204 + $0x90] sm:$0xf]
      %v384 = vld [vmem:[%s204 + $0x94] sm:$0xf]
      %v385 = vld [vmem:[%s204 + $0x98] sm:$0xf]
      %v386 = vld [vmem:[%s204 + $0x9c] sm:$0x3]
      %v387 = vld [vmem:[%s204 + $0xa0] sm:$0xf]
      %v388 = vld [vmem:[%s204 + $0xa4] sm:$0xf]
      %v389 = vld [vmem:[%s204 + $0xa8] sm:$0xf]
      %v390 = vld [vmem:[%s204 + $0xac] sm:$0xf]
      %v391 = vld [vmem:[%s204 + $0xb0] sm:$0x3]
      %v392 = vld [vmem:[%s204 + $0xb4] sm:$0xf]
      %v393 = vld [vmem:[%s204 + $0xb8] sm:$0xf]
      %v394 = vld [vmem:[%s204 + $0xbc] sm:$0xf]
      %v395 = vld [vmem:[%s204 + $0xc0] sm:$0xf]
      %v396 = vld [vmem:[%s204 + $0xc4] sm:$0x3]
      %v397 = vld [vmem:[%s204 + $0xc8] sm:$0xf]
      %v398 = vld [vmem:[%s204 + $0xcc] sm:$0xf]
      %v399 = vld [vmem:[%s204 + $0xd0] sm:$0xf]
      %v400 = vld [vmem:[%s204 + $0xd4] sm:$0xf]
      %v401 = vld [vmem:[%s204 + $0xd8] sm:$0x3]
      %v402 = vld [vmem:[%s204 + $0xdc] sm:$0xf]
      %v403 = vld [vmem:[%s204 + $0xe0] sm:$0xf]
      %v404 = vld [vmem:[%s204 + $0xe4] sm:$0xf]
      %v405 = vld [vmem:[%s204 + $0xe8] sm:$0xf]
      %v406 = vld [vmem:[%s204 + $0xec] sm:$0x3]
      %v407 = vld [vmem:[%s204 + $0xf0] sm:$0xf]
      %v408 = vld [vmem:[%s204 + $0xf4] sm:$0xf]
      %v409 = vld [vmem:[%s204 + $0xf8] sm:$0xf]
      %v410 = vld [vmem:[%s204 + $0xfc] sm:$0xf]
      %v411 = vld [vmem:[%s204 + $0x100] sm:$0x3]
      %v412 = vld [vmem:[%s204 + $0x104] sm:$0xf]
      %v413 = vld [vmem:[%s204 + $0x108] sm:$0xf]
      %v414 = vld [vmem:[%s204 + $0x10c] sm:$0xf]
      %v415 = vld [vmem:[%s204 + $0x110] sm:$0xf]
      %v416 = vld [vmem:[%s204 + $0x114] sm:$0x3]
      %v417 = vld [vmem:[%s204 + $0x118] sm:$0xf]
      %v418 = vld [vmem:[%s204 + $0x11c] sm:$0xf]
      %v419 = vld [vmem:[%s204 + $0x120] sm:$0xf]
      %v420 = vld [vmem:[%s204 + $0x124] sm:$0xf]
      %v421 = vld [vmem:[%s204 + $0x128] sm:$0x3]
      %v422 = vld [vmem:[%s204 + $0x12c] sm:$0xf]
      %v423 = vld [vmem:[%s204 + $0x130] sm:$0xf]
      %v424 = vld [vmem:[%s204 + $0x134] sm:$0xf]
      %v425 = vld [vmem:[%s204 + $0x138] sm:$0xf]
      %v426 = vld [vmem:[%s204 + $0x13c] sm:$0x3]
      %v427 = vld [vmem:[%s204 + $0x140] sm:$0xf]
      %v428 = vld [vmem:[%s204 + $0x144] sm:$0xf]
      %v429 = vld [vmem:[%s204 + $0x148] sm:$0xf]
      %v430 = vld [vmem:[%s204 + $0x14c] sm:$0xf]
      %v431 = vld [vmem:[%s204 + $0x150] sm:$0x3]
      %v432 = vld [vmem:[%s204 + $0x154] sm:$0xf]
      %v433 = vld [vmem:[%s204 + $0x158] sm:$0xf]
      %v434 = vld [vmem:[%s204 + $0x15c] sm:$0xf]
      %v435 = vld [vmem:[%s204 + $0x160] sm:$0xf]
      %v436 = vld [vmem:[%s204 + $0x164] sm:$0x3]
      %v437 = vld [vmem:[%s204 + $0x168] sm:$0xf]
      %v438 = vld [vmem:[%s204 + $0x16c] sm:$0xf]
      %v439 = vld [vmem:[%s204 + $0x170] sm:$0xf]
      %v440 = vld [vmem:[%s204 + $0x174] sm:$0xf]
      %v441 = vld [vmem:[%s204 + $0x178] sm:$0x3]
      %v442 = vld [vmem:[%s204 + $0x17c] sm:$0xf]
      %v443 = vld [vmem:[%s204 + $0x180] sm:$0xf]
      %v444 = vld [vmem:[%s204 + $0x184] sm:$0xf]
      %v445 = vld [vmem:[%s204 + $0x188] sm:$0xf]
      %v446 = vld [vmem:[%s204 + $0x18c] sm:$0x3]
      %v447 = vld [vmem:[%s204 + $0x190] sm:$0xf]
      %v448 = vld [vmem:[%s204 + $0x194] sm:$0xf]
      %v449 = vld [vmem:[%s204 + $0x198] sm:$0xf]
      %v450 = vld [vmem:[%s204 + $0x19c] sm:$0xf]
      %v451 = vld [vmem:[%s204 + $0x1a0] sm:$0x3]
      %v452 = vld [vmem:[%s204 + $0x1a4] sm:$0xf]
      %v453 = vld [vmem:[%s204 + $0x1a8] sm:$0xf]
      %v454 = vld [vmem:[%s204 + $0x1ac] sm:$0xf]
      %v455 = vld [vmem:[%s204 + $0x1b0] sm:$0xf]
      %v456 = vld [vmem:[%s204 + $0x1b4] sm:$0x3]
      %v457 = vld [vmem:[%s204 + $0x1b8] sm:$0xf]
      %v458 = vld [vmem:[%s204 + $0x1bc] sm:$0xf]
      %v459 = vld [vmem:[%s204 + $0x1c0] sm:$0xf]
      %v460 = vld [vmem:[%s204 + $0x1c4] sm:$0xf]
      %v461 = vld [vmem:[%s204 + $0x1c8] sm:$0x3]
      %v462 = vld [vmem:[%s204 + $0x1cc] sm:$0xf]
      %v463 = vld [vmem:[%s204 + $0x1d0] sm:$0xf]
      %v464 = vld [vmem:[%s204 + $0x1d4] sm:$0xf]
      %v465 = vld [vmem:[%s204 + $0x1d8] sm:$0xf]
      %v466 = vld [vmem:[%s204 + $0x1dc] sm:$0x3]
      %v467 = vld [vmem:[%s204 + $0x1e0] sm:$0xf]
      %v468 = vld [vmem:[%s204 + $0x1e4] sm:$0xf]
      %v469 = vld [vmem:[%s204 + $0x1e8] sm:$0xf]
      %v470 = vld [vmem:[%s204 + $0x1ec] sm:$0xf]
      %v471 = vld [vmem:[%s204 + $0x1f0] sm:$0x3]
      %v472 = vld [vmem:[%s204 + $0x1f4] sm:$0xf]
      %v473 = vld [vmem:[%s204 + $0x1f8] sm:$0xf]
      %v474 = vld [vmem:[%s204 + $0x1fc] sm:$0xf]
      %v475 = vld [vmem:[%s204 + $0x200] sm:$0xf]
      %v476 = vld [vmem:[%s204 + $0x204] sm:$0x3]
      %v477 = vld [vmem:[%s204 + $0x208] sm:$0xf]
      %v478 = vld [vmem:[%s204 + $0x20c] sm:$0xf]
      %v479 = vld [vmem:[%s204 + $0x210] sm:$0xf]
      %v480 = vld [vmem:[%s204 + $0x214] sm:$0xf]
      %v481 = vld [vmem:[%s204 + $0x218] sm:$0x3]
      %v482 = vld [vmem:[%s204 + $0x21c] sm:$0xf]
      %v483 = vld [vmem:[%s204 + $0x220] sm:$0xf]
      %v484 = vld [vmem:[%s204 + $0x224] sm:$0xf]
      %v485 = vld [vmem:[%s204 + $0x228] sm:$0xf]
      %v486 = vld [vmem:[%s204 + $0x22c] sm:$0x3]
      %v487 = vld [vmem:[%s204 + $0x230] sm:$0xf]
      %v488 = vld [vmem:[%s204 + $0x234] sm:$0xf]
      %v489 = vld [vmem:[%s204 + $0x238] sm:$0xf]
      %v490 = vld [vmem:[%s204 + $0x23c] sm:$0xf]
      %v491 = vld [vmem:[%s204 + $0x240] sm:$0x3]
      %v492 = vld [vmem:[%s204 + $0x244] sm:$0xf]
      %v493 = vld [vmem:[%s204 + $0x248] sm:$0xf]
      %v494 = vld [vmem:[%s204 + $0x24c] sm:$0xf]
      %v495 = vld [vmem:[%s204 + $0x250] sm:$0xf]
      %v496 = vld [vmem:[%s204 + $0x254] sm:$0x3]
      %v497 = vld [vmem:[%s204 + $0x258] sm:$0xf]
      %v498 = vld [vmem:[%s204 + $0x25c] sm:$0xf]
      %v499 = vld [vmem:[%s204 + $0x260] sm:$0xf]
      %v500 = vld [vmem:[%s204 + $0x264] sm:$0xf]
      %v501 = vld [vmem:[%s204 + $0x268] sm:$0x3]
      %v502 = vld [vmem:[%s204 + $0x26c] sm:$0xf]
      %v503 = vld [vmem:[%s204 + $0x270] sm:$0xf]
      %v504 = vld [vmem:[%s204 + $0x274] sm:$0xf]
      %v505 = vld [vmem:[%s204 + $0x278] sm:$0xf]
      %v506 = vld [vmem:[%s204 + $0x27c] sm:$0x3]
      %v507 = vld [vmem:[%s204 + $0x280] sm:$0xf]
      %v508 = vld [vmem:[%s204 + $0x284] sm:$0xf]
      %v509 = vld [vmem:[%s204 + $0x288] sm:$0xf]
      %v510 = vld [vmem:[%s204 + $0x28c] sm:$0xf]
      %v511 = vld [vmem:[%s204 + $0x290] sm:$0x3]
      %v512 = vld [vmem:[%s204 + $0x294] sm:$0xf]
      %v513 = vld [vmem:[%s204 + $0x298] sm:$0xf]
      %v514 = vld [vmem:[%s204 + $0x29c] sm:$0xf]
      %v515 = vld [vmem:[%s204 + $0x2a0] sm:$0xf]
      %v516 = vld [vmem:[%s204 + $0x2a4] sm:$0x3]
      %v517 = vld [vmem:[%s204 + $0x2a8] sm:$0xf]
      %v518 = vld [vmem:[%s204 + $0x2ac] sm:$0xf]
      %v519 = vld [vmem:[%s204 + $0x2b0] sm:$0xf]
      %v520 = vld [vmem:[%s204 + $0x2b4] sm:$0xf]
      %v521 = vld [vmem:[%s204 + $0x2b8] sm:$0x3]
      %v522 = vld [vmem:[%s204 + $0x2bc] sm:$0xf]
      %v523 = vld [vmem:[%s204 + $0x2c0] sm:$0xf]
      %v524 = vld [vmem:[%s204 + $0x2c4] sm:$0xf]
      %v525 = vld [vmem:[%s204 + $0x2c8] sm:$0xf]
      %v526 = vld [vmem:[%s204 + $0x2cc] sm:$0x3]
      %v527 = vld [vmem:[%s204 + $0x2d0] sm:$0xf]
      %v528 = vld [vmem:[%s204 + $0x2d4] sm:$0xf]
      %v529 = vld [vmem:[%s204 + $0x2d8] sm:$0xf]
      %v530 = vld [vmem:[%s204 + $0x2dc] sm:$0xf]
      %v531 = vld [vmem:[%s204 + $0x2e0] sm:$0x3]
      %v532 = vld [vmem:[%s204 + $0x2e4] sm:$0xf]
      %v533 = vld [vmem:[%s204 + $0x2e8] sm:$0xf]
      %v534 = vld [vmem:[%s204 + $0x2ec] sm:$0xf]
      %v535 = vld [vmem:[%s204 + $0x2f0] sm:$0xf]
      %v536 = vld [vmem:[%s204 + $0x2f4] sm:$0x3]
      %v537 = vld [vmem:[%s204 + $0x2f8] sm:$0xf]
      %v538 = vld [vmem:[%s204 + $0x2fc] sm:$0xf]
      %v539 = vld [vmem:[%s204 + $0x300] sm:$0xf]
      %v540 = vld [vmem:[%s204 + $0x304] sm:$0xf]
      %v541 = vld [vmem:[%s204 + $0x308] sm:$0x3]
      %v542 = vld [vmem:[%s204 + $0x30c] sm:$0xf]
      %v543 = vld [vmem:[%s204 + $0x310] sm:$0xf]
      %v544 = vld [vmem:[%s204 + $0x314] sm:$0xf]
      %v545 = vld [vmem:[%s204 + $0x318] sm:$0xf]
      %v546 = vld [vmem:[%s204 + $0x31c] sm:$0x3]
      %v547 = vld [vmem:[%s204 + $0x320] sm:$0xf]
      %v548 = vld [vmem:[%s204 + $0x324] sm:$0xf]
      %v549 = vld [vmem:[%s204 + $0x328] sm:$0xf]
      %v550 = vld [vmem:[%s204 + $0x32c] sm:$0xf]
      %v551 = vld [vmem:[%s204 + $0x330] sm:$0x3]
      %v552 = vld [vmem:[%s204 + $0x334] sm:$0xf]
      %v553 = vld [vmem:[%s204 + $0x338] sm:$0xf]
      %v554 = vld [vmem:[%s204 + $0x33c] sm:$0xf]
      %v555 = vld [vmem:[%s204 + $0x340] sm:$0xf]
      %v556 = vld [vmem:[%s204 + $0x344] sm:$0x3]
      %v557 = vld [vmem:[%s204 + $0x348] sm:$0xf]
      %v558 = vld [vmem:[%s204 + $0x34c] sm:$0xf]
      %v559 = vld [vmem:[%s204 + $0x350] sm:$0xf]
      %v560 = vld [vmem:[%s204 + $0x354] sm:$0xf]
      %v561 = vld [vmem:[%s204 + $0x358] sm:$0x3]
      %v562 = vld [vmem:[%s204 + $0x35c] sm:$0xf]
      %v563 = vld [vmem:[%s204 + $0x360] sm:$0xf]
      %v564 = vld [vmem:[%s204 + $0x364] sm:$0xf]
      %v565 = vld [vmem:[%s204 + $0x368] sm:$0xf]
      %v566 = vld [vmem:[%s204 + $0x36c] sm:$0x3]
      %v567 = vld [vmem:[%s204 + $0x370] sm:$0xf]
      %v568 = vld [vmem:[%s204 + $0x374] sm:$0xf]
      %v569 = vld [vmem:[%s204 + $0x378] sm:$0xf]
      %v570 = vld [vmem:[%s204 + $0x37c] sm:$0xf]
      %v571 = vld [vmem:[%s204 + $0x380] sm:$0x3]
      %v572 = vld [vmem:[%s204 + $0x384] sm:$0xf]
      %v573 = vld [vmem:[%s204 + $0x388] sm:$0xf]
      %v574 = vld [vmem:[%s204 + $0x38c] sm:$0xf]
      %v575 = vld [vmem:[%s204 + $0x390] sm:$0xf]
      %v576 = vld [vmem:[%s204 + $0x394] sm:$0x3]
      %v577 = vld [vmem:[%s204 + $0x398] sm:$0xf]
      %v578 = vld [vmem:[%s204 + $0x39c] sm:$0xf]
      %v579 = vld [vmem:[%s204 + $0x3a0] sm:$0xf]
      %v580 = vld [vmem:[%s204 + $0x3a4] sm:$0xf]
      %v581 = vld [vmem:[%s204 + $0x3a8] sm:$0x3]
      %v582 = vld [vmem:[%s204 + $0x3ac] sm:$0xf]
      %v583 = vld [vmem:[%s204 + $0x3b0] sm:$0xf]
      %v584 = vld [vmem:[%s204 + $0x3b4] sm:$0xf]
      %v585 = vld [vmem:[%s204 + $0x3b8] sm:$0xf]
      %v586 = vld [vmem:[%s204 + $0x3bc] sm:$0x3]
      %v587 = vld [vmem:[%s204 + $0x3c0] sm:$0xf]
      %v588 = vld [vmem:[%s204 + $0x3c4] sm:$0xf]
      %v589 = vld [vmem:[%s204 + $0x3c8] sm:$0xf]
      %v590 = vld [vmem:[%s204 + $0x3cc] sm:$0xf]
      %v591 = vld [vmem:[%s204 + $0x3d0] sm:$0x3]
      %v592 = vld [vmem:[%s204 + $0x3d4] sm:$0xf]
      %v593 = vld [vmem:[%s204 + $0x3d8] sm:$0xf]
      %v594 = vld [vmem:[%s204 + $0x3dc] sm:$0xf]
      %v595 = vld [vmem:[%s204 + $0x3e0] sm:$0xf]
      %v596 = vld [vmem:[%s204 + $0x3e4] sm:$0x3]
      %v597 = vld [vmem:[%s204 + $0x3e8] sm:$0xf]
      %v598 = vld [vmem:[%s204 + $0x3ec] sm:$0xf]
      %v599 = vld [vmem:[%s204 + $0x3f0] sm:$0xf]
      %v600 = vld [vmem:[%s204 + $0x3f4] sm:$0xf]
      %v601 = vld [vmem:[%s204 + $0x3f8] sm:$0x3]
      %v602 = vld [vmem:[%s204 + $0x3fc] sm:$0xf]
      %v603 = vld [vmem:[%s204 + $0x400] sm:$0xf]
      %v604 = vld [vmem:[%s204 + $0x404] sm:$0xf]
      %v605 = vld [vmem:[%s204 + $0x408] sm:$0xf]
      %v606 = vld [vmem:[%s204 + $0x40c] sm:$0x3]
      %v607 = vld [vmem:[%s204 + $0x410] sm:$0xf]
      %v608 = vld [vmem:[%s204 + $0x414] sm:$0xf]
      %v609 = vld [vmem:[%s204 + $0x418] sm:$0xf]
      %v610 = vld [vmem:[%s204 + $0x41c] sm:$0xf]
      %v611 = vld [vmem:[%s204 + $0x420] sm:$0x3]
      %v612 = vld [vmem:[%s204 + $0x424] sm:$0xf]
      %v613 = vld [vmem:[%s204 + $0x428] sm:$0xf]
      %v614 = vld [vmem:[%s204 + $0x42c] sm:$0xf]
      %v615 = vld [vmem:[%s204 + $0x430] sm:$0xf]
      %v616 = vld [vmem:[%s204 + $0x434] sm:$0x3]
      %v617 = vld [vmem:[%s204 + $0x438] sm:$0xf]
      %v618 = vld [vmem:[%s204 + $0x43c] sm:$0xf]
      %v619 = vld [vmem:[%s204 + $0x440] sm:$0xf]
      %v620 = vld [vmem:[%s204 + $0x444] sm:$0xf]
      %v621 = vld [vmem:[%s204 + $0x448] sm:$0x3]
      %v622 = vld [vmem:[%s204 + $0x44c] sm:$0xf]
      %v623 = vld [vmem:[%s204 + $0x450] sm:$0xf]
      %v624 = vld [vmem:[%s204 + $0x454] sm:$0xf]
      %v625 = vld [vmem:[%s204 + $0x458] sm:$0xf]
      %v626 = vld [vmem:[%s204 + $0x45c] sm:$0x3]
      %v627 = vld [vmem:[%s204 + $0x460] sm:$0xf]
      %v628 = vld [vmem:[%s204 + $0x464] sm:$0xf]
      %v629 = vld [vmem:[%s204 + $0x468] sm:$0xf]
      %v630 = vld [vmem:[%s204 + $0x46c] sm:$0xf]
      %v631 = vld [vmem:[%s204 + $0x470] sm:$0x3]
      %v632 = vld [vmem:[%s204 + $0x474] sm:$0xf]
      %v633 = vld [vmem:[%s204 + $0x478] sm:$0xf]
      %v634 = vld [vmem:[%s204 + $0x47c] sm:$0xf]
      %v635 = vld [vmem:[%s204 + $0x480] sm:$0xf]
      %v636 = vld [vmem:[%s204 + $0x484] sm:$0x3]
      %v637 = vld [vmem:[%s204 + $0x488] sm:$0xf]
      %v638 = vld [vmem:[%s204 + $0x48c] sm:$0xf]
      %v639 = vld [vmem:[%s204 + $0x490] sm:$0xf]
      %v640 = vld [vmem:[%s204 + $0x494] sm:$0xf]
      %v641 = vld [vmem:[%s204 + $0x498] sm:$0x3]
      %v642 = vld [vmem:[%s204 + $0x49c] sm:$0xf]
      %v643 = vld [vmem:[%s204 + $0x4a0] sm:$0xf]
      %v644 = vld [vmem:[%s204 + $0x4a4] sm:$0xf]
      %v645 = vld [vmem:[%s204 + $0x4a8] sm:$0xf]
      %v646 = vld [vmem:[%s204 + $0x4ac] sm:$0x3]
      %v647 = vld [vmem:[%s204 + $0x4b0] sm:$0xf]
      %v648 = vld [vmem:[%s204 + $0x4b4] sm:$0xf]
      %v649 = vld [vmem:[%s204 + $0x4b8] sm:$0xf]
      %v650 = vld [vmem:[%s204 + $0x4bc] sm:$0xf]
      %v651 = vld [vmem:[%s204 + $0x4c0] sm:$0x3]
      %v652 = vld [vmem:[%s204 + $0x4c4] sm:$0xf]
      %v653 = vld [vmem:[%s204 + $0x4c8] sm:$0xf]
      %v654 = vld [vmem:[%s204 + $0x4cc] sm:$0xf]
      %v655 = vld [vmem:[%s204 + $0x4d0] sm:$0xf]
      %v656 = vld [vmem:[%s204 + $0x4d4] sm:$0x3]
      %v657 = vld [vmem:[%s204 + $0x4d8] sm:$0xf]
      %v658 = vld [vmem:[%s204 + $0x4dc] sm:$0xf]
      %v659 = vld [vmem:[%s204 + $0x4e0] sm:$0xf]
      %v660 = vld [vmem:[%s204 + $0x4e4] sm:$0xf]
      %v661 = vld [vmem:[%s204 + $0x4e8] sm:$0x3]
      %v662 = vld [vmem:[%s204 + $0x4ec] sm:$0xf]
      %v663 = vld [vmem:[%s204 + $0x4f0] sm:$0xf]
      %v664 = vld [vmem:[%s204 + $0x4f4] sm:$0xf]
      %v665 = vld [vmem:[%s204 + $0x4f8] sm:$0xf]
      %v666 = vld [vmem:[%s204 + $0x4fc] sm:$0x3]
      %v667 = vld [vmem:[%s204 + $0x500] sm:$0xf]
      %v668 = vld [vmem:[%s204 + $0x504] sm:$0xf]
      %v669 = vld [vmem:[%s204 + $0x508] sm:$0xf]
      %v670 = vld [vmem:[%s204 + $0x50c] sm:$0xf]
      %v671 = vld [vmem:[%s204 + $0x510] sm:$0x3]
      %v672 = vld [vmem:[%s204 + $0x514] sm:$0xf]
      %v673 = vld [vmem:[%s204 + $0x518] sm:$0xf]
      %v674 = vld [vmem:[%s204 + $0x51c] sm:$0xf]
      %v675 = vld [vmem:[%s204 + $0x520] sm:$0xf]
      %v676 = vld [vmem:[%s204 + $0x524] sm:$0x3]
      %v677 = vld [vmem:[%s204 + $0x528] sm:$0xf]
      %v678 = vld [vmem:[%s204 + $0x52c] sm:$0xf]
      %v679 = vld [vmem:[%s204 + $0x530] sm:$0xf]
      %v680 = vld [vmem:[%s204 + $0x534] sm:$0xf]
      %v681 = vld [vmem:[%s204 + $0x538] sm:$0x3]
      %v682 = vld [vmem:[%s204 + $0x53c] sm:$0xf]
      %v683 = vld [vmem:[%s204 + $0x540] sm:$0xf]
      %v684 = vld [vmem:[%s204 + $0x544] sm:$0xf]
      %v685 = vld [vmem:[%s204 + $0x548] sm:$0xf]
      %v686 = vld [vmem:[%s204 + $0x54c] sm:$0x3]
      %v687 = vld [vmem:[%s204 + $0x550] sm:$0xf]
      %v688 = vld [vmem:[%s204 + $0x554] sm:$0xf]
      %v689 = vld [vmem:[%s204 + $0x558] sm:$0xf]
      %v690 = vld [vmem:[%s204 + $0x55c] sm:$0xf]
      %v691 = vld [vmem:[%s204 + $0x560] sm:$0x3]
      %v692 = vld [vmem:[%s204 + $0x564] sm:$0xf]
      %v693 = vld [vmem:[%s204 + $0x568] sm:$0xf]
      %v694 = vld [vmem:[%s204 + $0x56c] sm:$0xf]
      %v695 = vld [vmem:[%s204 + $0x570] sm:$0xf]
      %v696 = vld [vmem:[%s204 + $0x574] sm:$0x3]
      %v697 = vld [vmem:[%s204 + $0x578] sm:$0xf]
      %v698 = vld [vmem:[%s204 + $0x57c] sm:$0xf]
      %v699 = vld [vmem:[%s204 + $0x580] sm:$0xf]
      %v700 = vld [vmem:[%s204 + $0x584] sm:$0xf]
      %v701 = vld [vmem:[%s204 + $0x588] sm:$0x3]
      %v702 = vld [vmem:[%s204 + $0x58c] sm:$0xf]
      %v703 = vld [vmem:[%s204 + $0x590] sm:$0xf]
      %v704 = vld [vmem:[%s204 + $0x594] sm:$0xf]
      %v705 = vld [vmem:[%s204 + $0x598] sm:$0xf]
      %v706 = vld [vmem:[%s204 + $0x59c] sm:$0x3]
      %v707 = vld [vmem:[%s204 + $0x5a0] sm:$0xf]
      %v708 = vld [vmem:[%s204 + $0x5a4] sm:$0xf]
      %v709 = vld [vmem:[%s204 + $0x5a8] sm:$0xf]
      %v710 = vld [vmem:[%s204 + $0x5ac] sm:$0xf]
      %v711 = vld [vmem:[%s204 + $0x5b0] sm:$0x3]
      %v712 = vld [vmem:[%s204 + $0x5b4] sm:$0xf]
      %v713 = vld [vmem:[%s204 + $0x5b8] sm:$0xf]
      %v714 = vld [vmem:[%s204 + $0x5bc] sm:$0xf]
      %v715 = vld [vmem:[%s204 + $0x5c0] sm:$0xf]
      %v716 = vld [vmem:[%s204 + $0x5c4] sm:$0x3]
      %v717 = vld [vmem:[%s204 + $0x5c8] sm:$0xf]
      %v718 = vld [vmem:[%s204 + $0x5cc] sm:$0xf]
      %v719 = vld [vmem:[%s204 + $0x5d0] sm:$0xf]
      %v720 = vld [vmem:[%s204 + $0x5d4] sm:$0xf]
      %v721 = vld [vmem:[%s204 + $0x5d8] sm:$0x3]
      %v722 = vld [vmem:[%s204 + $0x5dc] sm:$0xf]
      %v723 = vld [vmem:[%s204 + $0x5e0] sm:$0xf]
      %v724 = vld [vmem:[%s204 + $0x5e4] sm:$0xf]
      %v725 = vld [vmem:[%s204 + $0x5e8] sm:$0xf]
      %v726 = vld [vmem:[%s204 + $0x5ec] sm:$0x3]
      %v727 = vld [vmem:[%s204 + $0x5f0] sm:$0xf]
      %v728 = vld [vmem:[%s204 + $0x5f4] sm:$0xf]
      %v729 = vld [vmem:[%s204 + $0x5f8] sm:$0xf]
      %v730 = vld [vmem:[%s204 + $0x5fc] sm:$0xf]
      %v731 = vld [vmem:[%s204 + $0x600] sm:$0x3]
      %v732 = vld [vmem:[%s204 + $0x604] sm:$0xf]
      %v733 = vld [vmem:[%s204 + $0x608] sm:$0xf]
      %v734 = vld [vmem:[%s204 + $0x60c] sm:$0xf]
      %v735 = vld [vmem:[%s204 + $0x610] sm:$0xf]
      %v736 = vld [vmem:[%s204 + $0x614] sm:$0x3]
      %v737 = vld [vmem:[%s204 + $0x618] sm:$0xf]
      %v738 = vld [vmem:[%s204 + $0x61c] sm:$0xf]
      %v739 = vld [vmem:[%s204 + $0x620] sm:$0xf]
      %v740 = vld [vmem:[%s204 + $0x624] sm:$0xf]
      %v741 = vld [vmem:[%s204 + $0x628] sm:$0x3]
      %v742 = vld [vmem:[%s204 + $0x62c] sm:$0xf]
      %v743 = vld [vmem:[%s204 + $0x630] sm:$0xf]
      %v744 = vld [vmem:[%s204 + $0x634] sm:$0xf]
      %v745 = vld [vmem:[%s204 + $0x638] sm:$0xf]
      %v746 = vld [vmem:[%s204 + $0x63c] sm:$0x3]
      %v747 = vld [vmem:[%s204 + $0x640] sm:$0xf]
      %v748 = vld [vmem:[%s204 + $0x644] sm:$0xf]
      %v749 = vld [vmem:[%s204 + $0x648] sm:$0xf]
      %v750 = vld [vmem:[%s204 + $0x64c] sm:$0xf]
      %v751 = vld [vmem:[%s204 + $0x650] sm:$0x3]
      %v752 = vld [vmem:[%s204 + $0x654] sm:$0xf]
      %v753 = vld [vmem:[%s204 + $0x658] sm:$0xf]
      %v754 = vld [vmem:[%s204 + $0x65c] sm:$0xf]
      %v755 = vld [vmem:[%s204 + $0x660] sm:$0xf]
      %v756 = vld [vmem:[%s204 + $0x664] sm:$0x3]
      %v757 = vld [vmem:[%s204 + $0x668] sm:$0xf]
      %v758 = vld [vmem:[%s204 + $0x66c] sm:$0xf]
      %v759 = vld [vmem:[%s204 + $0x670] sm:$0xf]
      %v760 = vld [vmem:[%s204 + $0x674] sm:$0xf]
      %v761 = vld [vmem:[%s204 + $0x678] sm:$0x3]
      %v762 = vld [vmem:[%s204 + $0x67c] sm:$0xf]
      %v763 = vld [vmem:[%s204 + $0x680] sm:$0xf]
      %v764 = vld [vmem:[%s204 + $0x684] sm:$0xf]
      %v765 = vld [vmem:[%s204 + $0x688] sm:$0xf]
      %v766 = vld [vmem:[%s204 + $0x68c] sm:$0x3]
      %v767 = vld [vmem:[%s204 + $0x690] sm:$0xf]
      %v768 = vld [vmem:[%s204 + $0x694] sm:$0xf]
      %v769 = vld [vmem:[%s204 + $0x698] sm:$0xf]
      %v770 = vld [vmem:[%s204 + $0x69c] sm:$0xf]
      %v771 = vld [vmem:[%s204 + $0x6a0] sm:$0x3]
      %v772 = vld [vmem:[%s204 + $0x6a4] sm:$0xf]
      %v773 = vld [vmem:[%s204 + $0x6a8] sm:$0xf]
      %v774 = vld [vmem:[%s204 + $0x6ac] sm:$0xf]
      %v775 = vld [vmem:[%s204 + $0x6b0] sm:$0xf]
      %v776 = vld [vmem:[%s204 + $0x6b4] sm:$0x3]
      %v777 = vld [vmem:[%s204 + $0x6b8] sm:$0xf]
      %v778 = vld [vmem:[%s204 + $0x6bc] sm:$0xf]
      %v779 = vld [vmem:[%s204 + $0x6c0] sm:$0xf]
      %v780 = vld [vmem:[%s204 + $0x6c4] sm:$0xf]
      %v781 = vld [vmem:[%s204 + $0x6c8] sm:$0x3]
      %v782 = vld [vmem:[%s204 + $0x6cc] sm:$0xf]
      %v783 = vld [vmem:[%s204 + $0x6d0] sm:$0xf]
      %v784 = vld [vmem:[%s204 + $0x6d4] sm:$0xf]
      %v785 = vld [vmem:[%s204 + $0x6d8] sm:$0xf]
      %v786 = vld [vmem:[%s204 + $0x6dc] sm:$0x3]
      %v787 = vld [vmem:[%s204 + $0x6e0] sm:$0xf]
      %v788 = vld [vmem:[%s204 + $0x6e4] sm:$0xf]
      %v789 = vld [vmem:[%s204 + $0x6e8] sm:$0xf]
      %v790 = vld [vmem:[%s204 + $0x6ec] sm:$0xf]
      %v791 = vld [vmem:[%s204 + $0x6f0] sm:$0x3]
      %v792 = vld [vmem:[%s204 + $0x6f4] sm:$0xf]
      %v793 = vld [vmem:[%s204 + $0x6f8] sm:$0xf]
      %v794 = vld [vmem:[%s204 + $0x6fc] sm:$0xf]
      %v795 = vld [vmem:[%s204 + $0x700] sm:$0xf]
      %v796 = vld [vmem:[%s204 + $0x704] sm:$0x3]
      %v797 = vld [vmem:[%s204 + $0x708] sm:$0xf]
      %v798 = vld [vmem:[%s204 + $0x70c] sm:$0xf]
      %v799 = vld [vmem:[%s204 + $0x710] sm:$0xf]
      %v800 = vld [vmem:[%s204 + $0x714] sm:$0xf]
      %v801 = vld [vmem:[%s204 + $0x718] sm:$0x3]
      %v802 = vld [vmem:[%s204 + $0x71c] sm:$0xf]
      %v803 = vld [vmem:[%s204 + $0x720] sm:$0xf]
      %v804 = vld [vmem:[%s204 + $0x724] sm:$0xf]
      %v805 = vld [vmem:[%s204 + $0x728] sm:$0xf]
      %v806 = vld [vmem:[%s204 + $0x72c] sm:$0x3]
      %v807 = vld [vmem:[%s204 + $0x730] sm:$0xf]
      %v808 = vld [vmem:[%s204 + $0x734] sm:$0xf]
      %v809 = vld [vmem:[%s204 + $0x738] sm:$0xf]
      %v810 = vld [vmem:[%s204 + $0x73c] sm:$0xf]
      %v811 = vld [vmem:[%s204 + $0x740] sm:$0x3]
      %v812 = vld [vmem:[%s204 + $0x744] sm:$0xf]
      %v813 = vld [vmem:[%s204 + $0x748] sm:$0xf]
      %v814 = vld [vmem:[%s204 + $0x74c] sm:$0xf]
      %v815 = vld [vmem:[%s204 + $0x750] sm:$0xf]
      %v816 = vld [vmem:[%s204 + $0x754] sm:$0x3]
      %v817 = vld [vmem:[%s204 + $0x758] sm:$0xf]
      %v818 = vld [vmem:[%s204 + $0x75c] sm:$0xf]
      %v819 = vld [vmem:[%s204 + $0x760] sm:$0xf]
      %v820 = vld [vmem:[%s204 + $0x764] sm:$0xf]
      %v821 = vld [vmem:[%s204 + $0x768] sm:$0x3]
      %v822 = vld [vmem:[%s204 + $0x76c] sm:$0xf]
      %v823 = vld [vmem:[%s204 + $0x770] sm:$0xf]
      %v824 = vld [vmem:[%s204 + $0x774] sm:$0xf]
      %v825 = vld [vmem:[%s204 + $0x778] sm:$0xf]
      %v826 = vld [vmem:[%s204 + $0x77c] sm:$0x3]
      %v827 = vld [vmem:[%s204 + $0x780] sm:$0xf]
      %v828 = vld [vmem:[%s204 + $0x784] sm:$0xf]
      %v829 = vld [vmem:[%s204 + $0x788] sm:$0xf]
      %v830 = vld [vmem:[%s204 + $0x78c] sm:$0xf]
      %v831 = vld [vmem:[%s204 + $0x790] sm:$0x3]
      %v832 = vld [vmem:[%s204 + $0x794] sm:$0xf]
      %v833 = vld [vmem:[%s204 + $0x798] sm:$0xf]
      %v834 = vld [vmem:[%s204 + $0x79c] sm:$0xf]
      %v835 = vld [vmem:[%s204 + $0x7a0] sm:$0xf]
      %v836 = vld [vmem:[%s204 + $0x7a4] sm:$0x3]
      %v837 = vld [vmem:[%s204 + $0x7a8] sm:$0xf]
      %v838 = vld [vmem:[%s204 + $0x7ac] sm:$0xf]
      %v839 = vld [vmem:[%s204 + $0x7b0] sm:$0xf]
      %v840 = vld [vmem:[%s204 + $0x7b4] sm:$0xf]
      %v841 = vld [vmem:[%s204 + $0x7b8] sm:$0x3]
      %v842 = vld [vmem:[%s204 + $0x7bc] sm:$0xf]
      %v843 = vld [vmem:[%s204 + $0x7c0] sm:$0xf]
      %v844 = vld [vmem:[%s204 + $0x7c4] sm:$0xf]
      %v845 = vld [vmem:[%s204 + $0x7c8] sm:$0xf]
      %v846 = vld [vmem:[%s204 + $0x7cc] sm:$0x3]
      %v847 = vld [vmem:[%s204 + $0x7d0] sm:$0xf]
      %v848 = vld [vmem:[%s204 + $0x7d4] sm:$0xf]
      %v849 = vld [vmem:[%s204 + $0x7d8] sm:$0xf]
      %v850 = vld [vmem:[%s204 + $0x7dc] sm:$0xf]
      %v851 = vld [vmem:[%s204 + $0x7e0] sm:$0x3]
      %v852 = vld [vmem:[%s204 + $0x7e4] sm:$0xf]
      %v853 = vld [vmem:[%s204 + $0x7e8] sm:$0xf]
      %v854 = vld [vmem:[%s204 + $0x7ec] sm:$0xf]
      %v855 = vld [vmem:[%s204 + $0x7f0] sm:$0xf]
      %v856 = vld [vmem:[%s204 + $0x7f4] sm:$0x3]
      %v857 = vld [vmem:[%s204 + $0x7f8] sm:$0xf]
      %v858 = vld [vmem:[%s204 + $0x7fc] sm:$0xf]
      %v859 = vld [vmem:[%s204 + $0x800] sm:$0xf]
      %v860 = vld [vmem:[%s204 + $0x804] sm:$0xf]
      %v861 = vld [vmem:[%s204 + $0x808] sm:$0x3]
      %v862 = vld [vmem:[%s204 + $0x80c] sm:$0xf]
      %v863 = vld [vmem:[%s204 + $0x810] sm:$0xf]
      %v864 = vld [vmem:[%s204 + $0x814] sm:$0xf]
      %v865 = vld [vmem:[%s204 + $0x818] sm:$0xf]
      %v866 = vld [vmem:[%s204 + $0x81c] sm:$0x3]
      %v867 = vld [vmem:[%s204 + $0x820] sm:$0xf]
      %v868 = vld [vmem:[%s204 + $0x824] sm:$0xf]
      %v869 = vld [vmem:[%s204 + $0x828] sm:$0xf]
      %v870 = vld [vmem:[%s204 + $0x82c] sm:$0xf]
      %v871 = vld [vmem:[%s204 + $0x830] sm:$0x3]
      %v872 = vld [vmem:[%s204 + $0x834] sm:$0xf]
      %v873 = vld [vmem:[%s204 + $0x838] sm:$0xf]
      %v874 = vld [vmem:[%s204 + $0x83c] sm:$0xf]
      %v875 = vld [vmem:[%s204 + $0x840] sm:$0xf]
      %v876 = vld [vmem:[%s204 + $0x844] sm:$0x3]
      %v877 = vld [vmem:[%s204 + $0x848] sm:$0xf]
      %v878 = vld [vmem:[%s204 + $0x84c] sm:$0xf]
      %v879 = vld [vmem:[%s204 + $0x850] sm:$0xf]
      %v880 = vld [vmem:[%s204 + $0x854] sm:$0xf]
      %v881 = vld [vmem:[%s204 + $0x858] sm:$0x3]
      %v882 = vld [vmem:[%s204 + $0x85c] sm:$0xf]
      %v883 = vld [vmem:[%s204 + $0x860] sm:$0xf]
      %v884 = vld [vmem:[%s204 + $0x864] sm:$0xf]
      %v885 = vld [vmem:[%s204 + $0x868] sm:$0xf]
      %v886 = vld [vmem:[%s204 + $0x86c] sm:$0x3]
      %v887 = vld [vmem:[%s204 + $0x870] sm:$0xf]
      %v888 = vld [vmem:[%s204 + $0x874] sm:$0xf]
      %v889 = vld [vmem:[%s204 + $0x878] sm:$0xf]
      %v890 = vld [vmem:[%s204 + $0x87c] sm:$0xf]
      %v891 = vld [vmem:[%s204 + $0x880] sm:$0x3]
      %v892 = vld [vmem:[%s204 + $0x884] sm:$0xf]
      %v893 = vld [vmem:[%s204 + $0x888] sm:$0xf]
      %v894 = vld [vmem:[%s204 + $0x88c] sm:$0xf]
      %v895 = vld [vmem:[%s204 + $0x890] sm:$0xf]
      %v896 = vld [vmem:[%s204 + $0x894] sm:$0x3]
      %v897 = vld [vmem:[%s204 + $0x898] sm:$0xf]
      %v898 = vld [vmem:[%s204 + $0x89c] sm:$0xf]
      %v899 = vld [vmem:[%s204 + $0x8a0] sm:$0xf]
      %v900 = vld [vmem:[%s204 + $0x8a4] sm:$0xf]
      %v901 = vld [vmem:[%s204 + $0x8a8] sm:$0x3]
      %v902 = vld [vmem:[%s204 + $0x8ac] sm:$0xf]
      %v903 = vld [vmem:[%s204 + $0x8b0] sm:$0xf]
      %v904 = vld [vmem:[%s204 + $0x8b4] sm:$0xf]
      %v905 = vld [vmem:[%s204 + $0x8b8] sm:$0xf]
      %v906 = vld [vmem:[%s204 + $0x8bc] sm:$0x3]
      %v907 = vld [vmem:[%s204 + $0x8c0] sm:$0xf]
      %v908 = vld [vmem:[%s204 + $0x8c4] sm:$0xf]
      %v909 = vld [vmem:[%s204 + $0x8c8] sm:$0xf]
      %v910 = vld [vmem:[%s204 + $0x8cc] sm:$0xf]
      %v911 = vld [vmem:[%s204 + $0x8d0] sm:$0x3]
      %v912 = vld [vmem:[%s204 + $0x8d4] sm:$0xf]
      %v913 = vld [vmem:[%s204 + $0x8d8] sm:$0xf]
      %v914 = vld [vmem:[%s204 + $0x8dc] sm:$0xf]
      %v915 = vld [vmem:[%s204 + $0x8e0] sm:$0xf]
      %v916 = vld [vmem:[%s204 + $0x8e4] sm:$0x3]
      %v917 = vld [vmem:[%s204 + $0x8e8] sm:$0xf]
      %v918 = vld [vmem:[%s204 + $0x8ec] sm:$0xf]
      %v919 = vld [vmem:[%s204 + $0x8f0] sm:$0xf]
      %v920 = vld [vmem:[%s204 + $0x8f4] sm:$0xf]
      %v921 = vld [vmem:[%s204 + $0x8f8] sm:$0x3]
      %v922 = vld [vmem:[%s204 + $0x8fc] sm:$0xf]
      %v923 = vld [vmem:[%s204 + $0x900] sm:$0xf]
      %v924 = vld [vmem:[%s204 + $0x904] sm:$0xf]
      %v925 = vld [vmem:[%s204 + $0x908] sm:$0xf]
      %v926 = vld [vmem:[%s204 + $0x90c] sm:$0x3]
      %v927 = vld [vmem:[%s204 + $0x910] sm:$0xf]
      %v928 = vld [vmem:[%s204 + $0x914] sm:$0xf]
      %v929 = vld [vmem:[%s204 + $0x918] sm:$0xf]
      %v930 = vld [vmem:[%s204 + $0x91c] sm:$0xf]
      %v931 = vld [vmem:[%s204 + $0x920] sm:$0x3]
      %v932 = vld [vmem:[%s204 + $0x924] sm:$0xf]
      %v933 = vld [vmem:[%s204 + $0x928] sm:$0xf]
      %v934 = vld [vmem:[%s204 + $0x92c] sm:$0xf]
      %v935 = vld [vmem:[%s204 + $0x930] sm:$0xf]
      %v936 = vld [vmem:[%s204 + $0x934] sm:$0x3]
      %v937 = vld [vmem:[%s204 + $0x938] sm:$0xf]
      %v938 = vld [vmem:[%s204 + $0x93c] sm:$0xf]
      %v939 = vld [vmem:[%s204 + $0x940] sm:$0xf]
      %v940 = vld [vmem:[%s204 + $0x944] sm:$0xf]
      %v941 = vld [vmem:[%s204 + $0x948] sm:$0x3]
      %v942 = vld [vmem:[%s204 + $0x94c] sm:$0xf]
      %v943 = vld [vmem:[%s204 + $0x950] sm:$0xf]
      %v944 = vld [vmem:[%s204 + $0x954] sm:$0xf]
      %v945 = vld [vmem:[%s204 + $0x958] sm:$0xf]
      %v946 = vld [vmem:[%s204 + $0x95c] sm:$0x3]
      %v947 = vld [vmem:[%s204 + $0x960] sm:$0xf]
      %v948 = vld [vmem:[%s204 + $0x964] sm:$0xf]
      %v949 = vld [vmem:[%s204 + $0x968] sm:$0xf]
      %v950 = vld [vmem:[%s204 + $0x96c] sm:$0xf]
      %v951 = vld [vmem:[%s204 + $0x970] sm:$0x3]
      %v952 = vld [vmem:[%s204 + $0x974] sm:$0xf]
      %v953 = vld [vmem:[%s204 + $0x978] sm:$0xf]
      %v954 = vld [vmem:[%s204 + $0x97c] sm:$0xf]
      %v955 = vld [vmem:[%s204 + $0x980] sm:$0xf]
      %v956 = vld [vmem:[%s204 + $0x984] sm:$0x3]
      %v957 = vld [vmem:[%s204 + $0x988] sm:$0xf]
      %v958 = vld [vmem:[%s204 + $0x98c] sm:$0xf]
      %v959 = vld [vmem:[%s204 + $0x990] sm:$0xf]
      %v960 = vld [vmem:[%s204 + $0x994] sm:$0xf]
      %v961 = vld [vmem:[%s204 + $0x998] sm:$0x3]
      %v962 = vld [vmem:[%s204 + $0x99c] sm:$0xf]
      %v963 = vld [vmem:[%s204 + $0x9a0] sm:$0xf]
      %v964 = vld [vmem:[%s204 + $0x9a4] sm:$0xf]
      %v965 = vld [vmem:[%s204 + $0x9a8] sm:$0xf]
      %v966 = vld [vmem:[%s204 + $0x9ac] sm:$0x3]
      %v967 = vld [vmem:[%s204 + $0x9b0] sm:$0xf]
      %v968 = vld [vmem:[%s204 + $0x9b4] sm:$0xf]
      %v969 = vld [vmem:[%s204 + $0x9b8] sm:$0xf]
      %v970 = vld [vmem:[%s204 + $0x9bc] sm:$0xf]
      %v971 = vld [vmem:[%s204 + $0x9c0] sm:$0x3]
      %v972 = vld [vmem:[%s204 + $0x9c4] sm:$0xf]
      %v973 = vld [vmem:[%s204 + $0x9c8] sm:$0xf]
      %v974 = vld [vmem:[%s204 + $0x9cc] sm:$0xf]
      %v975 = vld [vmem:[%s204 + $0x9d0] sm:$0xf]
      %v976 = vld [vmem:[%s204 + $0x9d4] sm:$0x3]
      %v977 = vld [vmem:[%s204 + $0x9d8] sm:$0xf]
      %v978 = vld [vmem:[%s204 + $0x9dc] sm:$0xf]
      %v979 = vld [vmem:[%s204 + $0x9e0] sm:$0xf]
      %v980 = vld [vmem:[%s204 + $0x9e4] sm:$0xf]
      %v981 = vld [vmem:[%s204 + $0x9e8] sm:$0x3]
      %v982 = vld [vmem:[%s204 + $0x9ec] sm:$0xf]
      %v983 = vld [vmem:[%s204 + $0x9f0] sm:$0xf]
      %v984 = vld [vmem:[%s204 + $0x9f4] sm:$0xf]
      %v985 = vld [vmem:[%s204 + $0x9f8] sm:$0xf]
      %v986 = vld [vmem:[%s204 + $0x9fc] sm:$0x3]
      %v987 = vld [vmem:[%s210] sm:$0xff]
      %v988 = vld [vmem:[%s210 + $0x8] sm:$0xff]
      %v989 = vld [vmem:[%s210 + $0x10] sm:$0xff]
      %v990 = vld [vmem:[%s210 + $0x18] sm:$0xff]
      %v991 = vld [vmem:[%s210 + $0x20] sm:$0xff]
      %v992 = vld [vmem:[%s210 + $0x28] sm:$0xff]
      %v993 = vld [vmem:[%s210 + $0x30] sm:$0xff]
      %v994 = vld [vmem:[%s210 + $0x38] sm:$0xff]
      %v995 = vld [vmem:[%s210 + $0x40] sm:$0xff]
      %v996 = vld [vmem:[%s210 + $0x48] sm:$0xff]
      %v997 = vld [vmem:[%s210 + $0x50] sm:$0xff]
      %v998 = vld [vmem:[%s210 + $0x58] sm:$0xff]
      %v999 = vld [vmem:[%s210 + $0x60] sm:$0xff]
      %v1000 = vld [vmem:[%s210 + $0x68] sm:$0xff]
      %v1001 = vld [vmem:[%s210 + $0x70] sm:$0xff]
      %v1002 = vld [vmem:[%s210 + $0x78] sm:$0xff]
      %v1019 = vcombine.high %v987, %v987
      %v1021 = vunpack.c.l.s4 1966171168
      %v1022 = vunpack.c.0.s8 %v1021
      %v1023 = vlaneseq
      %v1024 = vshrl.u32 %v1023, 7
      %v1025 = vsub.s32 %v1022, %v1024
      %v1026 = vrot.slane %v987, %v1025
      %v1028 = vunpack.c.l.s4 1966171168
      %v1029 = vunpack.c.0.s8 %v1028
      %v1030 = vlaneseq
      %v1031 = vshrl.u32 %v1030, 7
      %v1032 = vsub.s32 %v1029, %v1031
      %v1033 = vrot.slane %v1019, %v1032
      %v1034 = vcombine.high %v1026, %v1026
      %v1035 = vcombine.high %v1033, %v1033
      %v1037 = vunpack.c.l.s4 1966171168
      %v1038 = vunpack.c.0.s8 %v1037
      %v1039 = vlaneseq
      %v1040 = vshrl.u32 %v1039, 7
      %v1041 = vsub.s32 %v1038, %v1040
      %v1042 = vrot.slane %v1026, %v1041
      %v1044 = vunpack.c.l.s4 1966171168
      %v1045 = vunpack.c.0.s8 %v1044
      %v1046 = vlaneseq
      %v1047 = vshrl.u32 %v1046, 7
      %v1048 = vsub.s32 %v1045, %v1047
      %v1049 = vrot.slane %v1033, %v1048
      %v1051 = vunpack.c.l.s4 1966171168
      %v1052 = vunpack.c.0.s8 %v1051
      %v1053 = vlaneseq
      %v1054 = vshrl.u32 %v1053, 7
      %v1055 = vsub.s32 %v1052, %v1054
      %v1056 = vrot.slane %v1034, %v1055
      %v1058 = vunpack.c.l.s4 1966171168
      %v1059 = vunpack.c.0.s8 %v1058
      %v1060 = vlaneseq
      %v1061 = vshrl.u32 %v1060, 7
      %v1062 = vsub.s32 %v1059, %v1061
      %v1063 = vrot.slane %v1035, %v1062
      %v1064 = vcombine.high %v1042, %v1042
      %v1065 = vcombine.high %v1049, %v1049
      %v1066 = vcombine.high %v1056, %v1056
      %v1067 = vcombine.high %v1063, %v1063
      %v1068 = vcombine.high %v988, %v988
      %v1070 = vunpack.c.l.s4 1966171168
      %v1071 = vunpack.c.0.s8 %v1070
      %v1072 = vlaneseq
      %v1073 = vshrl.u32 %v1072, 7
      %v1074 = vsub.s32 %v1071, %v1073
      %v1075 = vrot.slane %v988, %v1074
      %v1077 = vunpack.c.l.s4 1966171168
      %v1078 = vunpack.c.0.s8 %v1077
      %v1079 = vlaneseq
      %v1080 = vshrl.u32 %v1079, 7
      %v1081 = vsub.s32 %v1078, %v1080
      %v1082 = vrot.slane %v1068, %v1081
      %v1083 = vcombine.high %v1075, %v1075
      %v1084 = vcombine.high %v1082, %v1082
      %v1086 = vunpack.c.l.s4 1966171168
      %v1087 = vunpack.c.0.s8 %v1086
      %v1088 = vlaneseq
      %v1089 = vshrl.u32 %v1088, 7
      %v1090 = vsub.s32 %v1087, %v1089
      %v1091 = vrot.slane %v1075, %v1090
      %v1093 = vunpack.c.l.s4 1966171168
      %v1094 = vunpack.c.0.s8 %v1093
      %v1095 = vlaneseq
      %v1096 = vshrl.u32 %v1095, 7
      %v1097 = vsub.s32 %v1094, %v1096
      %v1098 = vrot.slane %v1082, %v1097
      %v1100 = vunpack.c.l.s4 1966171168
      %v1101 = vunpack.c.0.s8 %v1100
      %v1102 = vlaneseq
      %v1103 = vshrl.u32 %v1102, 7
      %v1104 = vsub.s32 %v1101, %v1103
      %v1105 = vrot.slane %v1083, %v1104
      %v1107 = vunpack.c.l.s4 1966171168
      %v1108 = vunpack.c.0.s8 %v1107
      %v1109 = vlaneseq
      %v1110 = vshrl.u32 %v1109, 7
      %v1111 = vsub.s32 %v1108, %v1110
      %v1112 = vrot.slane %v1084, %v1111
      %v1113 = vcombine.high %v1091, %v1091
      %v1114 = vcombine.high %v1098, %v1098
      %v1115 = vcombine.high %v1105, %v1105
      %v1116 = vcombine.high %v1112, %v1112
      %v1117 = vcombine.high %v989, %v989
      %v1119 = vunpack.c.l.s4 1966171168
      %v1120 = vunpack.c.0.s8 %v1119
      %v1121 = vlaneseq
      %v1122 = vshrl.u32 %v1121, 7
      %v1123 = vsub.s32 %v1120, %v1122
      %v1124 = vrot.slane %v989, %v1123
      %v1126 = vunpack.c.l.s4 1966171168
      %v1127 = vunpack.c.0.s8 %v1126
      %v1128 = vlaneseq
      %v1129 = vshrl.u32 %v1128, 7
      %v1130 = vsub.s32 %v1127, %v1129
      %v1131 = vrot.slane %v1117, %v1130
      %v1132 = vcombine.high %v1124, %v1124
      %v1133 = vcombine.high %v1131, %v1131
      %v1135 = vunpack.c.l.s4 1966171168
      %v1136 = vunpack.c.0.s8 %v1135
      %v1137 = vlaneseq
      %v1138 = vshrl.u32 %v1137, 7
      %v1139 = vsub.s32 %v1136, %v1138
      %v1140 = vrot.slane %v1124, %v1139
      %v1142 = vunpack.c.l.s4 1966171168
      %v1143 = vunpack.c.0.s8 %v1142
      %v1144 = vlaneseq
      %v1145 = vshrl.u32 %v1144, 7
      %v1146 = vsub.s32 %v1143, %v1145
      %v1147 = vrot.slane %v1131, %v1146
      %v1149 = vunpack.c.l.s4 1966171168
      %v1150 = vunpack.c.0.s8 %v1149
      %v1151 = vlaneseq
      %v1152 = vshrl.u32 %v1151, 7
      %v1153 = vsub.s32 %v1150, %v1152
      %v1154 = vrot.slane %v1132, %v1153
      %v1156 = vunpack.c.l.s4 1966171168
      %v1157 = vunpack.c.0.s8 %v1156
      %v1158 = vlaneseq
      %v1159 = vshrl.u32 %v1158, 7
      %v1160 = vsub.s32 %v1157, %v1159
      %v1161 = vrot.slane %v1133, %v1160
      %v1162 = vcombine.high %v1140, %v1140
      %v1163 = vcombine.high %v1147, %v1147
      %v1164 = vcombine.high %v1154, %v1154
      %v1165 = vcombine.high %v1161, %v1161
      %v1166 = vcombine.high %v990, %v990
      %v1168 = vunpack.c.l.s4 1966171168
      %v1169 = vunpack.c.0.s8 %v1168
      %v1170 = vlaneseq
      %v1171 = vshrl.u32 %v1170, 7
      %v1172 = vsub.s32 %v1169, %v1171
      %v1173 = vrot.slane %v990, %v1172
      %v1175 = vunpack.c.l.s4 1966171168
      %v1176 = vunpack.c.0.s8 %v1175
      %v1177 = vlaneseq
      %v1178 = vshrl.u32 %v1177, 7
      %v1179 = vsub.s32 %v1176, %v1178
      %v1180 = vrot.slane %v1166, %v1179
      %v1181 = vcombine.high %v1173, %v1173
      %v1182 = vcombine.high %v1180, %v1180
      %v1184 = vunpack.c.l.s4 1966171168
      %v1185 = vunpack.c.0.s8 %v1184
      %v1186 = vlaneseq
      %v1187 = vshrl.u32 %v1186, 7
      %v1188 = vsub.s32 %v1185, %v1187
      %v1189 = vrot.slane %v1173, %v1188
      %v1191 = vunpack.c.l.s4 1966171168
      %v1192 = vunpack.c.0.s8 %v1191
      %v1193 = vlaneseq
      %v1194 = vshrl.u32 %v1193, 7
      %v1195 = vsub.s32 %v1192, %v1194
      %v1196 = vrot.slane %v1180, %v1195
      %v1198 = vunpack.c.l.s4 1966171168
      %v1199 = vunpack.c.0.s8 %v1198
      %v1200 = vlaneseq
      %v1201 = vshrl.u32 %v1200, 7
      %v1202 = vsub.s32 %v1199, %v1201
      %v1203 = vrot.slane %v1181, %v1202
      %v1205 = vunpack.c.l.s4 1966171168
      %v1206 = vunpack.c.0.s8 %v1205
      %v1207 = vlaneseq
      %v1208 = vshrl.u32 %v1207, 7
      %v1209 = vsub.s32 %v1206, %v1208
      %v1210 = vrot.slane %v1182, %v1209
      %v1211 = vcombine.high %v1189, %v1189
      %v1212 = vcombine.high %v1196, %v1196
      %v1213 = vcombine.high %v1203, %v1203
      %v1214 = vcombine.high %v1210, %v1210
      %v1215 = vcombine.high %v991, %v991
      %v1217 = vunpack.c.l.s4 1966171168
      %v1218 = vunpack.c.0.s8 %v1217
      %v1219 = vlaneseq
      %v1220 = vshrl.u32 %v1219, 7
      %v1221 = vsub.s32 %v1218, %v1220
      %v1222 = vrot.slane %v991, %v1221
      %v1224 = vunpack.c.l.s4 1966171168
      %v1225 = vunpack.c.0.s8 %v1224
      %v1226 = vlaneseq
      %v1227 = vshrl.u32 %v1226, 7
      %v1228 = vsub.s32 %v1225, %v1227
      %v1229 = vrot.slane %v1215, %v1228
      %v1230 = vcombine.high %v1222, %v1222
      %v1231 = vcombine.high %v1229, %v1229
      %v1233 = vunpack.c.l.s4 1966171168
      %v1234 = vunpack.c.0.s8 %v1233
      %v1235 = vlaneseq
      %v1236 = vshrl.u32 %v1235, 7
      %v1237 = vsub.s32 %v1234, %v1236
      %v1238 = vrot.slane %v1222, %v1237
      %v1240 = vunpack.c.l.s4 1966171168
      %v1241 = vunpack.c.0.s8 %v1240
      %v1242 = vlaneseq
      %v1243 = vshrl.u32 %v1242, 7
      %v1244 = vsub.s32 %v1241, %v1243
      %v1245 = vrot.slane %v1229, %v1244
      %v1247 = vunpack.c.l.s4 1966171168
      %v1248 = vunpack.c.0.s8 %v1247
      %v1249 = vlaneseq
      %v1250 = vshrl.u32 %v1249, 7
      %v1251 = vsub.s32 %v1248, %v1250
      %v1252 = vrot.slane %v1230, %v1251
      %v1254 = vunpack.c.l.s4 1966171168
      %v1255 = vunpack.c.0.s8 %v1254
      %v1256 = vlaneseq
      %v1257 = vshrl.u32 %v1256, 7
      %v1258 = vsub.s32 %v1255, %v1257
      %v1259 = vrot.slane %v1231, %v1258
      %v1260 = vcombine.high %v1238, %v1238
      %v1261 = vcombine.high %v1245, %v1245
      %v1262 = vcombine.high %v1252, %v1252
      %v1263 = vcombine.high %v1259, %v1259
      %v1264 = vcombine.high %v992, %v992
      %v1266 = vunpack.c.l.s4 1966171168
      %v1267 = vunpack.c.0.s8 %v1266
      %v1268 = vlaneseq
      %v1269 = vshrl.u32 %v1268, 7
      %v1270 = vsub.s32 %v1267, %v1269
      %v1271 = vrot.slane %v992, %v1270
      %v1273 = vunpack.c.l.s4 1966171168
      %v1274 = vunpack.c.0.s8 %v1273
      %v1275 = vlaneseq
      %v1276 = vshrl.u32 %v1275, 7
      %v1277 = vsub.s32 %v1274, %v1276
      %v1278 = vrot.slane %v1264, %v1277
      %v1279 = vcombine.high %v1271, %v1271
      %v1280 = vcombine.high %v1278, %v1278
      %v1282 = vunpack.c.l.s4 1966171168
      %v1283 = vunpack.c.0.s8 %v1282
      %v1284 = vlaneseq
      %v1285 = vshrl.u32 %v1284, 7
      %v1286 = vsub.s32 %v1283, %v1285
      %v1287 = vrot.slane %v1271, %v1286
      %v1289 = vunpack.c.l.s4 1966171168
      %v1290 = vunpack.c.0.s8 %v1289
      %v1291 = vlaneseq
      %v1292 = vshrl.u32 %v1291, 7
      %v1293 = vsub.s32 %v1290, %v1292
      %v1294 = vrot.slane %v1278, %v1293
      %v1296 = vunpack.c.l.s4 1966171168
      %v1297 = vunpack.c.0.s8 %v1296
      %v1298 = vlaneseq
      %v1299 = vshrl.u32 %v1298, 7
      %v1300 = vsub.s32 %v1297, %v1299
      %v1301 = vrot.slane %v1279, %v1300
      %v1303 = vunpack.c.l.s4 1966171168
      %v1304 = vunpack.c.0.s8 %v1303
      %v1305 = vlaneseq
      %v1306 = vshrl.u32 %v1305, 7
      %v1307 = vsub.s32 %v1304, %v1306
      %v1308 = vrot.slane %v1280, %v1307
      %v1309 = vcombine.high %v1287, %v1287
      %v1310 = vcombine.high %v1294, %v1294
      %v1311 = vcombine.high %v1301, %v1301
      %v1312 = vcombine.high %v1308, %v1308
      %v1313 = vcombine.high %v993, %v993
      %v1315 = vunpack.c.l.s4 1966171168
      %v1316 = vunpack.c.0.s8 %v1315
      %v1317 = vlaneseq
      %v1318 = vshrl.u32 %v1317, 7
      %v1319 = vsub.s32 %v1316, %v1318
      %v1320 = vrot.slane %v993, %v1319
      %v1322 = vunpack.c.l.s4 1966171168
      %v1323 = vunpack.c.0.s8 %v1322
      %v1324 = vlaneseq
      %v1325 = vshrl.u32 %v1324, 7
      %v1326 = vsub.s32 %v1323, %v1325
      %v1327 = vrot.slane %v1313, %v1326
      %v1328 = vcombine.high %v1320, %v1320
      %v1329 = vcombine.high %v1327, %v1327
      %v1331 = vunpack.c.l.s4 1966171168
      %v1332 = vunpack.c.0.s8 %v1331
      %v1333 = vlaneseq
      %v1334 = vshrl.u32 %v1333, 7
      %v1335 = vsub.s32 %v1332, %v1334
      %v1336 = vrot.slane %v1320, %v1335
      %v1338 = vunpack.c.l.s4 1966171168
      %v1339 = vunpack.c.0.s8 %v1338
      %v1340 = vlaneseq
      %v1341 = vshrl.u32 %v1340, 7
      %v1342 = vsub.s32 %v1339, %v1341
      %v1343 = vrot.slane %v1327, %v1342
      %v1345 = vunpack.c.l.s4 1966171168
      %v1346 = vunpack.c.0.s8 %v1345
      %v1347 = vlaneseq
      %v1348 = vshrl.u32 %v1347, 7
      %v1349 = vsub.s32 %v1346, %v1348
      %v1350 = vrot.slane %v1328, %v1349
      %v1352 = vunpack.c.l.s4 1966171168
      %v1353 = vunpack.c.0.s8 %v1352
      %v1354 = vlaneseq
      %v1355 = vshrl.u32 %v1354, 7
      %v1356 = vsub.s32 %v1353, %v1355
      %v1357 = vrot.slane %v1329, %v1356
      %v1358 = vcombine.high %v1336, %v1336
      %v1359 = vcombine.high %v1343, %v1343
      %v1360 = vcombine.high %v1350, %v1350
      %v1361 = vcombine.high %v1357, %v1357
      %v1362 = vcombine.high %v994, %v994
      %v1364 = vunpack.c.l.s4 1966171168
      %v1365 = vunpack.c.0.s8 %v1364
      %v1366 = vlaneseq
      %v1367 = vshrl.u32 %v1366, 7
      %v1368 = vsub.s32 %v1365, %v1367
      %v1369 = vrot.slane %v994, %v1368
      %v1371 = vunpack.c.l.s4 1966171168
      %v1372 = vunpack.c.0.s8 %v1371
      %v1373 = vlaneseq
      %v1374 = vshrl.u32 %v1373, 7
      %v1375 = vsub.s32 %v1372, %v1374
      %v1376 = vrot.slane %v1362, %v1375
      %v1377 = vcombine.high %v1369, %v1369
      %v1378 = vcombine.high %v1376, %v1376
      %v1380 = vunpack.c.l.s4 1966171168
      %v1381 = vunpack.c.0.s8 %v1380
      %v1382 = vlaneseq
      %v1383 = vshrl.u32 %v1382, 7
      %v1384 = vsub.s32 %v1381, %v1383
      %v1385 = vrot.slane %v1369, %v1384
      %v1387 = vunpack.c.l.s4 1966171168
      %v1388 = vunpack.c.0.s8 %v1387
      %v1389 = vlaneseq
      %v1390 = vshrl.u32 %v1389, 7
      %v1391 = vsub.s32 %v1388, %v1390
      %v1392 = vrot.slane %v1376, %v1391
      %v1394 = vunpack.c.l.s4 1966171168
      %v1395 = vunpack.c.0.s8 %v1394
      %v1396 = vlaneseq
      %v1397 = vshrl.u32 %v1396, 7
      %v1398 = vsub.s32 %v1395, %v1397
      %v1399 = vrot.slane %v1377, %v1398
      %v1401 = vunpack.c.l.s4 1966171168
      %v1402 = vunpack.c.0.s8 %v1401
      %v1403 = vlaneseq
      %v1404 = vshrl.u32 %v1403, 7
      %v1405 = vsub.s32 %v1402, %v1404
      %v1406 = vrot.slane %v1378, %v1405
      %v1407 = vcombine.high %v1385, %v1385
      %v1408 = vcombine.high %v1392, %v1392
      %v1409 = vcombine.high %v1399, %v1399
      %v1410 = vcombine.high %v1406, %v1406
      %v1411 = vcombine.high %v995, %v995
      %v1413 = vunpack.c.l.s4 1966171168
      %v1414 = vunpack.c.0.s8 %v1413
      %v1415 = vlaneseq
      %v1416 = vshrl.u32 %v1415, 7
      %v1417 = vsub.s32 %v1414, %v1416
      %v1418 = vrot.slane %v995, %v1417
      %v1420 = vunpack.c.l.s4 1966171168
      %v1421 = vunpack.c.0.s8 %v1420
      %v1422 = vlaneseq
      %v1423 = vshrl.u32 %v1422, 7
      %v1424 = vsub.s32 %v1421, %v1423
      %v1425 = vrot.slane %v1411, %v1424
      %v1426 = vcombine.high %v1418, %v1418
      %v1427 = vcombine.high %v1425, %v1425
      %v1429 = vunpack.c.l.s4 1966171168
      %v1430 = vunpack.c.0.s8 %v1429
      %v1431 = vlaneseq
      %v1432 = vshrl.u32 %v1431, 7
      %v1433 = vsub.s32 %v1430, %v1432
      %v1434 = vrot.slane %v1418, %v1433
      %v1436 = vunpack.c.l.s4 1966171168
      %v1437 = vunpack.c.0.s8 %v1436
      %v1438 = vlaneseq
      %v1439 = vshrl.u32 %v1438, 7
      %v1440 = vsub.s32 %v1437, %v1439
      %v1441 = vrot.slane %v1425, %v1440
      %v1443 = vunpack.c.l.s4 1966171168
      %v1444 = vunpack.c.0.s8 %v1443
      %v1445 = vlaneseq
      %v1446 = vshrl.u32 %v1445, 7
      %v1447 = vsub.s32 %v1444, %v1446
      %v1448 = vrot.slane %v1426, %v1447
      %v1450 = vunpack.c.l.s4 1966171168
      %v1451 = vunpack.c.0.s8 %v1450
      %v1452 = vlaneseq
      %v1453 = vshrl.u32 %v1452, 7
      %v1454 = vsub.s32 %v1451, %v1453
      %v1455 = vrot.slane %v1427, %v1454
      %v1456 = vcombine.high %v1434, %v1434
      %v1457 = vcombine.high %v1441, %v1441
      %v1458 = vcombine.high %v1448, %v1448
      %v1459 = vcombine.high %v1455, %v1455
      %v1460 = vcombine.high %v996, %v996
      %v1462 = vunpack.c.l.s4 1966171168
      %v1463 = vunpack.c.0.s8 %v1462
      %v1464 = vlaneseq
      %v1465 = vshrl.u32 %v1464, 7
      %v1466 = vsub.s32 %v1463, %v1465
      %v1467 = vrot.slane %v996, %v1466
      %v1469 = vunpack.c.l.s4 1966171168
      %v1470 = vunpack.c.0.s8 %v1469
      %v1471 = vlaneseq
      %v1472 = vshrl.u32 %v1471, 7
      %v1473 = vsub.s32 %v1470, %v1472
      %v1474 = vrot.slane %v1460, %v1473
      %v1475 = vcombine.high %v1467, %v1467
      %v1476 = vcombine.high %v1474, %v1474
      %v1478 = vunpack.c.l.s4 1966171168
      %v1479 = vunpack.c.0.s8 %v1478
      %v1480 = vlaneseq
      %v1481 = vshrl.u32 %v1480, 7
      %v1482 = vsub.s32 %v1479, %v1481
      %v1483 = vrot.slane %v1467, %v1482
      %v1485 = vunpack.c.l.s4 1966171168
      %v1486 = vunpack.c.0.s8 %v1485
      %v1487 = vlaneseq
      %v1488 = vshrl.u32 %v1487, 7
      %v1489 = vsub.s32 %v1486, %v1488
      %v1490 = vrot.slane %v1474, %v1489
      %v1492 = vunpack.c.l.s4 1966171168
      %v1493 = vunpack.c.0.s8 %v1492
      %v1494 = vlaneseq
      %v1495 = vshrl.u32 %v1494, 7
      %v1496 = vsub.s32 %v1493, %v1495
      %v1497 = vrot.slane %v1475, %v1496
      %v1499 = vunpack.c.l.s4 1966171168
      %v1500 = vunpack.c.0.s8 %v1499
      %v1501 = vlaneseq
      %v1502 = vshrl.u32 %v1501, 7
      %v1503 = vsub.s32 %v1500, %v1502
      %v1504 = vrot.slane %v1476, %v1503
      %v1505 = vcombine.high %v1483, %v1483
      %v1506 = vcombine.high %v1490, %v1490
      %v1507 = vcombine.high %v1497, %v1497
      %v1508 = vcombine.high %v1504, %v1504
      %v1509 = vcombine.high %v997, %v997
      %v1511 = vunpack.c.l.s4 1966171168
      %v1512 = vunpack.c.0.s8 %v1511
      %v1513 = vlaneseq
      %v1514 = vshrl.u32 %v1513, 7
      %v1515 = vsub.s32 %v1512, %v1514
      %v1516 = vrot.slane %v997, %v1515
      %v1518 = vunpack.c.l.s4 1966171168
      %v1519 = vunpack.c.0.s8 %v1518
      %v1520 = vlaneseq
      %v1521 = vshrl.u32 %v1520, 7
      %v1522 = vsub.s32 %v1519, %v1521
      %v1523 = vrot.slane %v1509, %v1522
      %v1524 = vcombine.high %v1516, %v1516
      %v1525 = vcombine.high %v1523, %v1523
      %v1527 = vunpack.c.l.s4 1966171168
      %v1528 = vunpack.c.0.s8 %v1527
      %v1529 = vlaneseq
      %v1530 = vshrl.u32 %v1529, 7
      %v1531 = vsub.s32 %v1528, %v1530
      %v1532 = vrot.slane %v1516, %v1531
      %v1534 = vunpack.c.l.s4 1966171168
      %v1535 = vunpack.c.0.s8 %v1534
      %v1536 = vlaneseq
      %v1537 = vshrl.u32 %v1536, 7
      %v1538 = vsub.s32 %v1535, %v1537
      %v1539 = vrot.slane %v1523, %v1538
      %v1541 = vunpack.c.l.s4 1966171168
      %v1542 = vunpack.c.0.s8 %v1541
      %v1543 = vlaneseq
      %v1544 = vshrl.u32 %v1543, 7
      %v1545 = vsub.s32 %v1542, %v1544
      %v1546 = vrot.slane %v1524, %v1545
      %v1548 = vunpack.c.l.s4 1966171168
      %v1549 = vunpack.c.0.s8 %v1548
      %v1550 = vlaneseq
      %v1551 = vshrl.u32 %v1550, 7
      %v1552 = vsub.s32 %v1549, %v1551
      %v1553 = vrot.slane %v1525, %v1552
      %v1554 = vcombine.high %v1532, %v1532
      %v1555 = vcombine.high %v1539, %v1539
      %v1556 = vcombine.high %v1546, %v1546
      %v1557 = vcombine.high %v1553, %v1553
      %v1558 = vcombine.high %v998, %v998
      %v1560 = vunpack.c.l.s4 1966171168
      %v1561 = vunpack.c.0.s8 %v1560
      %v1562 = vlaneseq
      %v1563 = vshrl.u32 %v1562, 7
      %v1564 = vsub.s32 %v1561, %v1563
      %v1565 = vrot.slane %v998, %v1564
      %v1567 = vunpack.c.l.s4 1966171168
      %v1568 = vunpack.c.0.s8 %v1567
      %v1569 = vlaneseq
      %v1570 = vshrl.u32 %v1569, 7
      %v1571 = vsub.s32 %v1568, %v1570
      %v1572 = vrot.slane %v1558, %v1571
      %v1573 = vcombine.high %v1565, %v1565
      %v1574 = vcombine.high %v1572, %v1572
      %v1576 = vunpack.c.l.s4 1966171168
      %v1577 = vunpack.c.0.s8 %v1576
      %v1578 = vlaneseq
      %v1579 = vshrl.u32 %v1578, 7
      %v1580 = vsub.s32 %v1577, %v1579
      %v1581 = vrot.slane %v1565, %v1580
      %v1583 = vunpack.c.l.s4 1966171168
      %v1584 = vunpack.c.0.s8 %v1583
      %v1585 = vlaneseq
      %v1586 = vshrl.u32 %v1585, 7
      %v1587 = vsub.s32 %v1584, %v1586
      %v1588 = vrot.slane %v1572, %v1587
      %v1590 = vunpack.c.l.s4 1966171168
      %v1591 = vunpack.c.0.s8 %v1590
      %v1592 = vlaneseq
      %v1593 = vshrl.u32 %v1592, 7
      %v1594 = vsub.s32 %v1591, %v1593
      %v1595 = vrot.slane %v1573, %v1594
      %v1597 = vunpack.c.l.s4 1966171168
      %v1598 = vunpack.c.0.s8 %v1597
      %v1599 = vlaneseq
      %v1600 = vshrl.u32 %v1599, 7
      %v1601 = vsub.s32 %v1598, %v1600
      %v1602 = vrot.slane %v1574, %v1601
      %v1603 = vcombine.high %v1581, %v1581
      %v1604 = vcombine.high %v1588, %v1588
      %v1605 = vcombine.high %v1595, %v1595
      %v1606 = vcombine.high %v1602, %v1602
      %v1607 = vcombine.high %v999, %v999
      %v1609 = vunpack.c.l.s4 1966171168
      %v1610 = vunpack.c.0.s8 %v1609
      %v1611 = vlaneseq
      %v1612 = vshrl.u32 %v1611, 7
      %v1613 = vsub.s32 %v1610, %v1612
      %v1614 = vrot.slane %v999, %v1613
      %v1616 = vunpack.c.l.s4 1966171168
      %v1617 = vunpack.c.0.s8 %v1616
      %v1618 = vlaneseq
      %v1619 = vshrl.u32 %v1618, 7
      %v1620 = vsub.s32 %v1617, %v1619
      %v1621 = vrot.slane %v1607, %v1620
      %v1622 = vcombine.high %v1614, %v1614
      %v1623 = vcombine.high %v1621, %v1621
      %v1625 = vunpack.c.l.s4 1966171168
      %v1626 = vunpack.c.0.s8 %v1625
      %v1627 = vlaneseq
      %v1628 = vshrl.u32 %v1627, 7
      %v1629 = vsub.s32 %v1626, %v1628
      %v1630 = vrot.slane %v1614, %v1629
      %v1632 = vunpack.c.l.s4 1966171168
      %v1633 = vunpack.c.0.s8 %v1632
      %v1634 = vlaneseq
      %v1635 = vshrl.u32 %v1634, 7
      %v1636 = vsub.s32 %v1633, %v1635
      %v1637 = vrot.slane %v1621, %v1636
      %v1639 = vunpack.c.l.s4 1966171168
      %v1640 = vunpack.c.0.s8 %v1639
      %v1641 = vlaneseq
      %v1642 = vshrl.u32 %v1641, 7
      %v1643 = vsub.s32 %v1640, %v1642
      %v1644 = vrot.slane %v1622, %v1643
      %v1646 = vunpack.c.l.s4 1966171168
      %v1647 = vunpack.c.0.s8 %v1646
      %v1648 = vlaneseq
      %v1649 = vshrl.u32 %v1648, 7
      %v1650 = vsub.s32 %v1647, %v1649
      %v1651 = vrot.slane %v1623, %v1650
      %v1652 = vcombine.high %v1630, %v1630
      %v1653 = vcombine.high %v1637, %v1637
      %v1654 = vcombine.high %v1644, %v1644
      %v1655 = vcombine.high %v1651, %v1651
      %v1656 = vcombine.high %v1000, %v1000
      %v1658 = vunpack.c.l.s4 1966171168
      %v1659 = vunpack.c.0.s8 %v1658
      %v1660 = vlaneseq
      %v1661 = vshrl.u32 %v1660, 7
      %v1662 = vsub.s32 %v1659, %v1661
      %v1663 = vrot.slane %v1000, %v1662
      %v1665 = vunpack.c.l.s4 1966171168
      %v1666 = vunpack.c.0.s8 %v1665
      %v1667 = vlaneseq
      %v1668 = vshrl.u32 %v1667, 7
      %v1669 = vsub.s32 %v1666, %v1668
      %v1670 = vrot.slane %v1656, %v1669
      %v1671 = vcombine.high %v1663, %v1663
      %v1672 = vcombine.high %v1670, %v1670
      %v1674 = vunpack.c.l.s4 1966171168
      %v1675 = vunpack.c.0.s8 %v1674
      %v1676 = vlaneseq
      %v1677 = vshrl.u32 %v1676, 7
      %v1678 = vsub.s32 %v1675, %v1677
      %v1679 = vrot.slane %v1663, %v1678
      %v1681 = vunpack.c.l.s4 1966171168
      %v1682 = vunpack.c.0.s8 %v1681
      %v1683 = vlaneseq
      %v1684 = vshrl.u32 %v1683, 7
      %v1685 = vsub.s32 %v1682, %v1684
      %v1686 = vrot.slane %v1670, %v1685
      %v1688 = vunpack.c.l.s4 1966171168
      %v1689 = vunpack.c.0.s8 %v1688
      %v1690 = vlaneseq
      %v1691 = vshrl.u32 %v1690, 7
      %v1692 = vsub.s32 %v1689, %v1691
      %v1693 = vrot.slane %v1671, %v1692
      %v1695 = vunpack.c.l.s4 1966171168
      %v1696 = vunpack.c.0.s8 %v1695
      %v1697 = vlaneseq
      %v1698 = vshrl.u32 %v1697, 7
      %v1699 = vsub.s32 %v1696, %v1698
      %v1700 = vrot.slane %v1672, %v1699
      %v1701 = vcombine.high %v1679, %v1679
      %v1702 = vcombine.high %v1686, %v1686
      %v1703 = vcombine.high %v1693, %v1693
      %v1704 = vcombine.high %v1700, %v1700
      %v1705 = vcombine.high %v1001, %v1001
      %v1707 = vunpack.c.l.s4 1966171168
      %v1708 = vunpack.c.0.s8 %v1707
      %v1709 = vlaneseq
      %v1710 = vshrl.u32 %v1709, 7
      %v1711 = vsub.s32 %v1708, %v1710
      %v1712 = vrot.slane %v1001, %v1711
      %v1714 = vunpack.c.l.s4 1966171168
      %v1715 = vunpack.c.0.s8 %v1714
      %v1716 = vlaneseq
      %v1717 = vshrl.u32 %v1716, 7
      %v1718 = vsub.s32 %v1715, %v1717
      %v1719 = vrot.slane %v1705, %v1718
      %v1720 = vcombine.high %v1712, %v1712
      %v1721 = vcombine.high %v1719, %v1719
      %v1723 = vunpack.c.l.s4 1966171168
      %v1724 = vunpack.c.0.s8 %v1723
      %v1725 = vlaneseq
      %v1726 = vshrl.u32 %v1725, 7
      %v1727 = vsub.s32 %v1724, %v1726
      %v1728 = vrot.slane %v1712, %v1727
      %v1730 = vunpack.c.l.s4 1966171168
      %v1731 = vunpack.c.0.s8 %v1730
      %v1732 = vlaneseq
      %v1733 = vshrl.u32 %v1732, 7
      %v1734 = vsub.s32 %v1731, %v1733
      %v1735 = vrot.slane %v1719, %v1734
      %v1737 = vunpack.c.l.s4 1966171168
      %v1738 = vunpack.c.0.s8 %v1737
      %v1739 = vlaneseq
      %v1740 = vshrl.u32 %v1739, 7
      %v1741 = vsub.s32 %v1738, %v1740
      %v1742 = vrot.slane %v1720, %v1741
      %v1744 = vunpack.c.l.s4 1966171168
      %v1745 = vunpack.c.0.s8 %v1744
      %v1746 = vlaneseq
      %v1747 = vshrl.u32 %v1746, 7
      %v1748 = vsub.s32 %v1745, %v1747
      %v1749 = vrot.slane %v1721, %v1748
      %v1750 = vcombine.high %v1728, %v1728
      %v1751 = vcombine.high %v1735, %v1735
      %v1752 = vcombine.high %v1742, %v1742
      %v1753 = vcombine.high %v1749, %v1749
      %v1754 = vcombine.high %v1002, %v1002
      %v1756 = vunpack.c.l.s4 1966171168
      %v1757 = vunpack.c.0.s8 %v1756
      %v1758 = vlaneseq
      %v1759 = vshrl.u32 %v1758, 7
      %v1760 = vsub.s32 %v1757, %v1759
      %v1761 = vrot.slane %v1002, %v1760
      %v1763 = vunpack.c.l.s4 1966171168
      %v1764 = vunpack.c.0.s8 %v1763
      %v1765 = vlaneseq
      %v1766 = vshrl.u32 %v1765, 7
      %v1767 = vsub.s32 %v1764, %v1766
      %v1768 = vrot.slane %v1754, %v1767
      %v1769 = vcombine.high %v1761, %v1761
      %v1770 = vcombine.high %v1768, %v1768
      %v1772 = vunpack.c.l.s4 1966171168
      %v1773 = vunpack.c.0.s8 %v1772
      %v1774 = vlaneseq
      %v1775 = vshrl.u32 %v1774, 7
      %v1776 = vsub.s32 %v1773, %v1775
      %v1777 = vrot.slane %v1761, %v1776
      %v1779 = vunpack.c.l.s4 1966171168
      %v1780 = vunpack.c.0.s8 %v1779
      %v1781 = vlaneseq
      %v1782 = vshrl.u32 %v1781, 7
      %v1783 = vsub.s32 %v1780, %v1782
      %v1784 = vrot.slane %v1768, %v1783
      %v1786 = vunpack.c.l.s4 1966171168
      %v1787 = vunpack.c.0.s8 %v1786
      %v1788 = vlaneseq
      %v1789 = vshrl.u32 %v1788, 7
      %v1790 = vsub.s32 %v1787, %v1789
      %v1791 = vrot.slane %v1769, %v1790
      %v1793 = vunpack.c.l.s4 1966171168
      %v1794 = vunpack.c.0.s8 %v1793
      %v1795 = vlaneseq
      %v1796 = vshrl.u32 %v1795, 7
      %v1797 = vsub.s32 %v1794, %v1796
      %v1798 = vrot.slane %v1770, %v1797
      %v1799 = vcombine.high %v1777, %v1777
      %v1800 = vcombine.high %v1784, %v1784
      %v1801 = vcombine.high %v1791, %v1791
      %v1802 = vcombine.high %v1798, %v1798
      %v1803 = vlaneseq
      %v1804 = vshrl.u32 %v1803, 7
      %v1805 = vsub.s32 0, %v1804
      %v1806 = vrot.slane %v1042, %v1805
      %v1807 = vlaneseq
      %v1808 = vshrl.u32 %v1807, 7
      %v1809 = vsub.s32 0, %v1808
      %v1810 = vrot.slane %v1056, %v1809
      %v1811 = vlaneseq
      %v1812 = vshrl.u32 %v1811, 7
      %v1813 = vsub.s32 0, %v1812
      %v1814 = vrot.slane %v1064, %v1813
      %v1815 = vlaneseq
      %v1816 = vshrl.u32 %v1815, 7
      %v1817 = vsub.s32 0, %v1816
      %v1818 = vrot.slane %v1066, %v1817
      %v1819 = vlaneseq
      %v1820 = vshrl.u32 %v1819, 7
      %v1821 = vsub.s32 0, %v1820
      %v1822 = vrot.slane %v1049, %v1821
      %v1823 = vlaneseq
      %v1824 = vshrl.u32 %v1823, 7
      %v1825 = vsub.s32 0, %v1824
      %v1826 = vrot.slane %v1063, %v1825
      %v1827 = vlaneseq
      %v1828 = vshrl.u32 %v1827, 7
      %v1829 = vsub.s32 0, %v1828
      %v1830 = vrot.slane %v1065, %v1829
      %v1831 = vlaneseq
      %v1832 = vshrl.u32 %v1831, 7
      %v1833 = vsub.s32 0, %v1832
      %v1834 = vrot.slane %v1067, %v1833
      %v1835 = vlaneseq
      %v1836 = vshrl.u32 %v1835, 7
      %v1837 = vsub.s32 0, %v1836
      %v1838 = vrot.slane %v1091, %v1837
      %v1839 = vlaneseq
      %v1840 = vshrl.u32 %v1839, 7
      %v1841 = vsub.s32 0, %v1840
      %v1842 = vrot.slane %v1105, %v1841
      %v1843 = vlaneseq
      %v1844 = vshrl.u32 %v1843, 7
      %v1845 = vsub.s32 0, %v1844
      %v1846 = vrot.slane %v1113, %v1845
      %v1847 = vlaneseq
      %v1848 = vshrl.u32 %v1847, 7
      %v1849 = vsub.s32 0, %v1848
      %v1850 = vrot.slane %v1115, %v1849
      %v1851 = vlaneseq
      %v1852 = vshrl.u32 %v1851, 7
      %v1853 = vsub.s32 0, %v1852
      %v1854 = vrot.slane %v1098, %v1853
      %v1855 = vlaneseq
      %v1856 = vshrl.u32 %v1855, 7
      %v1857 = vsub.s32 0, %v1856
      %v1858 = vrot.slane %v1112, %v1857
      %v1859 = vlaneseq
      %v1860 = vshrl.u32 %v1859, 7
      %v1861 = vsub.s32 0, %v1860
      %v1862 = vrot.slane %v1114, %v1861
      %v1863 = vlaneseq
      %v1864 = vshrl.u32 %v1863, 7
      %v1865 = vsub.s32 0, %v1864
      %v1866 = vrot.slane %v1116, %v1865
      %v1867 = vlaneseq
      %v1868 = vshrl.u32 %v1867, 7
      %v1869 = vsub.s32 0, %v1868
      %v1870 = vrot.slane %v1140, %v1869
      %v1871 = vlaneseq
      %v1872 = vshrl.u32 %v1871, 7
      %v1873 = vsub.s32 0, %v1872
      %v1874 = vrot.slane %v1154, %v1873
      %v1875 = vlaneseq
      %v1876 = vshrl.u32 %v1875, 7
      %v1877 = vsub.s32 0, %v1876
      %v1878 = vrot.slane %v1162, %v1877
      %v1879 = vlaneseq
      %v1880 = vshrl.u32 %v1879, 7
      %v1881 = vsub.s32 0, %v1880
      %v1882 = vrot.slane %v1164, %v1881
      %v1883 = vlaneseq
      %v1884 = vshrl.u32 %v1883, 7
      %v1885 = vsub.s32 0, %v1884
      %v1886 = vrot.slane %v1147, %v1885
      %v1887 = vlaneseq
      %v1888 = vshrl.u32 %v1887, 7
      %v1889 = vsub.s32 0, %v1888
      %v1890 = vrot.slane %v1161, %v1889
      %v1891 = vlaneseq
      %v1892 = vshrl.u32 %v1891, 7
      %v1893 = vsub.s32 0, %v1892
      %v1894 = vrot.slane %v1163, %v1893
      %v1895 = vlaneseq
      %v1896 = vshrl.u32 %v1895, 7
      %v1897 = vsub.s32 0, %v1896
      %v1898 = vrot.slane %v1165, %v1897
      %v1899 = vlaneseq
      %v1900 = vshrl.u32 %v1899, 7
      %v1901 = vsub.s32 0, %v1900
      %v1902 = vrot.slane %v1189, %v1901
      %v1903 = vlaneseq
      %v1904 = vshrl.u32 %v1903, 7
      %v1905 = vsub.s32 0, %v1904
      %v1906 = vrot.slane %v1203, %v1905
      %v1907 = vlaneseq
      %v1908 = vshrl.u32 %v1907, 7
      %v1909 = vsub.s32 0, %v1908
      %v1910 = vrot.slane %v1211, %v1909
      %v1911 = vlaneseq
      %v1912 = vshrl.u32 %v1911, 7
      %v1913 = vsub.s32 0, %v1912
      %v1914 = vrot.slane %v1213, %v1913
      %v1915 = vlaneseq
      %v1916 = vshrl.u32 %v1915, 7
      %v1917 = vsub.s32 0, %v1916
      %v1918 = vrot.slane %v1196, %v1917
      %v1919 = vlaneseq
      %v1920 = vshrl.u32 %v1919, 7
      %v1921 = vsub.s32 0, %v1920
      %v1922 = vrot.slane %v1210, %v1921
      %v1923 = vlaneseq
      %v1924 = vshrl.u32 %v1923, 7
      %v1925 = vsub.s32 0, %v1924
      %v1926 = vrot.slane %v1212, %v1925
      %v1927 = vlaneseq
      %v1928 = vshrl.u32 %v1927, 7
      %v1929 = vsub.s32 0, %v1928
      %v1930 = vrot.slane %v1214, %v1929
      %v1931 = vlaneseq
      %v1932 = vshrl.u32 %v1931, 7
      %v1933 = vsub.s32 0, %v1932
      %v1934 = vrot.slane %v1238, %v1933
      %v1935 = vlaneseq
      %v1936 = vshrl.u32 %v1935, 7
      %v1937 = vsub.s32 0, %v1936
      %v1938 = vrot.slane %v1252, %v1937
      %v1939 = vlaneseq
      %v1940 = vshrl.u32 %v1939, 7
      %v1941 = vsub.s32 0, %v1940
      %v1942 = vrot.slane %v1260, %v1941
      %v1943 = vlaneseq
      %v1944 = vshrl.u32 %v1943, 7
      %v1945 = vsub.s32 0, %v1944
      %v1946 = vrot.slane %v1262, %v1945
      %v1947 = vlaneseq
      %v1948 = vshrl.u32 %v1947, 7
      %v1949 = vsub.s32 0, %v1948
      %v1950 = vrot.slane %v1245, %v1949
      %v1951 = vlaneseq
      %v1952 = vshrl.u32 %v1951, 7
      %v1953 = vsub.s32 0, %v1952
      %v1954 = vrot.slane %v1259, %v1953
      %v1955 = vlaneseq
      %v1956 = vshrl.u32 %v1955, 7
      %v1957 = vsub.s32 0, %v1956
      %v1958 = vrot.slane %v1261, %v1957
      %v1959 = vlaneseq
      %v1960 = vshrl.u32 %v1959, 7
      %v1961 = vsub.s32 0, %v1960
      %v1962 = vrot.slane %v1263, %v1961
      %v1963 = vlaneseq
      %v1964 = vshrl.u32 %v1963, 7
      %v1965 = vsub.s32 0, %v1964
      %v1966 = vrot.slane %v1287, %v1965
      %v1967 = vlaneseq
      %v1968 = vshrl.u32 %v1967, 7
      %v1969 = vsub.s32 0, %v1968
      %v1970 = vrot.slane %v1301, %v1969
      %v1971 = vlaneseq
      %v1972 = vshrl.u32 %v1971, 7
      %v1973 = vsub.s32 0, %v1972
      %v1974 = vrot.slane %v1309, %v1973
      %v1975 = vlaneseq
      %v1976 = vshrl.u32 %v1975, 7
      %v1977 = vsub.s32 0, %v1976
      %v1978 = vrot.slane %v1311, %v1977
      %v1979 = vlaneseq
      %v1980 = vshrl.u32 %v1979, 7
      %v1981 = vsub.s32 0, %v1980
      %v1982 = vrot.slane %v1294, %v1981
      %v1983 = vlaneseq
      %v1984 = vshrl.u32 %v1983, 7
      %v1985 = vsub.s32 0, %v1984
      %v1986 = vrot.slane %v1308, %v1985
      %v1987 = vlaneseq
      %v1988 = vshrl.u32 %v1987, 7
      %v1989 = vsub.s32 0, %v1988
      %v1990 = vrot.slane %v1310, %v1989
      %v1991 = vlaneseq
      %v1992 = vshrl.u32 %v1991, 7
      %v1993 = vsub.s32 0, %v1992
      %v1994 = vrot.slane %v1312, %v1993
      %v1995 = vlaneseq
      %v1996 = vshrl.u32 %v1995, 7
      %v1997 = vsub.s32 0, %v1996
      %v1998 = vrot.slane %v1336, %v1997
      %v1999 = vlaneseq
      %v2000 = vshrl.u32 %v1999, 7
      %v2001 = vsub.s32 0, %v2000
      %v2002 = vrot.slane %v1350, %v2001
      %v2003 = vlaneseq
      %v2004 = vshrl.u32 %v2003, 7
      %v2005 = vsub.s32 0, %v2004
      %v2006 = vrot.slane %v1358, %v2005
      %v2007 = vlaneseq
      %v2008 = vshrl.u32 %v2007, 7
      %v2009 = vsub.s32 0, %v2008
      %v2010 = vrot.slane %v1360, %v2009
      %v2011 = vlaneseq
      %v2012 = vshrl.u32 %v2011, 7
      %v2013 = vsub.s32 0, %v2012
      %v2014 = vrot.slane %v1343, %v2013
      %v2015 = vlaneseq
      %v2016 = vshrl.u32 %v2015, 7
      %v2017 = vsub.s32 0, %v2016
      %v2018 = vrot.slane %v1357, %v2017
      %v2019 = vlaneseq
      %v2020 = vshrl.u32 %v2019, 7
      %v2021 = vsub.s32 0, %v2020
      %v2022 = vrot.slane %v1359, %v2021
      %v2023 = vlaneseq
      %v2024 = vshrl.u32 %v2023, 7
      %v2025 = vsub.s32 0, %v2024
      %v2026 = vrot.slane %v1361, %v2025
      %v2027 = vlaneseq
      %v2028 = vshrl.u32 %v2027, 7
      %v2029 = vsub.s32 0, %v2028
      %v2030 = vrot.slane %v1385, %v2029
      %v2031 = vlaneseq
      %v2032 = vshrl.u32 %v2031, 7
      %v2033 = vsub.s32 0, %v2032
      %v2034 = vrot.slane %v1399, %v2033
      %v2035 = vlaneseq
      %v2036 = vshrl.u32 %v2035, 7
      %v2037 = vsub.s32 0, %v2036
      %v2038 = vrot.slane %v1407, %v2037
      %v2039 = vlaneseq
      %v2040 = vshrl.u32 %v2039, 7
      %v2041 = vsub.s32 0, %v2040
      %v2042 = vrot.slane %v1409, %v2041
      %v2043 = vlaneseq
      %v2044 = vshrl.u32 %v2043, 7
      %v2045 = vsub.s32 0, %v2044
      %v2046 = vrot.slane %v1392, %v2045
      %v2047 = vlaneseq
      %v2048 = vshrl.u32 %v2047, 7
      %v2049 = vsub.s32 0, %v2048
      %v2050 = vrot.slane %v1406, %v2049
      %v2051 = vlaneseq
      %v2052 = vshrl.u32 %v2051, 7
      %v2053 = vsub.s32 0, %v2052
      %v2054 = vrot.slane %v1408, %v2053
      %v2055 = vlaneseq
      %v2056 = vshrl.u32 %v2055, 7
      %v2057 = vsub.s32 0, %v2056
      %v2058 = vrot.slane %v1410, %v2057
      %v2059 = vlaneseq
      %v2060 = vshrl.u32 %v2059, 7
      %v2061 = vsub.s32 0, %v2060
      %v2062 = vrot.slane %v1434, %v2061
      %v2063 = vlaneseq
      %v2064 = vshrl.u32 %v2063, 7
      %v2065 = vsub.s32 0, %v2064
      %v2066 = vrot.slane %v1448, %v2065
      %v2067 = vlaneseq
      %v2068 = vshrl.u32 %v2067, 7
      %v2069 = vsub.s32 0, %v2068
      %v2070 = vrot.slane %v1456, %v2069
      %v2071 = vlaneseq
      %v2072 = vshrl.u32 %v2071, 7
      %v2073 = vsub.s32 0, %v2072
      %v2074 = vrot.slane %v1458, %v2073
      %v2075 = vlaneseq
      %v2076 = vshrl.u32 %v2075, 7
      %v2077 = vsub.s32 0, %v2076
      %v2078 = vrot.slane %v1441, %v2077
      %v2079 = vlaneseq
      %v2080 = vshrl.u32 %v2079, 7
      %v2081 = vsub.s32 0, %v2080
      %v2082 = vrot.slane %v1455, %v2081
      %v2083 = vlaneseq
      %v2084 = vshrl.u32 %v2083, 7
      %v2085 = vsub.s32 0, %v2084
      %v2086 = vrot.slane %v1457, %v2085
      %v2087 = vlaneseq
      %v2088 = vshrl.u32 %v2087, 7
      %v2089 = vsub.s32 0, %v2088
      %v2090 = vrot.slane %v1459, %v2089
      %v2091 = vlaneseq
      %v2092 = vshrl.u32 %v2091, 7
      %v2093 = vsub.s32 0, %v2092
      %v2094 = vrot.slane %v1483, %v2093
      %v2095 = vlaneseq
      %v2096 = vshrl.u32 %v2095, 7
      %v2097 = vsub.s32 0, %v2096
      %v2098 = vrot.slane %v1497, %v2097
      %v2099 = vlaneseq
      %v2100 = vshrl.u32 %v2099, 7
      %v2101 = vsub.s32 0, %v2100
      %v2102 = vrot.slane %v1505, %v2101
      %v2103 = vlaneseq
      %v2104 = vshrl.u32 %v2103, 7
      %v2105 = vsub.s32 0, %v2104
      %v2106 = vrot.slane %v1507, %v2105
      %v2107 = vlaneseq
      %v2108 = vshrl.u32 %v2107, 7
      %v2109 = vsub.s32 0, %v2108
      %v2110 = vrot.slane %v1490, %v2109
      %v2111 = vlaneseq
      %v2112 = vshrl.u32 %v2111, 7
      %v2113 = vsub.s32 0, %v2112
      %v2114 = vrot.slane %v1504, %v2113
      %v2115 = vlaneseq
      %v2116 = vshrl.u32 %v2115, 7
      %v2117 = vsub.s32 0, %v2116
      %v2118 = vrot.slane %v1506, %v2117
      %v2119 = vlaneseq
      %v2120 = vshrl.u32 %v2119, 7
      %v2121 = vsub.s32 0, %v2120
      %v2122 = vrot.slane %v1508, %v2121
      %v2123 = vlaneseq
      %v2124 = vshrl.u32 %v2123, 7
      %v2125 = vsub.s32 0, %v2124
      %v2126 = vrot.slane %v1532, %v2125
      %v2127 = vlaneseq
      %v2128 = vshrl.u32 %v2127, 7
      %v2129 = vsub.s32 0, %v2128
      %v2130 = vrot.slane %v1546, %v2129
      %v2131 = vlaneseq
      %v2132 = vshrl.u32 %v2131, 7
      %v2133 = vsub.s32 0, %v2132
      %v2134 = vrot.slane %v1554, %v2133
      %v2135 = vlaneseq
      %v2136 = vshrl.u32 %v2135, 7
      %v2137 = vsub.s32 0, %v2136
      %v2138 = vrot.slane %v1556, %v2137
      %v2139 = vlaneseq
      %v2140 = vshrl.u32 %v2139, 7
      %v2141 = vsub.s32 0, %v2140
      %v2142 = vrot.slane %v1539, %v2141
      %v2143 = vlaneseq
      %v2144 = vshrl.u32 %v2143, 7
      %v2145 = vsub.s32 0, %v2144
      %v2146 = vrot.slane %v1553, %v2145
      %v2147 = vlaneseq
      %v2148 = vshrl.u32 %v2147, 7
      %v2149 = vsub.s32 0, %v2148
      %v2150 = vrot.slane %v1555, %v2149
      %v2151 = vlaneseq
      %v2152 = vshrl.u32 %v2151, 7
      %v2153 = vsub.s32 0, %v2152
      %v2154 = vrot.slane %v1557, %v2153
      %v2155 = vlaneseq
      %v2156 = vshrl.u32 %v2155, 7
      %v2157 = vsub.s32 0, %v2156
      %v2158 = vrot.slane %v1581, %v2157
      %v2159 = vlaneseq
      %v2160 = vshrl.u32 %v2159, 7
      %v2161 = vsub.s32 0, %v2160
      %v2162 = vrot.slane %v1595, %v2161
      %v2163 = vlaneseq
      %v2164 = vshrl.u32 %v2163, 7
      %v2165 = vsub.s32 0, %v2164
      %v2166 = vrot.slane %v1603, %v2165
      %v2167 = vlaneseq
      %v2168 = vshrl.u32 %v2167, 7
      %v2169 = vsub.s32 0, %v2168
      %v2170 = vrot.slane %v1605, %v2169
      %v2171 = vlaneseq
      %v2172 = vshrl.u32 %v2171, 7
      %v2173 = vsub.s32 0, %v2172
      %v2174 = vrot.slane %v1588, %v2173
      %v2175 = vlaneseq
      %v2176 = vshrl.u32 %v2175, 7
      %v2177 = vsub.s32 0, %v2176
      %v2178 = vrot.slane %v1602, %v2177
      %v2179 = vlaneseq
      %v2180 = vshrl.u32 %v2179, 7
      %v2181 = vsub.s32 0, %v2180
      %v2182 = vrot.slane %v1604, %v2181
      %v2183 = vlaneseq
      %v2184 = vshrl.u32 %v2183, 7
      %v2185 = vsub.s32 0, %v2184
      %v2186 = vrot.slane %v1606, %v2185
      %v2187 = vlaneseq
      %v2188 = vshrl.u32 %v2187, 7
      %v2189 = vsub.s32 0, %v2188
      %v2190 = vrot.slane %v1630, %v2189
      %v2191 = vlaneseq
      %v2192 = vshrl.u32 %v2191, 7
      %v2193 = vsub.s32 0, %v2192
      %v2194 = vrot.slane %v1644, %v2193
      %v2195 = vlaneseq
      %v2196 = vshrl.u32 %v2195, 7
      %v2197 = vsub.s32 0, %v2196
      %v2198 = vrot.slane %v1652, %v2197
      %v2199 = vlaneseq
      %v2200 = vshrl.u32 %v2199, 7
      %v2201 = vsub.s32 0, %v2200
      %v2202 = vrot.slane %v1654, %v2201
      %v2203 = vlaneseq
      %v2204 = vshrl.u32 %v2203, 7
      %v2205 = vsub.s32 0, %v2204
      %v2206 = vrot.slane %v1637, %v2205
      %v2207 = vlaneseq
      %v2208 = vshrl.u32 %v2207, 7
      %v2209 = vsub.s32 0, %v2208
      %v2210 = vrot.slane %v1651, %v2209
      %v2211 = vlaneseq
      %v2212 = vshrl.u32 %v2211, 7
      %v2213 = vsub.s32 0, %v2212
      %v2214 = vrot.slane %v1653, %v2213
      %v2215 = vlaneseq
      %v2216 = vshrl.u32 %v2215, 7
      %v2217 = vsub.s32 0, %v2216
      %v2218 = vrot.slane %v1655, %v2217
      %v2219 = vlaneseq
      %v2220 = vshrl.u32 %v2219, 7
      %v2221 = vsub.s32 0, %v2220
      %v2222 = vrot.slane %v1679, %v2221
      %v2223 = vlaneseq
      %v2224 = vshrl.u32 %v2223, 7
      %v2225 = vsub.s32 0, %v2224
      %v2226 = vrot.slane %v1693, %v2225
      %v2227 = vlaneseq
      %v2228 = vshrl.u32 %v2227, 7
      %v2229 = vsub.s32 0, %v2228
      %v2230 = vrot.slane %v1701, %v2229
      %v2231 = vlaneseq
      %v2232 = vshrl.u32 %v2231, 7
      %v2233 = vsub.s32 0, %v2232
      %v2234 = vrot.slane %v1703, %v2233
      %v2235 = vlaneseq
      %v2236 = vshrl.u32 %v2235, 7
      %v2237 = vsub.s32 0, %v2236
      %v2238 = vrot.slane %v1686, %v2237
      %v2239 = vlaneseq
      %v2240 = vshrl.u32 %v2239, 7
      %v2241 = vsub.s32 0, %v2240
      %v2242 = vrot.slane %v1700, %v2241
      %v2243 = vlaneseq
      %v2244 = vshrl.u32 %v2243, 7
      %v2245 = vsub.s32 0, %v2244
      %v2246 = vrot.slane %v1702, %v2245
      %v2247 = vlaneseq
      %v2248 = vshrl.u32 %v2247, 7
      %v2249 = vsub.s32 0, %v2248
      %v2250 = vrot.slane %v1704, %v2249
      %v2251 = vlaneseq
      %v2252 = vshrl.u32 %v2251, 7
      %v2253 = vsub.s32 0, %v2252
      %v2254 = vrot.slane %v1728, %v2253
      %v2255 = vlaneseq
      %v2256 = vshrl.u32 %v2255, 7
      %v2257 = vsub.s32 0, %v2256
      %v2258 = vrot.slane %v1742, %v2257
      %v2259 = vlaneseq
      %v2260 = vshrl.u32 %v2259, 7
      %v2261 = vsub.s32 0, %v2260
      %v2262 = vrot.slane %v1750, %v2261
      %v2263 = vlaneseq
      %v2264 = vshrl.u32 %v2263, 7
      %v2265 = vsub.s32 0, %v2264
      %v2266 = vrot.slane %v1752, %v2265
      %v2267 = vlaneseq
      %v2268 = vshrl.u32 %v2267, 7
      %v2269 = vsub.s32 0, %v2268
      %v2270 = vrot.slane %v1735, %v2269
      %v2271 = vlaneseq
      %v2272 = vshrl.u32 %v2271, 7
      %v2273 = vsub.s32 0, %v2272
      %v2274 = vrot.slane %v1749, %v2273
      %v2275 = vlaneseq
      %v2276 = vshrl.u32 %v2275, 7
      %v2277 = vsub.s32 0, %v2276
      %v2278 = vrot.slane %v1751, %v2277
      %v2279 = vlaneseq
      %v2280 = vshrl.u32 %v2279, 7
      %v2281 = vsub.s32 0, %v2280
      %v2282 = vrot.slane %v1753, %v2281
      %v2283 = vlaneseq
      %v2284 = vshrl.u32 %v2283, 7
      %v2285 = vsub.s32 0, %v2284
      %v2286 = vrot.slane %v1777, %v2285
      %v2287 = vlaneseq
      %v2288 = vshrl.u32 %v2287, 7
      %v2289 = vsub.s32 0, %v2288
      %v2290 = vrot.slane %v1791, %v2289
      %v2291 = vlaneseq
      %v2292 = vshrl.u32 %v2291, 7
      %v2293 = vsub.s32 0, %v2292
      %v2294 = vrot.slane %v1799, %v2293
      %v2295 = vlaneseq
      %v2296 = vshrl.u32 %v2295, 7
      %v2297 = vsub.s32 0, %v2296
      %v2298 = vrot.slane %v1801, %v2297
      %v2299 = vlaneseq
      %v2300 = vshrl.u32 %v2299, 7
      %v2301 = vsub.s32 0, %v2300
      %v2302 = vrot.slane %v1784, %v2301
      %v2303 = vlaneseq
      %v2304 = vshrl.u32 %v2303, 7
      %v2305 = vsub.s32 0, %v2304
      %v2306 = vrot.slane %v1798, %v2305
      %v2307 = vlaneseq
      %v2308 = vshrl.u32 %v2307, 7
      %v2309 = vsub.s32 0, %v2308
      %v2310 = vrot.slane %v1800, %v2309
      %v2311 = vlaneseq
      %v2312 = vshrl.u32 %v2311, 7
      %v2313 = vsub.s32 0, %v2312
      %v2314 = vrot.slane %v1802, %v2313
      %v2448 = vunpack.c.l.b16 %v347
      %v2449 = vunpack.c.l.b16 %v348
      %v2450 = vunpack.c.l.b16 %v349
      %v2451 = vunpack.c.l.b16 %v350
      %v2452 = vunpack.c.l.b16 %v351
      %v2453 = vpack.c.b16 %v2449, %v2448
      %v2454 = vpack.c.b16 %v2451, %v2450
      %v2455 = vpack.c.b16 %v2452, %v2452
      %vm2458 = vcmask 293888
      %v2460 = vsel %vm2458, %v219, 0
      %vm2462 = vcmask 1041408
      %v2464 = vsel %vm2462, %v2455, 0
      %2466 = vmatprep.subr.bf16.mxu0 0
      %2467 = vmatpush1.bf16.msra.mxu0 %v2453
      %2468 = vmatprep.subr.bf16.mxu0 0
      %2469 = vmatpush1.bf16.msra.mxu0 %v2454
      %2470 = vmatprep.subr.bf16.mxu0 0
      %2471 = vmatpush1.bf16.msra.mxu0 %v2464
      %2472 = vmatprep.subr.bf16.mxu0 0
      %2473 = vmatpush1.bf16.msra.mxu0 0
      %2474 = vmatprep.subr.bf16.mxu0 0
      %2475 = vmatpush1.bf16.msra.mxu0 0
      %2476 = vmatprep.subr.bf16.mxu0 0
      %2477 = vmatpush1.bf16.msra.mxu0 0
      %2478 = vmatprep.subr.bf16.mxu0 0
      %2479 = vmatpush1.bf16.msra.mxu0 0
      %2480 = vmatprep.subr.bf16.mxu0 0
      %2481 = vmatpush1.bf16.msra.mxu0 0
      %2482 = vmatprep.subr.bf16.mxu0 0
      %2483 = vmatpush1.bf16.msra.mxu0 0
      %2484 = vmatprep.subr.bf16.mxu0 0
      %2485 = vmatpush1.bf16.msra.mxu0 0
      %2486 = vmatprep.subr.bf16.mxu0 0
      %2487 = vmatpush1.bf16.msra.mxu0 0
      %2488 = vmatprep.subr.bf16.mxu0 0
      %2489 = vmatpush1.bf16.msra.mxu0 0
      %2490 = vmatprep.subr.bf16.mxu0 0
      %2491 = vmatpush1.bf16.msra.mxu0 0
      %2492 = vmatprep.subr.bf16.mxu0 0
      %2493 = vmatpush1.bf16.msra.mxu0 0
      %2494 = vmatprep.subr.bf16.mxu0 0
      %2495 = vmatpush1.bf16.msra.mxu0 0
      %2496 = vmatprep.subr.bf16.mxu0 0
      %2497 = vmatpush1.bf16.msra.mxu0 0
      %2498 = vmatprep.mubr.bf16.mxu0 0
      %2499 = vmatmul.mubr.bf16.gmra.mrb[0].mxu0 %v2460
      %v2500 = vpop.f32.mrb[0].mxu0
      %v2501 = vadd.f32 %v1806, %v2500
      %v2502 = vpop.f32.mrb[0].mxu0
      %v2503 = vpop.f32.mrb[0].mxu0
      %v2504 = vpop.f32.mrb[0].mxu0
      %2505 = vdwg.mxu0
      %v2511 = vunpack.c.l.b16 %v352
      %v2512 = vunpack.c.l.b16 %v353
      %v2513 = vunpack.c.l.b16 %v354
      %v2514 = vunpack.c.l.b16 %v355
      %v2515 = vunpack.c.l.b16 %v356
      %v2516 = vpack.c.b16 %v2512, %v2511
      %v2517 = vpack.c.b16 %v2514, %v2513
      %v2518 = vpack.c.b16 %v2515, %v2515
      %v2522 = vsel %vm2458, %v220, 0
      %v2525 = vsel %vm2462, %v2518, 0
      %2527 = vmatprep.subr.bf16.mxu0 0
      %2528 = vmatpush1.bf16.msra.mxu0 %v2516
      %2529 = vmatprep.subr.bf16.mxu0 0
      %2530 = vmatpush1.bf16.msra.mxu0 %v2517
      %2531 = vmatprep.subr.bf16.mxu0 0
      %2532 = vmatpush1.bf16.msra.mxu0 %v2525
      %2533 = vmatprep.subr.bf16.mxu0 0
      %2534 = vmatpush1.bf16.msra.mxu0 0
      %2535 = vmatprep.subr.bf16.mxu0 0
      %2536 = vmatpush1.bf16.msra.mxu0 0
      %2537 = vmatprep.subr.bf16.mxu0 0
      %2538 = vmatpush1.bf16.msra.mxu0 0
      %2539 = vmatprep.subr.bf16.mxu0 0
      %2540 = vmatpush1.bf16.msra.mxu0 0
      %2541 = vmatprep.subr.bf16.mxu0 0
      %2542 = vmatpush1.bf16.msra.mxu0 0
      %2543 = vmatprep.subr.bf16.mxu0 0
      %2544 = vmatpush1.bf16.msra.mxu0 0
      %2545 = vmatprep.subr.bf16.mxu0 0
      %2546 = vmatpush1.bf16.msra.mxu0 0
      %2547 = vmatprep.subr.bf16.mxu0 0
      %2548 = vmatpush1.bf16.msra.mxu0 0
      %2549 = vmatprep.subr.bf16.mxu0 0
      %2550 = vmatpush1.bf16.msra.mxu0 0
      %2551 = vmatprep.subr.bf16.mxu0 0
      %2552 = vmatpush1.bf16.msra.mxu0 0
      %2553 = vmatprep.subr.bf16.mxu0 0
      %2554 = vmatpush1.bf16.msra.mxu0 0
      %2555 = vmatprep.subr.bf16.mxu0 0
      %2556 = vmatpush1.bf16.msra.mxu0 0
      %2557 = vmatprep.subr.bf16.mxu0 0
      %2558 = vmatpush1.bf16.msra.mxu0 0
      %2559 = vmatprep.mubr.bf16.mxu0 0
      %2560 = vmatmul.mubr.bf16.gmra.mrb[0].mxu0 %v2522
      %v2561 = vpop.f32.mrb[0].mxu0
      %v2562 = vadd.f32 %v1810, %v2561
      %v2563 = vpop.f32.mrb[0].mxu0
      %v2564 = vpop.f32.mrb[0].mxu0
      %v2565 = vpop.f32.mrb[0].mxu0
      %2566 = vdwg.mxu0
      %v2572 = vunpack.c.l.b16 %v357
      %v2573 = vunpack.c.l.b16 %v358
      %v2574 = vunpack.c.l.b16 %v359
      %v2575 = vunpack.c.l.b16 %v360
      %v2576 = vunpack.c.l.b16 %v361
      %v2577 = vpack.c.b16 %v2573, %v2572
      %v2578 = vpack.c.b16 %v2575, %v2574
      %v2579 = vpack.c.b16 %v2576, %v2576
      %v2583 = vsel %vm2458, %v221, 0
      %v2586 = vsel %vm2462, %v2579, 0
      %2588 = vmatprep.subr.bf16.mxu0 0
      %2589 = vmatpush1.bf16.msra.mxu0 %v2577
      %2590 = vmatprep.subr.bf16.mxu0 0
      %2591 = vmatpush1.bf16.msra.mxu0 %v2578
      %2592 = vmatprep.subr.bf16.mxu0 0
      %2593 = vmatpush1.bf16.msra.mxu0 %v2586
      %2594 = vmatprep.subr.bf16.mxu0 0
      %2595 = vmatpush1.bf16.msra.mxu0 0
      %2596 = vmatprep.subr.bf16.mxu0 0
      %2597 = vmatpush1.bf16.msra.mxu0 0
      %2598 = vmatprep.subr.bf16.mxu0 0
      %2599 = vmatpush1.bf16.msra.mxu0 0
      %2600 = vmatprep.subr.bf16.mxu0 0
      %2601 = vmatpush1.bf16.msra.mxu0 0
      %2602 = vmatprep.subr.bf16.mxu0 0
      %2603 = vmatpush1.bf16.msra.mxu0 0
      %2604 = vmatprep.subr.bf16.mxu0 0
      %2605 = vmatpush1.bf16.msra.mxu0 0
      %2606 = vmatprep.subr.bf16.mxu0 0
      %2607 = vmatpush1.bf16.msra.mxu0 0
      %2608 = vmatprep.subr.bf16.mxu0 0
      %2609 = vmatpush1.bf16.msra.mxu0 0
      %2610 = vmatprep.subr.bf16.mxu0 0
      %2611 = vmatpush1.bf16.msra.mxu0 0
      %2612 = vmatprep.subr.bf16.mxu0 0
      %2613 = vmatpush1.bf16.msra.mxu0 0
      %2614 = vmatprep.subr.bf16.mxu0 0
      %2615 = vmatpush1.bf16.msra.mxu0 0
      %2616 = vmatprep.subr.bf16.mxu0 0
      %2617 = vmatpush1.bf16.msra.mxu0 0
      %2618 = vmatprep.subr.bf16.mxu0 0
      %2619 = vmatpush1.bf16.msra.mxu0 0
      %2620 = vmatprep.mubr.bf16.mxu0 0
      %2621 = vmatmul.mubr.bf16.gmra.mrb[0].mxu0 %v2583
      %v2622 = vpop.f32.mrb[0].mxu0
      %v2623 = vadd.f32 %v1814, %v2622
      %v2624 = vpop.f32.mrb[0].mxu0
      %v2625 = vpop.f32.mrb[0].mxu0
      %v2626 = vpop.f32.mrb[0].mxu0
      %2627 = vdwg.mxu0
      %v2633 = vunpack.c.l.b16 %v362
      %v2634 = vunpack.c.l.b16 %v363
      %v2635 = vunpack.c.l.b16 %v364
      %v2636 = vunpack.c.l.b16 %v365
      %v2637 = vunpack.c.l.b16 %v366
      %v2638 = vpack.c.b16 %v2634, %v2633
      %v2639 = vpack.c.b16 %v2636, %v2635
      %v2640 = vpack.c.b16 %v2637, %v2637
      %v2644 = vsel %vm2458, %v222, 0
      %v2647 = vsel %vm2462, %v2640, 0
      %2649 = vmatprep.subr.bf16.mxu0 0
      %2650 = vmatpush1.bf16.msra.mxu0 %v2638
      %2651 = vmatprep.subr.bf16.mxu0 0
      %2652 = vmatpush1.bf16.msra.mxu0 %v2639
      %2653 = vmatprep.subr.bf16.mxu0 0
      %2654 = vmatpush1.bf16.msra.mxu0 %v2647
      %2655 = vmatprep.subr.bf16.mxu0 0
      %2656 = vmatpush1.bf16.msra.mxu0 0
      %2657 = vmatprep.subr.bf16.mxu0 0
      %2658 = vmatpush1.bf16.msra.mxu0 0
      %2659 = vmatprep.subr.bf16.mxu0 0
      %2660 = vmatpush1.bf16.msra.mxu0 0
      %2661 = vmatprep.subr.bf16.mxu0 0
      %2662 = vmatpush1.bf16.msra.mxu0 0
      %2663 = vmatprep.subr.bf16.mxu0 0
      %2664 = vmatpush1.bf16.msra.mxu0 0
      %2665 = vmatprep.subr.bf16.mxu0 0
      %2666 = vmatpush1.bf16.msra.mxu0 0
      %2667 = vmatprep.subr.bf16.mxu0 0
      %2668 = vmatpush1.bf16.msra.mxu0 0
      %2669 = vmatprep.subr.bf16.mxu0 0
      %2670 = vmatpush1.bf16.msra.mxu0 0
      %2671 = vmatprep.subr.bf16.mxu0 0
      %2672 = vmatpush1.bf16.msra.mxu0 0
      %2673 = vmatprep.subr.bf16.mxu0 0
      %2674 = vmatpush1.bf16.msra.mxu0 0
      %2675 = vmatprep.subr.bf16.mxu0 0
      %2676 = vmatpush1.bf16.msra.mxu0 0
      %2677 = vmatprep.subr.bf16.mxu0 0
      %2678 = vmatpush1.bf16.msra.mxu0 0
      %2679 = vmatprep.subr.bf16.mxu0 0
      %2680 = vmatpush1.bf16.msra.mxu0 0
      %2681 = vmatprep.mubr.bf16.mxu0 0
      %2682 = vmatmul.mubr.bf16.gmra.mrb[0].mxu0 %v2644
      %v2683 = vpop.f32.mrb[0].mxu0
      %v2684 = vadd.f32 %v1818, %v2683
      %v2685 = vpop.f32.mrb[0].mxu0
      %v2686 = vpop.f32.mrb[0].mxu0
      %v2687 = vpop.f32.mrb[0].mxu0
      %2688 = vdwg.mxu0
      %v2694 = vunpack.c.l.b16 %v367
      %v2695 = vunpack.c.l.b16 %v368
      %v2696 = vunpack.c.l.b16 %v369
      %v2697 = vunpack.c.l.b16 %v370
      %v2698 = vunpack.c.l.b16 %v371
      %v2699 = vpack.c.b16 %v2695, %v2694
      %v2700 = vpack.c.b16 %v2697, %v2696
      %v2701 = vpack.c.b16 %v2698, %v2698
      %v2705 = vsel %vm2458, %v223, 0
      %v2708 = vsel %vm2462, %v2701, 0
      %2710 = vmatprep.subr.bf16.mxu0 0
      %2711 = vmatpush1.bf16.msra.mxu0 %v2699
      %2712 = vmatprep.subr.bf16.mxu0 0
      %2713 = vmatpush1.bf16.msra.mxu0 %v2700
      %2714 = vmatprep.subr.bf16.mxu0 0
      %2715 = vmatpush1.bf16.msra.mxu0 %v2708
      %2716 = vmatprep.subr.bf16.mxu0 0
      %2717 = vmatpush1.bf16.msra.mxu0 0
      %2718 = vmatprep.subr.bf16.mxu0 0
      %2719 = vmatpush1.bf16.msra.mxu0 0
      %2720 = vmatprep.subr.bf16.mxu0 0
      %2721 = vmatpush1.bf16.msra.mxu0 0
      %2722 = vmatprep.subr.bf16.mxu0 0
      %2723 = vmatpush1.bf16.msra.mxu0 0
      %2724 = vmatprep.subr.bf16.mxu0 0
      %2725 = vmatpush1.bf16.msra.mxu0 0
      %2726 = vmatprep.subr.bf16.mxu0 0
      %2727 = vmatpush1.bf16.msra.mxu0 0
      %2728 = vmatprep.subr.bf16.mxu0 0
      %2729 = vmatpush1.bf16.msra.mxu0 0
      %2730 = vmatprep.subr.bf16.mxu0 0
      %2731 = vmatpush1.bf16.msra.mxu0 0
      %2732 = vmatprep.subr.bf16.mxu0 0
      %2733 = vmatpush1.bf16.msra.mxu0 0
      %2734 = vmatprep.subr.bf16.mxu0 0
      %2735 = vmatpush1.bf16.msra.mxu0 0
      %2736 = vmatprep.subr.bf16.mxu0 0
      %2737 = vmatpush1.bf16.msra.mxu0 0
      %2738 = vmatprep.subr.bf16.mxu0 0
      %2739 = vmatpush1.bf16.msra.mxu0 0
      %2740 = vmatprep.subr.bf16.mxu0 0
      %2741 = vmatpush1.bf16.msra.mxu0 0
      %2742 = vmatprep.mubr.bf16.mxu0 0
      %2743 = vmatmul.mubr.bf16.gmra.mrb[0].mxu0 %v2705
      %v2744 = vpop.f32.mrb[0].mxu0
      %v2745 = vadd.f32 %v1822, %v2744
      %v2746 = vpop.f32.mrb[0].mxu0
      %v2747 = vpop.f32.mrb[0].mxu0
      %v2748 = vpop.f32.mrb[0].mxu0
      %2749 = vdwg.mxu0
      %v2755 = vunpack.c.l.b16 %v372
      %v2756 = vunpack.c.l.b16 %v373
      %v2757 = vunpack.c.l.b16 %v374
      %v2758 = vunpack.c.l.b16 %v375
      %v2759 = vunpack.c.l.b16 %v376
      %v2760 = vpack.c.b16 %v2756, %v2755
      %v2761 = vpack.c.b16 %v2758, %v2757
      %v2762 = vpack.c.b16 %v2759, %v2759
      %v2766 = vsel %vm2458, %v224, 0
      %v2769 = vsel %vm2462, %v2762, 0
      %2771 = vmatprep.subr.bf16.mxu0 0
      %2772 = vmatpush1.bf16.msra.mxu0 %v2760
      %2773 = vmatprep.subr.bf16.mxu0 0
      %2774 = vmatpush1.bf16.msra.mxu0 %v2761
      %2775 = vmatprep.subr.bf16.mxu0 0
      %2776 = vmatpush1.bf16.msra.mxu0 %v2769
      %2777 = vmatprep.subr.bf16.mxu0 0
      %2778 = vmatpush1.bf16.msra.mxu0 0
      %2779 = vmatprep.subr.bf16.mxu0 0
      %2780 = vmatpush1.bf16.msra.mxu0 0
      %2781 = vmatprep.subr.bf16.mxu0 0
      %2782 = vmatpush1.bf16.msra.mxu0 0
      %2783 = vmatprep.subr.bf16.mxu0 0
      %2784 = vmatpush1.bf16.msra.mxu0 0
      %2785 = vmatprep.subr.bf16.mxu0 0
      %2786 = vmatpush1.bf16.msra.mxu0 0
      %2787 = vmatprep.subr.bf16.mxu0 0
      %2788 = vmatpush1.bf16.msra.mxu0 0
      %2789 = vmatprep.subr.bf16.mxu0 0
      %2790 = vmatpush1.bf16.msra.mxu0 0
      %2791 = vmatprep.subr.bf16.mxu0 0
      %2792 = vmatpush1.bf16.msra.mxu0 0
      %2793 = vmatprep.subr.bf16.mxu0 0
      %2794 = vmatpush1.bf16.msra.mxu0 0
      %2795 = vmatprep.subr.bf16.mxu0 0
      %2796 = vmatpush1.bf16.msra.mxu0 0
      %2797 = vmatprep.subr.bf16.mxu0 0
      %2798 = vmatpush1.bf16.msra.mxu0 0
      %2799 = vmatprep.subr.bf16.mxu0 0
      %2800 = vmatpush1.bf16.msra.mxu0 0
      %2801 = vmatprep.subr.bf16.mxu0 0
      %2802 = vmatpush1.bf16.msra.mxu0 0
      %2803 = vmatprep.mubr.bf16.mxu0 0
      %2804 = vmatmul.mubr.bf16.gmra.mrb[0].mxu0 %v2766
      %v2805 = vpop.f32.mrb[0].mxu0
      %v2806 = vadd.f32 %v1826, %v2805
      %v2807 = vpop.f32.mrb[0].mxu0
      %v2808 = vpop.f32.mrb[0].mxu0
      %v2809 = vpop.f32.mrb[0].mxu0
      %2810 = vdwg.mxu0
      %v2816 = vunpack.c.l.b16 %v377
      %v2817 = vunpack.c.l.b16 %v378
      %v2818 = vunpack.c.l.b16 %v379
      %v2819 = vunpack.c.l.b16 %v380
      %v2820 = vunpack.c.l.b16 %v381
      %v2821 = vpack.c.b16 %v2817, %v2816
      %v2822 = vpack.c.b16 %v2819, %v2818
      %v2823 = vpack.c.b16 %v2820, %v2820
      %v2827 = vsel %vm2458, %v225, 0
      %v2830 = vsel %vm2462, %v2823, 0
      %2832 = vmatprep.subr.bf16.mxu0 0
      %2833 = vmatpush1.bf16.msra.mxu0 %v2821
      %2834 = vmatprep.subr.bf16.mxu0 0
      %2835 = vmatpush1.bf16.msra.mxu0 %v2822
      %2836 = vmatprep.subr.bf16.mxu0 0
      %2837 = vmatpush1.bf16.msra.mxu0 %v2830
      %2838 = vmatprep.subr.bf16.mxu0 0
      %2839 = vmatpush1.bf16.msra.mxu0 0
      %2840 = vmatprep.subr.bf16.mxu0 0
      %2841 = vmatpush1.bf16.msra.mxu0 0
      %2842 = vmatprep.subr.bf16.mxu0 0
      %2843 = vmatpush1.bf16.msra.mxu0 0
      %2844 = vmatprep.subr.bf16.mxu0 0
      %2845 = vmatpush1.bf16.msra.mxu0 0
      %2846 = vmatprep.subr.bf16.mxu0 0
      %2847 = vmatpush1.bf16.msra.mxu0 0
      %2848 = vmatprep.subr.bf16.mxu0 0
      %2849 = vmatpush1.bf16.msra.mxu0 0
      %2850 = vmatprep.subr.bf16.mxu0 0
      %2851 = vmatpush1.bf16.msra.mxu0 0
      %2852 = vmatprep.subr.bf16.mxu0 0
      %2853 = vmatpush1.bf16.msra.mxu0 0
      %2854 = vmatprep.subr.bf16.mxu0 0
      %2855 = vmatpush1.bf16.msra.mxu0 0
      %2856 = vmatprep.subr.bf16.mxu0 0
      %2857 = vmatpush1.bf16.msra.mxu0 0
      %2858 = vmatprep.subr.bf16.mxu0 0
      %2859 = vmatpush1.bf16.msra.mxu0 0
      %2860 = vmatprep.subr.bf16.mxu0 0
      %2861 = vmatpush1.bf16.msra.mxu0 0
      %2862 = vmatprep.subr.bf16.mxu0 0
      %2863 = vmatpush1.bf16.msra.mxu0 0
      %2864 = vmatprep.mubr.bf16.mxu0 0
      %2865 = vmatmul.mubr.bf16.gmra.mrb[0].mxu0 %v2827
      %v2866 = vpop.f32.mrb[0].mxu0
      %v2867 = vadd.f32 %v1830, %v2866
      %v2868 = vpop.f32.mrb[0].mxu0
      %v2869 = vpop.f32.mrb[0].mxu0
      %v2870 = vpop.f32.mrb[0].mxu0
      %2871 = vdwg.mxu0
      %v2877 = vunpack.c.l.b16 %v382
      %v2878 = vunpack.c.l.b16 %v383
      %v2879 = vunpack.c.l.b16 %v384
      %v2880 = vunpack.c.l.b16 %v385
      %v2881 = vunpack.c.l.b16 %v386
      %v2882 = vpack.c.b16 %v2878, %v2877
      %v2883 = vpack.c.b16 %v2880, %v2879
      %v2884 = vpack.c.b16 %v2881, %v2881
      %v2888 = vsel %vm2458, %v226, 0
      %v2891 = vsel %vm2462, %v2884, 0
      %2893 = vmatprep.subr.bf16.mxu0 0
      %2894 = vmatpush1.bf16.msra.mxu0 %v2882
      %2895 = vmatprep.subr.bf16.mxu0 0
      %2896 = vmatpush1.bf16.msra.mxu0 %v2883
      %2897 = vmatprep.subr.bf16.mxu0 0
      %2898 = vmatpush1.bf16.msra.mxu0 %v2891
      %2899 = vmatprep.subr.bf16.mxu0 0
      %2900 = vmatpush1.bf16.msra.mxu0 0
      %2901 = vmatprep.subr.bf16.mxu0 0
      %2902 = vmatpush1.bf16.msra.mxu0 0
      %2903 = vmatprep.subr.bf16.mxu0 0
      %2904 = vmatpush1.bf16.msra.mxu0 0
      %2905 = vmatprep.subr.bf16.mxu0 0
      %2906 = vmatpush1.bf16.msra.mxu0 0
      %2907 = vmatprep.subr.bf16.mxu0 0
      %2908 = vmatpush1.bf16.msra.mxu0 0
      %2909 = vmatprep.subr.bf16.mxu0 0
      %2910 = vmatpush1.bf16.msra.mxu0 0
      %2911 = vmatprep.subr.bf16.mxu0 0
      %2912 = vmatpush1.bf16.msra.mxu0 0
      %2913 = vmatprep.subr.bf16.mxu0 0
      %2914 = vmatpush1.bf16.msra.mxu0 0
      %2915 = vmatprep.subr.bf16.mxu0 0
      %2916 = vmatpush1.bf16.msra.mxu0 0
      %2917 = vmatprep.subr.bf16.mxu0 0
      %2918 = vmatpush1.bf16.msra.mxu0 0
      %2919 = vmatprep.subr.bf16.mxu0 0
      %2920 = vmatpush1.bf16.msra.mxu0 0
      %2921 = vmatprep.subr.bf16.mxu0 0
      %2922 = vmatpush1.bf16.msra.mxu0 0
      %2923 = vmatprep.subr.bf16.mxu0 0
      %2924 = vmatpush1.bf16.msra.mxu0 0
      %2925 = vmatprep.mubr.bf16.mxu0 0
      %2926 = vmatmul.mubr.bf16.gmra.mrb[0].mxu0 %v2888
      %v2927 = vpop.f32.mrb[0].mxu0
      %v2928 = vadd.f32 %v1834, %v2927
      %v2929 = vpop.f32.mrb[0].mxu0
      %v2930 = vpop.f32.mrb[0].mxu0
      %v2931 = vpop.f32.mrb[0].mxu0
      %2932 = vdwg.mxu0
      %v2938 = vunpack.c.l.b16 %v387
      %v2939 = vunpack.c.l.b16 %v388
      %v2940 = vunpack.c.l.b16 %v389
      %v2941 = vunpack.c.l.b16 %v390
      %v2942 = vunpack.c.l.b16 %v391
      %v2943 = vpack.c.b16 %v2939, %v2938
      %v2944 = vpack.c.b16 %v2941, %v2940
      %v2945 = vpack.c.b16 %v2942, %v2942
      %v2949 = vsel %vm2458, %v227, 0
      %v2952 = vsel %vm2462, %v2945, 0
      %2954 = vmatprep.subr.bf16.mxu0 0
      %2955 = vmatpush1.bf16.msra.mxu0 %v2943
      %2956 = vmatprep.subr.bf16.mxu0 0
      %2957 = vmatpush1.bf16.msra.mxu0 %v2944
      %2958 = vmatprep.subr.bf16.mxu0 0
      %2959 = vmatpush1.bf16.msra.mxu0 %v2952
      %2960 = vmatprep.subr.bf16.mxu0 0
      %2961 = vmatpush1.bf16.msra.mxu0 0
      %2962 = vmatprep.subr.bf16.mxu0 0
      %2963 = vmatpush1.bf16.msra.mxu0 0
      %2964 = vmatprep.subr.bf16.mxu0 0
      %2965 = vmatpush1.bf16.msra.mxu0 0
      %2966 = vmatprep.subr.bf16.mxu0 0
      %2967 = vmatpush1.bf16.msra.mxu0 0
      %2968 = vmatprep.subr.bf16.mxu0 0
      %2969 = vmatpush1.bf16.msra.mxu0 0
      %2970 = vmatprep.subr.bf16.mxu0 0
      %2971 = vmatpush1.bf16.msra.mxu0 0
      %2972 = vmatprep.subr.bf16.mxu0 0
      %2973 = vmatpush1.bf16.msra.mxu0 0
      %2974 = vmatprep.subr.bf16.mxu0 0
      %2975 = vmatpush1.bf16.msra.mxu0 0
      %2976 = vmatprep.subr.bf16.mxu0 0
      %2977 = vmatpush1.bf16.msra.mxu0 0
      %2978 = vmatprep.subr.bf16.mxu0 0
      %2979 = vmatpush1.bf16.msra.mxu0 0
      %2980 = vmatprep.subr.bf16.mxu0 0
      %2981 = vmatpush1.bf16.msra.mxu0 0
      %2982 = vmatprep.subr.bf16.mxu0 0
      %2983 = vmatpush1.bf16.msra.mxu0 0
      %2984 = vmatprep.subr.bf16.mxu0 0
      %2985 = vmatpush1.bf16.msra.mxu0 0
      %2986 = vmatprep.mubr.bf16.mxu0 0
      %2987 = vmatmul.mubr.bf16.gmra.mrb[0].mxu0 %v2949
      %v2988 = vpop.f32.mrb[0].mxu0
      %v2989 = vadd.f32 %v1838, %v2988
      %v2990 = vpop.f32.mrb[0].mxu0
      %v2991 = vpop.f32.mrb[0].mxu0
      %v2992 = vpop.f32.mrb[0].mxu0
      %2993 = vdwg.mxu0
      %v2999 = vunpack.c.l.b16 %v392
      %v3000 = vunpack.c.l.b16 %v393
      %v3001 = vunpack.c.l.b16 %v394
      %v3002 = vunpack.c.l.b16 %v395
      %v3003 = vunpack.c.l.b16 %v396
      %v3004 = vpack.c.b16 %v3000, %v2999
      %v3005 = vpack.c.b16 %v3002, %v3001
      %v3006 = vpack.c.b16 %v3003, %v3003
      %v3010 = vsel %vm2458, %v228, 0
      %v3013 = vsel %vm2462, %v3006, 0
      %3015 = vmatprep.subr.bf16.mxu0 0
      %3016 = vmatpush1.bf16.msra.mxu0 %v3004
      %3017 = vmatprep.subr.bf16.mxu0 0
      %3018 = vmatpush1.bf16.msra.mxu0 %v3005
      %3019 = vmatprep.subr.bf16.mxu0 0
      %3020 = vmatpush1.bf16.msra.mxu0 %v3013
      %3021 = vmatprep.subr.bf16.mxu0 0
      %3022 = vmatpush1.bf16.msra.mxu0 0
      %3023 = vmatprep.subr.bf16.mxu0 0
      %3024 = vmatpush1.bf16.msra.mxu0 0
      %3025 = vmatprep.subr.bf16.mxu0 0
      %3026 = vmatpush1.bf16.msra.mxu0 0
      %3027 = vmatprep.subr.bf16.mxu0 0
      %3028 = vmatpush1.bf16.msra.mxu0 0
      %3029 = vmatprep.subr.bf16.mxu0 0
      %3030 = vmatpush1.bf16.msra.mxu0 0
      %3031 = vmatprep.subr.bf16.mxu0 0
      %3032 = vmatpush1.bf16.msra.mxu0 0
      %3033 = vmatprep.subr.bf16.mxu0 0
      %3034 = vmatpush1.bf16.msra.mxu0 0
      %3035 = vmatprep.subr.bf16.mxu0 0
      %3036 = vmatpush1.bf16.msra.mxu0 0
      %3037 = vmatprep.subr.bf16.mxu0 0
      %3038 = vmatpush1.bf16.msra.mxu0 0
      %3039 = vmatprep.subr.bf16.mxu0 0
      %3040 = vmatpush1.bf16.msra.mxu0 0
      %3041 = vmatprep.subr.bf16.mxu0 0
      %3042 = vmatpush1.bf16.msra.mxu0 0
      %3043 = vmatprep.subr.bf16.mxu0 0
      %3044 = vmatpush1.bf16.msra.mxu0 0
      %3045 = vmatprep.subr.bf16.mxu0 0
      %3046 = vmatpush1.bf16.msra.mxu0 0
      %3047 = vmatprep.mubr.bf16.mxu0 0
      %3048 = vmatmul.mubr.bf16.gmra.mrb[0].mxu0 %v3010
      %v3049 = vpop.f32.mrb[0].mxu0
      %v3050 = vadd.f32 %v1842, %v3049
      %v3051 = vpop.f32.mrb[0].mxu0
      %v3052 = vpop.f32.mrb[0].mxu0
      %v3053 = vpop.f32.mrb[0].mxu0
      %3054 = vdwg.mxu0
      %v3060 = vunpack.c.l.b16 %v397
      %v3061 = vunpack.c.l.b16 %v398
      %v3062 = vunpack.c.l.b16 %v399
      %v3063 = vunpack.c.l.b16 %v400
      %v3064 = vunpack.c.l.b16 %v401
      %v3065 = vpack.c.b16 %v3061, %v3060
      %v3066 = vpack.c.b16 %v3063, %v3062
      %v3067 = vpack.c.b16 %v3064, %v3064
      %v3071 = vsel %vm2458, %v229, 0
      %v3074 = vsel %vm2462, %v3067, 0
      %3076 = vmatprep.subr.bf16.mxu0 0
      %3077 = vmatpush1.bf16.msra.mxu0 %v3065
      %3078 = vmatprep.subr.bf16.mxu0 0
      %3079 = vmatpush1.bf16.msra.mxu0 %v3066
      %3080 = vmatprep.subr.bf16.mxu0 0
      %3081 = vmatpush1.bf16.msra.mxu0 %v3074
      %3082 = vmatprep.subr.bf16.mxu0 0
      %3083 = vmatpush1.bf16.msra.mxu0 0
      %3084 = vmatprep.subr.bf16.mxu0 0
      %3085 = vmatpush1.bf16.msra.mxu0 0
      %3086 = vmatprep.subr.bf16.mxu0 0
      %3087 = vmatpush1.bf16.msra.mxu0 0
      %3088 = vmatprep.subr.bf16.mxu0 0
      %3089 = vmatpush1.bf16.msra.mxu0 0
      %3090 = vmatprep.subr.bf16.mxu0 0
      %3091 = vmatpush1.bf16.msra.mxu0 0
      %3092 = vmatprep.subr.bf16.mxu0 0
      %3093 = vmatpush1.bf16.msra.mxu0 0
      %3094 = vmatprep.subr.bf16.mxu0 0
      %3095 = vmatpush1.bf16.msra.mxu0 0
      %3096 = vmatprep.subr.bf16.mxu0 0
      %3097 = vmatpush1.bf16.msra.mxu0 0
      %3098 = vmatprep.subr.bf16.mxu0 0
      %3099 = vmatpush1.bf16.msra.mxu0 0
      %3100 = vmatprep.subr.bf16.mxu0 0
      %3101 = vmatpush1.bf16.msra.mxu0 0
      %3102 = vmatprep.subr.bf16.mxu0 0
      %3103 = vmatpush1.bf16.msra.mxu0 0
      %3104 = vmatprep.subr.bf16.mxu0 0
      %3105 = vmatpush1.bf16.msra.mxu0 0
      %3106 = vmatprep.subr.bf16.mxu0 0
      %3107 = vmatpush1.bf16.msra.mxu0 0
      %3108 = vmatprep.mubr.bf16.mxu0 0
      %3109 = vmatmul.mubr.bf16.gmra.mrb[0].mxu0 %v3071
      %v3110 = vpop.f32.mrb[0].mxu0
      %v3111 = vadd.f32 %v1846, %v3110
      %v3112 = vpop.f32.mrb[0].mxu0
      %v3113 = vpop.f32.mrb[0].mxu0
      %v3114 = vpop.f32.mrb[0].mxu0
      %3115 = vdwg.mxu0
      %v3121 = vunpack.c.l.b16 %v402
      %v3122 = vunpack.c.l.b16 %v403
      %v3123 = vunpack.c.l.b16 %v404
      %v3124 = vunpack.c.l.b16 %v405
      %v3125 = vunpack.c.l.b16 %v406
      %v3126 = vpack.c.b16 %v3122, %v3121
      %v3127 = vpack.c.b16 %v3124, %v3123
      %v3128 = vpack.c.b16 %v3125, %v3125
      %v3132 = vsel %vm2458, %v230, 0
      %v3135 = vsel %vm2462, %v3128, 0
      %3137 = vmatprep.subr.bf16.mxu0 0
      %3138 = vmatpush1.bf16.msra.mxu0 %v3126
      %3139 = vmatprep.subr.bf16.mxu0 0
      %3140 = vmatpush1.bf16.msra.mxu0 %v3127
      %3141 = vmatprep.subr.bf16.mxu0 0
      %3142 = vmatpush1.bf16.msra.mxu0 %v3135
      %3143 = vmatprep.subr.bf16.mxu0 0
      %3144 = vmatpush1.bf16.msra.mxu0 0
      %3145 = vmatprep.subr.bf16.mxu0 0
      %3146 = vmatpush1.bf16.msra.mxu0 0
      %3147 = vmatprep.subr.bf16.mxu0 0
      %3148 = vmatpush1.bf16.msra.mxu0 0
      %3149 = vmatprep.subr.bf16.mxu0 0
      %3150 = vmatpush1.bf16.msra.mxu0 0
      %3151 = vmatprep.subr.bf16.mxu0 0
      %3152 = vmatpush1.bf16.msra.mxu0 0
      %3153 = vmatprep.subr.bf16.mxu0 0
      %3154 = vmatpush1.bf16.msra.mxu0 0
      %3155 = vmatprep.subr.bf16.mxu0 0
      %3156 = vmatpush1.bf16.msra.mxu0 0
      %3157 = vmatprep.subr.bf16.mxu0 0
      %3158 = vmatpush1.bf16.msra.mxu0 0
      %3159 = vmatprep.subr.bf16.mxu0 0
      %3160 = vmatpush1.bf16.msra.mxu0 0
      %3161 = vmatprep.subr.bf16.mxu0 0
      %3162 = vmatpush1.bf16.msra.mxu0 0
      %3163 = vmatprep.subr.bf16.mxu0 0
      %3164 = vmatpush1.bf16.msra.mxu0 0
      %3165 = vmatprep.subr.bf16.mxu0 0
      %3166 = vmatpush1.bf16.msra.mxu0 0
      %3167 = vmatprep.subr.bf16.mxu0 0
      %3168 = vmatpush1.bf16.msra.mxu0 0
      %3169 = vmatprep.mubr.bf16.mxu0 0
      %3170 = vmatmul.mubr.bf16.gmra.mrb[0].mxu0 %v3132
      %v3171 = vpop.f32.mrb[0].mxu0
      %v3172 = vadd.f32 %v1850, %v3171
      %v3173 = vpop.f32.mrb[0].mxu0
      %v3174 = vpop.f32.mrb[0].mxu0
      %v3175 = vpop.f32.mrb[0].mxu0
      %3176 = vdwg.mxu0
      %v3182 = vunpack.c.l.b16 %v407
      %v3183 = vunpack.c.l.b16 %v408
      %v3184 = vunpack.c.l.b16 %v409
      %v3185 = vunpack.c.l.b16 %v410
      %v3186 = vunpack.c.l.b16 %v411
      %v3187 = vpack.c.b16 %v3183, %v3182
      %v3188 = vpack.c.b16 %v3185, %v3184
      %v3189 = vpack.c.b16 %v3186, %v3186
      %v3193 = vsel %vm2458, %v231, 0
      %v3196 = vsel %vm2462, %v3189, 0
      %3198 = vmatprep.subr.bf16.mxu0 0
      %3199 = vmatpush1.bf16.msra.mxu0 %v3187
      %3200 = vmatprep.subr.bf16.mxu0 0
      %3201 = vmatpush1.bf16.msra.mxu0 %v3188
      %3202 = vmatprep.subr.bf16.mxu0 0
      %3203 = vmatpush1.bf16.msra.mxu0 %v3196
      %3204 = vmatprep.subr.bf16.mxu0 0
      %3205 = vmatpush1.bf16.msra.mxu0 0
      %3206 = vmatprep.subr.bf16.mxu0 0
      %3207 = vmatpush1.bf16.msra.mxu0 0
      %3208 = vmatprep.subr.bf16.mxu0 0
      %3209 = vmatpush1.bf16.msra.mxu0 0
      %3210 = vmatprep.subr.bf16.mxu0 0
      %3211 = vmatpush1.bf16.msra.mxu0 0
      %3212 = vmatprep.subr.bf16.mxu0 0
      %3213 = vmatpush1.bf16.msra.mxu0 0
      %3214 = vmatprep.subr.bf16.mxu0 0
      %3215 = vmatpush1.bf16.msra.mxu0 0
      %3216 = vmatprep.subr.bf16.mxu0 0
      %3217 = vmatpush1.bf16.msra.mxu0 0
      %3218 = vmatprep.subr.bf16.mxu0 0
      %3219 = vmatpush1.bf16.msra.mxu0 0
      %3220 = vmatprep.subr.bf16.mxu0 0
      %3221 = vmatpush1.bf16.msra.mxu0 0
      %3222 = vmatprep.subr.bf16.mxu0 0
      %3223 = vmatpush1.bf16.msra.mxu0 0
      %3224 = vmatprep.subr.bf16.mxu0 0
      %3225 = vmatpush1.bf16.msra.mxu0 0
      %3226 = vmatprep.subr.bf16.mxu0 0
      %3227 = vmatpush1.bf16.msra.mxu0 0
      %3228 = vmatprep.subr.bf16.mxu0 0
      %3229 = vmatpush1.bf16.msra.mxu0 0
      %3230 = vmatprep.mubr.bf16.mxu0 0
      %3231 = vmatmul.mubr.bf16.gmra.mrb[0].mxu0 %v3193
      %v3232 = vpop.f32.mrb[0].mxu0
      %v3233 = vadd.f32 %v1854, %v3232
      %v3234 = vpop.f32.mrb[0].mxu0
      %v3235 = vpop.f32.mrb[0].mxu0
      %v3236 = vpop.f32.mrb[0].mxu0
      %3237 = vdwg.mxu0
      %v3243 = vunpack.c.l.b16 %v412
      %v3244 = vunpack.c.l.b16 %v413
      %v3245 = vunpack.c.l.b16 %v414
      %v3246 = vunpack.c.l.b16 %v415
      %v3247 = vunpack.c.l.b16 %v416
      %v3248 = vpack.c.b16 %v3244, %v3243
      %v3249 = vpack.c.b16 %v3246, %v3245
      %v3250 = vpack.c.b16 %v3247, %v3247
      %v3254 = vsel %vm2458, %v232, 0
      %v3257 = vsel %vm2462, %v3250, 0
      %3259 = vmatprep.subr.bf16.mxu0 0
      %3260 = vmatpush1.bf16.msra.mxu0 %v3248
      %3261 = vmatprep.subr.bf16.mxu0 0
      %3262 = vmatpush1.bf16.msra.mxu0 %v3249
      %3263 = vmatprep.subr.bf16.mxu0 0
      %3264 = vmatpush1.bf16.msra.mxu0 %v3257
      %3265 = vmatprep.subr.bf16.mxu0 0
      %3266 = vmatpush1.bf16.msra.mxu0 0
      %3267 = vmatprep.subr.bf16.mxu0 0
      %3268 = vmatpush1.bf16.msra.mxu0 0
      %3269 = vmatprep.subr.bf16.mxu0 0
      %3270 = vmatpush1.bf16.msra.mxu0 0
      %3271 = vmatprep.subr.bf16.mxu0 0
      %3272 = vmatpush1.bf16.msra.mxu0 0
      %3273 = vmatprep.subr.bf16.mxu0 0
      %3274 = vmatpush1.bf16.msra.mxu0 0
      %3275 = vmatprep.subr.bf16.mxu0 0
      %3276 = vmatpush1.bf16.msra.mxu0 0
      %3277 = vmatprep.subr.bf16.mxu0 0
      %3278 = vmatpush1.bf16.msra.mxu0 0
      %3279 = vmatprep.subr.bf16.mxu0 0
      %3280 = vmatpush1.bf16.msra.mxu0 0
      %3281 = vmatprep.subr.bf16.mxu0 0
      %3282 = vmatpush1.bf16.msra.mxu0 0
      %3283 = vmatprep.subr.bf16.mxu0 0
      %3284 = vmatpush1.bf16.msra.mxu0 0
      %3285 = vmatprep.subr.bf16.mxu0 0
      %3286 = vmatpush1.bf16.msra.mxu0 0
      %3287 = vmatprep.subr.bf16.mxu0 0
      %3288 = vmatpush1.bf16.msra.mxu0 0
      %3289 = vmatprep.subr.bf16.mxu0 0
      %3290 = vmatpush1.bf16.msra.mxu0 0
      %3291 = vmatprep.mubr.bf16.mxu0 0
      %3292 = vmatmul.mubr.bf16.gmra.mrb[0].mxu0 %v3254
      %v3293 = vpop.f32.mrb[0].mxu0
      %v3294 = vadd.f32 %v1858, %v3293
      %v3295 = vpop.f32.mrb[0].mxu0
      %v3296 = vpop.f32.mrb[0].mxu0
      %v3297 = vpop.f32.mrb[0].mxu0
      %3298 = vdwg.mxu0
      %v3304 = vunpack.c.l.b16 %v417
      %v3305 = vunpack.c.l.b16 %v418
      %v3306 = vunpack.c.l.b16 %v419
      %v3307 = vunpack.c.l.b16 %v420
      %v3308 = vunpack.c.l.b16 %v421
      %v3309 = vpack.c.b16 %v3305, %v3304
      %v3310 = vpack.c.b16 %v3307, %v3306
      %v3311 = vpack.c.b16 %v3308, %v3308
      %v3315 = vsel %vm2458, %v233, 0
      %v3318 = vsel %vm2462, %v3311, 0
      %3320 = vmatprep.subr.bf16.mxu0 0
      %3321 = vmatpush1.bf16.msra.mxu0 %v3309
      %3322 = vmatprep.subr.bf16.mxu0 0
      %3323 = vmatpush1.bf16.msra.mxu0 %v3310
      %3324 = vmatprep.subr.bf16.mxu0 0
      %3325 = vmatpush1.bf16.msra.mxu0 %v3318
      %3326 = vmatprep.subr.bf16.mxu0 0
      %3327 = vmatpush1.bf16.msra.mxu0 0
      %3328 = vmatprep.subr.bf16.mxu0 0
      %3329 = vmatpush1.bf16.msra.mxu0 0
      %3330 = vmatprep.subr.bf16.mxu0 0
      %3331 = vmatpush1.bf16.msra.mxu0 0
      %3332 = vmatprep.subr.bf16.mxu0 0
      %3333 = vmatpush1.bf16.msra.mxu0 0
      %3334 = vmatprep.subr.bf16.mxu0 0
      %3335 = vmatpush1.bf16.msra.mxu0 0
      %3336 = vmatprep.subr.bf16.mxu0 0
      %3337 = vmatpush1.bf16.msra.mxu0 0
      %3338 = vmatprep.subr.bf16.mxu0 0
      %3339 = vmatpush1.bf16.msra.mxu0 0
      %3340 = vmatprep.subr.bf16.mxu0 0
      %3341 = vmatpush1.bf16.msra.mxu0 0
      %3342 = vmatprep.subr.bf16.mxu0 0
      %3343 = vmatpush1.bf16.msra.mxu0 0
      %3344 = vmatprep.subr.bf16.mxu0 0
      %3345 = vmatpush1.bf16.msra.mxu0 0
      %3346 = vmatprep.subr.bf16.mxu0 0
      %3347 = vmatpush1.bf16.msra.mxu0 0
      %3348 = vmatprep.subr.bf16.mxu0 0
      %3349 = vmatpush1.bf16.msra.mxu0 0
      %3350 = vmatprep.subr.bf16.mxu0 0
      %3351 = vmatpush1.bf16.msra.mxu0 0
      %3352 = vmatprep.mubr.bf16.mxu0 0
      %3353 = vmatmul.mubr.bf16.gmra.mrb[0].mxu0 %v3315
      %v3354 = vpop.f32.mrb[0].mxu0
      %v3355 = vadd.f32 %v1862, %v3354
      %v3356 = vpop.f32.mrb[0].mxu0
      %v3357 = vpop.f32.mrb[0].mxu0
      %v3358 = vpop.f32.mrb[0].mxu0
      %3359 = vdwg.mxu0
      %v3365 = vunpack.c.l.b16 %v422
      %v3366 = vunpack.c.l.b16 %v423
      %v3367 = vunpack.c.l.b16 %v424
      %v3368 = vunpack.c.l.b16 %v425
      %v3369 = vunpack.c.l.b16 %v426
      %v3370 = vpack.c.b16 %v3366, %v3365
      %v3371 = vpack.c.b16 %v3368, %v3367
      %v3372 = vpack.c.b16 %v3369, %v3369
      %v3376 = vsel %vm2458, %v234, 0
      %v3379 = vsel %vm2462, %v3372, 0
      %3381 = vmatprep.subr.bf16.mxu0 0
      %3382 = vmatpush1.bf16.msra.mxu0 %v3370
      %3383 = vmatprep.subr.bf16.mxu0 0
      %3384 = vmatpush1.bf16.msra.mxu0 %v3371
      %3385 = vmatprep.subr.bf16.mxu0 0
      %3386 = vmatpush1.bf16.msra.mxu0 %v3379
      %3387 = vmatprep.subr.bf16.mxu0 0
      %3388 = vmatpush1.bf16.msra.mxu0 0
      %3389 = vmatprep.subr.bf16.mxu0 0
      %3390 = vmatpush1.bf16.msra.mxu0 0
      %3391 = vmatprep.subr.bf16.mxu0 0
      %3392 = vmatpush1.bf16.msra.mxu0 0
      %3393 = vmatprep.subr.bf16.mxu0 0
      %3394 = vmatpush1.bf16.msra.mxu0 0
      %3395 = vmatprep.subr.bf16.mxu0 0
      %3396 = vmatpush1.bf16.msra.mxu0 0
      %3397 = vmatprep.subr.bf16.mxu0 0
      %3398 = vmatpush1.bf16.msra.mxu0 0
      %3399 = vmatprep.subr.bf16.mxu0 0
      %3400 = vmatpush1.bf16.msra.mxu0 0
      %3401 = vmatprep.subr.bf16.mxu0 0
      %3402 = vmatpush1.bf16.msra.mxu0 0
      %3403 = vmatprep.subr.bf16.mxu0 0
      %3404 = vmatpush1.bf16.msra.mxu0 0
      %3405 = vmatprep.subr.bf16.mxu0 0
      %3406 = vmatpush1.bf16.msra.mxu0 0
      %3407 = vmatprep.subr.bf16.mxu0 0
      %3408 = vmatpush1.bf16.msra.mxu0 0
      %3409 = vmatprep.subr.bf16.mxu0 0
      %3410 = vmatpush1.bf16.msra.mxu0 0
      %3411 = vmatprep.subr.bf16.mxu0 0
      %3412 = vmatpush1.bf16.msra.mxu0 0
      %3413 = vmatprep.mubr.bf16.mxu0 0
      %3414 = vmatmul.mubr.bf16.gmra.mrb[0].mxu0 %v3376
      %v3415 = vpop.f32.mrb[0].mxu0
      %v3416 = vadd.f32 %v1866, %v3415
      %v3417 = vpop.f32.mrb[0].mxu0
      %v3418 = vpop.f32.mrb[0].mxu0
      %v3419 = vpop.f32.mrb[0].mxu0
      %3420 = vdwg.mxu0
      %v3426 = vunpack.c.l.b16 %v427
      %v3427 = vunpack.c.l.b16 %v428
      %v3428 = vunpack.c.l.b16 %v429
      %v3429 = vunpack.c.l.b16 %v430
      %v3430 = vunpack.c.l.b16 %v431
      %v3431 = vpack.c.b16 %v3427, %v3426
      %v3432 = vpack.c.b16 %v3429, %v3428
      %v3433 = vpack.c.b16 %v3430, %v3430
      %v3437 = vsel %vm2458, %v235, 0
      %v3440 = vsel %vm2462, %v3433, 0
      %3442 = vmatprep.subr.bf16.mxu0 0
      %3443 = vmatpush1.bf16.msra.mxu0 %v3431
      %3444 = vmatprep.subr.bf16.mxu0 0
      %3445 = vmatpush1.bf16.msra.mxu0 %v3432
      %3446 = vmatprep.subr.bf16.mxu0 0
      %3447 = vmatpush1.bf16.msra.mxu0 %v3440
      %3448 = vmatprep.subr.bf16.mxu0 0
      %3449 = vmatpush1.bf16.msra.mxu0 0
      %3450 = vmatprep.subr.bf16.mxu0 0
      %3451 = vmatpush1.bf16.msra.mxu0 0
      %3452 = vmatprep.subr.bf16.mxu0 0
      %3453 = vmatpush1.bf16.msra.mxu0 0
      %3454 = vmatprep.subr.bf16.mxu0 0
      %3455 = vmatpush1.bf16.msra.mxu0 0
      %3456 = vmatprep.subr.bf16.mxu0 0
      %3457 = vmatpush1.bf16.msra.mxu0 0
      %3458 = vmatprep.subr.bf16.mxu0 0
      %3459 = vmatpush1.bf16.msra.mxu0 0
      %3460 = vmatprep.subr.bf16.mxu0 0
      %3461 = vmatpush1.bf16.msra.mxu0 0
      %3462 = vmatprep.subr.bf16.mxu0 0
      %3463 = vmatpush1.bf16.msra.mxu0 0
      %3464 = vmatprep.subr.bf16.mxu0 0
      %3465 = vmatpush1.bf16.msra.mxu0 0
      %3466 = vmatprep.subr.bf16.mxu0 0
      %3467 = vmatpush1.bf16.msra.mxu0 0
      %3468 = vmatprep.subr.bf16.mxu0 0
      %3469 = vmatpush1.bf16.msra.mxu0 0
      %3470 = vmatprep.subr.bf16.mxu0 0
      %3471 = vmatpush1.bf16.msra.mxu0 0
      %3472 = vmatprep.subr.bf16.mxu0 0
      %3473 = vmatpush1.bf16.msra.mxu0 0
      %3474 = vmatprep.mubr.bf16.mxu0 0
      %3475 = vmatmul.mubr.bf16.gmra.mrb[0].mxu0 %v3437
      %v3476 = vpop.f32.mrb[0].mxu0
      %v3477 = vadd.f32 %v1870, %v3476
      %v3478 = vpop.f32.mrb[0].mxu0
      %v3479 = vpop.f32.mrb[0].mxu0
      %v3480 = vpop.f32.mrb[0].mxu0
      %3481 = vdwg.mxu0
      %v3487 = vunpack.c.l.b16 %v432
      %v3488 = vunpack.c.l.b16 %v433
      %v3489 = vunpack.c.l.b16 %v434
      %v3490 = vunpack.c.l.b16 %v435
      %v3491 = vunpack.c.l.b16 %v436
      %v3492 = vpack.c.b16 %v3488, %v3487
      %v3493 = vpack.c.b16 %v3490, %v3489
      %v3494 = vpack.c.b16 %v3491, %v3491
      %v3498 = vsel %vm2458, %v236, 0
      %v3501 = vsel %vm2462, %v3494, 0
      %3503 = vmatprep.subr.bf16.mxu0 0
      %3504 = vmatpush1.bf16.msra.mxu0 %v3492
      %3505 = vmatprep.subr.bf16.mxu0 0
      %3506 = vmatpush1.bf16.msra.mxu0 %v3493
      %3507 = vmatprep.subr.bf16.mxu0 0
      %3508 = vmatpush1.bf16.msra.mxu0 %v3501
      %3509 = vmatprep.subr.bf16.mxu0 0
      %3510 = vmatpush1.bf16.msra.mxu0 0
      %3511 = vmatprep.subr.bf16.mxu0 0
      %3512 = vmatpush1.bf16.msra.mxu0 0
      %3513 = vmatprep.subr.bf16.mxu0 0
      %3514 = vmatpush1.bf16.msra.mxu0 0
      %3515 = vmatprep.subr.bf16.mxu0 0
      %3516 = vmatpush1.bf16.msra.mxu0 0
      %3517 = vmatprep.subr.bf16.mxu0 0
      %3518 = vmatpush1.bf16.msra.mxu0 0
      %3519 = vmatprep.subr.bf16.mxu0 0
      %3520 = vmatpush1.bf16.msra.mxu0 0
      %3521 = vmatprep.subr.bf16.mxu0 0
      %3522 = vmatpush1.bf16.msra.mxu0 0
      %3523 = vmatprep.subr.bf16.mxu0 0
      %3524 = vmatpush1.bf16.msra.mxu0 0
      %3525 = vmatprep.subr.bf16.mxu0 0
      %3526 = vmatpush1.bf16.msra.mxu0 0
      %3527 = vmatprep.subr.bf16.mxu0 0
      %3528 = vmatpush1.bf16.msra.mxu0 0
      %3529 = vmatprep.subr.bf16.mxu0 0
      %3530 = vmatpush1.bf16.msra.mxu0 0
      %3531 = vmatprep.subr.bf16.mxu0 0
      %3532 = vmatpush1.bf16.msra.mxu0 0
      %3533 = vmatprep.subr.bf16.mxu0 0
      %3534 = vmatpush1.bf16.msra.mxu0 0
      %3535 = vmatprep.mubr.bf16.mxu0 0
      %3536 = vmatmul.mubr.bf16.gmra.mrb[0].mxu0 %v3498
      %v3537 = vpop.f32.mrb[0].mxu0
      %v3538 = vadd.f32 %v1874, %v3537
      %v3539 = vpop.f32.mrb[0].mxu0
      %v3540 = vpop.f32.mrb[0].mxu0
      %v3541 = vpop.f32.mrb[0].mxu0
      %3542 = vdwg.mxu0
      %v3548 = vunpack.c.l.b16 %v437
      %v3549 = vunpack.c.l.b16 %v438
      %v3550 = vunpack.c.l.b16 %v439
      %v3551 = vunpack.c.l.b16 %v440
      %v3552 = vunpack.c.l.b16 %v441
      %v3553 = vpack.c.b16 %v3549, %v3548
      %v3554 = vpack.c.b16 %v3551, %v3550
      %v3555 = vpack.c.b16 %v3552, %v3552
      %v3559 = vsel %vm2458, %v237, 0
      %v3562 = vsel %vm2462, %v3555, 0
      %3564 = vmatprep.subr.bf16.mxu0 0
      %3565 = vmatpush1.bf16.msra.mxu0 %v3553
      %3566 = vmatprep.subr.bf16.mxu0 0
      %3567 = vmatpush1.bf16.msra.mxu0 %v3554
      %3568 = vmatprep.subr.bf16.mxu0 0
      %3569 = vmatpush1.bf16.msra.mxu0 %v3562
      %3570 = vmatprep.subr.bf16.mxu0 0
      %3571 = vmatpush1.bf16.msra.mxu0 0
      %3572 = vmatprep.subr.bf16.mxu0 0
      %3573 = vmatpush1.bf16.msra.mxu0 0
      %3574 = vmatprep.subr.bf16.mxu0 0
      %3575 = vmatpush1.bf16.msra.mxu0 0
      %3576 = vmatprep.subr.bf16.mxu0 0
      %3577 = vmatpush1.bf16.msra.mxu0 0
      %3578 = vmatprep.subr.bf16.mxu0 0
      %3579 = vmatpush1.bf16.msra.mxu0 0
      %3580 = vmatprep.subr.bf16.mxu0 0
      %3581 = vmatpush1.bf16.msra.mxu0 0
      %3582 = vmatprep.subr.bf16.mxu0 0
      %3583 = vmatpush1.bf16.msra.mxu0 0
      %3584 = vmatprep.subr.bf16.mxu0 0
      %3585 = vmatpush1.bf16.msra.mxu0 0
      %3586 = vmatprep.subr.bf16.mxu0 0
      %3587 = vmatpush1.bf16.msra.mxu0 0
      %3588 = vmatprep.subr.bf16.mxu0 0
      %3589 = vmatpush1.bf16.msra.mxu0 0
      %3590 = vmatprep.subr.bf16.mxu0 0
      %3591 = vmatpush1.bf16.msra.mxu0 0
      %3592 = vmatprep.subr.bf16.mxu0 0
      %3593 = vmatpush1.bf16.msra.mxu0 0
      %3594 = vmatprep.subr.bf16.mxu0 0
      %3595 = vmatpush1.bf16.msra.mxu0 0
      %3596 = vmatprep.mubr.bf16.mxu0 0
      %3597 = vmatmul.mubr.bf16.gmra.mrb[0].mxu0 %v3559
      %v3598 = vpop.f32.mrb[0].mxu0
      %v3599 = vadd.f32 %v1878, %v3598
      %v3600 = vpop.f32.mrb[0].mxu0
      %v3601 = vpop.f32.mrb[0].mxu0
      %v3602 = vpop.f32.mrb[0].mxu0
      %3603 = vdwg.mxu0
      %v3609 = vunpack.c.l.b16 %v442
      %v3610 = vunpack.c.l.b16 %v443
      %v3611 = vunpack.c.l.b16 %v444
      %v3612 = vunpack.c.l.b16 %v445
      %v3613 = vunpack.c.l.b16 %v446
      %v3614 = vpack.c.b16 %v3610, %v3609
      %v3615 = vpack.c.b16 %v3612, %v3611
      %v3616 = vpack.c.b16 %v3613, %v3613
      %v3620 = vsel %vm2458, %v238, 0
      %v3623 = vsel %vm2462, %v3616, 0
      %3625 = vmatprep.subr.bf16.mxu0 0
      %3626 = vmatpush1.bf16.msra.mxu0 %v3614
      %3627 = vmatprep.subr.bf16.mxu0 0
      %3628 = vmatpush1.bf16.msra.mxu0 %v3615
      %3629 = vmatprep.subr.bf16.mxu0 0
      %3630 = vmatpush1.bf16.msra.mxu0 %v3623
      %3631 = vmatprep.subr.bf16.mxu0 0
      %3632 = vmatpush1.bf16.msra.mxu0 0
      %3633 = vmatprep.subr.bf16.mxu0 0
      %3634 = vmatpush1.bf16.msra.mxu0 0
      %3635 = vmatprep.subr.bf16.mxu0 0
      %3636 = vmatpush1.bf16.msra.mxu0 0
      %3637 = vmatprep.subr.bf16.mxu0 0
      %3638 = vmatpush1.bf16.msra.mxu0 0
      %3639 = vmatprep.subr.bf16.mxu0 0
      %3640 = vmatpush1.bf16.msra.mxu0 0
      %3641 = vmatprep.subr.bf16.mxu0 0
      %3642 = vmatpush1.bf16.msra.mxu0 0
      %3643 = vmatprep.subr.bf16.mxu0 0
      %3644 = vmatpush1.bf16.msra.mxu0 0
      %3645 = vmatprep.subr.bf16.mxu0 0
      %3646 = vmatpush1.bf16.msra.mxu0 0
      %3647 = vmatprep.subr.bf16.mxu0 0
      %3648 = vmatpush1.bf16.msra.mxu0 0
      %3649 = vmatprep.subr.bf16.mxu0 0
      %3650 = vmatpush1.bf16.msra.mxu0 0
      %3651 = vmatprep.subr.bf16.mxu0 0
      %3652 = vmatpush1.bf16.msra.mxu0 0
      %3653 = vmatprep.subr.bf16.mxu0 0
      %3654 = vmatpush1.bf16.msra.mxu0 0
      %3655 = vmatprep.subr.bf16.mxu0 0
      %3656 = vmatpush1.bf16.msra.mxu0 0
      %3657 = vmatprep.mubr.bf16.mxu0 0
      %3658 = vmatmul.mubr.bf16.gmra.mrb[0].mxu0 %v3620
      %v3659 = vpop.f32.mrb[0].mxu0
      %v3660 = vadd.f32 %v1882, %v3659
      %v3661 = vpop.f32.mrb[0].mxu0
      %v3662 = vpop.f32.mrb[0].mxu0
      %v3663 = vpop.f32.mrb[0].mxu0
      %3664 = vdwg.mxu0
      %v3670 = vunpack.c.l.b16 %v447
      %v3671 = vunpack.c.l.b16 %v448
      %v3672 = vunpack.c.l.b16 %v449
      %v3673 = vunpack.c.l.b16 %v450
      %v3674 = vunpack.c.l.b16 %v451
      %v3675 = vpack.c.b16 %v3671, %v3670
      %v3676 = vpack.c.b16 %v3673, %v3672
      %v3677 = vpack.c.b16 %v3674, %v3674
      %v3681 = vsel %vm2458, %v239, 0
      %v3684 = vsel %vm2462, %v3677, 0
      %3686 = vmatprep.subr.bf16.mxu0 0
      %3687 = vmatpush1.bf16.msra.mxu0 %v3675
      %3688 = vmatprep.subr.bf16.mxu0 0
      %3689 = vmatpush1.bf16.msra.mxu0 %v3676
      %3690 = vmatprep.subr.bf16.mxu0 0
      %3691 = vmatpush1.bf16.msra.mxu0 %v3684
      %3692 = vmatprep.subr.bf16.mxu0 0
      %3693 = vmatpush1.bf16.msra.mxu0 0
      %3694 = vmatprep.subr.bf16.mxu0 0
      %3695 = vmatpush1.bf16.msra.mxu0 0
      %3696 = vmatprep.subr.bf16.mxu0 0
      %3697 = vmatpush1.bf16.msra.mxu0 0
      %3698 = vmatprep.subr.bf16.mxu0 0
      %3699 = vmatpush1.bf16.msra.mxu0 0
      %3700 = vmatprep.subr.bf16.mxu0 0
      %3701 = vmatpush1.bf16.msra.mxu0 0
      %3702 = vmatprep.subr.bf16.mxu0 0
      %3703 = vmatpush1.bf16.msra.mxu0 0
      %3704 = vmatprep.subr.bf16.mxu0 0
      %3705 = vmatpush1.bf16.msra.mxu0 0
      %3706 = vmatprep.subr.bf16.mxu0 0
      %3707 = vmatpush1.bf16.msra.mxu0 0
      %3708 = vmatprep.subr.bf16.mxu0 0
      %3709 = vmatpush1.bf16.msra.mxu0 0
      %3710 = vmatprep.subr.bf16.mxu0 0
      %3711 = vmatpush1.bf16.msra.mxu0 0
      %3712 = vmatprep.subr.bf16.mxu0 0
      %3713 = vmatpush1.bf16.msra.mxu0 0
      %3714 = vmatprep.subr.bf16.mxu0 0
      %3715 = vmatpush1.bf16.msra.mxu0 0
      %3716 = vmatprep.subr.bf16.mxu0 0
      %3717 = vmatpush1.bf16.msra.mxu0 0
      %3718 = vmatprep.mubr.bf16.mxu0 0
      %3719 = vmatmul.mubr.bf16.gmra.mrb[0].mxu0 %v3681
      %v3720 = vpop.f32.mrb[0].mxu0
      %v3721 = vadd.f32 %v1886, %v3720
      %v3722 = vpop.f32.mrb[0].mxu0
      %v3723 = vpop.f32.mrb[0].mxu0
      %v3724 = vpop.f32.mrb[0].mxu0
      %3725 = vdwg.mxu0
      %v3731 = vunpack.c.l.b16 %v452
      %v3732 = vunpack.c.l.b16 %v453
      %v3733 = vunpack.c.l.b16 %v454
      %v3734 = vunpack.c.l.b16 %v455
      %v3735 = vunpack.c.l.b16 %v456
      %v3736 = vpack.c.b16 %v3732, %v3731
      %v3737 = vpack.c.b16 %v3734, %v3733
      %v3738 = vpack.c.b16 %v3735, %v3735
      %v3742 = vsel %vm2458, %v240, 0
      %v3745 = vsel %vm2462, %v3738, 0
      %3747 = vmatprep.subr.bf16.mxu0 0
      %3748 = vmatpush1.bf16.msra.mxu0 %v3736
      %3749 = vmatprep.subr.bf16.mxu0 0
      %3750 = vmatpush1.bf16.msra.mxu0 %v3737
      %3751 = vmatprep.subr.bf16.mxu0 0
      %3752 = vmatpush1.bf16.msra.mxu0 %v3745
      %3753 = vmatprep.subr.bf16.mxu0 0
      %3754 = vmatpush1.bf16.msra.mxu0 0
      %3755 = vmatprep.subr.bf16.mxu0 0
      %3756 = vmatpush1.bf16.msra.mxu0 0
      %3757 = vmatprep.subr.bf16.mxu0 0
      %3758 = vmatpush1.bf16.msra.mxu0 0
      %3759 = vmatprep.subr.bf16.mxu0 0
      %3760 = vmatpush1.bf16.msra.mxu0 0
      %3761 = vmatprep.subr.bf16.mxu0 0
      %3762 = vmatpush1.bf16.msra.mxu0 0
      %3763 = vmatprep.subr.bf16.mxu0 0
      %3764 = vmatpush1.bf16.msra.mxu0 0
      %3765 = vmatprep.subr.bf16.mxu0 0
      %3766 = vmatpush1.bf16.msra.mxu0 0
      %3767 = vmatprep.subr.bf16.mxu0 0
      %3768 = vmatpush1.bf16.msra.mxu0 0
      %3769 = vmatprep.subr.bf16.mxu0 0
      %3770 = vmatpush1.bf16.msra.mxu0 0
      %3771 = vmatprep.subr.bf16.mxu0 0
      %3772 = vmatpush1.bf16.msra.mxu0 0
      %3773 = vmatprep.subr.bf16.mxu0 0
      %3774 = vmatpush1.bf16.msra.mxu0 0
      %3775 = vmatprep.subr.bf16.mxu0 0
      %3776 = vmatpush1.bf16.msra.mxu0 0
      %3777 = vmatprep.subr.bf16.mxu0 0
      %3778 = vmatpush1.bf16.msra.mxu0 0
      %3779 = vmatprep.mubr.bf16.mxu0 0
      %3780 = vmatmul.mubr.bf16.gmra.mrb[0].mxu0 %v3742
      %v3781 = vpop.f32.mrb[0].mxu0
      %v3782 = vadd.f32 %v1890, %v3781
      %v3783 = vpop.f32.mrb[0].mxu0
      %v3784 = vpop.f32.mrb[0].mxu0
      %v3785 = vpop.f32.mrb[0].mxu0
      %3786 = vdwg.mxu0
      %v3792 = vunpack.c.l.b16 %v457
      %v3793 = vunpack.c.l.b16 %v458
      %v3794 = vunpack.c.l.b16 %v459
      %v3795 = vunpack.c.l.b16 %v460
      %v3796 = vunpack.c.l.b16 %v461
      %v3797 = vpack.c.b16 %v3793, %v3792
      %v3798 = vpack.c.b16 %v3795, %v3794
      %v3799 = vpack.c.b16 %v3796, %v3796
      %v3803 = vsel %vm2458, %v241, 0
      %v3806 = vsel %vm2462, %v3799, 0
      %3808 = vmatprep.subr.bf16.mxu0 0
      %3809 = vmatpush1.bf16.msra.mxu0 %v3797
      %3810 = vmatprep.subr.bf16.mxu0 0
      %3811 = vmatpush1.bf16.msra.mxu0 %v3798
      %3812 = vmatprep.subr.bf16.mxu0 0
      %3813 = vmatpush1.bf16.msra.mxu0 %v3806
      %3814 = vmatprep.subr.bf16.mxu0 0
      %3815 = vmatpush1.bf16.msra.mxu0 0
      %3816 = vmatprep.subr.bf16.mxu0 0
      %3817 = vmatpush1.bf16.msra.mxu0 0
      %3818 = vmatprep.subr.bf16.mxu0 0
      %3819 = vmatpush1.bf16.msra.mxu0 0
      %3820 = vmatprep.subr.bf16.mxu0 0
      %3821 = vmatpush1.bf16.msra.mxu0 0
      %3822 = vmatprep.subr.bf16.mxu0 0
      %3823 = vmatpush1.bf16.msra.mxu0 0
      %3824 = vmatprep.subr.bf16.mxu0 0
      %3825 = vmatpush1.bf16.msra.mxu0 0
      %3826 = vmatprep.subr.bf16.mxu0 0
      %3827 = vmatpush1.bf16.msra.mxu0 0
      %3828 = vmatprep.subr.bf16.mxu0 0
      %3829 = vmatpush1.bf16.msra.mxu0 0
      %3830 = vmatprep.subr.bf16.mxu0 0
      %3831 = vmatpush1.bf16.msra.mxu0 0
      %3832 = vmatprep.subr.bf16.mxu0 0
      %3833 = vmatpush1.bf16.msra.mxu0 0
      %3834 = vmatprep.subr.bf16.mxu0 0
      %3835 = vmatpush1.bf16.msra.mxu0 0
      %3836 = vmatprep.subr.bf16.mxu0 0
      %3837 = vmatpush1.bf16.msra.mxu0 0
      %3838 = vmatprep.subr.bf16.mxu0 0
      %3839 = vmatpush1.bf16.msra.mxu0 0
      %3840 = vmatprep.mubr.bf16.mxu0 0
      %3841 = vmatmul.mubr.bf16.gmra.mrb[0].mxu0 %v3803
      %v3842 = vpop.f32.mrb[0].mxu0
      %v3843 = vadd.f32 %v1894, %v3842
      %v3844 = vpop.f32.mrb[0].mxu0
      %v3845 = vpop.f32.mrb[0].mxu0
      %v3846 = vpop.f32.mrb[0].mxu0
      %3847 = vdwg.mxu0
      %v3853 = vunpack.c.l.b16 %v462
      %v3854 = vunpack.c.l.b16 %v463
      %v3855 = vunpack.c.l.b16 %v464
      %v3856 = vunpack.c.l.b16 %v465
      %v3857 = vunpack.c.l.b16 %v466
      %v3858 = vpack.c.b16 %v3854, %v3853
      %v3859 = vpack.c.b16 %v3856, %v3855
      %v3860 = vpack.c.b16 %v3857, %v3857
      %v3864 = vsel %vm2458, %v242, 0
      %v3867 = vsel %vm2462, %v3860, 0
      %3869 = vmatprep.subr.bf16.mxu0 0
      %3870 = vmatpush1.bf16.msra.mxu0 %v3858
      %3871 = vmatprep.subr.bf16.mxu0 0
      %3872 = vmatpush1.bf16.msra.mxu0 %v3859
      %3873 = vmatprep.subr.bf16.mxu0 0
      %3874 = vmatpush1.bf16.msra.mxu0 %v3867
      %3875 = vmatprep.subr.bf16.mxu0 0
      %3876 = vmatpush1.bf16.msra.mxu0 0
      %3877 = vmatprep.subr.bf16.mxu0 0
      %3878 = vmatpush1.bf16.msra.mxu0 0
      %3879 = vmatprep.subr.bf16.mxu0 0
      %3880 = vmatpush1.bf16.msra.mxu0 0
      %3881 = vmatprep.subr.bf16.mxu0 0
      %3882 = vmatpush1.bf16.msra.mxu0 0
      %3883 = vmatprep.subr.bf16.mxu0 0
      %3884 = vmatpush1.bf16.msra.mxu0 0
      %3885 = vmatprep.subr.bf16.mxu0 0
      %3886 = vmatpush1.bf16.msra.mxu0 0
      %3887 = vmatprep.subr.bf16.mxu0 0
      %3888 = vmatpush1.bf16.msra.mxu0 0
      %3889 = vmatprep.subr.bf16.mxu0 0
      %3890 = vmatpush1.bf16.msra.mxu0 0
      %3891 = vmatprep.subr.bf16.mxu0 0
      %3892 = vmatpush1.bf16.msra.mxu0 0
      %3893 = vmatprep.subr.bf16.mxu0 0
      %3894 = vmatpush1.bf16.msra.mxu0 0
      %3895 = vmatprep.subr.bf16.mxu0 0
      %3896 = vmatpush1.bf16.msra.mxu0 0
      %3897 = vmatprep.subr.bf16.mxu0 0
      %3898 = vmatpush1.bf16.msra.mxu0 0
      %3899 = vmatprep.subr.bf16.mxu0 0
      %3900 = vmatpush1.bf16.msra.mxu0 0
      %3901 = vmatprep.mubr.bf16.mxu0 0
      %3902 = vmatmul.mubr.bf16.gmra.mrb[0].mxu0 %v3864
      %v3903 = vpop.f32.mrb[0].mxu0
      %v3904 = vadd.f32 %v1898, %v3903
      %v3905 = vpop.f32.mrb[0].mxu0
      %v3906 = vpop.f32.mrb[0].mxu0
      %v3907 = vpop.f32.mrb[0].mxu0
      %3908 = vdwg.mxu0
      %v3914 = vunpack.c.l.b16 %v467
      %v3915 = vunpack.c.l.b16 %v468
      %v3916 = vunpack.c.l.b16 %v469
      %v3917 = vunpack.c.l.b16 %v470
      %v3918 = vunpack.c.l.b16 %v471
      %v3919 = vpack.c.b16 %v3915, %v3914
      %v3920 = vpack.c.b16 %v3917, %v3916
      %v3921 = vpack.c.b16 %v3918, %v3918
      %v3925 = vsel %vm2458, %v243, 0
      %v3928 = vsel %vm2462, %v3921, 0
      %3930 = vmatprep.subr.bf16.mxu0 0
      %3931 = vmatpush1.bf16.msra.mxu0 %v3919
      %3932 = vmatprep.subr.bf16.mxu0 0
      %3933 = vmatpush1.bf16.msra.mxu0 %v3920
      %3934 = vmatprep.subr.bf16.mxu0 0
      %3935 = vmatpush1.bf16.msra.mxu0 %v3928
      %3936 = vmatprep.subr.bf16.mxu0 0
      %3937 = vmatpush1.bf16.msra.mxu0 0
      %3938 = vmatprep.subr.bf16.mxu0 0
      %3939 = vmatpush1.bf16.msra.mxu0 0
      %3940 = vmatprep.subr.bf16.mxu0 0
      %3941 = vmatpush1.bf16.msra.mxu0 0
      %3942 = vmatprep.subr.bf16.mxu0 0
      %3943 = vmatpush1.bf16.msra.mxu0 0
      %3944 = vmatprep.subr.bf16.mxu0 0
      %3945 = vmatpush1.bf16.msra.mxu0 0
      %3946 = vmatprep.subr.bf16.mxu0 0
      %3947 = vmatpush1.bf16.msra.mxu0 0
      %3948 = vmatprep.subr.bf16.mxu0 0
      %3949 = vmatpush1.bf16.msra.mxu0 0
      %3950 = vmatprep.subr.bf16.mxu0 0
      %3951 = vmatpush1.bf16.msra.mxu0 0
      %3952 = vmatprep.subr.bf16.mxu0 0
      %3953 = vmatpush1.bf16.msra.mxu0 0
      %3954 = vmatprep.subr.bf16.mxu0 0
      %3955 = vmatpush1.bf16.msra.mxu0 0
      %3956 = vmatprep.subr.bf16.mxu0 0
      %3957 = vmatpush1.bf16.msra.mxu0 0
      %3958 = vmatprep.subr.bf16.mxu0 0
      %3959 = vmatpush1.bf16.msra.mxu0 0
      %3960 = vmatprep.subr.bf16.mxu0 0
      %3961 = vmatpush1.bf16.msra.mxu0 0
      %3962 = vmatprep.mubr.bf16.mxu0 0
      %3963 = vmatmul.mubr.bf16.gmra.mrb[0].mxu0 %v3925
      %v3964 = vpop.f32.mrb[0].mxu0
      %v3965 = vadd.f32 %v1902, %v3964
      %v3966 = vpop.f32.mrb[0].mxu0
      %v3967 = vpop.f32.mrb[0].mxu0
      %v3968 = vpop.f32.mrb[0].mxu0
      %3969 = vdwg.mxu0
      %v3975 = vunpack.c.l.b16 %v472
      %v3976 = vunpack.c.l.b16 %v473
      %v3977 = vunpack.c.l.b16 %v474
      %v3978 = vunpack.c.l.b16 %v475
      %v3979 = vunpack.c.l.b16 %v476
      %v3980 = vpack.c.b16 %v3976, %v3975
      %v3981 = vpack.c.b16 %v3978, %v3977
      %v3982 = vpack.c.b16 %v3979, %v3979
      %v3986 = vsel %vm2458, %v244, 0
      %v3989 = vsel %vm2462, %v3982, 0
      %3991 = vmatprep.subr.bf16.mxu0 0
      %3992 = vmatpush1.bf16.msra.mxu0 %v3980
      %3993 = vmatprep.subr.bf16.mxu0 0
      %3994 = vmatpush1.bf16.msra.mxu0 %v3981
      %3995 = vmatprep.subr.bf16.mxu0 0
      %3996 = vmatpush1.bf16.msra.mxu0 %v3989
      %3997 = vmatprep.subr.bf16.mxu0 0
      %3998 = vmatpush1.bf16.msra.mxu0 0
      %3999 = vmatprep.subr.bf16.mxu0 0
      %4000 = vmatpush1.bf16.msra.mxu0 0
      %4001 = vmatprep.subr.bf16.mxu0 0
      %4002 = vmatpush1.bf16.msra.mxu0 0
      %4003 = vmatprep.subr.bf16.mxu0 0
      %4004 = vmatpush1.bf16.msra.mxu0 0
      %4005 = vmatprep.subr.bf16.mxu0 0
      %4006 = vmatpush1.bf16.msra.mxu0 0
      %4007 = vmatprep.subr.bf16.mxu0 0
      %4008 = vmatpush1.bf16.msra.mxu0 0
      %4009 = vmatprep.subr.bf16.mxu0 0
      %4010 = vmatpush1.bf16.msra.mxu0 0
      %4011 = vmatprep.subr.bf16.mxu0 0
      %4012 = vmatpush1.bf16.msra.mxu0 0
      %4013 = vmatprep.subr.bf16.mxu0 0
      %4014 = vmatpush1.bf16.msra.mxu0 0
      %4015 = vmatprep.subr.bf16.mxu0 0
      %4016 = vmatpush1.bf16.msra.mxu0 0
      %4017 = vmatprep.subr.bf16.mxu0 0
      %4018 = vmatpush1.bf16.msra.mxu0 0
      %4019 = vmatprep.subr.bf16.mxu0 0
      %4020 = vmatpush1.bf16.msra.mxu0 0
      %4021 = vmatprep.subr.bf16.mxu0 0
      %4022 = vmatpush1.bf16.msra.mxu0 0
      %4023 = vmatprep.mubr.bf16.mxu0 0
      %4024 = vmatmul.mubr.bf16.gmra.mrb[0].mxu0 %v3986
      %v4025 = vpop.f32.mrb[0].mxu0
      %v4026 = vadd.f32 %v1906, %v4025
      %v4027 = vpop.f32.mrb[0].mxu0
      %v4028 = vpop.f32.mrb[0].mxu0
      %v4029 = vpop.f32.mrb[0].mxu0
      %4030 = vdwg.mxu0
      %v4036 = vunpack.c.l.b16 %v477
      %v4037 = vunpack.c.l.b16 %v478
      %v4038 = vunpack.c.l.b16 %v479
      %v4039 = vunpack.c.l.b16 %v480
      %v4040 = vunpack.c.l.b16 %v481
      %v4041 = vpack.c.b16 %v4037, %v4036
      %v4042 = vpack.c.b16 %v4039, %v4038
      %v4043 = vpack.c.b16 %v4040, %v4040
      %v4047 = vsel %vm2458, %v245, 0
      %v4050 = vsel %vm2462, %v4043, 0
      %4052 = vmatprep.subr.bf16.mxu0 0
      %4053 = vmatpush1.bf16.msra.mxu0 %v4041
      %4054 = vmatprep.subr.bf16.mxu0 0
      %4055 = vmatpush1.bf16.msra.mxu0 %v4042
      %4056 = vmatprep.subr.bf16.mxu0 0
      %4057 = vmatpush1.bf16.msra.mxu0 %v4050
      %4058 = vmatprep.subr.bf16.mxu0 0
      %4059 = vmatpush1.bf16.msra.mxu0 0
      %4060 = vmatprep.subr.bf16.mxu0 0
      %4061 = vmatpush1.bf16.msra.mxu0 0
      %4062 = vmatprep.subr.bf16.mxu0 0
      %4063 = vmatpush1.bf16.msra.mxu0 0
      %4064 = vmatprep.subr.bf16.mxu0 0
      %4065 = vmatpush1.bf16.msra.mxu0 0
      %4066 = vmatprep.subr.bf16.mxu0 0
      %4067 = vmatpush1.bf16.msra.mxu0 0
      %4068 = vmatprep.subr.bf16.mxu0 0
      %4069 = vmatpush1.bf16.msra.mxu0 0
      %4070 = vmatprep.subr.bf16.mxu0 0
      %4071 = vmatpush1.bf16.msra.mxu0 0
      %4072 = vmatprep.subr.bf16.mxu0 0
      %4073 = vmatpush1.bf16.msra.mxu0 0
      %4074 = vmatprep.subr.bf16.mxu0 0
      %4075 = vmatpush1.bf16.msra.mxu0 0
      %4076 = vmatprep.subr.bf16.mxu0 0
      %4077 = vmatpush1.bf16.msra.mxu0 0
      %4078 = vmatprep.subr.bf16.mxu0 0
      %4079 = vmatpush1.bf16.msra.mxu0 0
      %4080 = vmatprep.subr.bf16.mxu0 0
      %4081 = vmatpush1.bf16.msra.mxu0 0
      %4082 = vmatprep.subr.bf16.mxu0 0
      %4083 = vmatpush1.bf16.msra.mxu0 0
      %4084 = vmatprep.mubr.bf16.mxu0 0
      %4085 = vmatmul.mubr.bf16.gmra.mrb[0].mxu0 %v4047
      %v4086 = vpop.f32.mrb[0].mxu0
      %v4087 = vadd.f32 %v1910, %v4086
      %v4088 = vpop.f32.mrb[0].mxu0
      %v4089 = vpop.f32.mrb[0].mxu0
      %v4090 = vpop.f32.mrb[0].mxu0
      %4091 = vdwg.mxu0
      %v4097 = vunpack.c.l.b16 %v482
      %v4098 = vunpack.c.l.b16 %v483
      %v4099 = vunpack.c.l.b16 %v484
      %v4100 = vunpack.c.l.b16 %v485
      %v4101 = vunpack.c.l.b16 %v486
      %v4102 = vpack.c.b16 %v4098, %v4097
      %v4103 = vpack.c.b16 %v4100, %v4099
      %v4104 = vpack.c.b16 %v4101, %v4101
      %v4108 = vsel %vm2458, %v246, 0
      %v4111 = vsel %vm2462, %v4104, 0
      %4113 = vmatprep.subr.bf16.mxu0 0
      %4114 = vmatpush1.bf16.msra.mxu0 %v4102
      %4115 = vmatprep.subr.bf16.mxu0 0
      %4116 = vmatpush1.bf16.msra.mxu0 %v4103
      %4117 = vmatprep.subr.bf16.mxu0 0
      %4118 = vmatpush1.bf16.msra.mxu0 %v4111
      %4119 = vmatprep.subr.bf16.mxu0 0
      %4120 = vmatpush1.bf16.msra.mxu0 0
      %4121 = vmatprep.subr.bf16.mxu0 0
      %4122 = vmatpush1.bf16.msra.mxu0 0
      %4123 = vmatprep.subr.bf16.mxu0 0
      %4124 = vmatpush1.bf16.msra.mxu0 0
      %4125 = vmatprep.subr.bf16.mxu0 0
      %4126 = vmatpush1.bf16.msra.mxu0 0
      %4127 = vmatprep.subr.bf16.mxu0 0
      %4128 = vmatpush1.bf16.msra.mxu0 0
      %4129 = vmatprep.subr.bf16.mxu0 0
      %4130 = vmatpush1.bf16.msra.mxu0 0
      %4131 = vmatprep.subr.bf16.mxu0 0
      %4132 = vmatpush1.bf16.msra.mxu0 0
      %4133 = vmatprep.subr.bf16.mxu0 0
      %4134 = vmatpush1.bf16.msra.mxu0 0
      %4135 = vmatprep.subr.bf16.mxu0 0
      %4136 = vmatpush1.bf16.msra.mxu0 0
      %4137 = vmatprep.subr.bf16.mxu0 0
      %4138 = vmatpush1.bf16.msra.mxu0 0
      %4139 = vmatprep.subr.bf16.mxu0 0
      %4140 = vmatpush1.bf16.msra.mxu0 0
      %4141 = vmatprep.subr.bf16.mxu0 0
      %4142 = vmatpush1.bf16.msra.mxu0 0
      %4143 = vmatprep.subr.bf16.mxu0 0
      %4144 = vmatpush1.bf16.msra.mxu0 0
      %4145 = vmatprep.mubr.bf16.mxu0 0
      %4146 = vmatmul.mubr.bf16.gmra.mrb[0].mxu0 %v4108
      %v4147 = vpop.f32.mrb[0].mxu0
      %v4148 = vadd.f32 %v1914, %v4147
      %v4149 = vpop.f32.mrb[0].mxu0
      %v4150 = vpop.f32.mrb[0].mxu0
      %v4151 = vpop.f32.mrb[0].mxu0
      %4152 = vdwg.mxu0
      %v4158 = vunpack.c.l.b16 %v487
      %v4159 = vunpack.c.l.b16 %v488
      %v4160 = vunpack.c.l.b16 %v489
      %v4161 = vunpack.c.l.b16 %v490
      %v4162 = vunpack.c.l.b16 %v491
      %v4163 = vpack.c.b16 %v4159, %v4158
      %v4164 = vpack.c.b16 %v4161, %v4160
      %v4165 = vpack.c.b16 %v4162, %v4162
      %v4169 = vsel %vm2458, %v247, 0
      %v4172 = vsel %vm2462, %v4165, 0
      %4174 = vmatprep.subr.bf16.mxu0 0
      %4175 = vmatpush1.bf16.msra.mxu0 %v4163
      %4176 = vmatprep.subr.bf16.mxu0 0
      %4177 = vmatpush1.bf16.msra.mxu0 %v4164
      %4178 = vmatprep.subr.bf16.mxu0 0
      %4179 = vmatpush1.bf16.msra.mxu0 %v4172
      %4180 = vmatprep.subr.bf16.mxu0 0
      %4181 = vmatpush1.bf16.msra.mxu0 0
      %4182 = vmatprep.subr.bf16.mxu0 0
      %4183 = vmatpush1.bf16.msra.mxu0 0
      %4184 = vmatprep.subr.bf16.mxu0 0
      %4185 = vmatpush1.bf16.msra.mxu0 0
      %4186 = vmatprep.subr.bf16.mxu0 0
      %4187 = vmatpush1.bf16.msra.mxu0 0
      %4188 = vmatprep.subr.bf16.mxu0 0
      %4189 = vmatpush1.bf16.msra.mxu0 0
      %4190 = vmatprep.subr.bf16.mxu0 0
      %4191 = vmatpush1.bf16.msra.mxu0 0
      %4192 = vmatprep.subr.bf16.mxu0 0
      %4193 = vmatpush1.bf16.msra.mxu0 0
      %4194 = vmatprep.subr.bf16.mxu0 0
      %4195 = vmatpush1.bf16.msra.mxu0 0
      %4196 = vmatprep.subr.bf16.mxu0 0
      %4197 = vmatpush1.bf16.msra.mxu0 0
      %4198 = vmatprep.subr.bf16.mxu0 0
      %4199 = vmatpush1.bf16.msra.mxu0 0
      %4200 = vmatprep.subr.bf16.mxu0 0
      %4201 = vmatpush1.bf16.msra.mxu0 0
      %4202 = vmatprep.subr.bf16.mxu0 0
      %4203 = vmatpush1.bf16.msra.mxu0 0
      %4204 = vmatprep.subr.bf16.mxu0 0
      %4205 = vmatpush1.bf16.msra.mxu0 0
      %4206 = vmatprep.mubr.bf16.mxu0 0
      %4207 = vmatmul.mubr.bf16.gmra.mrb[0].mxu0 %v4169
      %v4208 = vpop.f32.mrb[0].mxu0
      %v4209 = vadd.f32 %v1918, %v4208
      %v4210 = vpop.f32.mrb[0].mxu0
      %v4211 = vpop.f32.mrb[0].mxu0
      %v4212 = vpop.f32.mrb[0].mxu0
      %4213 = vdwg.mxu0
      %v4219 = vunpack.c.l.b16 %v492
      %v4220 = vunpack.c.l.b16 %v493
      %v4221 = vunpack.c.l.b16 %v494
      %v4222 = vunpack.c.l.b16 %v495
      %v4223 = vunpack.c.l.b16 %v496
      %v4224 = vpack.c.b16 %v4220, %v4219
      %v4225 = vpack.c.b16 %v4222, %v4221
      %v4226 = vpack.c.b16 %v4223, %v4223
      %v4230 = vsel %vm2458, %v248, 0
      %v4233 = vsel %vm2462, %v4226, 0
      %4235 = vmatprep.subr.bf16.mxu0 0
      %4236 = vmatpush1.bf16.msra.mxu0 %v4224
      %4237 = vmatprep.subr.bf16.mxu0 0
      %4238 = vmatpush1.bf16.msra.mxu0 %v4225
      %4239 = vmatprep.subr.bf16.mxu0 0
      %4240 = vmatpush1.bf16.msra.mxu0 %v4233
      %4241 = vmatprep.subr.bf16.mxu0 0
      %4242 = vmatpush1.bf16.msra.mxu0 0
      %4243 = vmatprep.subr.bf16.mxu0 0
      %4244 = vmatpush1.bf16.msra.mxu0 0
      %4245 = vmatprep.subr.bf16.mxu0 0
      %4246 = vmatpush1.bf16.msra.mxu0 0
      %4247 = vmatprep.subr.bf16.mxu0 0
      %4248 = vmatpush1.bf16.msra.mxu0 0
      %4249 = vmatprep.subr.bf16.mxu0 0
      %4250 = vmatpush1.bf16.msra.mxu0 0
      %4251 = vmatprep.subr.bf16.mxu0 0
      %4252 = vmatpush1.bf16.msra.mxu0 0
      %4253 = vmatprep.subr.bf16.mxu0 0
      %4254 = vmatpush1.bf16.msra.mxu0 0
      %4255 = vmatprep.subr.bf16.mxu0 0
      %4256 = vmatpush1.bf16.msra.mxu0 0
      %4257 = vmatprep.subr.bf16.mxu0 0
      %4258 = vmatpush1.bf16.msra.mxu0 0
      %4259 = vmatprep.subr.bf16.mxu0 0
      %4260 = vmatpush1.bf16.msra.mxu0 0
      %4261 = vmatprep.subr.bf16.mxu0 0
      %4262 = vmatpush1.bf16.msra.mxu0 0
      %4263 = vmatprep.subr.bf16.mxu0 0
      %4264 = vmatpush1.bf16.msra.mxu0 0
      %4265 = vmatprep.subr.bf16.mxu0 0
      %4266 = vmatpush1.bf16.msra.mxu0 0
      %4267 = vmatprep.mubr.bf16.mxu0 0
      %4268 = vmatmul.mubr.bf16.gmra.mrb[0].mxu0 %v4230
      %v4269 = vpop.f32.mrb[0].mxu0
      %v4270 = vadd.f32 %v1922, %v4269
      %v4271 = vpop.f32.mrb[0].mxu0
      %v4272 = vpop.f32.mrb[0].mxu0
      %v4273 = vpop.f32.mrb[0].mxu0
      %4274 = vdwg.mxu0
      %v4280 = vunpack.c.l.b16 %v497
      %v4281 = vunpack.c.l.b16 %v498
      %v4282 = vunpack.c.l.b16 %v499
      %v4283 = vunpack.c.l.b16 %v500
      %v4284 = vunpack.c.l.b16 %v501
      %v4285 = vpack.c.b16 %v4281, %v4280
      %v4286 = vpack.c.b16 %v4283, %v4282
      %v4287 = vpack.c.b16 %v4284, %v4284
      %v4291 = vsel %vm2458, %v249, 0
      %v4294 = vsel %vm2462, %v4287, 0
      %4296 = vmatprep.subr.bf16.mxu0 0
      %4297 = vmatpush1.bf16.msra.mxu0 %v4285
      %4298 = vmatprep.subr.bf16.mxu0 0
      %4299 = vmatpush1.bf16.msra.mxu0 %v4286
      %4300 = vmatprep.subr.bf16.mxu0 0
      %4301 = vmatpush1.bf16.msra.mxu0 %v4294
      %4302 = vmatprep.subr.bf16.mxu0 0
      %4303 = vmatpush1.bf16.msra.mxu0 0
      %4304 = vmatprep.subr.bf16.mxu0 0
      %4305 = vmatpush1.bf16.msra.mxu0 0
      %4306 = vmatprep.subr.bf16.mxu0 0
      %4307 = vmatpush1.bf16.msra.mxu0 0
      %4308 = vmatprep.subr.bf16.mxu0 0
      %4309 = vmatpush1.bf16.msra.mxu0 0
      %4310 = vmatprep.subr.bf16.mxu0 0
      %4311 = vmatpush1.bf16.msra.mxu0 0
      %4312 = vmatprep.subr.bf16.mxu0 0
      %4313 = vmatpush1.bf16.msra.mxu0 0
      %4314 = vmatprep.subr.bf16.mxu0 0
      %4315 = vmatpush1.bf16.msra.mxu0 0
      %4316 = vmatprep.subr.bf16.mxu0 0
      %4317 = vmatpush1.bf16.msra.mxu0 0
      %4318 = vmatprep.subr.bf16.mxu0 0
      %4319 = vmatpush1.bf16.msra.mxu0 0
      %4320 = vmatprep.subr.bf16.mxu0 0
      %4321 = vmatpush1.bf16.msra.mxu0 0
      %4322 = vmatprep.subr.bf16.mxu0 0
      %4323 = vmatpush1.bf16.msra.mxu0 0
      %4324 = vmatprep.subr.bf16.mxu0 0
      %4325 = vmatpush1.bf16.msra.mxu0 0
      %4326 = vmatprep.subr.bf16.mxu0 0
      %4327 = vmatpush1.bf16.msra.mxu0 0
      %4328 = vmatprep.mubr.bf16.mxu0 0
      %4329 = vmatmul.mubr.bf16.gmra.mrb[0].mxu0 %v4291
      %v4330 = vpop.f32.mrb[0].mxu0
      %v4331 = vadd.f32 %v1926, %v4330
      %v4332 = vpop.f32.mrb[0].mxu0
      %v4333 = vpop.f32.mrb[0].mxu0
      %v4334 = vpop.f32.mrb[0].mxu0
      %4335 = vdwg.mxu0
      %v4341 = vunpack.c.l.b16 %v502
      %v4342 = vunpack.c.l.b16 %v503
      %v4343 = vunpack.c.l.b16 %v504
      %v4344 = vunpack.c.l.b16 %v505
      %v4345 = vunpack.c.l.b16 %v506
      %v4346 = vpack.c.b16 %v4342, %v4341
      %v4347 = vpack.c.b16 %v4344, %v4343
      %v4348 = vpack.c.b16 %v4345, %v4345
      %v4352 = vsel %vm2458, %v250, 0
      %v4355 = vsel %vm2462, %v4348, 0
      %4357 = vmatprep.subr.bf16.mxu0 0
      %4358 = vmatpush1.bf16.msra.mxu0 %v4346
      %4359 = vmatprep.subr.bf16.mxu0 0
      %4360 = vmatpush1.bf16.msra.mxu0 %v4347
      %4361 = vmatprep.subr.bf16.mxu0 0
      %4362 = vmatpush1.bf16.msra.mxu0 %v4355
      %4363 = vmatprep.subr.bf16.mxu0 0
      %4364 = vmatpush1.bf16.msra.mxu0 0
      %4365 = vmatprep.subr.bf16.mxu0 0
      %4366 = vmatpush1.bf16.msra.mxu0 0
      %4367 = vmatprep.subr.bf16.mxu0 0
      %4368 = vmatpush1.bf16.msra.mxu0 0
      %4369 = vmatprep.subr.bf16.mxu0 0
      %4370 = vmatpush1.bf16.msra.mxu0 0
      %4371 = vmatprep.subr.bf16.mxu0 0
      %4372 = vmatpush1.bf16.msra.mxu0 0
      %4373 = vmatprep.subr.bf16.mxu0 0
      %4374 = vmatpush1.bf16.msra.mxu0 0
      %4375 = vmatprep.subr.bf16.mxu0 0
      %4376 = vmatpush1.bf16.msra.mxu0 0
      %4377 = vmatprep.subr.bf16.mxu0 0
      %4378 = vmatpush1.bf16.msra.mxu0 0
      %4379 = vmatprep.subr.bf16.mxu0 0
      %4380 = vmatpush1.bf16.msra.mxu0 0
      %4381 = vmatprep.subr.bf16.mxu0 0
      %4382 = vmatpush1.bf16.msra.mxu0 0
      %4383 = vmatprep.subr.bf16.mxu0 0
      %4384 = vmatpush1.bf16.msra.mxu0 0
      %4385 = vmatprep.subr.bf16.mxu0 0
      %4386 = vmatpush1.bf16.msra.mxu0 0
      %4387 = vmatprep.subr.bf16.mxu0 0
      %4388 = vmatpush1.bf16.msra.mxu0 0
      %4389 = vmatprep.mubr.bf16.mxu0 0
      %4390 = vmatmul.mubr.bf16.gmra.mrb[0].mxu0 %v4352
      %v4391 = vpop.f32.mrb[0].mxu0
      %v4392 = vadd.f32 %v1930, %v4391
      %v4393 = vpop.f32.mrb[0].mxu0
      %v4394 = vpop.f32.mrb[0].mxu0
      %v4395 = vpop.f32.mrb[0].mxu0
      %4396 = vdwg.mxu0
      %v4402 = vunpack.c.l.b16 %v507
      %v4403 = vunpack.c.l.b16 %v508
      %v4404 = vunpack.c.l.b16 %v509
      %v4405 = vunpack.c.l.b16 %v510
      %v4406 = vunpack.c.l.b16 %v511
      %v4407 = vpack.c.b16 %v4403, %v4402
      %v4408 = vpack.c.b16 %v4405, %v4404
      %v4409 = vpack.c.b16 %v4406, %v4406
      %v4413 = vsel %vm2458, %v251, 0
      %v4416 = vsel %vm2462, %v4409, 0
      %4418 = vmatprep.subr.bf16.mxu0 0
      %4419 = vmatpush1.bf16.msra.mxu0 %v4407
      %4420 = vmatprep.subr.bf16.mxu0 0
      %4421 = vmatpush1.bf16.msra.mxu0 %v4408
      %4422 = vmatprep.subr.bf16.mxu0 0
      %4423 = vmatpush1.bf16.msra.mxu0 %v4416
      %4424 = vmatprep.subr.bf16.mxu0 0
      %4425 = vmatpush1.bf16.msra.mxu0 0
      %4426 = vmatprep.subr.bf16.mxu0 0
      %4427 = vmatpush1.bf16.msra.mxu0 0
      %4428 = vmatprep.subr.bf16.mxu0 0
      %4429 = vmatpush1.bf16.msra.mxu0 0
      %4430 = vmatprep.subr.bf16.mxu0 0
      %4431 = vmatpush1.bf16.msra.mxu0 0
      %4432 = vmatprep.subr.bf16.mxu0 0
      %4433 = vmatpush1.bf16.msra.mxu0 0
      %4434 = vmatprep.subr.bf16.mxu0 0
      %4435 = vmatpush1.bf16.msra.mxu0 0
      %4436 = vmatprep.subr.bf16.mxu0 0
      %4437 = vmatpush1.bf16.msra.mxu0 0
      %4438 = vmatprep.subr.bf16.mxu0 0
      %4439 = vmatpush1.bf16.msra.mxu0 0
      %4440 = vmatprep.subr.bf16.mxu0 0
      %4441 = vmatpush1.bf16.msra.mxu0 0
      %4442 = vmatprep.subr.bf16.mxu0 0
      %4443 = vmatpush1.bf16.msra.mxu0 0
      %4444 = vmatprep.subr.bf16.mxu0 0
      %4445 = vmatpush1.bf16.msra.mxu0 0
      %4446 = vmatprep.subr.bf16.mxu0 0
      %4447 = vmatpush1.bf16.msra.mxu0 0
      %4448 = vmatprep.subr.bf16.mxu0 0
      %4449 = vmatpush1.bf16.msra.mxu0 0
      %4450 = vmatprep.mubr.bf16.mxu0 0
      %4451 = vmatmul.mubr.bf16.gmra.mrb[0].mxu0 %v4413
      %v4452 = vpop.f32.mrb[0].mxu0
      %v4453 = vadd.f32 %v1934, %v4452
      %v4454 = vpop.f32.mrb[0].mxu0
      %v4455 = vpop.f32.mrb[0].mxu0
      %v4456 = vpop.f32.mrb[0].mxu0
      %4457 = vdwg.mxu0
      %v4463 = vunpack.c.l.b16 %v512
      %v4464 = vunpack.c.l.b16 %v513
      %v4465 = vunpack.c.l.b16 %v514
      %v4466 = vunpack.c.l.b16 %v515
      %v4467 = vunpack.c.l.b16 %v516
      %v4468 = vpack.c.b16 %v4464, %v4463
      %v4469 = vpack.c.b16 %v4466, %v4465
      %v4470 = vpack.c.b16 %v4467, %v4467
      %v4474 = vsel %vm2458, %v252, 0
      %v4477 = vsel %vm2462, %v4470, 0
      %4479 = vmatprep.subr.bf16.mxu0 0
      %4480 = vmatpush1.bf16.msra.mxu0 %v4468
      %4481 = vmatprep.subr.bf16.mxu0 0
      %4482 = vmatpush1.bf16.msra.mxu0 %v4469
      %4483 = vmatprep.subr.bf16.mxu0 0
      %4484 = vmatpush1.bf16.msra.mxu0 %v4477
      %4485 = vmatprep.subr.bf16.mxu0 0
      %4486 = vmatpush1.bf16.msra.mxu0 0
      %4487 = vmatprep.subr.bf16.mxu0 0
      %4488 = vmatpush1.bf16.msra.mxu0 0
      %4489 = vmatprep.subr.bf16.mxu0 0
      %4490 = vmatpush1.bf16.msra.mxu0 0
      %4491 = vmatprep.subr.bf16.mxu0 0
      %4492 = vmatpush1.bf16.msra.mxu0 0
      %4493 = vmatprep.subr.bf16.mxu0 0
      %4494 = vmatpush1.bf16.msra.mxu0 0
      %4495 = vmatprep.subr.bf16.mxu0 0
      %4496 = vmatpush1.bf16.msra.mxu0 0
      %4497 = vmatprep.subr.bf16.mxu0 0
      %4498 = vmatpush1.bf16.msra.mxu0 0
      %4499 = vmatprep.subr.bf16.mxu0 0
      %4500 = vmatpush1.bf16.msra.mxu0 0
      %4501 = vmatprep.subr.bf16.mxu0 0
      %4502 = vmatpush1.bf16.msra.mxu0 0
      %4503 = vmatprep.subr.bf16.mxu0 0
      %4504 = vmatpush1.bf16.msra.mxu0 0
      %4505 = vmatprep.subr.bf16.mxu0 0
      %4506 = vmatpush1.bf16.msra.mxu0 0
      %4507 = vmatprep.subr.bf16.mxu0 0
      %4508 = vmatpush1.bf16.msra.mxu0 0
      %4509 = vmatprep.subr.bf16.mxu0 0
      %4510 = vmatpush1.bf16.msra.mxu0 0
      %4511 = vmatprep.mubr.bf16.mxu0 0
      %4512 = vmatmul.mubr.bf16.gmra.mrb[0].mxu0 %v4474
      %v4513 = vpop.f32.mrb[0].mxu0
      %v4514 = vadd.f32 %v1938, %v4513
      %v4515 = vpop.f32.mrb[0].mxu0
      %v4516 = vpop.f32.mrb[0].mxu0
      %v4517 = vpop.f32.mrb[0].mxu0
      %4518 = vdwg.mxu0
      %v4524 = vunpack.c.l.b16 %v517
      %v4525 = vunpack.c.l.b16 %v518
      %v4526 = vunpack.c.l.b16 %v519
      %v4527 = vunpack.c.l.b16 %v520
      %v4528 = vunpack.c.l.b16 %v521
      %v4529 = vpack.c.b16 %v4525, %v4524
      %v4530 = vpack.c.b16 %v4527, %v4526
      %v4531 = vpack.c.b16 %v4528, %v4528
      %v4535 = vsel %vm2458, %v253, 0
      %v4538 = vsel %vm2462, %v4531, 0
      %4540 = vmatprep.subr.bf16.mxu0 0
      %4541 = vmatpush1.bf16.msra.mxu0 %v4529
      %4542 = vmatprep.subr.bf16.mxu0 0
      %4543 = vmatpush1.bf16.msra.mxu0 %v4530
      %4544 = vmatprep.subr.bf16.mxu0 0
      %4545 = vmatpush1.bf16.msra.mxu0 %v4538
      %4546 = vmatprep.subr.bf16.mxu0 0
      %4547 = vmatpush1.bf16.msra.mxu0 0
      %4548 = vmatprep.subr.bf16.mxu0 0
      %4549 = vmatpush1.bf16.msra.mxu0 0
      %4550 = vmatprep.subr.bf16.mxu0 0
      %4551 = vmatpush1.bf16.msra.mxu0 0
      %4552 = vmatprep.subr.bf16.mxu0 0
      %4553 = vmatpush1.bf16.msra.mxu0 0
      %4554 = vmatprep.subr.bf16.mxu0 0
      %4555 = vmatpush1.bf16.msra.mxu0 0
      %4556 = vmatprep.subr.bf16.mxu0 0
      %4557 = vmatpush1.bf16.msra.mxu0 0
      %4558 = vmatprep.subr.bf16.mxu0 0
      %4559 = vmatpush1.bf16.msra.mxu0 0
      %4560 = vmatprep.subr.bf16.mxu0 0
      %4561 = vmatpush1.bf16.msra.mxu0 0
      %4562 = vmatprep.subr.bf16.mxu0 0
      %4563 = vmatpush1.bf16.msra.mxu0 0
      %4564 = vmatprep.subr.bf16.mxu0 0
      %4565 = vmatpush1.bf16.msra.mxu0 0
      %4566 = vmatprep.subr.bf16.mxu0 0
      %4567 = vmatpush1.bf16.msra.mxu0 0
      %4568 = vmatprep.subr.bf16.mxu0 0
      %4569 = vmatpush1.bf16.msra.mxu0 0
      %4570 = vmatprep.subr.bf16.mxu0 0
      %4571 = vmatpush1.bf16.msra.mxu0 0
      %4572 = vmatprep.mubr.bf16.mxu0 0
      %4573 = vmatmul.mubr.bf16.gmra.mrb[0].mxu0 %v4535
      %v4574 = vpop.f32.mrb[0].mxu0
      %v4575 = vadd.f32 %v1942, %v4574
      %v4576 = vpop.f32.mrb[0].mxu0
      %v4577 = vpop.f32.mrb[0].mxu0
      %v4578 = vpop.f32.mrb[0].mxu0
      %4579 = vdwg.mxu0
      %v4585 = vunpack.c.l.b16 %v522
      %v4586 = vunpack.c.l.b16 %v523
      %v4587 = vunpack.c.l.b16 %v524
      %v4588 = vunpack.c.l.b16 %v525
      %v4589 = vunpack.c.l.b16 %v526
      %v4590 = vpack.c.b16 %v4586, %v4585
      %v4591 = vpack.c.b16 %v4588, %v4587
      %v4592 = vpack.c.b16 %v4589, %v4589
      %v4596 = vsel %vm2458, %v254, 0
      %v4599 = vsel %vm2462, %v4592, 0
      %4601 = vmatprep.subr.bf16.mxu0 0
      %4602 = vmatpush1.bf16.msra.mxu0 %v4590
      %4603 = vmatprep.subr.bf16.mxu0 0
      %4604 = vmatpush1.bf16.msra.mxu0 %v4591
      %4605 = vmatprep.subr.bf16.mxu0 0
      %4606 = vmatpush1.bf16.msra.mxu0 %v4599
      %4607 = vmatprep.subr.bf16.mxu0 0
      %4608 = vmatpush1.bf16.msra.mxu0 0
      %4609 = vmatprep.subr.bf16.mxu0 0
      %4610 = vmatpush1.bf16.msra.mxu0 0
      %4611 = vmatprep.subr.bf16.mxu0 0
      %4612 = vmatpush1.bf16.msra.mxu0 0
      %4613 = vmatprep.subr.bf16.mxu0 0
      %4614 = vmatpush1.bf16.msra.mxu0 0
      %4615 = vmatprep.subr.bf16.mxu0 0
      %4616 = vmatpush1.bf16.msra.mxu0 0
      %4617 = vmatprep.subr.bf16.mxu0 0
      %4618 = vmatpush1.bf16.msra.mxu0 0
      %4619 = vmatprep.subr.bf16.mxu0 0
      %4620 = vmatpush1.bf16.msra.mxu0 0
      %4621 = vmatprep.subr.bf16.mxu0 0
      %4622 = vmatpush1.bf16.msra.mxu0 0
      %4623 = vmatprep.subr.bf16.mxu0 0
      %4624 = vmatpush1.bf16.msra.mxu0 0
      %4625 = vmatprep.subr.bf16.mxu0 0
      %4626 = vmatpush1.bf16.msra.mxu0 0
      %4627 = vmatprep.subr.bf16.mxu0 0
      %4628 = vmatpush1.bf16.msra.mxu0 0
      %4629 = vmatprep.subr.bf16.mxu0 0
      %4630 = vmatpush1.bf16.msra.mxu0 0
      %4631 = vmatprep.subr.bf16.mxu0 0
      %4632 = vmatpush1.bf16.msra.mxu0 0
      %4633 = vmatprep.mubr.bf16.mxu0 0
      %4634 = vmatmul.mubr.bf16.gmra.mrb[0].mxu0 %v4596
      %v4635 = vpop.f32.mrb[0].mxu0
      %v4636 = vadd.f32 %v1946, %v4635
      %v4637 = vpop.f32.mrb[0].mxu0
      %v4638 = vpop.f32.mrb[0].mxu0
      %v4639 = vpop.f32.mrb[0].mxu0
      %4640 = vdwg.mxu0
      %v4646 = vunpack.c.l.b16 %v527
      %v4647 = vunpack.c.l.b16 %v528
      %v4648 = vunpack.c.l.b16 %v529
      %v4649 = vunpack.c.l.b16 %v530
      %v4650 = vunpack.c.l.b16 %v531
      %v4651 = vpack.c.b16 %v4647, %v4646
      %v4652 = vpack.c.b16 %v4649, %v4648
      %v4653 = vpack.c.b16 %v4650, %v4650
      %v4657 = vsel %vm2458, %v255, 0
      %v4660 = vsel %vm2462, %v4653, 0
      %4662 = vmatprep.subr.bf16.mxu0 0
      %4663 = vmatpush1.bf16.msra.mxu0 %v4651
      %4664 = vmatprep.subr.bf16.mxu0 0
      %4665 = vmatpush1.bf16.msra.mxu0 %v4652
      %4666 = vmatprep.subr.bf16.mxu0 0
      %4667 = vmatpush1.bf16.msra.mxu0 %v4660
      %4668 = vmatprep.subr.bf16.mxu0 0
      %4669 = vmatpush1.bf16.msra.mxu0 0
      %4670 = vmatprep.subr.bf16.mxu0 0
      %4671 = vmatpush1.bf16.msra.mxu0 0
      %4672 = vmatprep.subr.bf16.mxu0 0
      %4673 = vmatpush1.bf16.msra.mxu0 0
      %4674 = vmatprep.subr.bf16.mxu0 0
      %4675 = vmatpush1.bf16.msra.mxu0 0
      %4676 = vmatprep.subr.bf16.mxu0 0
      %4677 = vmatpush1.bf16.msra.mxu0 0
      %4678 = vmatprep.subr.bf16.mxu0 0
      %4679 = vmatpush1.bf16.msra.mxu0 0
      %4680 = vmatprep.subr.bf16.mxu0 0
      %4681 = vmatpush1.bf16.msra.mxu0 0
      %4682 = vmatprep.subr.bf16.mxu0 0
      %4683 = vmatpush1.bf16.msra.mxu0 0
      %4684 = vmatprep.subr.bf16.mxu0 0
      %4685 = vmatpush1.bf16.msra.mxu0 0
      %4686 = vmatprep.subr.bf16.mxu0 0
      %4687 = vmatpush1.bf16.msra.mxu0 0
      %4688 = vmatprep.subr.bf16.mxu0 0
      %4689 = vmatpush1.bf16.msra.mxu0 0
      %4690 = vmatprep.subr.bf16.mxu0 0
      %4691 = vmatpush1.bf16.msra.mxu0 0
      %4692 = vmatprep.subr.bf16.mxu0 0
      %4693 = vmatpush1.bf16.msra.mxu0 0
      %4694 = vmatprep.mubr.bf16.mxu0 0
      %4695 = vmatmul.mubr.bf16.gmra.mrb[0].mxu0 %v4657
      %v4696 = vpop.f32.mrb[0].mxu0
      %v4697 = vadd.f32 %v1950, %v4696
      %v4698 = vpop.f32.mrb[0].mxu0
      %v4699 = vpop.f32.mrb[0].mxu0
      %v4700 = vpop.f32.mrb[0].mxu0
      %4701 = vdwg.mxu0
      %v4707 = vunpack.c.l.b16 %v532
      %v4708 = vunpack.c.l.b16 %v533
      %v4709 = vunpack.c.l.b16 %v534
      %v4710 = vunpack.c.l.b16 %v535
      %v4711 = vunpack.c.l.b16 %v536
      %v4712 = vpack.c.b16 %v4708, %v4707
      %v4713 = vpack.c.b16 %v4710, %v4709
      %v4714 = vpack.c.b16 %v4711, %v4711
      %v4718 = vsel %vm2458, %v256, 0
      %v4721 = vsel %vm2462, %v4714, 0
      %4723 = vmatprep.subr.bf16.mxu0 0
      %4724 = vmatpush1.bf16.msra.mxu0 %v4712
      %4725 = vmatprep.subr.bf16.mxu0 0
      %4726 = vmatpush1.bf16.msra.mxu0 %v4713
      %4727 = vmatprep.subr.bf16.mxu0 0
      %4728 = vmatpush1.bf16.msra.mxu0 %v4721
      %4729 = vmatprep.subr.bf16.mxu0 0
      %4730 = vmatpush1.bf16.msra.mxu0 0
      %4731 = vmatprep.subr.bf16.mxu0 0
      %4732 = vmatpush1.bf16.msra.mxu0 0
      %4733 = vmatprep.subr.bf16.mxu0 0
      %4734 = vmatpush1.bf16.msra.mxu0 0
      %4735 = vmatprep.subr.bf16.mxu0 0
      %4736 = vmatpush1.bf16.msra.mxu0 0
      %4737 = vmatprep.subr.bf16.mxu0 0
      %4738 = vmatpush1.bf16.msra.mxu0 0
      %4739 = vmatprep.subr.bf16.mxu0 0
      %4740 = vmatpush1.bf16.msra.mxu0 0
      %4741 = vmatprep.subr.bf16.mxu0 0
      %4742 = vmatpush1.bf16.msra.mxu0 0
      %4743 = vmatprep.subr.bf16.mxu0 0
      %4744 = vmatpush1.bf16.msra.mxu0 0
      %4745 = vmatprep.subr.bf16.mxu0 0
      %4746 = vmatpush1.bf16.msra.mxu0 0
      %4747 = vmatprep.subr.bf16.mxu0 0
      %4748 = vmatpush1.bf16.msra.mxu0 0
      %4749 = vmatprep.subr.bf16.mxu0 0
      %4750 = vmatpush1.bf16.msra.mxu0 0
      %4751 = vmatprep.subr.bf16.mxu0 0
      %4752 = vmatpush1.bf16.msra.mxu0 0
      %4753 = vmatprep.subr.bf16.mxu0 0
      %4754 = vmatpush1.bf16.msra.mxu0 0
      %4755 = vmatprep.mubr.bf16.mxu0 0
      %4756 = vmatmul.mubr.bf16.gmra.mrb[0].mxu0 %v4718
      %v4757 = vpop.f32.mrb[0].mxu0
      %v4758 = vadd.f32 %v1954, %v4757
      %v4759 = vpop.f32.mrb[0].mxu0
      %v4760 = vpop.f32.mrb[0].mxu0
      %v4761 = vpop.f32.mrb[0].mxu0
      %4762 = vdwg.mxu0
      %v4768 = vunpack.c.l.b16 %v537
      %v4769 = vunpack.c.l.b16 %v538
      %v4770 = vunpack.c.l.b16 %v539
      %v4771 = vunpack.c.l.b16 %v540
      %v4772 = vunpack.c.l.b16 %v541
      %v4773 = vpack.c.b16 %v4769, %v4768
      %v4774 = vpack.c.b16 %v4771, %v4770
      %v4775 = vpack.c.b16 %v4772, %v4772
      %v4779 = vsel %vm2458, %v257, 0
      %v4782 = vsel %vm2462, %v4775, 0
      %4784 = vmatprep.subr.bf16.mxu0 0
      %4785 = vmatpush1.bf16.msra.mxu0 %v4773
      %4786 = vmatprep.subr.bf16.mxu0 0
      %4787 = vmatpush1.bf16.msra.mxu0 %v4774
      %4788 = vmatprep.subr.bf16.mxu0 0
      %4789 = vmatpush1.bf16.msra.mxu0 %v4782
      %4790 = vmatprep.subr.bf16.mxu0 0
      %4791 = vmatpush1.bf16.msra.mxu0 0
      %4792 = vmatprep.subr.bf16.mxu0 0
      %4793 = vmatpush1.bf16.msra.mxu0 0
      %4794 = vmatprep.subr.bf16.mxu0 0
      %4795 = vmatpush1.bf16.msra.mxu0 0
      %4796 = vmatprep.subr.bf16.mxu0 0
      %4797 = vmatpush1.bf16.msra.mxu0 0
      %4798 = vmatprep.subr.bf16.mxu0 0
      %4799 = vmatpush1.bf16.msra.mxu0 0
      %4800 = vmatprep.subr.bf16.mxu0 0
      %4801 = vmatpush1.bf16.msra.mxu0 0
      %4802 = vmatprep.subr.bf16.mxu0 0
      %4803 = vmatpush1.bf16.msra.mxu0 0
      %4804 = vmatprep.subr.bf16.mxu0 0
      %4805 = vmatpush1.bf16.msra.mxu0 0
      %4806 = vmatprep.subr.bf16.mxu0 0
      %4807 = vmatpush1.bf16.msra.mxu0 0
      %4808 = vmatprep.subr.bf16.mxu0 0
      %4809 = vmatpush1.bf16.msra.mxu0 0
      %4810 = vmatprep.subr.bf16.mxu0 0
      %4811 = vmatpush1.bf16.msra.mxu0 0
      %4812 = vmatprep.subr.bf16.mxu0 0
      %4813 = vmatpush1.bf16.msra.mxu0 0
      %4814 = vmatprep.subr.bf16.mxu0 0
      %4815 = vmatpush1.bf16.msra.mxu0 0
      %4816 = vmatprep.mubr.bf16.mxu0 0
      %4817 = vmatmul.mubr.bf16.gmra.mrb[0].mxu0 %v4779
      %v4818 = vpop.f32.mrb[0].mxu0
      %v4819 = vadd.f32 %v1958, %v4818
      %v4820 = vpop.f32.mrb[0].mxu0
      %v4821 = vpop.f32.mrb[0].mxu0
      %v4822 = vpop.f32.mrb[0].mxu0
      %4823 = vdwg.mxu0
      %v4829 = vunpack.c.l.b16 %v542
      %v4830 = vunpack.c.l.b16 %v543
      %v4831 = vunpack.c.l.b16 %v544
      %v4832 = vunpack.c.l.b16 %v545
      %v4833 = vunpack.c.l.b16 %v546
      %v4834 = vpack.c.b16 %v4830, %v4829
      %v4835 = vpack.c.b16 %v4832, %v4831
      %v4836 = vpack.c.b16 %v4833, %v4833
      %v4840 = vsel %vm2458, %v258, 0
      %v4843 = vsel %vm2462, %v4836, 0
      %4845 = vmatprep.subr.bf16.mxu0 0
      %4846 = vmatpush1.bf16.msra.mxu0 %v4834
      %4847 = vmatprep.subr.bf16.mxu0 0
      %4848 = vmatpush1.bf16.msra.mxu0 %v4835
      %4849 = vmatprep.subr.bf16.mxu0 0
      %4850 = vmatpush1.bf16.msra.mxu0 %v4843
      %4851 = vmatprep.subr.bf16.mxu0 0
      %4852 = vmatpush1.bf16.msra.mxu0 0
      %4853 = vmatprep.subr.bf16.mxu0 0
      %4854 = vmatpush1.bf16.msra.mxu0 0
      %4855 = vmatprep.subr.bf16.mxu0 0
      %4856 = vmatpush1.bf16.msra.mxu0 0
      %4857 = vmatprep.subr.bf16.mxu0 0
      %4858 = vmatpush1.bf16.msra.mxu0 0
      %4859 = vmatprep.subr.bf16.mxu0 0
      %4860 = vmatpush1.bf16.msra.mxu0 0
      %4861 = vmatprep.subr.bf16.mxu0 0
      %4862 = vmatpush1.bf16.msra.mxu0 0
      %4863 = vmatprep.subr.bf16.mxu0 0
      %4864 = vmatpush1.bf16.msra.mxu0 0
      %4865 = vmatprep.subr.bf16.mxu0 0
      %4866 = vmatpush1.bf16.msra.mxu0 0
      %4867 = vmatprep.subr.bf16.mxu0 0
      %4868 = vmatpush1.bf16.msra.mxu0 0
      %4869 = vmatprep.subr.bf16.mxu0 0
      %4870 = vmatpush1.bf16.msra.mxu0 0
      %4871 = vmatprep.subr.bf16.mxu0 0
      %4872 = vmatpush1.bf16.msra.mxu0 0
      %4873 = vmatprep.subr.bf16.mxu0 0
      %4874 = vmatpush1.bf16.msra.mxu0 0
      %4875 = vmatprep.subr.bf16.mxu0 0
      %4876 = vmatpush1.bf16.msra.mxu0 0
      %4877 = vmatprep.mubr.bf16.mxu0 0
      %4878 = vmatmul.mubr.bf16.gmra.mrb[0].mxu0 %v4840
      %v4879 = vpop.f32.mrb[0].mxu0
      %v4880 = vadd.f32 %v1962, %v4879
      %v4881 = vpop.f32.mrb[0].mxu0
      %v4882 = vpop.f32.mrb[0].mxu0
      %v4883 = vpop.f32.mrb[0].mxu0
      %4884 = vdwg.mxu0
      %v4890 = vunpack.c.l.b16 %v547
      %v4891 = vunpack.c.l.b16 %v548
      %v4892 = vunpack.c.l.b16 %v549
      %v4893 = vunpack.c.l.b16 %v550
      %v4894 = vunpack.c.l.b16 %v551
      %v4895 = vpack.c.b16 %v4891, %v4890
      %v4896 = vpack.c.b16 %v4893, %v4892
      %v4897 = vpack.c.b16 %v4894, %v4894
      %v4901 = vsel %vm2458, %v259, 0
      %v4904 = vsel %vm2462, %v4897, 0
      %4906 = vmatprep.subr.bf16.mxu0 0
      %4907 = vmatpush1.bf16.msra.mxu0 %v4895
      %4908 = vmatprep.subr.bf16.mxu0 0
      %4909 = vmatpush1.bf16.msra.mxu0 %v4896
      %4910 = vmatprep.subr.bf16.mxu0 0
      %4911 = vmatpush1.bf16.msra.mxu0 %v4904
      %4912 = vmatprep.subr.bf16.mxu0 0
      %4913 = vmatpush1.bf16.msra.mxu0 0
      %4914 = vmatprep.subr.bf16.mxu0 0
      %4915 = vmatpush1.bf16.msra.mxu0 0
      %4916 = vmatprep.subr.bf16.mxu0 0
      %4917 = vmatpush1.bf16.msra.mxu0 0
      %4918 = vmatprep.subr.bf16.mxu0 0
      %4919 = vmatpush1.bf16.msra.mxu0 0
      %4920 = vmatprep.subr.bf16.mxu0 0
      %4921 = vmatpush1.bf16.msra.mxu0 0
      %4922 = vmatprep.subr.bf16.mxu0 0
      %4923 = vmatpush1.bf16.msra.mxu0 0
      %4924 = vmatprep.subr.bf16.mxu0 0
      %4925 = vmatpush1.bf16.msra.mxu0 0
      %4926 = vmatprep.subr.bf16.mxu0 0
      %4927 = vmatpush1.bf16.msra.mxu0 0
      %4928 = vmatprep.subr.bf16.mxu0 0
      %4929 = vmatpush1.bf16.msra.mxu0 0
      %4930 = vmatprep.subr.bf16.mxu0 0
      %4931 = vmatpush1.bf16.msra.mxu0 0
      %4932 = vmatprep.subr.bf16.mxu0 0
      %4933 = vmatpush1.bf16.msra.mxu0 0
      %4934 = vmatprep.subr.bf16.mxu0 0
      %4935 = vmatpush1.bf16.msra.mxu0 0
      %4936 = vmatprep.subr.bf16.mxu0 0
      %4937 = vmatpush1.bf16.msra.mxu0 0
      %4938 = vmatprep.mubr.bf16.mxu0 0
      %4939 = vmatmul.mubr.bf16.gmra.mrb[0].mxu0 %v4901
      %v4940 = vpop.f32.mrb[0].mxu0
      %v4941 = vadd.f32 %v1966, %v4940
      %v4942 = vpop.f32.mrb[0].mxu0
      %v4943 = vpop.f32.mrb[0].mxu0
      %v4944 = vpop.f32.mrb[0].mxu0
      %4945 = vdwg.mxu0
      %v4951 = vunpack.c.l.b16 %v552
      %v4952 = vunpack.c.l.b16 %v553
      %v4953 = vunpack.c.l.b16 %v554
      %v4954 = vunpack.c.l.b16 %v555
      %v4955 = vunpack.c.l.b16 %v556
      %v4956 = vpack.c.b16 %v4952, %v4951
      %v4957 = vpack.c.b16 %v4954, %v4953
      %v4958 = vpack.c.b16 %v4955, %v4955
      %v4962 = vsel %vm2458, %v260, 0
      %v4965 = vsel %vm2462, %v4958, 0
      %4967 = vmatprep.subr.bf16.mxu0 0
      %4968 = vmatpush1.bf16.msra.mxu0 %v4956
      %4969 = vmatprep.subr.bf16.mxu0 0
      %4970 = vmatpush1.bf16.msra.mxu0 %v4957
      %4971 = vmatprep.subr.bf16.mxu0 0
      %4972 = vmatpush1.bf16.msra.mxu0 %v4965
      %4973 = vmatprep.subr.bf16.mxu0 0
      %4974 = vmatpush1.bf16.msra.mxu0 0
      %4975 = vmatprep.subr.bf16.mxu0 0
      %4976 = vmatpush1.bf16.msra.mxu0 0
      %4977 = vmatprep.subr.bf16.mxu0 0
      %4978 = vmatpush1.bf16.msra.mxu0 0
      %4979 = vmatprep.subr.bf16.mxu0 0
      %4980 = vmatpush1.bf16.msra.mxu0 0
      %4981 = vmatprep.subr.bf16.mxu0 0
      %4982 = vmatpush1.bf16.msra.mxu0 0
      %4983 = vmatprep.subr.bf16.mxu0 0
      %4984 = vmatpush1.bf16.msra.mxu0 0
      %4985 = vmatprep.subr.bf16.mxu0 0
      %4986 = vmatpush1.bf16.msra.mxu0 0
      %4987 = vmatprep.subr.bf16.mxu0 0
      %4988 = vmatpush1.bf16.msra.mxu0 0
      %4989 = vmatprep.subr.bf16.mxu0 0
      %4990 = vmatpush1.bf16.msra.mxu0 0
      %4991 = vmatprep.subr.bf16.mxu0 0
      %4992 = vmatpush1.bf16.msra.mxu0 0
      %4993 = vmatprep.subr.bf16.mxu0 0
      %4994 = vmatpush1.bf16.msra.mxu0 0
      %4995 = vmatprep.subr.bf16.mxu0 0
      %4996 = vmatpush1.bf16.msra.mxu0 0
      %4997 = vmatprep.subr.bf16.mxu0 0
      %4998 = vmatpush1.bf16.msra.mxu0 0
      %4999 = vmatprep.mubr.bf16.mxu0 0
      %5000 = vmatmul.mubr.bf16.gmra.mrb[0].mxu0 %v4962
      %v5001 = vpop.f32.mrb[0].mxu0
      %v5002 = vadd.f32 %v1970, %v5001
      %v5003 = vpop.f32.mrb[0].mxu0
      %v5004 = vpop.f32.mrb[0].mxu0
      %v5005 = vpop.f32.mrb[0].mxu0
      %5006 = vdwg.mxu0
      %v5012 = vunpack.c.l.b16 %v557
      %v5013 = vunpack.c.l.b16 %v558
      %v5014 = vunpack.c.l.b16 %v559
      %v5015 = vunpack.c.l.b16 %v560
      %v5016 = vunpack.c.l.b16 %v561
      %v5017 = vpack.c.b16 %v5013, %v5012
      %v5018 = vpack.c.b16 %v5015, %v5014
      %v5019 = vpack.c.b16 %v5016, %v5016
      %v5023 = vsel %vm2458, %v261, 0
      %v5026 = vsel %vm2462, %v5019, 0
      %5028 = vmatprep.subr.bf16.mxu0 0
      %5029 = vmatpush1.bf16.msra.mxu0 %v5017
      %5030 = vmatprep.subr.bf16.mxu0 0
      %5031 = vmatpush1.bf16.msra.mxu0 %v5018
      %5032 = vmatprep.subr.bf16.mxu0 0
      %5033 = vmatpush1.bf16.msra.mxu0 %v5026
      %5034 = vmatprep.subr.bf16.mxu0 0
      %5035 = vmatpush1.bf16.msra.mxu0 0
      %5036 = vmatprep.subr.bf16.mxu0 0
      %5037 = vmatpush1.bf16.msra.mxu0 0
      %5038 = vmatprep.subr.bf16.mxu0 0
      %5039 = vmatpush1.bf16.msra.mxu0 0
      %5040 = vmatprep.subr.bf16.mxu0 0
      %5041 = vmatpush1.bf16.msra.mxu0 0
      %5042 = vmatprep.subr.bf16.mxu0 0
      %5043 = vmatpush1.bf16.msra.mxu0 0
      %5044 = vmatprep.subr.bf16.mxu0 0
      %5045 = vmatpush1.bf16.msra.mxu0 0
      %5046 = vmatprep.subr.bf16.mxu0 0
      %5047 = vmatpush1.bf16.msra.mxu0 0
      %5048 = vmatprep.subr.bf16.mxu0 0
      %5049 = vmatpush1.bf16.msra.mxu0 0
      %5050 = vmatprep.subr.bf16.mxu0 0
      %5051 = vmatpush1.bf16.msra.mxu0 0
      %5052 = vmatprep.subr.bf16.mxu0 0
      %5053 = vmatpush1.bf16.msra.mxu0 0
      %5054 = vmatprep.subr.bf16.mxu0 0
      %5055 = vmatpush1.bf16.msra.mxu0 0
      %5056 = vmatprep.subr.bf16.mxu0 0
      %5057 = vmatpush1.bf16.msra.mxu0 0
      %5058 = vmatprep.subr.bf16.mxu0 0
      %5059 = vmatpush1.bf16.msra.mxu0 0
      %5060 = vmatprep.mubr.bf16.mxu0 0
      %5061 = vmatmul.mubr.bf16.gmra.mrb[0].mxu0 %v5023
      %v5062 = vpop.f32.mrb[0].mxu0
      %v5063 = vadd.f32 %v1974, %v5062
      %v5064 = vpop.f32.mrb[0].mxu0
      %v5065 = vpop.f32.mrb[0].mxu0
      %v5066 = vpop.f32.mrb[0].mxu0
      %5067 = vdwg.mxu0
      %v5073 = vunpack.c.l.b16 %v562
      %v5074 = vunpack.c.l.b16 %v563
      %v5075 = vunpack.c.l.b16 %v564
      %v5076 = vunpack.c.l.b16 %v565
      %v5077 = vunpack.c.l.b16 %v566
      %v5078 = vpack.c.b16 %v5074, %v5073
      %v5079 = vpack.c.b16 %v5076, %v5075
      %v5080 = vpack.c.b16 %v5077, %v5077
      %v5084 = vsel %vm2458, %v262, 0
      %v5087 = vsel %vm2462, %v5080, 0
      %5089 = vmatprep.subr.bf16.mxu0 0
      %5090 = vmatpush1.bf16.msra.mxu0 %v5078
      %5091 = vmatprep.subr.bf16.mxu0 0
      %5092 = vmatpush1.bf16.msra.mxu0 %v5079
      %5093 = vmatprep.subr.bf16.mxu0 0
      %5094 = vmatpush1.bf16.msra.mxu0 %v5087
      %5095 = vmatprep.subr.bf16.mxu0 0
      %5096 = vmatpush1.bf16.msra.mxu0 0
      %5097 = vmatprep.subr.bf16.mxu0 0
      %5098 = vmatpush1.bf16.msra.mxu0 0
      %5099 = vmatprep.subr.bf16.mxu0 0
      %5100 = vmatpush1.bf16.msra.mxu0 0
      %5101 = vmatprep.subr.bf16.mxu0 0
      %5102 = vmatpush1.bf16.msra.mxu0 0
      %5103 = vmatprep.subr.bf16.mxu0 0
      %5104 = vmatpush1.bf16.msra.mxu0 0
      %5105 = vmatprep.subr.bf16.mxu0 0
      %5106 = vmatpush1.bf16.msra.mxu0 0
      %5107 = vmatprep.subr.bf16.mxu0 0
      %5108 = vmatpush1.bf16.msra.mxu0 0
      %5109 = vmatprep.subr.bf16.mxu0 0
      %5110 = vmatpush1.bf16.msra.mxu0 0
      %5111 = vmatprep.subr.bf16.mxu0 0
      %5112 = vmatpush1.bf16.msra.mxu0 0
      %5113 = vmatprep.subr.bf16.mxu0 0
      %5114 = vmatpush1.bf16.msra.mxu0 0
      %5115 = vmatprep.subr.bf16.mxu0 0
      %5116 = vmatpush1.bf16.msra.mxu0 0
      %5117 = vmatprep.subr.bf16.mxu0 0
      %5118 = vmatpush1.bf16.msra.mxu0 0
      %5119 = vmatprep.subr.bf16.mxu0 0
      %5120 = vmatpush1.bf16.msra.mxu0 0
      %5121 = vmatprep.mubr.bf16.mxu0 0
      %5122 = vmatmul.mubr.bf16.gmra.mrb[0].mxu0 %v5084
      %v5123 = vpop.f32.mrb[0].mxu0
      %v5124 = vadd.f32 %v1978, %v5123
      %v5125 = vpop.f32.mrb[0].mxu0
      %v5126 = vpop.f32.mrb[0].mxu0
      %v5127 = vpop.f32.mrb[0].mxu0
      %5128 = vdwg.mxu0
      %v5134 = vunpack.c.l.b16 %v567
      %v5135 = vunpack.c.l.b16 %v568
      %v5136 = vunpack.c.l.b16 %v569
      %v5137 = vunpack.c.l.b16 %v570
      %v5138 = vunpack.c.l.b16 %v571
      %v5139 = vpack.c.b16 %v5135, %v5134
      %v5140 = vpack.c.b16 %v5137, %v5136
      %v5141 = vpack.c.b16 %v5138, %v5138
      %v5145 = vsel %vm2458, %v263, 0
      %v5148 = vsel %vm2462, %v5141, 0
      %5150 = vmatprep.subr.bf16.mxu0 0
      %5151 = vmatpush1.bf16.msra.mxu0 %v5139
      %5152 = vmatprep.subr.bf16.mxu0 0
      %5153 = vmatpush1.bf16.msra.mxu0 %v5140
      %5154 = vmatprep.subr.bf16.mxu0 0
      %5155 = vmatpush1.bf16.msra.mxu0 %v5148
      %5156 = vmatprep.subr.bf16.mxu0 0
      %5157 = vmatpush1.bf16.msra.mxu0 0
      %5158 = vmatprep.subr.bf16.mxu0 0
      %5159 = vmatpush1.bf16.msra.mxu0 0
      %5160 = vmatprep.subr.bf16.mxu0 0
      %5161 = vmatpush1.bf16.msra.mxu0 0
      %5162 = vmatprep.subr.bf16.mxu0 0
      %5163 = vmatpush1.bf16.msra.mxu0 0
      %5164 = vmatprep.subr.bf16.mxu0 0
      %5165 = vmatpush1.bf16.msra.mxu0 0
      %5166 = vmatprep.subr.bf16.mxu0 0
      %5167 = vmatpush1.bf16.msra.mxu0 0
      %5168 = vmatprep.subr.bf16.mxu0 0
      %5169 = vmatpush1.bf16.msra.mxu0 0
      %5170 = vmatprep.subr.bf16.mxu0 0
      %5171 = vmatpush1.bf16.msra.mxu0 0
      %5172 = vmatprep.subr.bf16.mxu0 0
      %5173 = vmatpush1.bf16.msra.mxu0 0
      %5174 = vmatprep.subr.bf16.mxu0 0
      %5175 = vmatpush1.bf16.msra.mxu0 0
      %5176 = vmatprep.subr.bf16.mxu0 0
      %5177 = vmatpush1.bf16.msra.mxu0 0
      %5178 = vmatprep.subr.bf16.mxu0 0
      %5179 = vmatpush1.bf16.msra.mxu0 0
      %5180 = vmatprep.subr.bf16.mxu0 0
      %5181 = vmatpush1.bf16.msra.mxu0 0
      %5182 = vmatprep.mubr.bf16.mxu0 0
      %5183 = vmatmul.mubr.bf16.gmra.mrb[0].mxu0 %v5145
      %v5184 = vpop.f32.mrb[0].mxu0
      %v5185 = vadd.f32 %v1982, %v5184
      %v5186 = vpop.f32.mrb[0].mxu0
      %v5187 = vpop.f32.mrb[0].mxu0
      %v5188 = vpop.f32.mrb[0].mxu0
      %5189 = vdwg.mxu0
      %v5195 = vunpack.c.l.b16 %v572
      %v5196 = vunpack.c.l.b16 %v573
      %v5197 = vunpack.c.l.b16 %v574
      %v5198 = vunpack.c.l.b16 %v575
      %v5199 = vunpack.c.l.b16 %v576
      %v5200 = vpack.c.b16 %v5196, %v5195
      %v5201 = vpack.c.b16 %v5198, %v5197
      %v5202 = vpack.c.b16 %v5199, %v5199
      %v5206 = vsel %vm2458, %v264, 0
      %v5209 = vsel %vm2462, %v5202, 0
      %5211 = vmatprep.subr.bf16.mxu0 0
      %5212 = vmatpush1.bf16.msra.mxu0 %v5200
      %5213 = vmatprep.subr.bf16.mxu0 0
      %5214 = vmatpush1.bf16.msra.mxu0 %v5201
      %5215 = vmatprep.subr.bf16.mxu0 0
      %5216 = vmatpush1.bf16.msra.mxu0 %v5209
      %5217 = vmatprep.subr.bf16.mxu0 0
      %5218 = vmatpush1.bf16.msra.mxu0 0
      %5219 = vmatprep.subr.bf16.mxu0 0
      %5220 = vmatpush1.bf16.msra.mxu0 0
      %5221 = vmatprep.subr.bf16.mxu0 0
      %5222 = vmatpush1.bf16.msra.mxu0 0
      %5223 = vmatprep.subr.bf16.mxu0 0
      %5224 = vmatpush1.bf16.msra.mxu0 0
      %5225 = vmatprep.subr.bf16.mxu0 0
      %5226 = vmatpush1.bf16.msra.mxu0 0
      %5227 = vmatprep.subr.bf16.mxu0 0
      %5228 = vmatpush1.bf16.msra.mxu0 0
      %5229 = vmatprep.subr.bf16.mxu0 0
      %5230 = vmatpush1.bf16.msra.mxu0 0
      %5231 = vmatprep.subr.bf16.mxu0 0
      %5232 = vmatpush1.bf16.msra.mxu0 0
      %5233 = vmatprep.subr.bf16.mxu0 0
      %5234 = vmatpush1.bf16.msra.mxu0 0
      %5235 = vmatprep.subr.bf16.mxu0 0
      %5236 = vmatpush1.bf16.msra.mxu0 0
      %5237 = vmatprep.subr.bf16.mxu0 0
      %5238 = vmatpush1.bf16.msra.mxu0 0
      %5239 = vmatprep.subr.bf16.mxu0 0
      %5240 = vmatpush1.bf16.msra.mxu0 0
      %5241 = vmatprep.subr.bf16.mxu0 0
      %5242 = vmatpush1.bf16.msra.mxu0 0
      %5243 = vmatprep.mubr.bf16.mxu0 0
      %5244 = vmatmul.mubr.bf16.gmra.mrb[0].mxu0 %v5206
      %v5245 = vpop.f32.mrb[0].mxu0
      %v5246 = vadd.f32 %v1986, %v5245
      %v5247 = vpop.f32.mrb[0].mxu0
      %v5248 = vpop.f32.mrb[0].mxu0
      %v5249 = vpop.f32.mrb[0].mxu0
      %5250 = vdwg.mxu0
      %v5256 = vunpack.c.l.b16 %v577
      %v5257 = vunpack.c.l.b16 %v578
      %v5258 = vunpack.c.l.b16 %v579
      %v5259 = vunpack.c.l.b16 %v580
      %v5260 = vunpack.c.l.b16 %v581
      %v5261 = vpack.c.b16 %v5257, %v5256
      %v5262 = vpack.c.b16 %v5259, %v5258
      %v5263 = vpack.c.b16 %v5260, %v5260
      %v5267 = vsel %vm2458, %v265, 0
      %v5270 = vsel %vm2462, %v5263, 0
      %5272 = vmatprep.subr.bf16.mxu0 0
      %5273 = vmatpush1.bf16.msra.mxu0 %v5261
      %5274 = vmatprep.subr.bf16.mxu0 0
      %5275 = vmatpush1.bf16.msra.mxu0 %v5262
      %5276 = vmatprep.subr.bf16.mxu0 0
      %5277 = vmatpush1.bf16.msra.mxu0 %v5270
      %5278 = vmatprep.subr.bf16.mxu0 0
      %5279 = vmatpush1.bf16.msra.mxu0 0
      %5280 = vmatprep.subr.bf16.mxu0 0
      %5281 = vmatpush1.bf16.msra.mxu0 0
      %5282 = vmatprep.subr.bf16.mxu0 0
      %5283 = vmatpush1.bf16.msra.mxu0 0
      %5284 = vmatprep.subr.bf16.mxu0 0
      %5285 = vmatpush1.bf16.msra.mxu0 0
      %5286 = vmatprep.subr.bf16.mxu0 0
      %5287 = vmatpush1.bf16.msra.mxu0 0
      %5288 = vmatprep.subr.bf16.mxu0 0
      %5289 = vmatpush1.bf16.msra.mxu0 0
      %5290 = vmatprep.subr.bf16.mxu0 0
      %5291 = vmatpush1.bf16.msra.mxu0 0
      %5292 = vmatprep.subr.bf16.mxu0 0
      %5293 = vmatpush1.bf16.msra.mxu0 0
      %5294 = vmatprep.subr.bf16.mxu0 0
      %5295 = vmatpush1.bf16.msra.mxu0 0
      %5296 = vmatprep.subr.bf16.mxu0 0
      %5297 = vmatpush1.bf16.msra.mxu0 0
      %5298 = vmatprep.subr.bf16.mxu0 0
      %5299 = vmatpush1.bf16.msra.mxu0 0
      %5300 = vmatprep.subr.bf16.mxu0 0
      %5301 = vmatpush1.bf16.msra.mxu0 0
      %5302 = vmatprep.subr.bf16.mxu0 0
      %5303 = vmatpush1.bf16.msra.mxu0 0
      %5304 = vmatprep.mubr.bf16.mxu0 0
      %5305 = vmatmul.mubr.bf16.gmra.mrb[0].mxu0 %v5267
      %v5306 = vpop.f32.mrb[0].mxu0
      %v5307 = vadd.f32 %v1990, %v5306
      %v5308 = vpop.f32.mrb[0].mxu0
      %v5309 = vpop.f32.mrb[0].mxu0
      %v5310 = vpop.f32.mrb[0].mxu0
      %5311 = vdwg.mxu0
      %v5317 = vunpack.c.l.b16 %v582
      %v5318 = vunpack.c.l.b16 %v583
      %v5319 = vunpack.c.l.b16 %v584
      %v5320 = vunpack.c.l.b16 %v585
      %v5321 = vunpack.c.l.b16 %v586
      %v5322 = vpack.c.b16 %v5318, %v5317
      %v5323 = vpack.c.b16 %v5320, %v5319
      %v5324 = vpack.c.b16 %v5321, %v5321
      %v5328 = vsel %vm2458, %v266, 0
      %v5331 = vsel %vm2462, %v5324, 0
      %5333 = vmatprep.subr.bf16.mxu0 0
      %5334 = vmatpush1.bf16.msra.mxu0 %v5322
      %5335 = vmatprep.subr.bf16.mxu0 0
      %5336 = vmatpush1.bf16.msra.mxu0 %v5323
      %5337 = vmatprep.subr.bf16.mxu0 0
      %5338 = vmatpush1.bf16.msra.mxu0 %v5331
      %5339 = vmatprep.subr.bf16.mxu0 0
      %5340 = vmatpush1.bf16.msra.mxu0 0
      %5341 = vmatprep.subr.bf16.mxu0 0
      %5342 = vmatpush1.bf16.msra.mxu0 0
      %5343 = vmatprep.subr.bf16.mxu0 0
      %5344 = vmatpush1.bf16.msra.mxu0 0
      %5345 = vmatprep.subr.bf16.mxu0 0
      %5346 = vmatpush1.bf16.msra.mxu0 0
      %5347 = vmatprep.subr.bf16.mxu0 0
      %5348 = vmatpush1.bf16.msra.mxu0 0
      %5349 = vmatprep.subr.bf16.mxu0 0
      %5350 = vmatpush1.bf16.msra.mxu0 0
      %5351 = vmatprep.subr.bf16.mxu0 0
      %5352 = vmatpush1.bf16.msra.mxu0 0
      %5353 = vmatprep.subr.bf16.mxu0 0
      %5354 = vmatpush1.bf16.msra.mxu0 0
      %5355 = vmatprep.subr.bf16.mxu0 0
      %5356 = vmatpush1.bf16.msra.mxu0 0
      %5357 = vmatprep.subr.bf16.mxu0 0
      %5358 = vmatpush1.bf16.msra.mxu0 0
      %5359 = vmatprep.subr.bf16.mxu0 0
      %5360 = vmatpush1.bf16.msra.mxu0 0
      %5361 = vmatprep.subr.bf16.mxu0 0
      %5362 = vmatpush1.bf16.msra.mxu0 0
      %5363 = vmatprep.subr.bf16.mxu0 0
      %5364 = vmatpush1.bf16.msra.mxu0 0
      %5365 = vmatprep.mubr.bf16.mxu0 0
      %5366 = vmatmul.mubr.bf16.gmra.mrb[0].mxu0 %v5328
      %v5367 = vpop.f32.mrb[0].mxu0
      %v5368 = vadd.f32 %v1994, %v5367
      %v5369 = vpop.f32.mrb[0].mxu0
      %v5370 = vpop.f32.mrb[0].mxu0
      %v5371 = vpop.f32.mrb[0].mxu0
      %5372 = vdwg.mxu0
      %v5378 = vunpack.c.l.b16 %v587
      %v5379 = vunpack.c.l.b16 %v588
      %v5380 = vunpack.c.l.b16 %v589
      %v5381 = vunpack.c.l.b16 %v590
      %v5382 = vunpack.c.l.b16 %v591
      %v5383 = vpack.c.b16 %v5379, %v5378
      %v5384 = vpack.c.b16 %v5381, %v5380
      %v5385 = vpack.c.b16 %v5382, %v5382
      %v5389 = vsel %vm2458, %v267, 0
      %v5392 = vsel %vm2462, %v5385, 0
      %5394 = vmatprep.subr.bf16.mxu0 0
      %5395 = vmatpush1.bf16.msra.mxu0 %v5383
      %5396 = vmatprep.subr.bf16.mxu0 0
      %5397 = vmatpush1.bf16.msra.mxu0 %v5384
      %5398 = vmatprep.subr.bf16.mxu0 0
      %5399 = vmatpush1.bf16.msra.mxu0 %v5392
      %5400 = vmatprep.subr.bf16.mxu0 0
      %5401 = vmatpush1.bf16.msra.mxu0 0
      %5402 = vmatprep.subr.bf16.mxu0 0
      %5403 = vmatpush1.bf16.msra.mxu0 0
      %5404 = vmatprep.subr.bf16.mxu0 0
      %5405 = vmatpush1.bf16.msra.mxu0 0
      %5406 = vmatprep.subr.bf16.mxu0 0
      %5407 = vmatpush1.bf16.msra.mxu0 0
      %5408 = vmatprep.subr.bf16.mxu0 0
      %5409 = vmatpush1.bf16.msra.mxu0 0
      %5410 = vmatprep.subr.bf16.mxu0 0
      %5411 = vmatpush1.bf16.msra.mxu0 0
      %5412 = vmatprep.subr.bf16.mxu0 0
      %5413 = vmatpush1.bf16.msra.mxu0 0
      %5414 = vmatprep.subr.bf16.mxu0 0
      %5415 = vmatpush1.bf16.msra.mxu0 0
      %5416 = vmatprep.subr.bf16.mxu0 0
      %5417 = vmatpush1.bf16.msra.mxu0 0
      %5418 = vmatprep.subr.bf16.mxu0 0
      %5419 = vmatpush1.bf16.msra.mxu0 0
      %5420 = vmatprep.subr.bf16.mxu0 0
      %5421 = vmatpush1.bf16.msra.mxu0 0
      %5422 = vmatprep.subr.bf16.mxu0 0
      %5423 = vmatpush1.bf16.msra.mxu0 0
      %5424 = vmatprep.subr.bf16.mxu0 0
      %5425 = vmatpush1.bf16.msra.mxu0 0
      %5426 = vmatprep.mubr.bf16.mxu0 0
      %5427 = vmatmul.mubr.bf16.gmra.mrb[0].mxu0 %v5389
      %v5428 = vpop.f32.mrb[0].mxu0
      %v5429 = vadd.f32 %v1998, %v5428
      %v5430 = vpop.f32.mrb[0].mxu0
      %v5431 = vpop.f32.mrb[0].mxu0
      %v5432 = vpop.f32.mrb[0].mxu0
      %5433 = vdwg.mxu0
      %v5439 = vunpack.c.l.b16 %v592
      %v5440 = vunpack.c.l.b16 %v593
      %v5441 = vunpack.c.l.b16 %v594
      %v5442 = vunpack.c.l.b16 %v595
      %v5443 = vunpack.c.l.b16 %v596
      %v5444 = vpack.c.b16 %v5440, %v5439
      %v5445 = vpack.c.b16 %v5442, %v5441
      %v5446 = vpack.c.b16 %v5443, %v5443
      %v5450 = vsel %vm2458, %v268, 0
      %v5453 = vsel %vm2462, %v5446, 0
      %5455 = vmatprep.subr.bf16.mxu0 0
      %5456 = vmatpush1.bf16.msra.mxu0 %v5444
      %5457 = vmatprep.subr.bf16.mxu0 0
      %5458 = vmatpush1.bf16.msra.mxu0 %v5445
      %5459 = vmatprep.subr.bf16.mxu0 0
      %5460 = vmatpush1.bf16.msra.mxu0 %v5453
      %5461 = vmatprep.subr.bf16.mxu0 0
      %5462 = vmatpush1.bf16.msra.mxu0 0
      %5463 = vmatprep.subr.bf16.mxu0 0
      %5464 = vmatpush1.bf16.msra.mxu0 0
      %5465 = vmatprep.subr.bf16.mxu0 0
      %5466 = vmatpush1.bf16.msra.mxu0 0
      %5467 = vmatprep.subr.bf16.mxu0 0
      %5468 = vmatpush1.bf16.msra.mxu0 0
      %5469 = vmatprep.subr.bf16.mxu0 0
      %5470 = vmatpush1.bf16.msra.mxu0 0
      %5471 = vmatprep.subr.bf16.mxu0 0
      %5472 = vmatpush1.bf16.msra.mxu0 0
      %5473 = vmatprep.subr.bf16.mxu0 0
      %5474 = vmatpush1.bf16.msra.mxu0 0
      %5475 = vmatprep.subr.bf16.mxu0 0
      %5476 = vmatpush1.bf16.msra.mxu0 0
      %5477 = vmatprep.subr.bf16.mxu0 0
      %5478 = vmatpush1.bf16.msra.mxu0 0
      %5479 = vmatprep.subr.bf16.mxu0 0
      %5480 = vmatpush1.bf16.msra.mxu0 0
      %5481 = vmatprep.subr.bf16.mxu0 0
      %5482 = vmatpush1.bf16.msra.mxu0 0
      %5483 = vmatprep.subr.bf16.mxu0 0
      %5484 = vmatpush1.bf16.msra.mxu0 0
      %5485 = vmatprep.subr.bf16.mxu0 0
      %5486 = vmatpush1.bf16.msra.mxu0 0
      %5487 = vmatprep.mubr.bf16.mxu0 0
      %5488 = vmatmul.mubr.bf16.gmra.mrb[0].mxu0 %v5450
      %v5489 = vpop.f32.mrb[0].mxu0
      %v5490 = vadd.f32 %v2002, %v5489
      %v5491 = vpop.f32.mrb[0].mxu0
      %v5492 = vpop.f32.mrb[0].mxu0
      %v5493 = vpop.f32.mrb[0].mxu0
      %5494 = vdwg.mxu0
      %v5500 = vunpack.c.l.b16 %v597
      %v5501 = vunpack.c.l.b16 %v598
      %v5502 = vunpack.c.l.b16 %v599
      %v5503 = vunpack.c.l.b16 %v600
      %v5504 = vunpack.c.l.b16 %v601
      %v5505 = vpack.c.b16 %v5501, %v5500
      %v5506 = vpack.c.b16 %v5503, %v5502
      %v5507 = vpack.c.b16 %v5504, %v5504
      %v5511 = vsel %vm2458, %v269, 0
      %v5514 = vsel %vm2462, %v5507, 0
      %5516 = vmatprep.subr.bf16.mxu0 0
      %5517 = vmatpush1.bf16.msra.mxu0 %v5505
      %5518 = vmatprep.subr.bf16.mxu0 0
      %5519 = vmatpush1.bf16.msra.mxu0 %v5506
      %5520 = vmatprep.subr.bf16.mxu0 0
      %5521 = vmatpush1.bf16.msra.mxu0 %v5514
      %5522 = vmatprep.subr.bf16.mxu0 0
      %5523 = vmatpush1.bf16.msra.mxu0 0
      %5524 = vmatprep.subr.bf16.mxu0 0
      %5525 = vmatpush1.bf16.msra.mxu0 0
      %5526 = vmatprep.subr.bf16.mxu0 0
      %5527 = vmatpush1.bf16.msra.mxu0 0
      %5528 = vmatprep.subr.bf16.mxu0 0
      %5529 = vmatpush1.bf16.msra.mxu0 0
      %5530 = vmatprep.subr.bf16.mxu0 0
      %5531 = vmatpush1.bf16.msra.mxu0 0
      %5532 = vmatprep.subr.bf16.mxu0 0
      %5533 = vmatpush1.bf16.msra.mxu0 0
      %5534 = vmatprep.subr.bf16.mxu0 0
      %5535 = vmatpush1.bf16.msra.mxu0 0
      %5536 = vmatprep.subr.bf16.mxu0 0
      %5537 = vmatpush1.bf16.msra.mxu0 0
      %5538 = vmatprep.subr.bf16.mxu0 0
      %5539 = vmatpush1.bf16.msra.mxu0 0
      %5540 = vmatprep.subr.bf16.mxu0 0
      %5541 = vmatpush1.bf16.msra.mxu0 0
      %5542 = vmatprep.subr.bf16.mxu0 0
      %5543 = vmatpush1.bf16.msra.mxu0 0
      %5544 = vmatprep.subr.bf16.mxu0 0
      %5545 = vmatpush1.bf16.msra.mxu0 0
      %5546 = vmatprep.subr.bf16.mxu0 0
      %5547 = vmatpush1.bf16.msra.mxu0 0
      %5548 = vmatprep.mubr.bf16.mxu0 0
      %5549 = vmatmul.mubr.bf16.gmra.mrb[0].mxu0 %v5511
      %v5550 = vpop.f32.mrb[0].mxu0
      %v5551 = vadd.f32 %v2006, %v5550
      %v5552 = vpop.f32.mrb[0].mxu0
      %v5553 = vpop.f32.mrb[0].mxu0
      %v5554 = vpop.f32.mrb[0].mxu0
      %5555 = vdwg.mxu0
      %v5561 = vunpack.c.l.b16 %v602
      %v5562 = vunpack.c.l.b16 %v603
      %v5563 = vunpack.c.l.b16 %v604
      %v5564 = vunpack.c.l.b16 %v605
      %v5565 = vunpack.c.l.b16 %v606
      %v5566 = vpack.c.b16 %v5562, %v5561
      %v5567 = vpack.c.b16 %v5564, %v5563
      %v5568 = vpack.c.b16 %v5565, %v5565
      %v5572 = vsel %vm2458, %v270, 0
      %v5575 = vsel %vm2462, %v5568, 0
      %5577 = vmatprep.subr.bf16.mxu0 0
      %5578 = vmatpush1.bf16.msra.mxu0 %v5566
      %5579 = vmatprep.subr.bf16.mxu0 0
      %5580 = vmatpush1.bf16.msra.mxu0 %v5567
      %5581 = vmatprep.subr.bf16.mxu0 0
      %5582 = vmatpush1.bf16.msra.mxu0 %v5575
      %5583 = vmatprep.subr.bf16.mxu0 0
      %5584 = vmatpush1.bf16.msra.mxu0 0
      %5585 = vmatprep.subr.bf16.mxu0 0
      %5586 = vmatpush1.bf16.msra.mxu0 0
      %5587 = vmatprep.subr.bf16.mxu0 0
      %5588 = vmatpush1.bf16.msra.mxu0 0
      %5589 = vmatprep.subr.bf16.mxu0 0
      %5590 = vmatpush1.bf16.msra.mxu0 0
      %5591 = vmatprep.subr.bf16.mxu0 0
      %5592 = vmatpush1.bf16.msra.mxu0 0
      %5593 = vmatprep.subr.bf16.mxu0 0
      %5594 = vmatpush1.bf16.msra.mxu0 0
      %5595 = vmatprep.subr.bf16.mxu0 0
      %5596 = vmatpush1.bf16.msra.mxu0 0
      %5597 = vmatprep.subr.bf16.mxu0 0
      %5598 = vmatpush1.bf16.msra.mxu0 0
      %5599 = vmatprep.subr.bf16.mxu0 0
      %5600 = vmatpush1.bf16.msra.mxu0 0
      %5601 = vmatprep.subr.bf16.mxu0 0
      %5602 = vmatpush1.bf16.msra.mxu0 0
      %5603 = vmatprep.subr.bf16.mxu0 0
      %5604 = vmatpush1.bf16.msra.mxu0 0
      %5605 = vmatprep.subr.bf16.mxu0 0
      %5606 = vmatpush1.bf16.msra.mxu0 0
      %5607 = vmatprep.subr.bf16.mxu0 0
      %5608 = vmatpush1.bf16.msra.mxu0 0
      %5609 = vmatprep.mubr.bf16.mxu0 0
      %5610 = vmatmul.mubr.bf16.gmra.mrb[0].mxu0 %v5572
      %v5611 = vpop.f32.mrb[0].mxu0
      %v5612 = vadd.f32 %v2010, %v5611
      %v5613 = vpop.f32.mrb[0].mxu0
      %v5614 = vpop.f32.mrb[0].mxu0
      %v5615 = vpop.f32.mrb[0].mxu0
      %5616 = vdwg.mxu0
      %v5622 = vunpack.c.l.b16 %v607
      %v5623 = vunpack.c.l.b16 %v608
      %v5624 = vunpack.c.l.b16 %v609
      %v5625 = vunpack.c.l.b16 %v610
      %v5626 = vunpack.c.l.b16 %v611
      %v5627 = vpack.c.b16 %v5623, %v5622
      %v5628 = vpack.c.b16 %v5625, %v5624
      %v5629 = vpack.c.b16 %v5626, %v5626
      %v5633 = vsel %vm2458, %v271, 0
      %v5636 = vsel %vm2462, %v5629, 0
      %5638 = vmatprep.subr.bf16.mxu0 0
      %5639 = vmatpush1.bf16.msra.mxu0 %v5627
      %5640 = vmatprep.subr.bf16.mxu0 0
      %5641 = vmatpush1.bf16.msra.mxu0 %v5628
      %5642 = vmatprep.subr.bf16.mxu0 0
      %5643 = vmatpush1.bf16.msra.mxu0 %v5636
      %5644 = vmatprep.subr.bf16.mxu0 0
      %5645 = vmatpush1.bf16.msra.mxu0 0
      %5646 = vmatprep.subr.bf16.mxu0 0
      %5647 = vmatpush1.bf16.msra.mxu0 0
      %5648 = vmatprep.subr.bf16.mxu0 0
      %5649 = vmatpush1.bf16.msra.mxu0 0
      %5650 = vmatprep.subr.bf16.mxu0 0
      %5651 = vmatpush1.bf16.msra.mxu0 0
      %5652 = vmatprep.subr.bf16.mxu0 0
      %5653 = vmatpush1.bf16.msra.mxu0 0
      %5654 = vmatprep.subr.bf16.mxu0 0
      %5655 = vmatpush1.bf16.msra.mxu0 0
      %5656 = vmatprep.subr.bf16.mxu0 0
      %5657 = vmatpush1.bf16.msra.mxu0 0
      %5658 = vmatprep.subr.bf16.mxu0 0
      %5659 = vmatpush1.bf16.msra.mxu0 0
      %5660 = vmatprep.subr.bf16.mxu0 0
      %5661 = vmatpush1.bf16.msra.mxu0 0
      %5662 = vmatprep.subr.bf16.mxu0 0
      %5663 = vmatpush1.bf16.msra.mxu0 0
      %5664 = vmatprep.subr.bf16.mxu0 0
      %5665 = vmatpush1.bf16.msra.mxu0 0
      %5666 = vmatprep.subr.bf16.mxu0 0
      %5667 = vmatpush1.bf16.msra.mxu0 0
      %5668 = vmatprep.subr.bf16.mxu0 0
      %5669 = vmatpush1.bf16.msra.mxu0 0
      %5670 = vmatprep.mubr.bf16.mxu0 0
      %5671 = vmatmul.mubr.bf16.gmra.mrb[0].mxu0 %v5633
      %v5672 = vpop.f32.mrb[0].mxu0
      %v5673 = vadd.f32 %v2014, %v5672
      %v5674 = vpop.f32.mrb[0].mxu0
      %v5675 = vpop.f32.mrb[0].mxu0
      %v5676 = vpop.f32.mrb[0].mxu0
      %5677 = vdwg.mxu0
      %v5683 = vunpack.c.l.b16 %v612
      %v5684 = vunpack.c.l.b16 %v613
      %v5685 = vunpack.c.l.b16 %v614
      %v5686 = vunpack.c.l.b16 %v615
      %v5687 = vunpack.c.l.b16 %v616
      %v5688 = vpack.c.b16 %v5684, %v5683
      %v5689 = vpack.c.b16 %v5686, %v5685
      %v5690 = vpack.c.b16 %v5687, %v5687
      %v5694 = vsel %vm2458, %v272, 0
      %v5697 = vsel %vm2462, %v5690, 0
      %5699 = vmatprep.subr.bf16.mxu0 0
      %5700 = vmatpush1.bf16.msra.mxu0 %v5688
      %5701 = vmatprep.subr.bf16.mxu0 0
      %5702 = vmatpush1.bf16.msra.mxu0 %v5689
      %5703 = vmatprep.subr.bf16.mxu0 0
      %5704 = vmatpush1.bf16.msra.mxu0 %v5697
      %5705 = vmatprep.subr.bf16.mxu0 0
      %5706 = vmatpush1.bf16.msra.mxu0 0
      %5707 = vmatprep.subr.bf16.mxu0 0
      %5708 = vmatpush1.bf16.msra.mxu0 0
      %5709 = vmatprep.subr.bf16.mxu0 0
      %5710 = vmatpush1.bf16.msra.mxu0 0
      %5711 = vmatprep.subr.bf16.mxu0 0
      %5712 = vmatpush1.bf16.msra.mxu0 0
      %5713 = vmatprep.subr.bf16.mxu0 0
      %5714 = vmatpush1.bf16.msra.mxu0 0
      %5715 = vmatprep.subr.bf16.mxu0 0
      %5716 = vmatpush1.bf16.msra.mxu0 0
      %5717 = vmatprep.subr.bf16.mxu0 0
      %5718 = vmatpush1.bf16.msra.mxu0 0
      %5719 = vmatprep.subr.bf16.mxu0 0
      %5720 = vmatpush1.bf16.msra.mxu0 0
      %5721 = vmatprep.subr.bf16.mxu0 0
      %5722 = vmatpush1.bf16.msra.mxu0 0
      %5723 = vmatprep.subr.bf16.mxu0 0
      %5724 = vmatpush1.bf16.msra.mxu0 0
      %5725 = vmatprep.subr.bf16.mxu0 0
      %5726 = vmatpush1.bf16.msra.mxu0 0
      %5727 = vmatprep.subr.bf16.mxu0 0
      %5728 = vmatpush1.bf16.msra.mxu0 0
      %5729 = vmatprep.subr.bf16.mxu0 0
      %5730 = vmatpush1.bf16.msra.mxu0 0
      %5731 = vmatprep.mubr.bf16.mxu0 0
      %5732 = vmatmul.mubr.bf16.gmra.mrb[0].mxu0 %v5694
      %v5733 = vpop.f32.mrb[0].mxu0
      %v5734 = vadd.f32 %v2018, %v5733
      %v5735 = vpop.f32.mrb[0].mxu0
      %v5736 = vpop.f32.mrb[0].mxu0
      %v5737 = vpop.f32.mrb[0].mxu0
      %5738 = vdwg.mxu0
      %v5744 = vunpack.c.l.b16 %v617
      %v5745 = vunpack.c.l.b16 %v618
      %v5746 = vunpack.c.l.b16 %v619
      %v5747 = vunpack.c.l.b16 %v620
      %v5748 = vunpack.c.l.b16 %v621
      %v5749 = vpack.c.b16 %v5745, %v5744
      %v5750 = vpack.c.b16 %v5747, %v5746
      %v5751 = vpack.c.b16 %v5748, %v5748
      %v5755 = vsel %vm2458, %v273, 0
      %v5758 = vsel %vm2462, %v5751, 0
      %5760 = vmatprep.subr.bf16.mxu0 0
      %5761 = vmatpush1.bf16.msra.mxu0 %v5749
      %5762 = vmatprep.subr.bf16.mxu0 0
      %5763 = vmatpush1.bf16.msra.mxu0 %v5750
      %5764 = vmatprep.subr.bf16.mxu0 0
      %5765 = vmatpush1.bf16.msra.mxu0 %v5758
      %5766 = vmatprep.subr.bf16.mxu0 0
      %5767 = vmatpush1.bf16.msra.mxu0 0
      %5768 = vmatprep.subr.bf16.mxu0 0
      %5769 = vmatpush1.bf16.msra.mxu0 0
      %5770 = vmatprep.subr.bf16.mxu0 0
      %5771 = vmatpush1.bf16.msra.mxu0 0
      %5772 = vmatprep.subr.bf16.mxu0 0
      %5773 = vmatpush1.bf16.msra.mxu0 0
      %5774 = vmatprep.subr.bf16.mxu0 0
      %5775 = vmatpush1.bf16.msra.mxu0 0
      %5776 = vmatprep.subr.bf16.mxu0 0
      %5777 = vmatpush1.bf16.msra.mxu0 0
      %5778 = vmatprep.subr.bf16.mxu0 0
      %5779 = vmatpush1.bf16.msra.mxu0 0
      %5780 = vmatprep.subr.bf16.mxu0 0
      %5781 = vmatpush1.bf16.msra.mxu0 0
      %5782 = vmatprep.subr.bf16.mxu0 0
      %5783 = vmatpush1.bf16.msra.mxu0 0
      %5784 = vmatprep.subr.bf16.mxu0 0
      %5785 = vmatpush1.bf16.msra.mxu0 0
      %5786 = vmatprep.subr.bf16.mxu0 0
      %5787 = vmatpush1.bf16.msra.mxu0 0
      %5788 = vmatprep.subr.bf16.mxu0 0
      %5789 = vmatpush1.bf16.msra.mxu0 0
      %5790 = vmatprep.subr.bf16.mxu0 0
      %5791 = vmatpush1.bf16.msra.mxu0 0
      %5792 = vmatprep.mubr.bf16.mxu0 0
      %5793 = vmatmul.mubr.bf16.gmra.mrb[0].mxu0 %v5755
      %v5794 = vpop.f32.mrb[0].mxu0
      %v5795 = vadd.f32 %v2022, %v5794
      %v5796 = vpop.f32.mrb[0].mxu0
      %v5797 = vpop.f32.mrb[0].mxu0
      %v5798 = vpop.f32.mrb[0].mxu0
      %5799 = vdwg.mxu0
      %v5805 = vunpack.c.l.b16 %v622
      %v5806 = vunpack.c.l.b16 %v623
      %v5807 = vunpack.c.l.b16 %v624
      %v5808 = vunpack.c.l.b16 %v625
      %v5809 = vunpack.c.l.b16 %v626
      %v5810 = vpack.c.b16 %v5806, %v5805
      %v5811 = vpack.c.b16 %v5808, %v5807
      %v5812 = vpack.c.b16 %v5809, %v5809
      %v5816 = vsel %vm2458, %v274, 0
      %v5819 = vsel %vm2462, %v5812, 0
      %5821 = vmatprep.subr.bf16.mxu0 0
      %5822 = vmatpush1.bf16.msra.mxu0 %v5810
      %5823 = vmatprep.subr.bf16.mxu0 0
      %5824 = vmatpush1.bf16.msra.mxu0 %v5811
      %5825 = vmatprep.subr.bf16.mxu0 0
      %5826 = vmatpush1.bf16.msra.mxu0 %v5819
      %5827 = vmatprep.subr.bf16.mxu0 0
      %5828 = vmatpush1.bf16.msra.mxu0 0
      %5829 = vmatprep.subr.bf16.mxu0 0
      %5830 = vmatpush1.bf16.msra.mxu0 0
      %5831 = vmatprep.subr.bf16.mxu0 0
      %5832 = vmatpush1.bf16.msra.mxu0 0
      %5833 = vmatprep.subr.bf16.mxu0 0
      %5834 = vmatpush1.bf16.msra.mxu0 0
      %5835 = vmatprep.subr.bf16.mxu0 0
      %5836 = vmatpush1.bf16.msra.mxu0 0
      %5837 = vmatprep.subr.bf16.mxu0 0
      %5838 = vmatpush1.bf16.msra.mxu0 0
      %5839 = vmatprep.subr.bf16.mxu0 0
      %5840 = vmatpush1.bf16.msra.mxu0 0
      %5841 = vmatprep.subr.bf16.mxu0 0
      %5842 = vmatpush1.bf16.msra.mxu0 0
      %5843 = vmatprep.subr.bf16.mxu0 0
      %5844 = vmatpush1.bf16.msra.mxu0 0
      %5845 = vmatprep.subr.bf16.mxu0 0
      %5846 = vmatpush1.bf16.msra.mxu0 0
      %5847 = vmatprep.subr.bf16.mxu0 0
      %5848 = vmatpush1.bf16.msra.mxu0 0
      %5849 = vmatprep.subr.bf16.mxu0 0
      %5850 = vmatpush1.bf16.msra.mxu0 0
      %5851 = vmatprep.subr.bf16.mxu0 0
      %5852 = vmatpush1.bf16.msra.mxu0 0
      %5853 = vmatprep.mubr.bf16.mxu0 0
      %5854 = vmatmul.mubr.bf16.gmra.mrb[0].mxu0 %v5816
      %v5855 = vpop.f32.mrb[0].mxu0
      %v5856 = vadd.f32 %v2026, %v5855
      %v5857 = vpop.f32.mrb[0].mxu0
      %v5858 = vpop.f32.mrb[0].mxu0
      %v5859 = vpop.f32.mrb[0].mxu0
      %5860 = vdwg.mxu0
      %v5866 = vunpack.c.l.b16 %v627
      %v5867 = vunpack.c.l.b16 %v628
      %v5868 = vunpack.c.l.b16 %v629
      %v5869 = vunpack.c.l.b16 %v630
      %v5870 = vunpack.c.l.b16 %v631
      %v5871 = vpack.c.b16 %v5867, %v5866
      %v5872 = vpack.c.b16 %v5869, %v5868
      %v5873 = vpack.c.b16 %v5870, %v5870
      %v5877 = vsel %vm2458, %v275, 0
      %v5880 = vsel %vm2462, %v5873, 0
      %5882 = vmatprep.subr.bf16.mxu0 0
      %5883 = vmatpush1.bf16.msra.mxu0 %v5871
      %5884 = vmatprep.subr.bf16.mxu0 0
      %5885 = vmatpush1.bf16.msra.mxu0 %v5872
      %5886 = vmatprep.subr.bf16.mxu0 0
      %5887 = vmatpush1.bf16.msra.mxu0 %v5880
      %5888 = vmatprep.subr.bf16.mxu0 0
      %5889 = vmatpush1.bf16.msra.mxu0 0
      %5890 = vmatprep.subr.bf16.mxu0 0
      %5891 = vmatpush1.bf16.msra.mxu0 0
      %5892 = vmatprep.subr.bf16.mxu0 0
      %5893 = vmatpush1.bf16.msra.mxu0 0
      %5894 = vmatprep.subr.bf16.mxu0 0
      %5895 = vmatpush1.bf16.msra.mxu0 0
      %5896 = vmatprep.subr.bf16.mxu0 0
      %5897 = vmatpush1.bf16.msra.mxu0 0
      %5898 = vmatprep.subr.bf16.mxu0 0
      %5899 = vmatpush1.bf16.msra.mxu0 0
      %5900 = vmatprep.subr.bf16.mxu0 0
      %5901 = vmatpush1.bf16.msra.mxu0 0
      %5902 = vmatprep.subr.bf16.mxu0 0
      %5903 = vmatpush1.bf16.msra.mxu0 0
      %5904 = vmatprep.subr.bf16.mxu0 0
      %5905 = vmatpush1.bf16.msra.mxu0 0
      %5906 = vmatprep.subr.bf16.mxu0 0
      %5907 = vmatpush1.bf16.msra.mxu0 0
      %5908 = vmatprep.subr.bf16.mxu0 0
      %5909 = vmatpush1.bf16.msra.mxu0 0
      %5910 = vmatprep.subr.bf16.mxu0 0
      %5911 = vmatpush1.bf16.msra.mxu0 0
      %5912 = vmatprep.subr.bf16.mxu0 0
      %5913 = vmatpush1.bf16.msra.mxu0 0
      %5914 = vmatprep.mubr.bf16.mxu0 0
      %5915 = vmatmul.mubr.bf16.gmra.mrb[0].mxu0 %v5877
      %v5916 = vpop.f32.mrb[0].mxu0
      %v5917 = vadd.f32 %v2030, %v5916
      %v5918 = vpop.f32.mrb[0].mxu0
      %v5919 = vpop.f32.mrb[0].mxu0
      %v5920 = vpop.f32.mrb[0].mxu0
      %5921 = vdwg.mxu0
      %v5927 = vunpack.c.l.b16 %v632
      %v5928 = vunpack.c.l.b16 %v633
      %v5929 = vunpack.c.l.b16 %v634
      %v5930 = vunpack.c.l.b16 %v635
      %v5931 = vunpack.c.l.b16 %v636
      %v5932 = vpack.c.b16 %v5928, %v5927
      %v5933 = vpack.c.b16 %v5930, %v5929
      %v5934 = vpack.c.b16 %v5931, %v5931
      %v5938 = vsel %vm2458, %v276, 0
      %v5941 = vsel %vm2462, %v5934, 0
      %5943 = vmatprep.subr.bf16.mxu0 0
      %5944 = vmatpush1.bf16.msra.mxu0 %v5932
      %5945 = vmatprep.subr.bf16.mxu0 0
      %5946 = vmatpush1.bf16.msra.mxu0 %v5933
      %5947 = vmatprep.subr.bf16.mxu0 0
      %5948 = vmatpush1.bf16.msra.mxu0 %v5941
      %5949 = vmatprep.subr.bf16.mxu0 0
      %5950 = vmatpush1.bf16.msra.mxu0 0
      %5951 = vmatprep.subr.bf16.mxu0 0
      %5952 = vmatpush1.bf16.msra.mxu0 0
      %5953 = vmatprep.subr.bf16.mxu0 0
      %5954 = vmatpush1.bf16.msra.mxu0 0
      %5955 = vmatprep.subr.bf16.mxu0 0
      %5956 = vmatpush1.bf16.msra.mxu0 0
      %5957 = vmatprep.subr.bf16.mxu0 0
      %5958 = vmatpush1.bf16.msra.mxu0 0
      %5959 = vmatprep.subr.bf16.mxu0 0
      %5960 = vmatpush1.bf16.msra.mxu0 0
      %5961 = vmatprep.subr.bf16.mxu0 0
      %5962 = vmatpush1.bf16.msra.mxu0 0
      %5963 = vmatprep.subr.bf16.mxu0 0
      %5964 = vmatpush1.bf16.msra.mxu0 0
      %5965 = vmatprep.subr.bf16.mxu0 0
      %5966 = vmatpush1.bf16.msra.mxu0 0
      %5967 = vmatprep.subr.bf16.mxu0 0
      %5968 = vmatpush1.bf16.msra.mxu0 0
      %5969 = vmatprep.subr.bf16.mxu0 0
      %5970 = vmatpush1.bf16.msra.mxu0 0
      %5971 = vmatprep.subr.bf16.mxu0 0
      %5972 = vmatpush1.bf16.msra.mxu0 0
      %5973 = vmatprep.subr.bf16.mxu0 0
      %5974 = vmatpush1.bf16.msra.mxu0 0
      %5975 = vmatprep.mubr.bf16.mxu0 0
      %5976 = vmatmul.mubr.bf16.gmra.mrb[0].mxu0 %v5938
      %v5977 = vpop.f32.mrb[0].mxu0
      %v5978 = vadd.f32 %v2034, %v5977
      %v5979 = vpop.f32.mrb[0].mxu0
      %v5980 = vpop.f32.mrb[0].mxu0
      %v5981 = vpop.f32.mrb[0].mxu0
      %5982 = vdwg.mxu0
      %v5988 = vunpack.c.l.b16 %v637
      %v5989 = vunpack.c.l.b16 %v638
      %v5990 = vunpack.c.l.b16 %v639
      %v5991 = vunpack.c.l.b16 %v640
      %v5992 = vunpack.c.l.b16 %v641
      %v5993 = vpack.c.b16 %v5989, %v5988
      %v5994 = vpack.c.b16 %v5991, %v5990
      %v5995 = vpack.c.b16 %v5992, %v5992
      %v5999 = vsel %vm2458, %v277, 0
      %v6002 = vsel %vm2462, %v5995, 0
      %6004 = vmatprep.subr.bf16.mxu0 0
      %6005 = vmatpush1.bf16.msra.mxu0 %v5993
      %6006 = vmatprep.subr.bf16.mxu0 0
      %6007 = vmatpush1.bf16.msra.mxu0 %v5994
      %6008 = vmatprep.subr.bf16.mxu0 0
      %6009 = vmatpush1.bf16.msra.mxu0 %v6002
      %6010 = vmatprep.subr.bf16.mxu0 0
      %6011 = vmatpush1.bf16.msra.mxu0 0
      %6012 = vmatprep.subr.bf16.mxu0 0
      %6013 = vmatpush1.bf16.msra.mxu0 0
      %6014 = vmatprep.subr.bf16.mxu0 0
      %6015 = vmatpush1.bf16.msra.mxu0 0
      %6016 = vmatprep.subr.bf16.mxu0 0
      %6017 = vmatpush1.bf16.msra.mxu0 0
      %6018 = vmatprep.subr.bf16.mxu0 0
      %6019 = vmatpush1.bf16.msra.mxu0 0
      %6020 = vmatprep.subr.bf16.mxu0 0
      %6021 = vmatpush1.bf16.msra.mxu0 0
      %6022 = vmatprep.subr.bf16.mxu0 0
      %6023 = vmatpush1.bf16.msra.mxu0 0
      %6024 = vmatprep.subr.bf16.mxu0 0
      %6025 = vmatpush1.bf16.msra.mxu0 0
      %6026 = vmatprep.subr.bf16.mxu0 0
      %6027 = vmatpush1.bf16.msra.mxu0 0
      %6028 = vmatprep.subr.bf16.mxu0 0
      %6029 = vmatpush1.bf16.msra.mxu0 0
      %6030 = vmatprep.subr.bf16.mxu0 0
      %6031 = vmatpush1.bf16.msra.mxu0 0
      %6032 = vmatprep.subr.bf16.mxu0 0
      %6033 = vmatpush1.bf16.msra.mxu0 0
      %6034 = vmatprep.subr.bf16.mxu0 0
      %6035 = vmatpush1.bf16.msra.mxu0 0
      %6036 = vmatprep.mubr.bf16.mxu0 0
      %6037 = vmatmul.mubr.bf16.gmra.mrb[0].mxu0 %v5999
      %v6038 = vpop.f32.mrb[0].mxu0
      %v6039 = vadd.f32 %v2038, %v6038
      %v6040 = vpop.f32.mrb[0].mxu0
      %v6041 = vpop.f32.mrb[0].mxu0
      %v6042 = vpop.f32.mrb[0].mxu0
      %6043 = vdwg.mxu0
      %v6049 = vunpack.c.l.b16 %v642
      %v6050 = vunpack.c.l.b16 %v643
      %v6051 = vunpack.c.l.b16 %v644
      %v6052 = vunpack.c.l.b16 %v645
      %v6053 = vunpack.c.l.b16 %v646
      %v6054 = vpack.c.b16 %v6050, %v6049
      %v6055 = vpack.c.b16 %v6052, %v6051
      %v6056 = vpack.c.b16 %v6053, %v6053
      %v6060 = vsel %vm2458, %v278, 0
      %v6063 = vsel %vm2462, %v6056, 0
      %6065 = vmatprep.subr.bf16.mxu0 0
      %6066 = vmatpush1.bf16.msra.mxu0 %v6054
      %6067 = vmatprep.subr.bf16.mxu0 0
      %6068 = vmatpush1.bf16.msra.mxu0 %v6055
      %6069 = vmatprep.subr.bf16.mxu0 0
      %6070 = vmatpush1.bf16.msra.mxu0 %v6063
      %6071 = vmatprep.subr.bf16.mxu0 0
      %6072 = vmatpush1.bf16.msra.mxu0 0
      %6073 = vmatprep.subr.bf16.mxu0 0
      %6074 = vmatpush1.bf16.msra.mxu0 0
      %6075 = vmatprep.subr.bf16.mxu0 0
      %6076 = vmatpush1.bf16.msra.mxu0 0
      %6077 = vmatprep.subr.bf16.mxu0 0
      %6078 = vmatpush1.bf16.msra.mxu0 0
      %6079 = vmatprep.subr.bf16.mxu0 0
      %6080 = vmatpush1.bf16.msra.mxu0 0
      %6081 = vmatprep.subr.bf16.mxu0 0
      %6082 = vmatpush1.bf16.msra.mxu0 0
      %6083 = vmatprep.subr.bf16.mxu0 0
      %6084 = vmatpush1.bf16.msra.mxu0 0
      %6085 = vmatprep.subr.bf16.mxu0 0
      %6086 = vmatpush1.bf16.msra.mxu0 0
      %6087 = vmatprep.subr.bf16.mxu0 0
      %6088 = vmatpush1.bf16.msra.mxu0 0
      %6089 = vmatprep.subr.bf16.mxu0 0
      %6090 = vmatpush1.bf16.msra.mxu0 0
      %6091 = vmatprep.subr.bf16.mxu0 0
      %6092 = vmatpush1.bf16.msra.mxu0 0
      %6093 = vmatprep.subr.bf16.mxu0 0
      %6094 = vmatpush1.bf16.msra.mxu0 0
      %6095 = vmatprep.subr.bf16.mxu0 0
      %6096 = vmatpush1.bf16.msra.mxu0 0
      %6097 = vmatprep.mubr.bf16.mxu0 0
      %6098 = vmatmul.mubr.bf16.gmra.mrb[0].mxu0 %v6060
      %v6099 = vpop.f32.mrb[0].mxu0
      %v6100 = vadd.f32 %v2042, %v6099
      %v6101 = vpop.f32.mrb[0].mxu0
      %v6102 = vpop.f32.mrb[0].mxu0
      %v6103 = vpop.f32.mrb[0].mxu0
      %6104 = vdwg.mxu0
      %v6110 = vunpack.c.l.b16 %v647
      %v6111 = vunpack.c.l.b16 %v648
      %v6112 = vunpack.c.l.b16 %v649
      %v6113 = vunpack.c.l.b16 %v650
      %v6114 = vunpack.c.l.b16 %v651
      %v6115 = vpack.c.b16 %v6111, %v6110
      %v6116 = vpack.c.b16 %v6113, %v6112
      %v6117 = vpack.c.b16 %v6114, %v6114
      %v6121 = vsel %vm2458, %v279, 0
      %v6124 = vsel %vm2462, %v6117, 0
      %6126 = vmatprep.subr.bf16.mxu0 0
      %6127 = vmatpush1.bf16.msra.mxu0 %v6115
      %6128 = vmatprep.subr.bf16.mxu0 0
      %6129 = vmatpush1.bf16.msra.mxu0 %v6116
      %6130 = vmatprep.subr.bf16.mxu0 0
      %6131 = vmatpush1.bf16.msra.mxu0 %v6124
      %6132 = vmatprep.subr.bf16.mxu0 0
      %6133 = vmatpush1.bf16.msra.mxu0 0
      %6134 = vmatprep.subr.bf16.mxu0 0
      %6135 = vmatpush1.bf16.msra.mxu0 0
      %6136 = vmatprep.subr.bf16.mxu0 0
      %6137 = vmatpush1.bf16.msra.mxu0 0
      %6138 = vmatprep.subr.bf16.mxu0 0
      %6139 = vmatpush1.bf16.msra.mxu0 0
      %6140 = vmatprep.subr.bf16.mxu0 0
      %6141 = vmatpush1.bf16.msra.mxu0 0
      %6142 = vmatprep.subr.bf16.mxu0 0
      %6143 = vmatpush1.bf16.msra.mxu0 0
      %6144 = vmatprep.subr.bf16.mxu0 0
      %6145 = vmatpush1.bf16.msra.mxu0 0
      %6146 = vmatprep.subr.bf16.mxu0 0
      %6147 = vmatpush1.bf16.msra.mxu0 0
      %6148 = vmatprep.subr.bf16.mxu0 0
      %6149 = vmatpush1.bf16.msra.mxu0 0
      %6150 = vmatprep.subr.bf16.mxu0 0
      %6151 = vmatpush1.bf16.msra.mxu0 0
      %6152 = vmatprep.subr.bf16.mxu0 0
      %6153 = vmatpush1.bf16.msra.mxu0 0
      %6154 = vmatprep.subr.bf16.mxu0 0
      %6155 = vmatpush1.bf16.msra.mxu0 0
      %6156 = vmatprep.subr.bf16.mxu0 0
      %6157 = vmatpush1.bf16.msra.mxu0 0
      %6158 = vmatprep.mubr.bf16.mxu0 0
      %6159 = vmatmul.mubr.bf16.gmra.mrb[0].mxu0 %v6121
      %v6160 = vpop.f32.mrb[0].mxu0
      %v6161 = vadd.f32 %v2046, %v6160
      %v6162 = vpop.f32.mrb[0].mxu0
      %v6163 = vpop.f32.mrb[0].mxu0
      %v6164 = vpop.f32.mrb[0].mxu0
      %6165 = vdwg.mxu0
      %v6171 = vunpack.c.l.b16 %v652
      %v6172 = vunpack.c.l.b16 %v653
      %v6173 = vunpack.c.l.b16 %v654
      %v6174 = vunpack.c.l.b16 %v655
      %v6175 = vunpack.c.l.b16 %v656
      %v6176 = vpack.c.b16 %v6172, %v6171
      %v6177 = vpack.c.b16 %v6174, %v6173
      %v6178 = vpack.c.b16 %v6175, %v6175
      %v6182 = vsel %vm2458, %v280, 0
      %v6185 = vsel %vm2462, %v6178, 0
      %6187 = vmatprep.subr.bf16.mxu0 0
      %6188 = vmatpush1.bf16.msra.mxu0 %v6176
      %6189 = vmatprep.subr.bf16.mxu0 0
      %6190 = vmatpush1.bf16.msra.mxu0 %v6177
      %6191 = vmatprep.subr.bf16.mxu0 0
      %6192 = vmatpush1.bf16.msra.mxu0 %v6185
      %6193 = vmatprep.subr.bf16.mxu0 0
      %6194 = vmatpush1.bf16.msra.mxu0 0
      %6195 = vmatprep.subr.bf16.mxu0 0
      %6196 = vmatpush1.bf16.msra.mxu0 0
      %6197 = vmatprep.subr.bf16.mxu0 0
      %6198 = vmatpush1.bf16.msra.mxu0 0
      %6199 = vmatprep.subr.bf16.mxu0 0
      %6200 = vmatpush1.bf16.msra.mxu0 0
      %6201 = vmatprep.subr.bf16.mxu0 0
      %6202 = vmatpush1.bf16.msra.mxu0 0
      %6203 = vmatprep.subr.bf16.mxu0 0
      %6204 = vmatpush1.bf16.msra.mxu0 0
      %6205 = vmatprep.subr.bf16.mxu0 0
      %6206 = vmatpush1.bf16.msra.mxu0 0
      %6207 = vmatprep.subr.bf16.mxu0 0
      %6208 = vmatpush1.bf16.msra.mxu0 0
      %6209 = vmatprep.subr.bf16.mxu0 0
      %6210 = vmatpush1.bf16.msra.mxu0 0
      %6211 = vmatprep.subr.bf16.mxu0 0
      %6212 = vmatpush1.bf16.msra.mxu0 0
      %6213 = vmatprep.subr.bf16.mxu0 0
      %6214 = vmatpush1.bf16.msra.mxu0 0
      %6215 = vmatprep.subr.bf16.mxu0 0
      %6216 = vmatpush1.bf16.msra.mxu0 0
      %6217 = vmatprep.subr.bf16.mxu0 0
      %6218 = vmatpush1.bf16.msra.mxu0 0
      %6219 = vmatprep.mubr.bf16.mxu0 0
      %6220 = vmatmul.mubr.bf16.gmra.mrb[0].mxu0 %v6182
      %v6221 = vpop.f32.mrb[0].mxu0
      %v6222 = vadd.f32 %v2050, %v6221
      %v6223 = vpop.f32.mrb[0].mxu0
      %v6224 = vpop.f32.mrb[0].mxu0
      %v6225 = vpop.f32.mrb[0].mxu0
      %6226 = vdwg.mxu0
      %v6232 = vunpack.c.l.b16 %v657
      %v6233 = vunpack.c.l.b16 %v658
      %v6234 = vunpack.c.l.b16 %v659
      %v6235 = vunpack.c.l.b16 %v660
      %v6236 = vunpack.c.l.b16 %v661
      %v6237 = vpack.c.b16 %v6233, %v6232
      %v6238 = vpack.c.b16 %v6235, %v6234
      %v6239 = vpack.c.b16 %v6236, %v6236
      %v6243 = vsel %vm2458, %v281, 0
      %v6246 = vsel %vm2462, %v6239, 0
      %6248 = vmatprep.subr.bf16.mxu0 0
      %6249 = vmatpush1.bf16.msra.mxu0 %v6237
      %6250 = vmatprep.subr.bf16.mxu0 0
      %6251 = vmatpush1.bf16.msra.mxu0 %v6238
      %6252 = vmatprep.subr.bf16.mxu0 0
      %6253 = vmatpush1.bf16.msra.mxu0 %v6246
      %6254 = vmatprep.subr.bf16.mxu0 0
      %6255 = vmatpush1.bf16.msra.mxu0 0
      %6256 = vmatprep.subr.bf16.mxu0 0
      %6257 = vmatpush1.bf16.msra.mxu0 0
      %6258 = vmatprep.subr.bf16.mxu0 0
      %6259 = vmatpush1.bf16.msra.mxu0 0
      %6260 = vmatprep.subr.bf16.mxu0 0
      %6261 = vmatpush1.bf16.msra.mxu0 0
      %6262 = vmatprep.subr.bf16.mxu0 0
      %6263 = vmatpush1.bf16.msra.mxu0 0
      %6264 = vmatprep.subr.bf16.mxu0 0
      %6265 = vmatpush1.bf16.msra.mxu0 0
      %6266 = vmatprep.subr.bf16.mxu0 0
      %6267 = vmatpush1.bf16.msra.mxu0 0
      %6268 = vmatprep.subr.bf16.mxu0 0
      %6269 = vmatpush1.bf16.msra.mxu0 0
      %6270 = vmatprep.subr.bf16.mxu0 0
      %6271 = vmatpush1.bf16.msra.mxu0 0
      %6272 = vmatprep.subr.bf16.mxu0 0
      %6273 = vmatpush1.bf16.msra.mxu0 0
      %6274 = vmatprep.subr.bf16.mxu0 0
      %6275 = vmatpush1.bf16.msra.mxu0 0
      %6276 = vmatprep.subr.bf16.mxu0 0
      %6277 = vmatpush1.bf16.msra.mxu0 0
      %6278 = vmatprep.subr.bf16.mxu0 0
      %6279 = vmatpush1.bf16.msra.mxu0 0
      %6280 = vmatprep.mubr.bf16.mxu0 0
      %6281 = vmatmul.mubr.bf16.gmra.mrb[0].mxu0 %v6243
      %v6282 = vpop.f32.mrb[0].mxu0
      %v6283 = vadd.f32 %v2054, %v6282
      %v6284 = vpop.f32.mrb[0].mxu0
      %v6285 = vpop.f32.mrb[0].mxu0
      %v6286 = vpop.f32.mrb[0].mxu0
      %6287 = vdwg.mxu0
      %v6293 = vunpack.c.l.b16 %v662
      %v6294 = vunpack.c.l.b16 %v663
      %v6295 = vunpack.c.l.b16 %v664
      %v6296 = vunpack.c.l.b16 %v665
      %v6297 = vunpack.c.l.b16 %v666
      %v6298 = vpack.c.b16 %v6294, %v6293
      %v6299 = vpack.c.b16 %v6296, %v6295
      %v6300 = vpack.c.b16 %v6297, %v6297
      %v6304 = vsel %vm2458, %v282, 0
      %v6307 = vsel %vm2462, %v6300, 0
      %6309 = vmatprep.subr.bf16.mxu0 0
      %6310 = vmatpush1.bf16.msra.mxu0 %v6298
      %6311 = vmatprep.subr.bf16.mxu0 0
      %6312 = vmatpush1.bf16.msra.mxu0 %v6299
      %6313 = vmatprep.subr.bf16.mxu0 0
      %6314 = vmatpush1.bf16.msra.mxu0 %v6307
      %6315 = vmatprep.subr.bf16.mxu0 0
      %6316 = vmatpush1.bf16.msra.mxu0 0
      %6317 = vmatprep.subr.bf16.mxu0 0
      %6318 = vmatpush1.bf16.msra.mxu0 0
      %6319 = vmatprep.subr.bf16.mxu0 0
      %6320 = vmatpush1.bf16.msra.mxu0 0
      %6321 = vmatprep.subr.bf16.mxu0 0
      %6322 = vmatpush1.bf16.msra.mxu0 0
      %6323 = vmatprep.subr.bf16.mxu0 0
      %6324 = vmatpush1.bf16.msra.mxu0 0
      %6325 = vmatprep.subr.bf16.mxu0 0
      %6326 = vmatpush1.bf16.msra.mxu0 0
      %6327 = vmatprep.subr.bf16.mxu0 0
      %6328 = vmatpush1.bf16.msra.mxu0 0
      %6329 = vmatprep.subr.bf16.mxu0 0
      %6330 = vmatpush1.bf16.msra.mxu0 0
      %6331 = vmatprep.subr.bf16.mxu0 0
      %6332 = vmatpush1.bf16.msra.mxu0 0
      %6333 = vmatprep.subr.bf16.mxu0 0
      %6334 = vmatpush1.bf16.msra.mxu0 0
      %6335 = vmatprep.subr.bf16.mxu0 0
      %6336 = vmatpush1.bf16.msra.mxu0 0
      %6337 = vmatprep.subr.bf16.mxu0 0
      %6338 = vmatpush1.bf16.msra.mxu0 0
      %6339 = vmatprep.subr.bf16.mxu0 0
      %6340 = vmatpush1.bf16.msra.mxu0 0
      %6341 = vmatprep.mubr.bf16.mxu0 0
      %6342 = vmatmul.mubr.bf16.gmra.mrb[0].mxu0 %v6304
      %v6343 = vpop.f32.mrb[0].mxu0
      %v6344 = vadd.f32 %v2058, %v6343
      %v6345 = vpop.f32.mrb[0].mxu0
      %v6346 = vpop.f32.mrb[0].mxu0
      %v6347 = vpop.f32.mrb[0].mxu0
      %6348 = vdwg.mxu0
      %v6354 = vunpack.c.l.b16 %v667
      %v6355 = vunpack.c.l.b16 %v668
      %v6356 = vunpack.c.l.b16 %v669
      %v6357 = vunpack.c.l.b16 %v670
      %v6358 = vunpack.c.l.b16 %v671
      %v6359 = vpack.c.b16 %v6355, %v6354
      %v6360 = vpack.c.b16 %v6357, %v6356
      %v6361 = vpack.c.b16 %v6358, %v6358
      %v6365 = vsel %vm2458, %v283, 0
      %v6368 = vsel %vm2462, %v6361, 0
      %6370 = vmatprep.subr.bf16.mxu0 0
      %6371 = vmatpush1.bf16.msra.mxu0 %v6359
      %6372 = vmatprep.subr.bf16.mxu0 0
      %6373 = vmatpush1.bf16.msra.mxu0 %v6360
      %6374 = vmatprep.subr.bf16.mxu0 0
      %6375 = vmatpush1.bf16.msra.mxu0 %v6368
      %6376 = vmatprep.subr.bf16.mxu0 0
      %6377 = vmatpush1.bf16.msra.mxu0 0
      %6378 = vmatprep.subr.bf16.mxu0 0
      %6379 = vmatpush1.bf16.msra.mxu0 0
      %6380 = vmatprep.subr.bf16.mxu0 0
      %6381 = vmatpush1.bf16.msra.mxu0 0
      %6382 = vmatprep.subr.bf16.mxu0 0
      %6383 = vmatpush1.bf16.msra.mxu0 0
      %6384 = vmatprep.subr.bf16.mxu0 0
      %6385 = vmatpush1.bf16.msra.mxu0 0
      %6386 = vmatprep.subr.bf16.mxu0 0
      %6387 = vmatpush1.bf16.msra.mxu0 0
      %6388 = vmatprep.subr.bf16.mxu0 0
      %6389 = vmatpush1.bf16.msra.mxu0 0
      %6390 = vmatprep.subr.bf16.mxu0 0
      %6391 = vmatpush1.bf16.msra.mxu0 0
      %6392 = vmatprep.subr.bf16.mxu0 0
      %6393 = vmatpush1.bf16.msra.mxu0 0
      %6394 = vmatprep.subr.bf16.mxu0 0
      %6395 = vmatpush1.bf16.msra.mxu0 0
      %6396 = vmatprep.subr.bf16.mxu0 0
      %6397 = vmatpush1.bf16.msra.mxu0 0
      %6398 = vmatprep.subr.bf16.mxu0 0
      %6399 = vmatpush1.bf16.msra.mxu0 0
      %6400 = vmatprep.subr.bf16.mxu0 0
      %6401 = vmatpush1.bf16.msra.mxu0 0
      %6402 = vmatprep.mubr.bf16.mxu0 0
      %6403 = vmatmul.mubr.bf16.gmra.mrb[0].mxu0 %v6365
      %v6404 = vpop.f32.mrb[0].mxu0
      %v6405 = vadd.f32 %v2062, %v6404
      %v6406 = vpop.f32.mrb[0].mxu0
      %v6407 = vpop.f32.mrb[0].mxu0
      %v6408 = vpop.f32.mrb[0].mxu0
      %6409 = vdwg.mxu0
      %v6415 = vunpack.c.l.b16 %v672
      %v6416 = vunpack.c.l.b16 %v673
      %v6417 = vunpack.c.l.b16 %v674
      %v6418 = vunpack.c.l.b16 %v675
      %v6419 = vunpack.c.l.b16 %v676
      %v6420 = vpack.c.b16 %v6416, %v6415
      %v6421 = vpack.c.b16 %v6418, %v6417
      %v6422 = vpack.c.b16 %v6419, %v6419
      %v6426 = vsel %vm2458, %v284, 0
      %v6429 = vsel %vm2462, %v6422, 0
      %6431 = vmatprep.subr.bf16.mxu0 0
      %6432 = vmatpush1.bf16.msra.mxu0 %v6420
      %6433 = vmatprep.subr.bf16.mxu0 0
      %6434 = vmatpush1.bf16.msra.mxu0 %v6421
      %6435 = vmatprep.subr.bf16.mxu0 0
      %6436 = vmatpush1.bf16.msra.mxu0 %v6429
      %6437 = vmatprep.subr.bf16.mxu0 0
      %6438 = vmatpush1.bf16.msra.mxu0 0
      %6439 = vmatprep.subr.bf16.mxu0 0
      %6440 = vmatpush1.bf16.msra.mxu0 0
      %6441 = vmatprep.subr.bf16.mxu0 0
      %6442 = vmatpush1.bf16.msra.mxu0 0
      %6443 = vmatprep.subr.bf16.mxu0 0
      %6444 = vmatpush1.bf16.msra.mxu0 0
      %6445 = vmatprep.subr.bf16.mxu0 0
      %6446 = vmatpush1.bf16.msra.mxu0 0
      %6447 = vmatprep.subr.bf16.mxu0 0
      %6448 = vmatpush1.bf16.msra.mxu0 0
      %6449 = vmatprep.subr.bf16.mxu0 0
      %6450 = vmatpush1.bf16.msra.mxu0 0
      %6451 = vmatprep.subr.bf16.mxu0 0
      %6452 = vmatpush1.bf16.msra.mxu0 0
      %6453 = vmatprep.subr.bf16.mxu0 0
      %6454 = vmatpush1.bf16.msra.mxu0 0
      %6455 = vmatprep.subr.bf16.mxu0 0
      %6456 = vmatpush1.bf16.msra.mxu0 0
      %6457 = vmatprep.subr.bf16.mxu0 0
      %6458 = vmatpush1.bf16.msra.mxu0 0
      %6459 = vmatprep.subr.bf16.mxu0 0
      %6460 = vmatpush1.bf16.msra.mxu0 0
      %6461 = vmatprep.subr.bf16.mxu0 0
      %6462 = vmatpush1.bf16.msra.mxu0 0
      %6463 = vmatprep.mubr.bf16.mxu0 0
      %6464 = vmatmul.mubr.bf16.gmra.mrb[0].mxu0 %v6426
      %v6465 = vpop.f32.mrb[0].mxu0
      %v6466 = vadd.f32 %v2066, %v6465
      %v6467 = vpop.f32.mrb[0].mxu0
      %v6468 = vpop.f32.mrb[0].mxu0
      %v6469 = vpop.f32.mrb[0].mxu0
      %6470 = vdwg.mxu0
      %v6476 = vunpack.c.l.b16 %v677
      %v6477 = vunpack.c.l.b16 %v678
      %v6478 = vunpack.c.l.b16 %v679
      %v6479 = vunpack.c.l.b16 %v680
      %v6480 = vunpack.c.l.b16 %v681
      %v6481 = vpack.c.b16 %v6477, %v6476
      %v6482 = vpack.c.b16 %v6479, %v6478
      %v6483 = vpack.c.b16 %v6480, %v6480
      %v6487 = vsel %vm2458, %v285, 0
      %v6490 = vsel %vm2462, %v6483, 0
      %6492 = vmatprep.subr.bf16.mxu0 0
      %6493 = vmatpush1.bf16.msra.mxu0 %v6481
      %6494 = vmatprep.subr.bf16.mxu0 0
      %6495 = vmatpush1.bf16.msra.mxu0 %v6482
      %6496 = vmatprep.subr.bf16.mxu0 0
      %6497 = vmatpush1.bf16.msra.mxu0 %v6490
      %6498 = vmatprep.subr.bf16.mxu0 0
      %6499 = vmatpush1.bf16.msra.mxu0 0
      %6500 = vmatprep.subr.bf16.mxu0 0
      %6501 = vmatpush1.bf16.msra.mxu0 0
      %6502 = vmatprep.subr.bf16.mxu0 0
      %6503 = vmatpush1.bf16.msra.mxu0 0
      %6504 = vmatprep.subr.bf16.mxu0 0
      %6505 = vmatpush1.bf16.msra.mxu0 0
      %6506 = vmatprep.subr.bf16.mxu0 0
      %6507 = vmatpush1.bf16.msra.mxu0 0
      %6508 = vmatprep.subr.bf16.mxu0 0
      %6509 = vmatpush1.bf16.msra.mxu0 0
      %6510 = vmatprep.subr.bf16.mxu0 0
      %6511 = vmatpush1.bf16.msra.mxu0 0
      %6512 = vmatprep.subr.bf16.mxu0 0
      %6513 = vmatpush1.bf16.msra.mxu0 0
      %6514 = vmatprep.subr.bf16.mxu0 0
      %6515 = vmatpush1.bf16.msra.mxu0 0
      %6516 = vmatprep.subr.bf16.mxu0 0
      %6517 = vmatpush1.bf16.msra.mxu0 0
      %6518 = vmatprep.subr.bf16.mxu0 0
      %6519 = vmatpush1.bf16.msra.mxu0 0
      %6520 = vmatprep.subr.bf16.mxu0 0
      %6521 = vmatpush1.bf16.msra.mxu0 0
      %6522 = vmatprep.subr.bf16.mxu0 0
      %6523 = vmatpush1.bf16.msra.mxu0 0
      %6524 = vmatprep.mubr.bf16.mxu0 0
      %6525 = vmatmul.mubr.bf16.gmra.mrb[0].mxu0 %v6487
      %v6526 = vpop.f32.mrb[0].mxu0
      %v6527 = vadd.f32 %v2070, %v6526
      %v6528 = vpop.f32.mrb[0].mxu0
      %v6529 = vpop.f32.mrb[0].mxu0
      %v6530 = vpop.f32.mrb[0].mxu0
      %6531 = vdwg.mxu0
      %v6537 = vunpack.c.l.b16 %v682
      %v6538 = vunpack.c.l.b16 %v683
      %v6539 = vunpack.c.l.b16 %v684
      %v6540 = vunpack.c.l.b16 %v685
      %v6541 = vunpack.c.l.b16 %v686
      %v6542 = vpack.c.b16 %v6538, %v6537
      %v6543 = vpack.c.b16 %v6540, %v6539
      %v6544 = vpack.c.b16 %v6541, %v6541
      %v6548 = vsel %vm2458, %v286, 0
      %v6551 = vsel %vm2462, %v6544, 0
      %6553 = vmatprep.subr.bf16.mxu0 0
      %6554 = vmatpush1.bf16.msra.mxu0 %v6542
      %6555 = vmatprep.subr.bf16.mxu0 0
      %6556 = vmatpush1.bf16.msra.mxu0 %v6543
      %6557 = vmatprep.subr.bf16.mxu0 0
      %6558 = vmatpush1.bf16.msra.mxu0 %v6551
      %6559 = vmatprep.subr.bf16.mxu0 0
      %6560 = vmatpush1.bf16.msra.mxu0 0
      %6561 = vmatprep.subr.bf16.mxu0 0
      %6562 = vmatpush1.bf16.msra.mxu0 0
      %6563 = vmatprep.subr.bf16.mxu0 0
      %6564 = vmatpush1.bf16.msra.mxu0 0
      %6565 = vmatprep.subr.bf16.mxu0 0
      %6566 = vmatpush1.bf16.msra.mxu0 0
      %6567 = vmatprep.subr.bf16.mxu0 0
      %6568 = vmatpush1.bf16.msra.mxu0 0
      %6569 = vmatprep.subr.bf16.mxu0 0
      %6570 = vmatpush1.bf16.msra.mxu0 0
      %6571 = vmatprep.subr.bf16.mxu0 0
      %6572 = vmatpush1.bf16.msra.mxu0 0
      %6573 = vmatprep.subr.bf16.mxu0 0
      %6574 = vmatpush1.bf16.msra.mxu0 0
      %6575 = vmatprep.subr.bf16.mxu0 0
      %6576 = vmatpush1.bf16.msra.mxu0 0
      %6577 = vmatprep.subr.bf16.mxu0 0
      %6578 = vmatpush1.bf16.msra.mxu0 0
      %6579 = vmatprep.subr.bf16.mxu0 0
      %6580 = vmatpush1.bf16.msra.mxu0 0
      %6581 = vmatprep.subr.bf16.mxu0 0
      %6582 = vmatpush1.bf16.msra.mxu0 0
      %6583 = vmatprep.subr.bf16.mxu0 0
      %6584 = vmatpush1.bf16.msra.mxu0 0
      %6585 = vmatprep.mubr.bf16.mxu0 0
      %6586 = vmatmul.mubr.bf16.gmra.mrb[0].mxu0 %v6548
      %v6587 = vpop.f32.mrb[0].mxu0
      %v6588 = vadd.f32 %v2074, %v6587
      %v6589 = vpop.f32.mrb[0].mxu0
      %v6590 = vpop.f32.mrb[0].mxu0
      %v6591 = vpop.f32.mrb[0].mxu0
      %6592 = vdwg.mxu0
      %v6598 = vunpack.c.l.b16 %v687
      %v6599 = vunpack.c.l.b16 %v688
      %v6600 = vunpack.c.l.b16 %v689
      %v6601 = vunpack.c.l.b16 %v690
      %v6602 = vunpack.c.l.b16 %v691
      %v6603 = vpack.c.b16 %v6599, %v6598
      %v6604 = vpack.c.b16 %v6601, %v6600
      %v6605 = vpack.c.b16 %v6602, %v6602
      %v6609 = vsel %vm2458, %v287, 0
      %v6612 = vsel %vm2462, %v6605, 0
      %6614 = vmatprep.subr.bf16.mxu0 0
      %6615 = vmatpush1.bf16.msra.mxu0 %v6603
      %6616 = vmatprep.subr.bf16.mxu0 0
      %6617 = vmatpush1.bf16.msra.mxu0 %v6604
      %6618 = vmatprep.subr.bf16.mxu0 0
      %6619 = vmatpush1.bf16.msra.mxu0 %v6612
      %6620 = vmatprep.subr.bf16.mxu0 0
      %6621 = vmatpush1.bf16.msra.mxu0 0
      %6622 = vmatprep.subr.bf16.mxu0 0
      %6623 = vmatpush1.bf16.msra.mxu0 0
      %6624 = vmatprep.subr.bf16.mxu0 0
      %6625 = vmatpush1.bf16.msra.mxu0 0
      %6626 = vmatprep.subr.bf16.mxu0 0
      %6627 = vmatpush1.bf16.msra.mxu0 0
      %6628 = vmatprep.subr.bf16.mxu0 0
      %6629 = vmatpush1.bf16.msra.mxu0 0
      %6630 = vmatprep.subr.bf16.mxu0 0
      %6631 = vmatpush1.bf16.msra.mxu0 0
      %6632 = vmatprep.subr.bf16.mxu0 0
      %6633 = vmatpush1.bf16.msra.mxu0 0
      %6634 = vmatprep.subr.bf16.mxu0 0
      %6635 = vmatpush1.bf16.msra.mxu0 0
      %6636 = vmatprep.subr.bf16.mxu0 0
      %6637 = vmatpush1.bf16.msra.mxu0 0
      %6638 = vmatprep.subr.bf16.mxu0 0
      %6639 = vmatpush1.bf16.msra.mxu0 0
      %6640 = vmatprep.subr.bf16.mxu0 0
      %6641 = vmatpush1.bf16.msra.mxu0 0
      %6642 = vmatprep.subr.bf16.mxu0 0
      %6643 = vmatpush1.bf16.msra.mxu0 0
      %6644 = vmatprep.subr.bf16.mxu0 0
      %6645 = vmatpush1.bf16.msra.mxu0 0
      %6646 = vmatprep.mubr.bf16.mxu0 0
      %6647 = vmatmul.mubr.bf16.gmra.mrb[0].mxu0 %v6609
      %v6648 = vpop.f32.mrb[0].mxu0
      %v6649 = vadd.f32 %v2078, %v6648
      %v6650 = vpop.f32.mrb[0].mxu0
      %v6651 = vpop.f32.mrb[0].mxu0
      %v6652 = vpop.f32.mrb[0].mxu0
      %6653 = vdwg.mxu0
      %v6659 = vunpack.c.l.b16 %v692
      %v6660 = vunpack.c.l.b16 %v693
      %v6661 = vunpack.c.l.b16 %v694
      %v6662 = vunpack.c.l.b16 %v695
      %v6663 = vunpack.c.l.b16 %v696
      %v6664 = vpack.c.b16 %v6660, %v6659
      %v6665 = vpack.c.b16 %v6662, %v6661
      %v6666 = vpack.c.b16 %v6663, %v6663
      %v6670 = vsel %vm2458, %v288, 0
      %v6673 = vsel %vm2462, %v6666, 0
      %6675 = vmatprep.subr.bf16.mxu0 0
      %6676 = vmatpush1.bf16.msra.mxu0 %v6664
      %6677 = vmatprep.subr.bf16.mxu0 0
      %6678 = vmatpush1.bf16.msra.mxu0 %v6665
      %6679 = vmatprep.subr.bf16.mxu0 0
      %6680 = vmatpush1.bf16.msra.mxu0 %v6673
      %6681 = vmatprep.subr.bf16.mxu0 0
      %6682 = vmatpush1.bf16.msra.mxu0 0
      %6683 = vmatprep.subr.bf16.mxu0 0
      %6684 = vmatpush1.bf16.msra.mxu0 0
      %6685 = vmatprep.subr.bf16.mxu0 0
      %6686 = vmatpush1.bf16.msra.mxu0 0
      %6687 = vmatprep.subr.bf16.mxu0 0
      %6688 = vmatpush1.bf16.msra.mxu0 0
      %6689 = vmatprep.subr.bf16.mxu0 0
      %6690 = vmatpush1.bf16.msra.mxu0 0
      %6691 = vmatprep.subr.bf16.mxu0 0
      %6692 = vmatpush1.bf16.msra.mxu0 0
      %6693 = vmatprep.subr.bf16.mxu0 0
      %6694 = vmatpush1.bf16.msra.mxu0 0
      %6695 = vmatprep.subr.bf16.mxu0 0
      %6696 = vmatpush1.bf16.msra.mxu0 0
      %6697 = vmatprep.subr.bf16.mxu0 0
      %6698 = vmatpush1.bf16.msra.mxu0 0
      %6699 = vmatprep.subr.bf16.mxu0 0
      %6700 = vmatpush1.bf16.msra.mxu0 0
      %6701 = vmatprep.subr.bf16.mxu0 0
      %6702 = vmatpush1.bf16.msra.mxu0 0
      %6703 = vmatprep.subr.bf16.mxu0 0
      %6704 = vmatpush1.bf16.msra.mxu0 0
      %6705 = vmatprep.subr.bf16.mxu0 0
      %6706 = vmatpush1.bf16.msra.mxu0 0
      %6707 = vmatprep.mubr.bf16.mxu0 0
      %6708 = vmatmul.mubr.bf16.gmra.mrb[0].mxu0 %v6670
      %v6709 = vpop.f32.mrb[0].mxu0
      %v6710 = vadd.f32 %v2082, %v6709
      %v6711 = vpop.f32.mrb[0].mxu0
      %v6712 = vpop.f32.mrb[0].mxu0
      %v6713 = vpop.f32.mrb[0].mxu0
      %6714 = vdwg.mxu0
      %v6720 = vunpack.c.l.b16 %v697
      %v6721 = vunpack.c.l.b16 %v698
      %v6722 = vunpack.c.l.b16 %v699
      %v6723 = vunpack.c.l.b16 %v700
      %v6724 = vunpack.c.l.b16 %v701
      %v6725 = vpack.c.b16 %v6721, %v6720
      %v6726 = vpack.c.b16 %v6723, %v6722
      %v6727 = vpack.c.b16 %v6724, %v6724
      %v6731 = vsel %vm2458, %v289, 0
      %v6734 = vsel %vm2462, %v6727, 0
      %6736 = vmatprep.subr.bf16.mxu0 0
      %6737 = vmatpush1.bf16.msra.mxu0 %v6725
      %6738 = vmatprep.subr.bf16.mxu0 0
      %6739 = vmatpush1.bf16.msra.mxu0 %v6726
      %6740 = vmatprep.subr.bf16.mxu0 0
      %6741 = vmatpush1.bf16.msra.mxu0 %v6734
      %6742 = vmatprep.subr.bf16.mxu0 0
      %6743 = vmatpush1.bf16.msra.mxu0 0
      %6744 = vmatprep.subr.bf16.mxu0 0
      %6745 = vmatpush1.bf16.msra.mxu0 0
      %6746 = vmatprep.subr.bf16.mxu0 0
      %6747 = vmatpush1.bf16.msra.mxu0 0
      %6748 = vmatprep.subr.bf16.mxu0 0
      %6749 = vmatpush1.bf16.msra.mxu0 0
      %6750 = vmatprep.subr.bf16.mxu0 0
      %6751 = vmatpush1.bf16.msra.mxu0 0
      %6752 = vmatprep.subr.bf16.mxu0 0
      %6753 = vmatpush1.bf16.msra.mxu0 0
      %6754 = vmatprep.subr.bf16.mxu0 0
      %6755 = vmatpush1.bf16.msra.mxu0 0
      %6756 = vmatprep.subr.bf16.mxu0 0
      %6757 = vmatpush1.bf16.msra.mxu0 0
      %6758 = vmatprep.subr.bf16.mxu0 0
      %6759 = vmatpush1.bf16.msra.mxu0 0
      %6760 = vmatprep.subr.bf16.mxu0 0
      %6761 = vmatpush1.bf16.msra.mxu0 0
      %6762 = vmatprep.subr.bf16.mxu0 0
      %6763 = vmatpush1.bf16.msra.mxu0 0
      %6764 = vmatprep.subr.bf16.mxu0 0
      %6765 = vmatpush1.bf16.msra.mxu0 0
      %6766 = vmatprep.subr.bf16.mxu0 0
      %6767 = vmatpush1.bf16.msra.mxu0 0
      %6768 = vmatprep.mubr.bf16.mxu0 0
      %6769 = vmatmul.mubr.bf16.gmra.mrb[0].mxu0 %v6731
      %v6770 = vpop.f32.mrb[0].mxu0
      %v6771 = vadd.f32 %v2086, %v6770
      %v6772 = vpop.f32.mrb[0].mxu0
      %v6773 = vpop.f32.mrb[0].mxu0
      %v6774 = vpop.f32.mrb[0].mxu0
      %6775 = vdwg.mxu0
      %v6781 = vunpack.c.l.b16 %v702
      %v6782 = vunpack.c.l.b16 %v703
      %v6783 = vunpack.c.l.b16 %v704
      %v6784 = vunpack.c.l.b16 %v705
      %v6785 = vunpack.c.l.b16 %v706
      %v6786 = vpack.c.b16 %v6782, %v6781
      %v6787 = vpack.c.b16 %v6784, %v6783
      %v6788 = vpack.c.b16 %v6785, %v6785
      %v6792 = vsel %vm2458, %v290, 0
      %v6795 = vsel %vm2462, %v6788, 0
      %6797 = vmatprep.subr.bf16.mxu0 0
      %6798 = vmatpush1.bf16.msra.mxu0 %v6786
      %6799 = vmatprep.subr.bf16.mxu0 0
      %6800 = vmatpush1.bf16.msra.mxu0 %v6787
      %6801 = vmatprep.subr.bf16.mxu0 0
      %6802 = vmatpush1.bf16.msra.mxu0 %v6795
      %6803 = vmatprep.subr.bf16.mxu0 0
      %6804 = vmatpush1.bf16.msra.mxu0 0
      %6805 = vmatprep.subr.bf16.mxu0 0
      %6806 = vmatpush1.bf16.msra.mxu0 0
      %6807 = vmatprep.subr.bf16.mxu0 0
      %6808 = vmatpush1.bf16.msra.mxu0 0
      %6809 = vmatprep.subr.bf16.mxu0 0
      %6810 = vmatpush1.bf16.msra.mxu0 0
      %6811 = vmatprep.subr.bf16.mxu0 0
      %6812 = vmatpush1.bf16.msra.mxu0 0
      %6813 = vmatprep.subr.bf16.mxu0 0
      %6814 = vmatpush1.bf16.msra.mxu0 0
      %6815 = vmatprep.subr.bf16.mxu0 0
      %6816 = vmatpush1.bf16.msra.mxu0 0
      %6817 = vmatprep.subr.bf16.mxu0 0
      %6818 = vmatpush1.bf16.msra.mxu0 0
      %6819 = vmatprep.subr.bf16.mxu0 0
      %6820 = vmatpush1.bf16.msra.mxu0 0
      %6821 = vmatprep.subr.bf16.mxu0 0
      %6822 = vmatpush1.bf16.msra.mxu0 0
      %6823 = vmatprep.subr.bf16.mxu0 0
      %6824 = vmatpush1.bf16.msra.mxu0 0
      %6825 = vmatprep.subr.bf16.mxu0 0
      %6826 = vmatpush1.bf16.msra.mxu0 0
      %6827 = vmatprep.subr.bf16.mxu0 0
      %6828 = vmatpush1.bf16.msra.mxu0 0
      %6829 = vmatprep.mubr.bf16.mxu0 0
      %6830 = vmatmul.mubr.bf16.gmra.mrb[0].mxu0 %v6792
      %v6831 = vpop.f32.mrb[0].mxu0
      %v6832 = vadd.f32 %v2090, %v6831
      %v6833 = vpop.f32.mrb[0].mxu0
      %v6834 = vpop.f32.mrb[0].mxu0
      %v6835 = vpop.f32.mrb[0].mxu0
      %6836 = vdwg.mxu0
      %v6842 = vunpack.c.l.b16 %v707
      %v6843 = vunpack.c.l.b16 %v708
      %v6844 = vunpack.c.l.b16 %v709
      %v6845 = vunpack.c.l.b16 %v710
      %v6846 = vunpack.c.l.b16 %v711
      %v6847 = vpack.c.b16 %v6843, %v6842
      %v6848 = vpack.c.b16 %v6845, %v6844
      %v6849 = vpack.c.b16 %v6846, %v6846
      %v6853 = vsel %vm2458, %v291, 0
      %v6856 = vsel %vm2462, %v6849, 0
      %6858 = vmatprep.subr.bf16.mxu0 0
      %6859 = vmatpush1.bf16.msra.mxu0 %v6847
      %6860 = vmatprep.subr.bf16.mxu0 0
      %6861 = vmatpush1.bf16.msra.mxu0 %v6848
      %6862 = vmatprep.subr.bf16.mxu0 0
      %6863 = vmatpush1.bf16.msra.mxu0 %v6856
      %6864 = vmatprep.subr.bf16.mxu0 0
      %6865 = vmatpush1.bf16.msra.mxu0 0
      %6866 = vmatprep.subr.bf16.mxu0 0
      %6867 = vmatpush1.bf16.msra.mxu0 0
      %6868 = vmatprep.subr.bf16.mxu0 0
      %6869 = vmatpush1.bf16.msra.mxu0 0
      %6870 = vmatprep.subr.bf16.mxu0 0
      %6871 = vmatpush1.bf16.msra.mxu0 0
      %6872 = vmatprep.subr.bf16.mxu0 0
      %6873 = vmatpush1.bf16.msra.mxu0 0
      %6874 = vmatprep.subr.bf16.mxu0 0
      %6875 = vmatpush1.bf16.msra.mxu0 0
      %6876 = vmatprep.subr.bf16.mxu0 0
      %6877 = vmatpush1.bf16.msra.mxu0 0
      %6878 = vmatprep.subr.bf16.mxu0 0
      %6879 = vmatpush1.bf16.msra.mxu0 0
      %6880 = vmatprep.subr.bf16.mxu0 0
      %6881 = vmatpush1.bf16.msra.mxu0 0
      %6882 = vmatprep.subr.bf16.mxu0 0
      %6883 = vmatpush1.bf16.msra.mxu0 0
      %6884 = vmatprep.subr.bf16.mxu0 0
      %6885 = vmatpush1.bf16.msra.mxu0 0
      %6886 = vmatprep.subr.bf16.mxu0 0
      %6887 = vmatpush1.bf16.msra.mxu0 0
      %6888 = vmatprep.subr.bf16.mxu0 0
      %6889 = vmatpush1.bf16.msra.mxu0 0
      %6890 = vmatprep.mubr.bf16.mxu0 0
      %6891 = vmatmul.mubr.bf16.gmra.mrb[0].mxu0 %v6853
      %v6892 = vpop.f32.mrb[0].mxu0
      %v6893 = vadd.f32 %v2094, %v6892
      %v6894 = vpop.f32.mrb[0].mxu0
      %v6895 = vpop.f32.mrb[0].mxu0
      %v6896 = vpop.f32.mrb[0].mxu0
      %6897 = vdwg.mxu0
      %v6903 = vunpack.c.l.b16 %v712
      %v6904 = vunpack.c.l.b16 %v713
      %v6905 = vunpack.c.l.b16 %v714
      %v6906 = vunpack.c.l.b16 %v715
      %v6907 = vunpack.c.l.b16 %v716
      %v6908 = vpack.c.b16 %v6904, %v6903
      %v6909 = vpack.c.b16 %v6906, %v6905
      %v6910 = vpack.c.b16 %v6907, %v6907
      %v6914 = vsel %vm2458, %v292, 0
      %v6917 = vsel %vm2462, %v6910, 0
      %6919 = vmatprep.subr.bf16.mxu0 0
      %6920 = vmatpush1.bf16.msra.mxu0 %v6908
      %6921 = vmatprep.subr.bf16.mxu0 0
      %6922 = vmatpush1.bf16.msra.mxu0 %v6909
      %6923 = vmatprep.subr.bf16.mxu0 0
      %6924 = vmatpush1.bf16.msra.mxu0 %v6917
      %6925 = vmatprep.subr.bf16.mxu0 0
      %6926 = vmatpush1.bf16.msra.mxu0 0
      %6927 = vmatprep.subr.bf16.mxu0 0
      %6928 = vmatpush1.bf16.msra.mxu0 0
      %6929 = vmatprep.subr.bf16.mxu0 0
      %6930 = vmatpush1.bf16.msra.mxu0 0
      %6931 = vmatprep.subr.bf16.mxu0 0
      %6932 = vmatpush1.bf16.msra.mxu0 0
      %6933 = vmatprep.subr.bf16.mxu0 0
      %6934 = vmatpush1.bf16.msra.mxu0 0
      %6935 = vmatprep.subr.bf16.mxu0 0
      %6936 = vmatpush1.bf16.msra.mxu0 0
      %6937 = vmatprep.subr.bf16.mxu0 0
      %6938 = vmatpush1.bf16.msra.mxu0 0
      %6939 = vmatprep.subr.bf16.mxu0 0
      %6940 = vmatpush1.bf16.msra.mxu0 0
      %6941 = vmatprep.subr.bf16.mxu0 0
      %6942 = vmatpush1.bf16.msra.mxu0 0
      %6943 = vmatprep.subr.bf16.mxu0 0
      %6944 = vmatpush1.bf16.msra.mxu0 0
      %6945 = vmatprep.subr.bf16.mxu0 0
      %6946 = vmatpush1.bf16.msra.mxu0 0
      %6947 = vmatprep.subr.bf16.mxu0 0
      %6948 = vmatpush1.bf16.msra.mxu0 0
      %6949 = vmatprep.subr.bf16.mxu0 0
      %6950 = vmatpush1.bf16.msra.mxu0 0
      %6951 = vmatprep.mubr.bf16.mxu0 0
      %6952 = vmatmul.mubr.bf16.gmra.mrb[0].mxu0 %v6914
      %v6953 = vpop.f32.mrb[0].mxu0
      %v6954 = vadd.f32 %v2098, %v6953
      %v6955 = vpop.f32.mrb[0].mxu0
      %v6956 = vpop.f32.mrb[0].mxu0
      %v6957 = vpop.f32.mrb[0].mxu0
      %6958 = vdwg.mxu0
      %v6964 = vunpack.c.l.b16 %v717
      %v6965 = vunpack.c.l.b16 %v718
      %v6966 = vunpack.c.l.b16 %v719
      %v6967 = vunpack.c.l.b16 %v720
      %v6968 = vunpack.c.l.b16 %v721
      %v6969 = vpack.c.b16 %v6965, %v6964
      %v6970 = vpack.c.b16 %v6967, %v6966
      %v6971 = vpack.c.b16 %v6968, %v6968
      %v6975 = vsel %vm2458, %v293, 0
      %v6978 = vsel %vm2462, %v6971, 0
      %6980 = vmatprep.subr.bf16.mxu0 0
      %6981 = vmatpush1.bf16.msra.mxu0 %v6969
      %6982 = vmatprep.subr.bf16.mxu0 0
      %6983 = vmatpush1.bf16.msra.mxu0 %v6970
      %6984 = vmatprep.subr.bf16.mxu0 0
      %6985 = vmatpush1.bf16.msra.mxu0 %v6978
      %6986 = vmatprep.subr.bf16.mxu0 0
      %6987 = vmatpush1.bf16.msra.mxu0 0
      %6988 = vmatprep.subr.bf16.mxu0 0
      %6989 = vmatpush1.bf16.msra.mxu0 0
      %6990 = vmatprep.subr.bf16.mxu0 0
      %6991 = vmatpush1.bf16.msra.mxu0 0
      %6992 = vmatprep.subr.bf16.mxu0 0
      %6993 = vmatpush1.bf16.msra.mxu0 0
      %6994 = vmatprep.subr.bf16.mxu0 0
      %6995 = vmatpush1.bf16.msra.mxu0 0
      %6996 = vmatprep.subr.bf16.mxu0 0
      %6997 = vmatpush1.bf16.msra.mxu0 0
      %6998 = vmatprep.subr.bf16.mxu0 0
      %6999 = vmatpush1.bf16.msra.mxu0 0
      %7000 = vmatprep.subr.bf16.mxu0 0
      %7001 = vmatpush1.bf16.msra.mxu0 0
      %7002 = vmatprep.subr.bf16.mxu0 0
      %7003 = vmatpush1.bf16.msra.mxu0 0
      %7004 = vmatprep.subr.bf16.mxu0 0
      %7005 = vmatpush1.bf16.msra.mxu0 0
      %7006 = vmatprep.subr.bf16.mxu0 0
      %7007 = vmatpush1.bf16.msra.mxu0 0
      %7008 = vmatprep.subr.bf16.mxu0 0
      %7009 = vmatpush1.bf16.msra.mxu0 0
      %7010 = vmatprep.subr.bf16.mxu0 0
      %7011 = vmatpush1.bf16.msra.mxu0 0
      %7012 = vmatprep.mubr.bf16.mxu0 0
      %7013 = vmatmul.mubr.bf16.gmra.mrb[0].mxu0 %v6975
      %v7014 = vpop.f32.mrb[0].mxu0
      %v7015 = vadd.f32 %v2102, %v7014
      %v7016 = vpop.f32.mrb[0].mxu0
      %v7017 = vpop.f32.mrb[0].mxu0
      %v7018 = vpop.f32.mrb[0].mxu0
      %7019 = vdwg.mxu0
      %v7025 = vunpack.c.l.b16 %v722
      %v7026 = vunpack.c.l.b16 %v723
      %v7027 = vunpack.c.l.b16 %v724
      %v7028 = vunpack.c.l.b16 %v725
      %v7029 = vunpack.c.l.b16 %v726
      %v7030 = vpack.c.b16 %v7026, %v7025
      %v7031 = vpack.c.b16 %v7028, %v7027
      %v7032 = vpack.c.b16 %v7029, %v7029
      %v7036 = vsel %vm2458, %v294, 0
      %v7039 = vsel %vm2462, %v7032, 0
      %7041 = vmatprep.subr.bf16.mxu0 0
      %7042 = vmatpush1.bf16.msra.mxu0 %v7030
      %7043 = vmatprep.subr.bf16.mxu0 0
      %7044 = vmatpush1.bf16.msra.mxu0 %v7031
      %7045 = vmatprep.subr.bf16.mxu0 0
      %7046 = vmatpush1.bf16.msra.mxu0 %v7039
      %7047 = vmatprep.subr.bf16.mxu0 0
      %7048 = vmatpush1.bf16.msra.mxu0 0
      %7049 = vmatprep.subr.bf16.mxu0 0
      %7050 = vmatpush1.bf16.msra.mxu0 0
      %7051 = vmatprep.subr.bf16.mxu0 0
      %7052 = vmatpush1.bf16.msra.mxu0 0
      %7053 = vmatprep.subr.bf16.mxu0 0
      %7054 = vmatpush1.bf16.msra.mxu0 0
      %7055 = vmatprep.subr.bf16.mxu0 0
      %7056 = vmatpush1.bf16.msra.mxu0 0
      %7057 = vmatprep.subr.bf16.mxu0 0
      %7058 = vmatpush1.bf16.msra.mxu0 0
      %7059 = vmatprep.subr.bf16.mxu0 0
      %7060 = vmatpush1.bf16.msra.mxu0 0
      %7061 = vmatprep.subr.bf16.mxu0 0
      %7062 = vmatpush1.bf16.msra.mxu0 0
      %7063 = vmatprep.subr.bf16.mxu0 0
      %7064 = vmatpush1.bf16.msra.mxu0 0
      %7065 = vmatprep.subr.bf16.mxu0 0
      %7066 = vmatpush1.bf16.msra.mxu0 0
      %7067 = vmatprep.subr.bf16.mxu0 0
      %7068 = vmatpush1.bf16.msra.mxu0 0
      %7069 = vmatprep.subr.bf16.mxu0 0
      %7070 = vmatpush1.bf16.msra.mxu0 0
      %7071 = vmatprep.subr.bf16.mxu0 0
      %7072 = vmatpush1.bf16.msra.mxu0 0
      %7073 = vmatprep.mubr.bf16.mxu0 0
      %7074 = vmatmul.mubr.bf16.gmra.mrb[0].mxu0 %v7036
      %v7075 = vpop.f32.mrb[0].mxu0
      %v7076 = vadd.f32 %v2106, %v7075
      %v7077 = vpop.f32.mrb[0].mxu0
      %v7078 = vpop.f32.mrb[0].mxu0
      %v7079 = vpop.f32.mrb[0].mxu0
      %7080 = vdwg.mxu0
      %v7086 = vunpack.c.l.b16 %v727
      %v7087 = vunpack.c.l.b16 %v728
      %v7088 = vunpack.c.l.b16 %v729
      %v7089 = vunpack.c.l.b16 %v730
      %v7090 = vunpack.c.l.b16 %v731
      %v7091 = vpack.c.b16 %v7087, %v7086
      %v7092 = vpack.c.b16 %v7089, %v7088
      %v7093 = vpack.c.b16 %v7090, %v7090
      %v7097 = vsel %vm2458, %v295, 0
      %v7100 = vsel %vm2462, %v7093, 0
      %7102 = vmatprep.subr.bf16.mxu0 0
      %7103 = vmatpush1.bf16.msra.mxu0 %v7091
      %7104 = vmatprep.subr.bf16.mxu0 0
      %7105 = vmatpush1.bf16.msra.mxu0 %v7092
      %7106 = vmatprep.subr.bf16.mxu0 0
      %7107 = vmatpush1.bf16.msra.mxu0 %v7100
      %7108 = vmatprep.subr.bf16.mxu0 0
      %7109 = vmatpush1.bf16.msra.mxu0 0
      %7110 = vmatprep.subr.bf16.mxu0 0
      %7111 = vmatpush1.bf16.msra.mxu0 0
      %7112 = vmatprep.subr.bf16.mxu0 0
      %7113 = vmatpush1.bf16.msra.mxu0 0
      %7114 = vmatprep.subr.bf16.mxu0 0
      %7115 = vmatpush1.bf16.msra.mxu0 0
      %7116 = vmatprep.subr.bf16.mxu0 0
      %7117 = vmatpush1.bf16.msra.mxu0 0
      %7118 = vmatprep.subr.bf16.mxu0 0
      %7119 = vmatpush1.bf16.msra.mxu0 0
      %7120 = vmatprep.subr.bf16.mxu0 0
      %7121 = vmatpush1.bf16.msra.mxu0 0
      %7122 = vmatprep.subr.bf16.mxu0 0
      %7123 = vmatpush1.bf16.msra.mxu0 0
      %7124 = vmatprep.subr.bf16.mxu0 0
      %7125 = vmatpush1.bf16.msra.mxu0 0
      %7126 = vmatprep.subr.bf16.mxu0 0
      %7127 = vmatpush1.bf16.msra.mxu0 0
      %7128 = vmatprep.subr.bf16.mxu0 0
      %7129 = vmatpush1.bf16.msra.mxu0 0
      %7130 = vmatprep.subr.bf16.mxu0 0
      %7131 = vmatpush1.bf16.msra.mxu0 0
      %7132 = vmatprep.subr.bf16.mxu0 0
      %7133 = vmatpush1.bf16.msra.mxu0 0
      %7134 = vmatprep.mubr.bf16.mxu0 0
      %7135 = vmatmul.mubr.bf16.gmra.mrb[0].mxu0 %v7097
      %v7136 = vpop.f32.mrb[0].mxu0
      %v7137 = vadd.f32 %v2110, %v7136
      %v7138 = vpop.f32.mrb[0].mxu0
      %v7139 = vpop.f32.mrb[0].mxu0
      %v7140 = vpop.f32.mrb[0].mxu0
      %7141 = vdwg.mxu0
      %v7147 = vunpack.c.l.b16 %v732
      %v7148 = vunpack.c.l.b16 %v733
      %v7149 = vunpack.c.l.b16 %v734
      %v7150 = vunpack.c.l.b16 %v735
      %v7151 = vunpack.c.l.b16 %v736
      %v7152 = vpack.c.b16 %v7148, %v7147
      %v7153 = vpack.c.b16 %v7150, %v7149
      %v7154 = vpack.c.b16 %v7151, %v7151
      %v7158 = vsel %vm2458, %v296, 0
      %v7161 = vsel %vm2462, %v7154, 0
      %7163 = vmatprep.subr.bf16.mxu0 0
      %7164 = vmatpush1.bf16.msra.mxu0 %v7152
      %7165 = vmatprep.subr.bf16.mxu0 0
      %7166 = vmatpush1.bf16.msra.mxu0 %v7153
      %7167 = vmatprep.subr.bf16.mxu0 0
      %7168 = vmatpush1.bf16.msra.mxu0 %v7161
      %7169 = vmatprep.subr.bf16.mxu0 0
      %7170 = vmatpush1.bf16.msra.mxu0 0
      %7171 = vmatprep.subr.bf16.mxu0 0
      %7172 = vmatpush1.bf16.msra.mxu0 0
      %7173 = vmatprep.subr.bf16.mxu0 0
      %7174 = vmatpush1.bf16.msra.mxu0 0
      %7175 = vmatprep.subr.bf16.mxu0 0
      %7176 = vmatpush1.bf16.msra.mxu0 0
      %7177 = vmatprep.subr.bf16.mxu0 0
      %7178 = vmatpush1.bf16.msra.mxu0 0
      %7179 = vmatprep.subr.bf16.mxu0 0
      %7180 = vmatpush1.bf16.msra.mxu0 0
      %7181 = vmatprep.subr.bf16.mxu0 0
      %7182 = vmatpush1.bf16.msra.mxu0 0
      %7183 = vmatprep.subr.bf16.mxu0 0
      %7184 = vmatpush1.bf16.msra.mxu0 0
      %7185 = vmatprep.subr.bf16.mxu0 0
      %7186 = vmatpush1.bf16.msra.mxu0 0
      %7187 = vmatprep.subr.bf16.mxu0 0
      %7188 = vmatpush1.bf16.msra.mxu0 0
      %7189 = vmatprep.subr.bf16.mxu0 0
      %7190 = vmatpush1.bf16.msra.mxu0 0
      %7191 = vmatprep.subr.bf16.mxu0 0
      %7192 = vmatpush1.bf16.msra.mxu0 0
      %7193 = vmatprep.subr.bf16.mxu0 0
      %7194 = vmatpush1.bf16.msra.mxu0 0
      %7195 = vmatprep.mubr.bf16.mxu0 0
      %7196 = vmatmul.mubr.bf16.gmra.mrb[0].mxu0 %v7158
      %v7197 = vpop.f32.mrb[0].mxu0
      %v7198 = vadd.f32 %v2114, %v7197
      %v7199 = vpop.f32.mrb[0].mxu0
      %v7200 = vpop.f32.mrb[0].mxu0
      %v7201 = vpop.f32.mrb[0].mxu0
      %7202 = vdwg.mxu0
      %v7208 = vunpack.c.l.b16 %v737
      %v7209 = vunpack.c.l.b16 %v738
      %v7210 = vunpack.c.l.b16 %v739
      %v7211 = vunpack.c.l.b16 %v740
      %v7212 = vunpack.c.l.b16 %v741
      %v7213 = vpack.c.b16 %v7209, %v7208
      %v7214 = vpack.c.b16 %v7211, %v7210
      %v7215 = vpack.c.b16 %v7212, %v7212
      %v7219 = vsel %vm2458, %v297, 0
      %v7222 = vsel %vm2462, %v7215, 0
      %7224 = vmatprep.subr.bf16.mxu0 0
      %7225 = vmatpush1.bf16.msra.mxu0 %v7213
      %7226 = vmatprep.subr.bf16.mxu0 0
      %7227 = vmatpush1.bf16.msra.mxu0 %v7214
      %7228 = vmatprep.subr.bf16.mxu0 0
      %7229 = vmatpush1.bf16.msra.mxu0 %v7222
      %7230 = vmatprep.subr.bf16.mxu0 0
      %7231 = vmatpush1.bf16.msra.mxu0 0
      %7232 = vmatprep.subr.bf16.mxu0 0
      %7233 = vmatpush1.bf16.msra.mxu0 0
      %7234 = vmatprep.subr.bf16.mxu0 0
      %7235 = vmatpush1.bf16.msra.mxu0 0
      %7236 = vmatprep.subr.bf16.mxu0 0
      %7237 = vmatpush1.bf16.msra.mxu0 0
      %7238 = vmatprep.subr.bf16.mxu0 0
      %7239 = vmatpush1.bf16.msra.mxu0 0
      %7240 = vmatprep.subr.bf16.mxu0 0
      %7241 = vmatpush1.bf16.msra.mxu0 0
      %7242 = vmatprep.subr.bf16.mxu0 0
      %7243 = vmatpush1.bf16.msra.mxu0 0
      %7244 = vmatprep.subr.bf16.mxu0 0
      %7245 = vmatpush1.bf16.msra.mxu0 0
      %7246 = vmatprep.subr.bf16.mxu0 0
      %7247 = vmatpush1.bf16.msra.mxu0 0
      %7248 = vmatprep.subr.bf16.mxu0 0
      %7249 = vmatpush1.bf16.msra.mxu0 0
      %7250 = vmatprep.subr.bf16.mxu0 0
      %7251 = vmatpush1.bf16.msra.mxu0 0
      %7252 = vmatprep.subr.bf16.mxu0 0
      %7253 = vmatpush1.bf16.msra.mxu0 0
      %7254 = vmatprep.subr.bf16.mxu0 0
      %7255 = vmatpush1.bf16.msra.mxu0 0
      %7256 = vmatprep.mubr.bf16.mxu0 0
      %7257 = vmatmul.mubr.bf16.gmra.mrb[0].mxu0 %v7219
      %v7258 = vpop.f32.mrb[0].mxu0
      %v7259 = vadd.f32 %v2118, %v7258
      %v7260 = vpop.f32.mrb[0].mxu0
      %v7261 = vpop.f32.mrb[0].mxu0
      %v7262 = vpop.f32.mrb[0].mxu0
      %7263 = vdwg.mxu0
      %v7269 = vunpack.c.l.b16 %v742
      %v7270 = vunpack.c.l.b16 %v743
      %v7271 = vunpack.c.l.b16 %v744
      %v7272 = vunpack.c.l.b16 %v745
      %v7273 = vunpack.c.l.b16 %v746
      %v7274 = vpack.c.b16 %v7270, %v7269
      %v7275 = vpack.c.b16 %v7272, %v7271
      %v7276 = vpack.c.b16 %v7273, %v7273
      %v7280 = vsel %vm2458, %v298, 0
      %v7283 = vsel %vm2462, %v7276, 0
      %7285 = vmatprep.subr.bf16.mxu0 0
      %7286 = vmatpush1.bf16.msra.mxu0 %v7274
      %7287 = vmatprep.subr.bf16.mxu0 0
      %7288 = vmatpush1.bf16.msra.mxu0 %v7275
      %7289 = vmatprep.subr.bf16.mxu0 0
      %7290 = vmatpush1.bf16.msra.mxu0 %v7283
      %7291 = vmatprep.subr.bf16.mxu0 0
      %7292 = vmatpush1.bf16.msra.mxu0 0
      %7293 = vmatprep.subr.bf16.mxu0 0
      %7294 = vmatpush1.bf16.msra.mxu0 0
      %7295 = vmatprep.subr.bf16.mxu0 0
      %7296 = vmatpush1.bf16.msra.mxu0 0
      %7297 = vmatprep.subr.bf16.mxu0 0
      %7298 = vmatpush1.bf16.msra.mxu0 0
      %7299 = vmatprep.subr.bf16.mxu0 0
      %7300 = vmatpush1.bf16.msra.mxu0 0
      %7301 = vmatprep.subr.bf16.mxu0 0
      %7302 = vmatpush1.bf16.msra.mxu0 0
      %7303 = vmatprep.subr.bf16.mxu0 0
      %7304 = vmatpush1.bf16.msra.mxu0 0
      %7305 = vmatprep.subr.bf16.mxu0 0
      %7306 = vmatpush1.bf16.msra.mxu0 0
      %7307 = vmatprep.subr.bf16.mxu0 0
      %7308 = vmatpush1.bf16.msra.mxu0 0
      %7309 = vmatprep.subr.bf16.mxu0 0
      %7310 = vmatpush1.bf16.msra.mxu0 0
      %7311 = vmatprep.subr.bf16.mxu0 0
      %7312 = vmatpush1.bf16.msra.mxu0 0
      %7313 = vmatprep.subr.bf16.mxu0 0
      %7314 = vmatpush1.bf16.msra.mxu0 0
      %7315 = vmatprep.subr.bf16.mxu0 0
      %7316 = vmatpush1.bf16.msra.mxu0 0
      %7317 = vmatprep.mubr.bf16.mxu0 0
      %7318 = vmatmul.mubr.bf16.gmra.mrb[0].mxu0 %v7280
      %v7319 = vpop.f32.mrb[0].mxu0
      %v7320 = vadd.f32 %v2122, %v7319
      %v7321 = vpop.f32.mrb[0].mxu0
      %v7322 = vpop.f32.mrb[0].mxu0
      %v7323 = vpop.f32.mrb[0].mxu0
      %7324 = vdwg.mxu0
      %v7330 = vunpack.c.l.b16 %v747
      %v7331 = vunpack.c.l.b16 %v748
      %v7332 = vunpack.c.l.b16 %v749
      %v7333 = vunpack.c.l.b16 %v750
      %v7334 = vunpack.c.l.b16 %v751
      %v7335 = vpack.c.b16 %v7331, %v7330
      %v7336 = vpack.c.b16 %v7333, %v7332
      %v7337 = vpack.c.b16 %v7334, %v7334
      %v7341 = vsel %vm2458, %v299, 0
      %v7344 = vsel %vm2462, %v7337, 0
      %7346 = vmatprep.subr.bf16.mxu0 0
      %7347 = vmatpush1.bf16.msra.mxu0 %v7335
      %7348 = vmatprep.subr.bf16.mxu0 0
      %7349 = vmatpush1.bf16.msra.mxu0 %v7336
      %7350 = vmatprep.subr.bf16.mxu0 0
      %7351 = vmatpush1.bf16.msra.mxu0 %v7344
      %7352 = vmatprep.subr.bf16.mxu0 0
      %7353 = vmatpush1.bf16.msra.mxu0 0
      %7354 = vmatprep.subr.bf16.mxu0 0
      %7355 = vmatpush1.bf16.msra.mxu0 0
      %7356 = vmatprep.subr.bf16.mxu0 0
      %7357 = vmatpush1.bf16.msra.mxu0 0
      %7358 = vmatprep.subr.bf16.mxu0 0
      %7359 = vmatpush1.bf16.msra.mxu0 0
      %7360 = vmatprep.subr.bf16.mxu0 0
      %7361 = vmatpush1.bf16.msra.mxu0 0
      %7362 = vmatprep.subr.bf16.mxu0 0
      %7363 = vmatpush1.bf16.msra.mxu0 0
      %7364 = vmatprep.subr.bf16.mxu0 0
      %7365 = vmatpush1.bf16.msra.mxu0 0
      %7366 = vmatprep.subr.bf16.mxu0 0
      %7367 = vmatpush1.bf16.msra.mxu0 0
      %7368 = vmatprep.subr.bf16.mxu0 0
      %7369 = vmatpush1.bf16.msra.mxu0 0
      %7370 = vmatprep.subr.bf16.mxu0 0
      %7371 = vmatpush1.bf16.msra.mxu0 0
      %7372 = vmatprep.subr.bf16.mxu0 0
      %7373 = vmatpush1.bf16.msra.mxu0 0
      %7374 = vmatprep.subr.bf16.mxu0 0
      %7375 = vmatpush1.bf16.msra.mxu0 0
      %7376 = vmatprep.subr.bf16.mxu0 0
      %7377 = vmatpush1.bf16.msra.mxu0 0
      %7378 = vmatprep.mubr.bf16.mxu0 0
      %7379 = vmatmul.mubr.bf16.gmra.mrb[0].mxu0 %v7341
      %v7380 = vpop.f32.mrb[0].mxu0
      %v7381 = vadd.f32 %v2126, %v7380
      %v7382 = vpop.f32.mrb[0].mxu0
      %v7383 = vpop.f32.mrb[0].mxu0
      %v7384 = vpop.f32.mrb[0].mxu0
      %7385 = vdwg.mxu0
      %v7391 = vunpack.c.l.b16 %v752
      %v7392 = vunpack.c.l.b16 %v753
      %v7393 = vunpack.c.l.b16 %v754
      %v7394 = vunpack.c.l.b16 %v755
      %v7395 = vunpack.c.l.b16 %v756
      %v7396 = vpack.c.b16 %v7392, %v7391
      %v7397 = vpack.c.b16 %v7394, %v7393
      %v7398 = vpack.c.b16 %v7395, %v7395
      %v7402 = vsel %vm2458, %v300, 0
      %v7405 = vsel %vm2462, %v7398, 0
      %7407 = vmatprep.subr.bf16.mxu0 0
      %7408 = vmatpush1.bf16.msra.mxu0 %v7396
      %7409 = vmatprep.subr.bf16.mxu0 0
      %7410 = vmatpush1.bf16.msra.mxu0 %v7397
      %7411 = vmatprep.subr.bf16.mxu0 0
      %7412 = vmatpush1.bf16.msra.mxu0 %v7405
      %7413 = vmatprep.subr.bf16.mxu0 0
      %7414 = vmatpush1.bf16.msra.mxu0 0
      %7415 = vmatprep.subr.bf16.mxu0 0
      %7416 = vmatpush1.bf16.msra.mxu0 0
      %7417 = vmatprep.subr.bf16.mxu0 0
      %7418 = vmatpush1.bf16.msra.mxu0 0
      %7419 = vmatprep.subr.bf16.mxu0 0
      %7420 = vmatpush1.bf16.msra.mxu0 0
      %7421 = vmatprep.subr.bf16.mxu0 0
      %7422 = vmatpush1.bf16.msra.mxu0 0
      %7423 = vmatprep.subr.bf16.mxu0 0
      %7424 = vmatpush1.bf16.msra.mxu0 0
      %7425 = vmatprep.subr.bf16.mxu0 0
      %7426 = vmatpush1.bf16.msra.mxu0 0
      %7427 = vmatprep.subr.bf16.mxu0 0
      %7428 = vmatpush1.bf16.msra.mxu0 0
      %7429 = vmatprep.subr.bf16.mxu0 0
      %7430 = vmatpush1.bf16.msra.mxu0 0
      %7431 = vmatprep.subr.bf16.mxu0 0
      %7432 = vmatpush1.bf16.msra.mxu0 0
      %7433 = vmatprep.subr.bf16.mxu0 0
      %7434 = vmatpush1.bf16.msra.mxu0 0
      %7435 = vmatprep.subr.bf16.mxu0 0
      %7436 = vmatpush1.bf16.msra.mxu0 0
      %7437 = vmatprep.subr.bf16.mxu0 0
      %7438 = vmatpush1.bf16.msra.mxu0 0
      %7439 = vmatprep.mubr.bf16.mxu0 0
      %7440 = vmatmul.mubr.bf16.gmra.mrb[0].mxu0 %v7402
      %v7441 = vpop.f32.mrb[0].mxu0
      %v7442 = vadd.f32 %v2130, %v7441
      %v7443 = vpop.f32.mrb[0].mxu0
      %v7444 = vpop.f32.mrb[0].mxu0
      %v7445 = vpop.f32.mrb[0].mxu0
      %7446 = vdwg.mxu0
      %v7452 = vunpack.c.l.b16 %v757
      %v7453 = vunpack.c.l.b16 %v758
      %v7454 = vunpack.c.l.b16 %v759
      %v7455 = vunpack.c.l.b16 %v760
      %v7456 = vunpack.c.l.b16 %v761
      %v7457 = vpack.c.b16 %v7453, %v7452
      %v7458 = vpack.c.b16 %v7455, %v7454
      %v7459 = vpack.c.b16 %v7456, %v7456
      %v7463 = vsel %vm2458, %v301, 0
      %v7466 = vsel %vm2462, %v7459, 0
      %7468 = vmatprep.subr.bf16.mxu0 0
      %7469 = vmatpush1.bf16.msra.mxu0 %v7457
      %7470 = vmatprep.subr.bf16.mxu0 0
      %7471 = vmatpush1.bf16.msra.mxu0 %v7458
      %7472 = vmatprep.subr.bf16.mxu0 0
      %7473 = vmatpush1.bf16.msra.mxu0 %v7466
      %7474 = vmatprep.subr.bf16.mxu0 0
      %7475 = vmatpush1.bf16.msra.mxu0 0
      %7476 = vmatprep.subr.bf16.mxu0 0
      %7477 = vmatpush1.bf16.msra.mxu0 0
      %7478 = vmatprep.subr.bf16.mxu0 0
      %7479 = vmatpush1.bf16.msra.mxu0 0
      %7480 = vmatprep.subr.bf16.mxu0 0
      %7481 = vmatpush1.bf16.msra.mxu0 0
      %7482 = vmatprep.subr.bf16.mxu0 0
      %7483 = vmatpush1.bf16.msra.mxu0 0
      %7484 = vmatprep.subr.bf16.mxu0 0
      %7485 = vmatpush1.bf16.msra.mxu0 0
      %7486 = vmatprep.subr.bf16.mxu0 0
      %7487 = vmatpush1.bf16.msra.mxu0 0
      %7488 = vmatprep.subr.bf16.mxu0 0
      %7489 = vmatpush1.bf16.msra.mxu0 0
      %7490 = vmatprep.subr.bf16.mxu0 0
      %7491 = vmatpush1.bf16.msra.mxu0 0
      %7492 = vmatprep.subr.bf16.mxu0 0
      %7493 = vmatpush1.bf16.msra.mxu0 0
      %7494 = vmatprep.subr.bf16.mxu0 0
      %7495 = vmatpush1.bf16.msra.mxu0 0
      %7496 = vmatprep.subr.bf16.mxu0 0
      %7497 = vmatpush1.bf16.msra.mxu0 0
      %7498 = vmatprep.subr.bf16.mxu0 0
      %7499 = vmatpush1.bf16.msra.mxu0 0
      %7500 = vmatprep.mubr.bf16.mxu0 0
      %7501 = vmatmul.mubr.bf16.gmra.mrb[0].mxu0 %v7463
      %v7502 = vpop.f32.mrb[0].mxu0
      %v7503 = vadd.f32 %v2134, %v7502
      %v7504 = vpop.f32.mrb[0].mxu0
      %v7505 = vpop.f32.mrb[0].mxu0
      %v7506 = vpop.f32.mrb[0].mxu0
      %7507 = vdwg.mxu0
      %v7513 = vunpack.c.l.b16 %v762
      %v7514 = vunpack.c.l.b16 %v763
      %v7515 = vunpack.c.l.b16 %v764
      %v7516 = vunpack.c.l.b16 %v765
      %v7517 = vunpack.c.l.b16 %v766
      %v7518 = vpack.c.b16 %v7514, %v7513
      %v7519 = vpack.c.b16 %v7516, %v7515
      %v7520 = vpack.c.b16 %v7517, %v7517
      %v7524 = vsel %vm2458, %v302, 0
      %v7527 = vsel %vm2462, %v7520, 0
      %7529 = vmatprep.subr.bf16.mxu0 0
      %7530 = vmatpush1.bf16.msra.mxu0 %v7518
      %7531 = vmatprep.subr.bf16.mxu0 0
      %7532 = vmatpush1.bf16.msra.mxu0 %v7519
      %7533 = vmatprep.subr.bf16.mxu0 0
      %7534 = vmatpush1.bf16.msra.mxu0 %v7527
      %7535 = vmatprep.subr.bf16.mxu0 0
      %7536 = vmatpush1.bf16.msra.mxu0 0
      %7537 = vmatprep.subr.bf16.mxu0 0
      %7538 = vmatpush1.bf16.msra.mxu0 0
      %7539 = vmatprep.subr.bf16.mxu0 0
      %7540 = vmatpush1.bf16.msra.mxu0 0
      %7541 = vmatprep.subr.bf16.mxu0 0
      %7542 = vmatpush1.bf16.msra.mxu0 0
      %7543 = vmatprep.subr.bf16.mxu0 0
      %7544 = vmatpush1.bf16.msra.mxu0 0
      %7545 = vmatprep.subr.bf16.mxu0 0
      %7546 = vmatpush1.bf16.msra.mxu0 0
      %7547 = vmatprep.subr.bf16.mxu0 0
      %7548 = vmatpush1.bf16.msra.mxu0 0
      %7549 = vmatprep.subr.bf16.mxu0 0
      %7550 = vmatpush1.bf16.msra.mxu0 0
      %7551 = vmatprep.subr.bf16.mxu0 0
      %7552 = vmatpush1.bf16.msra.mxu0 0
      %7553 = vmatprep.subr.bf16.mxu0 0
      %7554 = vmatpush1.bf16.msra.mxu0 0
      %7555 = vmatprep.subr.bf16.mxu0 0
      %7556 = vmatpush1.bf16.msra.mxu0 0
      %7557 = vmatprep.subr.bf16.mxu0 0
      %7558 = vmatpush1.bf16.msra.mxu0 0
      %7559 = vmatprep.subr.bf16.mxu0 0
      %7560 = vmatpush1.bf16.msra.mxu0 0
      %7561 = vmatprep.mubr.bf16.mxu0 0
      %7562 = vmatmul.mubr.bf16.gmra.mrb[0].mxu0 %v7524
      %v7563 = vpop.f32.mrb[0].mxu0
      %v7564 = vadd.f32 %v2138, %v7563
      %v7565 = vpop.f32.mrb[0].mxu0
      %v7566 = vpop.f32.mrb[0].mxu0
      %v7567 = vpop.f32.mrb[0].mxu0
      %7568 = vdwg.mxu0
      %v7574 = vunpack.c.l.b16 %v767
      %v7575 = vunpack.c.l.b16 %v768
      %v7576 = vunpack.c.l.b16 %v769
      %v7577 = vunpack.c.l.b16 %v770
      %v7578 = vunpack.c.l.b16 %v771
      %v7579 = vpack.c.b16 %v7575, %v7574
      %v7580 = vpack.c.b16 %v7577, %v7576
      %v7581 = vpack.c.b16 %v7578, %v7578
      %v7585 = vsel %vm2458, %v303, 0
      %v7588 = vsel %vm2462, %v7581, 0
      %7590 = vmatprep.subr.bf16.mxu0 0
      %7591 = vmatpush1.bf16.msra.mxu0 %v7579
      %7592 = vmatprep.subr.bf16.mxu0 0
      %7593 = vmatpush1.bf16.msra.mxu0 %v7580
      %7594 = vmatprep.subr.bf16.mxu0 0
      %7595 = vmatpush1.bf16.msra.mxu0 %v7588
      %7596 = vmatprep.subr.bf16.mxu0 0
      %7597 = vmatpush1.bf16.msra.mxu0 0
      %7598 = vmatprep.subr.bf16.mxu0 0
      %7599 = vmatpush1.bf16.msra.mxu0 0
      %7600 = vmatprep.subr.bf16.mxu0 0
      %7601 = vmatpush1.bf16.msra.mxu0 0
      %7602 = vmatprep.subr.bf16.mxu0 0
      %7603 = vmatpush1.bf16.msra.mxu0 0
      %7604 = vmatprep.subr.bf16.mxu0 0
      %7605 = vmatpush1.bf16.msra.mxu0 0
      %7606 = vmatprep.subr.bf16.mxu0 0
      %7607 = vmatpush1.bf16.msra.mxu0 0
      %7608 = vmatprep.subr.bf16.mxu0 0
      %7609 = vmatpush1.bf16.msra.mxu0 0
      %7610 = vmatprep.subr.bf16.mxu0 0
      %7611 = vmatpush1.bf16.msra.mxu0 0
      %7612 = vmatprep.subr.bf16.mxu0 0
      %7613 = vmatpush1.bf16.msra.mxu0 0
      %7614 = vmatprep.subr.bf16.mxu0 0
      %7615 = vmatpush1.bf16.msra.mxu0 0
      %7616 = vmatprep.subr.bf16.mxu0 0
      %7617 = vmatpush1.bf16.msra.mxu0 0
      %7618 = vmatprep.subr.bf16.mxu0 0
      %7619 = vmatpush1.bf16.msra.mxu0 0
      %7620 = vmatprep.subr.bf16.mxu0 0
      %7621 = vmatpush1.bf16.msra.mxu0 0
      %7622 = vmatprep.mubr.bf16.mxu0 0
      %7623 = vmatmul.mubr.bf16.gmra.mrb[0].mxu0 %v7585
      %v7624 = vpop.f32.mrb[0].mxu0
      %v7625 = vadd.f32 %v2142, %v7624
      %v7626 = vpop.f32.mrb[0].mxu0
      %v7627 = vpop.f32.mrb[0].mxu0
      %v7628 = vpop.f32.mrb[0].mxu0
      %7629 = vdwg.mxu0
      %v7635 = vunpack.c.l.b16 %v772
      %v7636 = vunpack.c.l.b16 %v773
      %v7637 = vunpack.c.l.b16 %v774
      %v7638 = vunpack.c.l.b16 %v775
      %v7639 = vunpack.c.l.b16 %v776
      %v7640 = vpack.c.b16 %v7636, %v7635
      %v7641 = vpack.c.b16 %v7638, %v7637
      %v7642 = vpack.c.b16 %v7639, %v7639
      %v7646 = vsel %vm2458, %v304, 0
      %v7649 = vsel %vm2462, %v7642, 0
      %7651 = vmatprep.subr.bf16.mxu0 0
      %7652 = vmatpush1.bf16.msra.mxu0 %v7640
      %7653 = vmatprep.subr.bf16.mxu0 0
      %7654 = vmatpush1.bf16.msra.mxu0 %v7641
      %7655 = vmatprep.subr.bf16.mxu0 0
      %7656 = vmatpush1.bf16.msra.mxu0 %v7649
      %7657 = vmatprep.subr.bf16.mxu0 0
      %7658 = vmatpush1.bf16.msra.mxu0 0
      %7659 = vmatprep.subr.bf16.mxu0 0
      %7660 = vmatpush1.bf16.msra.mxu0 0
      %7661 = vmatprep.subr.bf16.mxu0 0
      %7662 = vmatpush1.bf16.msra.mxu0 0
      %7663 = vmatprep.subr.bf16.mxu0 0
      %7664 = vmatpush1.bf16.msra.mxu0 0
      %7665 = vmatprep.subr.bf16.mxu0 0
      %7666 = vmatpush1.bf16.msra.mxu0 0
      %7667 = vmatprep.subr.bf16.mxu0 0
      %7668 = vmatpush1.bf16.msra.mxu0 0
      %7669 = vmatprep.subr.bf16.mxu0 0
      %7670 = vmatpush1.bf16.msra.mxu0 0
      %7671 = vmatprep.subr.bf16.mxu0 0
      %7672 = vmatpush1.bf16.msra.mxu0 0
      %7673 = vmatprep.subr.bf16.mxu0 0
      %7674 = vmatpush1.bf16.msra.mxu0 0
      %7675 = vmatprep.subr.bf16.mxu0 0
      %7676 = vmatpush1.bf16.msra.mxu0 0
      %7677 = vmatprep.subr.bf16.mxu0 0
      %7678 = vmatpush1.bf16.msra.mxu0 0
      %7679 = vmatprep.subr.bf16.mxu0 0
      %7680 = vmatpush1.bf16.msra.mxu0 0
      %7681 = vmatprep.subr.bf16.mxu0 0
      %7682 = vmatpush1.bf16.msra.mxu0 0
      %7683 = vmatprep.mubr.bf16.mxu0 0
      %7684 = vmatmul.mubr.bf16.gmra.mrb[0].mxu0 %v7646
      %v7685 = vpop.f32.mrb[0].mxu0
      %v7686 = vadd.f32 %v2146, %v7685
      %v7687 = vpop.f32.mrb[0].mxu0
      %v7688 = vpop.f32.mrb[0].mxu0
      %v7689 = vpop.f32.mrb[0].mxu0
      %7690 = vdwg.mxu0
      %v7696 = vunpack.c.l.b16 %v777
      %v7697 = vunpack.c.l.b16 %v778
      %v7698 = vunpack.c.l.b16 %v779
      %v7699 = vunpack.c.l.b16 %v780
      %v7700 = vunpack.c.l.b16 %v781
      %v7701 = vpack.c.b16 %v7697, %v7696
      %v7702 = vpack.c.b16 %v7699, %v7698
      %v7703 = vpack.c.b16 %v7700, %v7700
      %v7707 = vsel %vm2458, %v305, 0
      %v7710 = vsel %vm2462, %v7703, 0
      %7712 = vmatprep.subr.bf16.mxu0 0
      %7713 = vmatpush1.bf16.msra.mxu0 %v7701
      %7714 = vmatprep.subr.bf16.mxu0 0
      %7715 = vmatpush1.bf16.msra.mxu0 %v7702
      %7716 = vmatprep.subr.bf16.mxu0 0
      %7717 = vmatpush1.bf16.msra.mxu0 %v7710
      %7718 = vmatprep.subr.bf16.mxu0 0
      %7719 = vmatpush1.bf16.msra.mxu0 0
      %7720 = vmatprep.subr.bf16.mxu0 0
      %7721 = vmatpush1.bf16.msra.mxu0 0
      %7722 = vmatprep.subr.bf16.mxu0 0
      %7723 = vmatpush1.bf16.msra.mxu0 0
      %7724 = vmatprep.subr.bf16.mxu0 0
      %7725 = vmatpush1.bf16.msra.mxu0 0
      %7726 = vmatprep.subr.bf16.mxu0 0
      %7727 = vmatpush1.bf16.msra.mxu0 0
      %7728 = vmatprep.subr.bf16.mxu0 0
      %7729 = vmatpush1.bf16.msra.mxu0 0
      %7730 = vmatprep.subr.bf16.mxu0 0
      %7731 = vmatpush1.bf16.msra.mxu0 0
      %7732 = vmatprep.subr.bf16.mxu0 0
      %7733 = vmatpush1.bf16.msra.mxu0 0
      %7734 = vmatprep.subr.bf16.mxu0 0
      %7735 = vmatpush1.bf16.msra.mxu0 0
      %7736 = vmatprep.subr.bf16.mxu0 0
      %7737 = vmatpush1.bf16.msra.mxu0 0
      %7738 = vmatprep.subr.bf16.mxu0 0
      %7739 = vmatpush1.bf16.msra.mxu0 0
      %7740 = vmatprep.subr.bf16.mxu0 0
      %7741 = vmatpush1.bf16.msra.mxu0 0
      %7742 = vmatprep.subr.bf16.mxu0 0
      %7743 = vmatpush1.bf16.msra.mxu0 0
      %7744 = vmatprep.mubr.bf16.mxu0 0
      %7745 = vmatmul.mubr.bf16.gmra.mrb[0].mxu0 %v7707
      %v7746 = vpop.f32.mrb[0].mxu0
      %v7747 = vadd.f32 %v2150, %v7746
      %v7748 = vpop.f32.mrb[0].mxu0
      %v7749 = vpop.f32.mrb[0].mxu0
      %v7750 = vpop.f32.mrb[0].mxu0
      %7751 = vdwg.mxu0
      %v7757 = vunpack.c.l.b16 %v782
      %v7758 = vunpack.c.l.b16 %v783
      %v7759 = vunpack.c.l.b16 %v784
      %v7760 = vunpack.c.l.b16 %v785
      %v7761 = vunpack.c.l.b16 %v786
      %v7762 = vpack.c.b16 %v7758, %v7757
      %v7763 = vpack.c.b16 %v7760, %v7759
      %v7764 = vpack.c.b16 %v7761, %v7761
      %v7768 = vsel %vm2458, %v306, 0
      %v7771 = vsel %vm2462, %v7764, 0
      %7773 = vmatprep.subr.bf16.mxu0 0
      %7774 = vmatpush1.bf16.msra.mxu0 %v7762
      %7775 = vmatprep.subr.bf16.mxu0 0
      %7776 = vmatpush1.bf16.msra.mxu0 %v7763
      %7777 = vmatprep.subr.bf16.mxu0 0
      %7778 = vmatpush1.bf16.msra.mxu0 %v7771
      %7779 = vmatprep.subr.bf16.mxu0 0
      %7780 = vmatpush1.bf16.msra.mxu0 0
      %7781 = vmatprep.subr.bf16.mxu0 0
      %7782 = vmatpush1.bf16.msra.mxu0 0
      %7783 = vmatprep.subr.bf16.mxu0 0
      %7784 = vmatpush1.bf16.msra.mxu0 0
      %7785 = vmatprep.subr.bf16.mxu0 0
      %7786 = vmatpush1.bf16.msra.mxu0 0
      %7787 = vmatprep.subr.bf16.mxu0 0
      %7788 = vmatpush1.bf16.msra.mxu0 0
      %7789 = vmatprep.subr.bf16.mxu0 0
      %7790 = vmatpush1.bf16.msra.mxu0 0
      %7791 = vmatprep.subr.bf16.mxu0 0
      %7792 = vmatpush1.bf16.msra.mxu0 0
      %7793 = vmatprep.subr.bf16.mxu0 0
      %7794 = vmatpush1.bf16.msra.mxu0 0
      %7795 = vmatprep.subr.bf16.mxu0 0
      %7796 = vmatpush1.bf16.msra.mxu0 0
      %7797 = vmatprep.subr.bf16.mxu0 0
      %7798 = vmatpush1.bf16.msra.mxu0 0
      %7799 = vmatprep.subr.bf16.mxu0 0
      %7800 = vmatpush1.bf16.msra.mxu0 0
      %7801 = vmatprep.subr.bf16.mxu0 0
      %7802 = vmatpush1.bf16.msra.mxu0 0
      %7803 = vmatprep.subr.bf16.mxu0 0
      %7804 = vmatpush1.bf16.msra.mxu0 0
      %7805 = vmatprep.mubr.bf16.mxu0 0
      %7806 = vmatmul.mubr.bf16.gmra.mrb[0].mxu0 %v7768
      %v7807 = vpop.f32.mrb[0].mxu0
      %v7808 = vadd.f32 %v2154, %v7807
      %v7809 = vpop.f32.mrb[0].mxu0
      %v7810 = vpop.f32.mrb[0].mxu0
      %v7811 = vpop.f32.mrb[0].mxu0
      %7812 = vdwg.mxu0
      %v7818 = vunpack.c.l.b16 %v787
      %v7819 = vunpack.c.l.b16 %v788
      %v7820 = vunpack.c.l.b16 %v789
      %v7821 = vunpack.c.l.b16 %v790
      %v7822 = vunpack.c.l.b16 %v791
      %v7823 = vpack.c.b16 %v7819, %v7818
      %v7824 = vpack.c.b16 %v7821, %v7820
      %v7825 = vpack.c.b16 %v7822, %v7822
      %v7829 = vsel %vm2458, %v307, 0
      %v7832 = vsel %vm2462, %v7825, 0
      %7834 = vmatprep.subr.bf16.mxu0 0
      %7835 = vmatpush1.bf16.msra.mxu0 %v7823
      %7836 = vmatprep.subr.bf16.mxu0 0
      %7837 = vmatpush1.bf16.msra.mxu0 %v7824
      %7838 = vmatprep.subr.bf16.mxu0 0
      %7839 = vmatpush1.bf16.msra.mxu0 %v7832
      %7840 = vmatprep.subr.bf16.mxu0 0
      %7841 = vmatpush1.bf16.msra.mxu0 0
      %7842 = vmatprep.subr.bf16.mxu0 0
      %7843 = vmatpush1.bf16.msra.mxu0 0
      %7844 = vmatprep.subr.bf16.mxu0 0
      %7845 = vmatpush1.bf16.msra.mxu0 0
      %7846 = vmatprep.subr.bf16.mxu0 0
      %7847 = vmatpush1.bf16.msra.mxu0 0
      %7848 = vmatprep.subr.bf16.mxu0 0
      %7849 = vmatpush1.bf16.msra.mxu0 0
      %7850 = vmatprep.subr.bf16.mxu0 0
      %7851 = vmatpush1.bf16.msra.mxu0 0
      %7852 = vmatprep.subr.bf16.mxu0 0
      %7853 = vmatpush1.bf16.msra.mxu0 0
      %7854 = vmatprep.subr.bf16.mxu0 0
      %7855 = vmatpush1.bf16.msra.mxu0 0
      %7856 = vmatprep.subr.bf16.mxu0 0
      %7857 = vmatpush1.bf16.msra.mxu0 0
      %7858 = vmatprep.subr.bf16.mxu0 0
      %7859 = vmatpush1.bf16.msra.mxu0 0
      %7860 = vmatprep.subr.bf16.mxu0 0
      %7861 = vmatpush1.bf16.msra.mxu0 0
      %7862 = vmatprep.subr.bf16.mxu0 0
      %7863 = vmatpush1.bf16.msra.mxu0 0
      %7864 = vmatprep.subr.bf16.mxu0 0
      %7865 = vmatpush1.bf16.msra.mxu0 0
      %7866 = vmatprep.mubr.bf16.mxu0 0
      %7867 = vmatmul.mubr.bf16.gmra.mrb[0].mxu0 %v7829
      %v7868 = vpop.f32.mrb[0].mxu0
      %v7869 = vadd.f32 %v2158, %v7868
      %v7870 = vpop.f32.mrb[0].mxu0
      %v7871 = vpop.f32.mrb[0].mxu0
      %v7872 = vpop.f32.mrb[0].mxu0
      %7873 = vdwg.mxu0
      %v7879 = vunpack.c.l.b16 %v792
      %v7880 = vunpack.c.l.b16 %v793
      %v7881 = vunpack.c.l.b16 %v794
      %v7882 = vunpack.c.l.b16 %v795
      %v7883 = vunpack.c.l.b16 %v796
      %v7884 = vpack.c.b16 %v7880, %v7879
      %v7885 = vpack.c.b16 %v7882, %v7881
      %v7886 = vpack.c.b16 %v7883, %v7883
      %v7890 = vsel %vm2458, %v308, 0
      %v7893 = vsel %vm2462, %v7886, 0
      %7895 = vmatprep.subr.bf16.mxu0 0
      %7896 = vmatpush1.bf16.msra.mxu0 %v7884
      %7897 = vmatprep.subr.bf16.mxu0 0
      %7898 = vmatpush1.bf16.msra.mxu0 %v7885
      %7899 = vmatprep.subr.bf16.mxu0 0
      %7900 = vmatpush1.bf16.msra.mxu0 %v7893
      %7901 = vmatprep.subr.bf16.mxu0 0
      %7902 = vmatpush1.bf16.msra.mxu0 0
      %7903 = vmatprep.subr.bf16.mxu0 0
      %7904 = vmatpush1.bf16.msra.mxu0 0
      %7905 = vmatprep.subr.bf16.mxu0 0
      %7906 = vmatpush1.bf16.msra.mxu0 0
      %7907 = vmatprep.subr.bf16.mxu0 0
      %7908 = vmatpush1.bf16.msra.mxu0 0
      %7909 = vmatprep.subr.bf16.mxu0 0
      %7910 = vmatpush1.bf16.msra.mxu0 0
      %7911 = vmatprep.subr.bf16.mxu0 0
      %7912 = vmatpush1.bf16.msra.mxu0 0
      %7913 = vmatprep.subr.bf16.mxu0 0
      %7914 = vmatpush1.bf16.msra.mxu0 0
      %7915 = vmatprep.subr.bf16.mxu0 0
      %7916 = vmatpush1.bf16.msra.mxu0 0
      %7917 = vmatprep.subr.bf16.mxu0 0
      %7918 = vmatpush1.bf16.msra.mxu0 0
      %7919 = vmatprep.subr.bf16.mxu0 0
      %7920 = vmatpush1.bf16.msra.mxu0 0
      %7921 = vmatprep.subr.bf16.mxu0 0
      %7922 = vmatpush1.bf16.msra.mxu0 0
      %7923 = vmatprep.subr.bf16.mxu0 0
      %7924 = vmatpush1.bf16.msra.mxu0 0
      %7925 = vmatprep.subr.bf16.mxu0 0
      %7926 = vmatpush1.bf16.msra.mxu0 0
      %7927 = vmatprep.mubr.bf16.mxu0 0
      %7928 = vmatmul.mubr.bf16.gmra.mrb[0].mxu0 %v7890
      %v7929 = vpop.f32.mrb[0].mxu0
      %v7930 = vadd.f32 %v2162, %v7929
      %v7931 = vpop.f32.mrb[0].mxu0
      %v7932 = vpop.f32.mrb[0].mxu0
      %v7933 = vpop.f32.mrb[0].mxu0
      %7934 = vdwg.mxu0
      %v7940 = vunpack.c.l.b16 %v797
      %v7941 = vunpack.c.l.b16 %v798
      %v7942 = vunpack.c.l.b16 %v799
      %v7943 = vunpack.c.l.b16 %v800
      %v7944 = vunpack.c.l.b16 %v801
      %v7945 = vpack.c.b16 %v7941, %v7940
      %v7946 = vpack.c.b16 %v7943, %v7942
      %v7947 = vpack.c.b16 %v7944, %v7944
      %v7951 = vsel %vm2458, %v309, 0
      %v7954 = vsel %vm2462, %v7947, 0
      %7956 = vmatprep.subr.bf16.mxu0 0
      %7957 = vmatpush1.bf16.msra.mxu0 %v7945
      %7958 = vmatprep.subr.bf16.mxu0 0
      %7959 = vmatpush1.bf16.msra.mxu0 %v7946
      %7960 = vmatprep.subr.bf16.mxu0 0
      %7961 = vmatpush1.bf16.msra.mxu0 %v7954
      %7962 = vmatprep.subr.bf16.mxu0 0
      %7963 = vmatpush1.bf16.msra.mxu0 0
      %7964 = vmatprep.subr.bf16.mxu0 0
      %7965 = vmatpush1.bf16.msra.mxu0 0
      %7966 = vmatprep.subr.bf16.mxu0 0
      %7967 = vmatpush1.bf16.msra.mxu0 0
      %7968 = vmatprep.subr.bf16.mxu0 0
      %7969 = vmatpush1.bf16.msra.mxu0 0
      %7970 = vmatprep.subr.bf16.mxu0 0
      %7971 = vmatpush1.bf16.msra.mxu0 0
      %7972 = vmatprep.subr.bf16.mxu0 0
      %7973 = vmatpush1.bf16.msra.mxu0 0
      %7974 = vmatprep.subr.bf16.mxu0 0
      %7975 = vmatpush1.bf16.msra.mxu0 0
      %7976 = vmatprep.subr.bf16.mxu0 0
      %7977 = vmatpush1.bf16.msra.mxu0 0
      %7978 = vmatprep.subr.bf16.mxu0 0
      %7979 = vmatpush1.bf16.msra.mxu0 0
      %7980 = vmatprep.subr.bf16.mxu0 0
      %7981 = vmatpush1.bf16.msra.mxu0 0
      %7982 = vmatprep.subr.bf16.mxu0 0
      %7983 = vmatpush1.bf16.msra.mxu0 0
      %7984 = vmatprep.subr.bf16.mxu0 0
      %7985 = vmatpush1.bf16.msra.mxu0 0
      %7986 = vmatprep.subr.bf16.mxu0 0
      %7987 = vmatpush1.bf16.msra.mxu0 0
      %7988 = vmatprep.mubr.bf16.mxu0 0
      %7989 = vmatmul.mubr.bf16.gmra.mrb[0].mxu0 %v7951
      %v7990 = vpop.f32.mrb[0].mxu0
      %v7991 = vadd.f32 %v2166, %v7990
      %v7992 = vpop.f32.mrb[0].mxu0
      %v7993 = vpop.f32.mrb[0].mxu0
      %v7994 = vpop.f32.mrb[0].mxu0
      %7995 = vdwg.mxu0
      %v8001 = vunpack.c.l.b16 %v802
      %v8002 = vunpack.c.l.b16 %v803
      %v8003 = vunpack.c.l.b16 %v804
      %v8004 = vunpack.c.l.b16 %v805
      %v8005 = vunpack.c.l.b16 %v806
      %v8006 = vpack.c.b16 %v8002, %v8001
      %v8007 = vpack.c.b16 %v8004, %v8003
      %v8008 = vpack.c.b16 %v8005, %v8005
      %v8012 = vsel %vm2458, %v310, 0
      %v8015 = vsel %vm2462, %v8008, 0
      %8017 = vmatprep.subr.bf16.mxu0 0
      %8018 = vmatpush1.bf16.msra.mxu0 %v8006
      %8019 = vmatprep.subr.bf16.mxu0 0
      %8020 = vmatpush1.bf16.msra.mxu0 %v8007
      %8021 = vmatprep.subr.bf16.mxu0 0
      %8022 = vmatpush1.bf16.msra.mxu0 %v8015
      %8023 = vmatprep.subr.bf16.mxu0 0
      %8024 = vmatpush1.bf16.msra.mxu0 0
      %8025 = vmatprep.subr.bf16.mxu0 0
      %8026 = vmatpush1.bf16.msra.mxu0 0
      %8027 = vmatprep.subr.bf16.mxu0 0
      %8028 = vmatpush1.bf16.msra.mxu0 0
      %8029 = vmatprep.subr.bf16.mxu0 0
      %8030 = vmatpush1.bf16.msra.mxu0 0
      %8031 = vmatprep.subr.bf16.mxu0 0
      %8032 = vmatpush1.bf16.msra.mxu0 0
      %8033 = vmatprep.subr.bf16.mxu0 0
      %8034 = vmatpush1.bf16.msra.mxu0 0
      %8035 = vmatprep.subr.bf16.mxu0 0
      %8036 = vmatpush1.bf16.msra.mxu0 0
      %8037 = vmatprep.subr.bf16.mxu0 0
      %8038 = vmatpush1.bf16.msra.mxu0 0
      %8039 = vmatprep.subr.bf16.mxu0 0
      %8040 = vmatpush1.bf16.msra.mxu0 0
      %8041 = vmatprep.subr.bf16.mxu0 0
      %8042 = vmatpush1.bf16.msra.mxu0 0
      %8043 = vmatprep.subr.bf16.mxu0 0
      %8044 = vmatpush1.bf16.msra.mxu0 0
      %8045 = vmatprep.subr.bf16.mxu0 0
      %8046 = vmatpush1.bf16.msra.mxu0 0
      %8047 = vmatprep.subr.bf16.mxu0 0
      %8048 = vmatpush1.bf16.msra.mxu0 0
      %8049 = vmatprep.mubr.bf16.mxu0 0
      %8050 = vmatmul.mubr.bf16.gmra.mrb[0].mxu0 %v8012
      %v8051 = vpop.f32.mrb[0].mxu0
      %v8052 = vadd.f32 %v2170, %v8051
      %v8053 = vpop.f32.mrb[0].mxu0
      %v8054 = vpop.f32.mrb[0].mxu0
      %v8055 = vpop.f32.mrb[0].mxu0
      %8056 = vdwg.mxu0
      %v8062 = vunpack.c.l.b16 %v807
      %v8063 = vunpack.c.l.b16 %v808
      %v8064 = vunpack.c.l.b16 %v809
      %v8065 = vunpack.c.l.b16 %v810
      %v8066 = vunpack.c.l.b16 %v811
      %v8067 = vpack.c.b16 %v8063, %v8062
      %v8068 = vpack.c.b16 %v8065, %v8064
      %v8069 = vpack.c.b16 %v8066, %v8066
      %v8073 = vsel %vm2458, %v311, 0
      %v8076 = vsel %vm2462, %v8069, 0
      %8078 = vmatprep.subr.bf16.mxu0 0
      %8079 = vmatpush1.bf16.msra.mxu0 %v8067
      %8080 = vmatprep.subr.bf16.mxu0 0
      %8081 = vmatpush1.bf16.msra.mxu0 %v8068
      %8082 = vmatprep.subr.bf16.mxu0 0
      %8083 = vmatpush1.bf16.msra.mxu0 %v8076
      %8084 = vmatprep.subr.bf16.mxu0 0
      %8085 = vmatpush1.bf16.msra.mxu0 0
      %8086 = vmatprep.subr.bf16.mxu0 0
      %8087 = vmatpush1.bf16.msra.mxu0 0
      %8088 = vmatprep.subr.bf16.mxu0 0
      %8089 = vmatpush1.bf16.msra.mxu0 0
      %8090 = vmatprep.subr.bf16.mxu0 0
      %8091 = vmatpush1.bf16.msra.mxu0 0
      %8092 = vmatprep.subr.bf16.mxu0 0
      %8093 = vmatpush1.bf16.msra.mxu0 0
      %8094 = vmatprep.subr.bf16.mxu0 0
      %8095 = vmatpush1.bf16.msra.mxu0 0
      %8096 = vmatprep.subr.bf16.mxu0 0
      %8097 = vmatpush1.bf16.msra.mxu0 0
      %8098 = vmatprep.subr.bf16.mxu0 0
      %8099 = vmatpush1.bf16.msra.mxu0 0
      %8100 = vmatprep.subr.bf16.mxu0 0
      %8101 = vmatpush1.bf16.msra.mxu0 0
      %8102 = vmatprep.subr.bf16.mxu0 0
      %8103 = vmatpush1.bf16.msra.mxu0 0
      %8104 = vmatprep.subr.bf16.mxu0 0
      %8105 = vmatpush1.bf16.msra.mxu0 0
      %8106 = vmatprep.subr.bf16.mxu0 0
      %8107 = vmatpush1.bf16.msra.mxu0 0
      %8108 = vmatprep.subr.bf16.mxu0 0
      %8109 = vmatpush1.bf16.msra.mxu0 0
      %8110 = vmatprep.mubr.bf16.mxu0 0
      %8111 = vmatmul.mubr.bf16.gmra.mrb[0].mxu0 %v8073
      %v8112 = vpop.f32.mrb[0].mxu0
      %v8113 = vadd.f32 %v2174, %v8112
      %v8114 = vpop.f32.mrb[0].mxu0
      %v8115 = vpop.f32.mrb[0].mxu0
      %v8116 = vpop.f32.mrb[0].mxu0
      %8117 = vdwg.mxu0
      %v8123 = vunpack.c.l.b16 %v812
      %v8124 = vunpack.c.l.b16 %v813
      %v8125 = vunpack.c.l.b16 %v814
      %v8126 = vunpack.c.l.b16 %v815
      %v8127 = vunpack.c.l.b16 %v816
      %v8128 = vpack.c.b16 %v8124, %v8123
      %v8129 = vpack.c.b16 %v8126, %v8125
      %v8130 = vpack.c.b16 %v8127, %v8127
      %v8134 = vsel %vm2458, %v312, 0
      %v8137 = vsel %vm2462, %v8130, 0
      %8139 = vmatprep.subr.bf16.mxu0 0
      %8140 = vmatpush1.bf16.msra.mxu0 %v8128
      %8141 = vmatprep.subr.bf16.mxu0 0
      %8142 = vmatpush1.bf16.msra.mxu0 %v8129
      %8143 = vmatprep.subr.bf16.mxu0 0
      %8144 = vmatpush1.bf16.msra.mxu0 %v8137
      %8145 = vmatprep.subr.bf16.mxu0 0
      %8146 = vmatpush1.bf16.msra.mxu0 0
      %8147 = vmatprep.subr.bf16.mxu0 0
      %8148 = vmatpush1.bf16.msra.mxu0 0
      %8149 = vmatprep.subr.bf16.mxu0 0
      %8150 = vmatpush1.bf16.msra.mxu0 0
      %8151 = vmatprep.subr.bf16.mxu0 0
      %8152 = vmatpush1.bf16.msra.mxu0 0
      %8153 = vmatprep.subr.bf16.mxu0 0
      %8154 = vmatpush1.bf16.msra.mxu0 0
      %8155 = vmatprep.subr.bf16.mxu0 0
      %8156 = vmatpush1.bf16.msra.mxu0 0
      %8157 = vmatprep.subr.bf16.mxu0 0
      %8158 = vmatpush1.bf16.msra.mxu0 0
      %8159 = vmatprep.subr.bf16.mxu0 0
      %8160 = vmatpush1.bf16.msra.mxu0 0
      %8161 = vmatprep.subr.bf16.mxu0 0
      %8162 = vmatpush1.bf16.msra.mxu0 0
      %8163 = vmatprep.subr.bf16.mxu0 0
      %8164 = vmatpush1.bf16.msra.mxu0 0
      %8165 = vmatprep.subr.bf16.mxu0 0
      %8166 = vmatpush1.bf16.msra.mxu0 0
      %8167 = vmatprep.subr.bf16.mxu0 0
      %8168 = vmatpush1.bf16.msra.mxu0 0
      %8169 = vmatprep.subr.bf16.mxu0 0
      %8170 = vmatpush1.bf16.msra.mxu0 0
      %8171 = vmatprep.mubr.bf16.mxu0 0
      %8172 = vmatmul.mubr.bf16.gmra.mrb[0].mxu0 %v8134
      %v8173 = vpop.f32.mrb[0].mxu0
      %v8174 = vadd.f32 %v2178, %v8173
      %v8175 = vpop.f32.mrb[0].mxu0
      %v8176 = vpop.f32.mrb[0].mxu0
      %v8177 = vpop.f32.mrb[0].mxu0
      %8178 = vdwg.mxu0
      %v8184 = vunpack.c.l.b16 %v817
      %v8185 = vunpack.c.l.b16 %v818
      %v8186 = vunpack.c.l.b16 %v819
      %v8187 = vunpack.c.l.b16 %v820
      %v8188 = vunpack.c.l.b16 %v821
      %v8189 = vpack.c.b16 %v8185, %v8184
      %v8190 = vpack.c.b16 %v8187, %v8186
      %v8191 = vpack.c.b16 %v8188, %v8188
      %v8195 = vsel %vm2458, %v313, 0
      %v8198 = vsel %vm2462, %v8191, 0
      %8200 = vmatprep.subr.bf16.mxu0 0
      %8201 = vmatpush1.bf16.msra.mxu0 %v8189
      %8202 = vmatprep.subr.bf16.mxu0 0
      %8203 = vmatpush1.bf16.msra.mxu0 %v8190
      %8204 = vmatprep.subr.bf16.mxu0 0
      %8205 = vmatpush1.bf16.msra.mxu0 %v8198
      %8206 = vmatprep.subr.bf16.mxu0 0
      %8207 = vmatpush1.bf16.msra.mxu0 0
      %8208 = vmatprep.subr.bf16.mxu0 0
      %8209 = vmatpush1.bf16.msra.mxu0 0
      %8210 = vmatprep.subr.bf16.mxu0 0
      %8211 = vmatpush1.bf16.msra.mxu0 0
      %8212 = vmatprep.subr.bf16.mxu0 0
      %8213 = vmatpush1.bf16.msra.mxu0 0
      %8214 = vmatprep.subr.bf16.mxu0 0
      %8215 = vmatpush1.bf16.msra.mxu0 0
      %8216 = vmatprep.subr.bf16.mxu0 0
      %8217 = vmatpush1.bf16.msra.mxu0 0
      %8218 = vmatprep.subr.bf16.mxu0 0
      %8219 = vmatpush1.bf16.msra.mxu0 0
      %8220 = vmatprep.subr.bf16.mxu0 0
      %8221 = vmatpush1.bf16.msra.mxu0 0
      %8222 = vmatprep.subr.bf16.mxu0 0
      %8223 = vmatpush1.bf16.msra.mxu0 0
      %8224 = vmatprep.subr.bf16.mxu0 0
      %8225 = vmatpush1.bf16.msra.mxu0 0
      %8226 = vmatprep.subr.bf16.mxu0 0
      %8227 = vmatpush1.bf16.msra.mxu0 0
      %8228 = vmatprep.subr.bf16.mxu0 0
      %8229 = vmatpush1.bf16.msra.mxu0 0
      %8230 = vmatprep.subr.bf16.mxu0 0
      %8231 = vmatpush1.bf16.msra.mxu0 0
      %8232 = vmatprep.mubr.bf16.mxu0 0
      %8233 = vmatmul.mubr.bf16.gmra.mrb[0].mxu0 %v8195
      %v8234 = vpop.f32.mrb[0].mxu0
      %v8235 = vadd.f32 %v2182, %v8234
      %v8236 = vpop.f32.mrb[0].mxu0
      %v8237 = vpop.f32.mrb[0].mxu0
      %v8238 = vpop.f32.mrb[0].mxu0
      %8239 = vdwg.mxu0
      %v8245 = vunpack.c.l.b16 %v822
      %v8246 = vunpack.c.l.b16 %v823
      %v8247 = vunpack.c.l.b16 %v824
      %v8248 = vunpack.c.l.b16 %v825
      %v8249 = vunpack.c.l.b16 %v826
      %v8250 = vpack.c.b16 %v8246, %v8245
      %v8251 = vpack.c.b16 %v8248, %v8247
      %v8252 = vpack.c.b16 %v8249, %v8249
      %v8256 = vsel %vm2458, %v314, 0
      %v8259 = vsel %vm2462, %v8252, 0
      %8261 = vmatprep.subr.bf16.mxu0 0
      %8262 = vmatpush1.bf16.msra.mxu0 %v8250
      %8263 = vmatprep.subr.bf16.mxu0 0
      %8264 = vmatpush1.bf16.msra.mxu0 %v8251
      %8265 = vmatprep.subr.bf16.mxu0 0
      %8266 = vmatpush1.bf16.msra.mxu0 %v8259
      %8267 = vmatprep.subr.bf16.mxu0 0
      %8268 = vmatpush1.bf16.msra.mxu0 0
      %8269 = vmatprep.subr.bf16.mxu0 0
      %8270 = vmatpush1.bf16.msra.mxu0 0
      %8271 = vmatprep.subr.bf16.mxu0 0
      %8272 = vmatpush1.bf16.msra.mxu0 0
      %8273 = vmatprep.subr.bf16.mxu0 0
      %8274 = vmatpush1.bf16.msra.mxu0 0
      %8275 = vmatprep.subr.bf16.mxu0 0
      %8276 = vmatpush1.bf16.msra.mxu0 0
      %8277 = vmatprep.subr.bf16.mxu0 0
      %8278 = vmatpush1.bf16.msra.mxu0 0
      %8279 = vmatprep.subr.bf16.mxu0 0
      %8280 = vmatpush1.bf16.msra.mxu0 0
      %8281 = vmatprep.subr.bf16.mxu0 0
      %8282 = vmatpush1.bf16.msra.mxu0 0
      %8283 = vmatprep.subr.bf16.mxu0 0
      %8284 = vmatpush1.bf16.msra.mxu0 0
      %8285 = vmatprep.subr.bf16.mxu0 0
      %8286 = vmatpush1.bf16.msra.mxu0 0
      %8287 = vmatprep.subr.bf16.mxu0 0
      %8288 = vmatpush1.bf16.msra.mxu0 0
      %8289 = vmatprep.subr.bf16.mxu0 0
      %8290 = vmatpush1.bf16.msra.mxu0 0
      %8291 = vmatprep.subr.bf16.mxu0 0
      %8292 = vmatpush1.bf16.msra.mxu0 0
      %8293 = vmatprep.mubr.bf16.mxu0 0
      %8294 = vmatmul.mubr.bf16.gmra.mrb[0].mxu0 %v8256
      %v8295 = vpop.f32.mrb[0].mxu0
      %v8296 = vadd.f32 %v2186, %v8295
      %v8297 = vpop.f32.mrb[0].mxu0
      %v8298 = vpop.f32.mrb[0].mxu0
      %v8299 = vpop.f32.mrb[0].mxu0
      %8300 = vdwg.mxu0
      %v8306 = vunpack.c.l.b16 %v827
      %v8307 = vunpack.c.l.b16 %v828
      %v8308 = vunpack.c.l.b16 %v829
      %v8309 = vunpack.c.l.b16 %v830
      %v8310 = vunpack.c.l.b16 %v831
      %v8311 = vpack.c.b16 %v8307, %v8306
      %v8312 = vpack.c.b16 %v8309, %v8308
      %v8313 = vpack.c.b16 %v8310, %v8310
      %v8317 = vsel %vm2458, %v315, 0
      %v8320 = vsel %vm2462, %v8313, 0
      %8322 = vmatprep.subr.bf16.mxu0 0
      %8323 = vmatpush1.bf16.msra.mxu0 %v8311
      %8324 = vmatprep.subr.bf16.mxu0 0
      %8325 = vmatpush1.bf16.msra.mxu0 %v8312
      %8326 = vmatprep.subr.bf16.mxu0 0
      %8327 = vmatpush1.bf16.msra.mxu0 %v8320
      %8328 = vmatprep.subr.bf16.mxu0 0
      %8329 = vmatpush1.bf16.msra.mxu0 0
      %8330 = vmatprep.subr.bf16.mxu0 0
      %8331 = vmatpush1.bf16.msra.mxu0 0
      %8332 = vmatprep.subr.bf16.mxu0 0
      %8333 = vmatpush1.bf16.msra.mxu0 0
      %8334 = vmatprep.subr.bf16.mxu0 0
      %8335 = vmatpush1.bf16.msra.mxu0 0
      %8336 = vmatprep.subr.bf16.mxu0 0
      %8337 = vmatpush1.bf16.msra.mxu0 0
      %8338 = vmatprep.subr.bf16.mxu0 0
      %8339 = vmatpush1.bf16.msra.mxu0 0
      %8340 = vmatprep.subr.bf16.mxu0 0
      %8341 = vmatpush1.bf16.msra.mxu0 0
      %8342 = vmatprep.subr.bf16.mxu0 0
      %8343 = vmatpush1.bf16.msra.mxu0 0
      %8344 = vmatprep.subr.bf16.mxu0 0
      %8345 = vmatpush1.bf16.msra.mxu0 0
      %8346 = vmatprep.subr.bf16.mxu0 0
      %8347 = vmatpush1.bf16.msra.mxu0 0
      %8348 = vmatprep.subr.bf16.mxu0 0
      %8349 = vmatpush1.bf16.msra.mxu0 0
      %8350 = vmatprep.subr.bf16.mxu0 0
      %8351 = vmatpush1.bf16.msra.mxu0 0
      %8352 = vmatprep.subr.bf16.mxu0 0
      %8353 = vmatpush1.bf16.msra.mxu0 0
      %8354 = vmatprep.mubr.bf16.mxu0 0
      %8355 = vmatmul.mubr.bf16.gmra.mrb[0].mxu0 %v8317
      %v8356 = vpop.f32.mrb[0].mxu0
      %v8357 = vadd.f32 %v2190, %v8356
      %v8358 = vpop.f32.mrb[0].mxu0
      %v8359 = vpop.f32.mrb[0].mxu0
      %v8360 = vpop.f32.mrb[0].mxu0
      %8361 = vdwg.mxu0
      %v8367 = vunpack.c.l.b16 %v832
      %v8368 = vunpack.c.l.b16 %v833
      %v8369 = vunpack.c.l.b16 %v834
      %v8370 = vunpack.c.l.b16 %v835
      %v8371 = vunpack.c.l.b16 %v836
      %v8372 = vpack.c.b16 %v8368, %v8367
      %v8373 = vpack.c.b16 %v8370, %v8369
      %v8374 = vpack.c.b16 %v8371, %v8371
      %v8378 = vsel %vm2458, %v316, 0
      %v8381 = vsel %vm2462, %v8374, 0
      %8383 = vmatprep.subr.bf16.mxu0 0
      %8384 = vmatpush1.bf16.msra.mxu0 %v8372
      %8385 = vmatprep.subr.bf16.mxu0 0
      %8386 = vmatpush1.bf16.msra.mxu0 %v8373
      %8387 = vmatprep.subr.bf16.mxu0 0
      %8388 = vmatpush1.bf16.msra.mxu0 %v8381
      %8389 = vmatprep.subr.bf16.mxu0 0
      %8390 = vmatpush1.bf16.msra.mxu0 0
      %8391 = vmatprep.subr.bf16.mxu0 0
      %8392 = vmatpush1.bf16.msra.mxu0 0
      %8393 = vmatprep.subr.bf16.mxu0 0
      %8394 = vmatpush1.bf16.msra.mxu0 0
      %8395 = vmatprep.subr.bf16.mxu0 0
      %8396 = vmatpush1.bf16.msra.mxu0 0
      %8397 = vmatprep.subr.bf16.mxu0 0
      %8398 = vmatpush1.bf16.msra.mxu0 0
      %8399 = vmatprep.subr.bf16.mxu0 0
      %8400 = vmatpush1.bf16.msra.mxu0 0
      %8401 = vmatprep.subr.bf16.mxu0 0
      %8402 = vmatpush1.bf16.msra.mxu0 0
      %8403 = vmatprep.subr.bf16.mxu0 0
      %8404 = vmatpush1.bf16.msra.mxu0 0
      %8405 = vmatprep.subr.bf16.mxu0 0
      %8406 = vmatpush1.bf16.msra.mxu0 0
      %8407 = vmatprep.subr.bf16.mxu0 0
      %8408 = vmatpush1.bf16.msra.mxu0 0
      %8409 = vmatprep.subr.bf16.mxu0 0
      %8410 = vmatpush1.bf16.msra.mxu0 0
      %8411 = vmatprep.subr.bf16.mxu0 0
      %8412 = vmatpush1.bf16.msra.mxu0 0
      %8413 = vmatprep.subr.bf16.mxu0 0
      %8414 = vmatpush1.bf16.msra.mxu0 0
      %8415 = vmatprep.mubr.bf16.mxu0 0
      %8416 = vmatmul.mubr.bf16.gmra.mrb[0].mxu0 %v8378
      %v8417 = vpop.f32.mrb[0].mxu0
      %v8418 = vadd.f32 %v2194, %v8417
      %v8419 = vpop.f32.mrb[0].mxu0
      %v8420 = vpop.f32.mrb[0].mxu0
      %v8421 = vpop.f32.mrb[0].mxu0
      %8422 = vdwg.mxu0
      %v8428 = vunpack.c.l.b16 %v837
      %v8429 = vunpack.c.l.b16 %v838
      %v8430 = vunpack.c.l.b16 %v839
      %v8431 = vunpack.c.l.b16 %v840
      %v8432 = vunpack.c.l.b16 %v841
      %v8433 = vpack.c.b16 %v8429, %v8428
      %v8434 = vpack.c.b16 %v8431, %v8430
      %v8435 = vpack.c.b16 %v8432, %v8432
      %v8439 = vsel %vm2458, %v317, 0
      %v8442 = vsel %vm2462, %v8435, 0
      %8444 = vmatprep.subr.bf16.mxu0 0
      %8445 = vmatpush1.bf16.msra.mxu0 %v8433
      %8446 = vmatprep.subr.bf16.mxu0 0
      %8447 = vmatpush1.bf16.msra.mxu0 %v8434
      %8448 = vmatprep.subr.bf16.mxu0 0
      %8449 = vmatpush1.bf16.msra.mxu0 %v8442
      %8450 = vmatprep.subr.bf16.mxu0 0
      %8451 = vmatpush1.bf16.msra.mxu0 0
      %8452 = vmatprep.subr.bf16.mxu0 0
      %8453 = vmatpush1.bf16.msra.mxu0 0
      %8454 = vmatprep.subr.bf16.mxu0 0
      %8455 = vmatpush1.bf16.msra.mxu0 0
      %8456 = vmatprep.subr.bf16.mxu0 0
      %8457 = vmatpush1.bf16.msra.mxu0 0
      %8458 = vmatprep.subr.bf16.mxu0 0
      %8459 = vmatpush1.bf16.msra.mxu0 0
      %8460 = vmatprep.subr.bf16.mxu0 0
      %8461 = vmatpush1.bf16.msra.mxu0 0
      %8462 = vmatprep.subr.bf16.mxu0 0
      %8463 = vmatpush1.bf16.msra.mxu0 0
      %8464 = vmatprep.subr.bf16.mxu0 0
      %8465 = vmatpush1.bf16.msra.mxu0 0
      %8466 = vmatprep.subr.bf16.mxu0 0
      %8467 = vmatpush1.bf16.msra.mxu0 0
      %8468 = vmatprep.subr.bf16.mxu0 0
      %8469 = vmatpush1.bf16.msra.mxu0 0
      %8470 = vmatprep.subr.bf16.mxu0 0
      %8471 = vmatpush1.bf16.msra.mxu0 0
      %8472 = vmatprep.subr.bf16.mxu0 0
      %8473 = vmatpush1.bf16.msra.mxu0 0
      %8474 = vmatprep.subr.bf16.mxu0 0
      %8475 = vmatpush1.bf16.msra.mxu0 0
      %8476 = vmatprep.mubr.bf16.mxu0 0
      %8477 = vmatmul.mubr.bf16.gmra.mrb[0].mxu0 %v8439
      %v8478 = vpop.f32.mrb[0].mxu0
      %v8479 = vadd.f32 %v2198, %v8478
      %v8480 = vpop.f32.mrb[0].mxu0
      %v8481 = vpop.f32.mrb[0].mxu0
      %v8482 = vpop.f32.mrb[0].mxu0
      %8483 = vdwg.mxu0
      %v8489 = vunpack.c.l.b16 %v842
      %v8490 = vunpack.c.l.b16 %v843
      %v8491 = vunpack.c.l.b16 %v844
      %v8492 = vunpack.c.l.b16 %v845
      %v8493 = vunpack.c.l.b16 %v846
      %v8494 = vpack.c.b16 %v8490, %v8489
      %v8495 = vpack.c.b16 %v8492, %v8491
      %v8496 = vpack.c.b16 %v8493, %v8493
      %v8500 = vsel %vm2458, %v318, 0
      %v8503 = vsel %vm2462, %v8496, 0
      %8505 = vmatprep.subr.bf16.mxu0 0
      %8506 = vmatpush1.bf16.msra.mxu0 %v8494
      %8507 = vmatprep.subr.bf16.mxu0 0
      %8508 = vmatpush1.bf16.msra.mxu0 %v8495
      %8509 = vmatprep.subr.bf16.mxu0 0
      %8510 = vmatpush1.bf16.msra.mxu0 %v8503
      %8511 = vmatprep.subr.bf16.mxu0 0
      %8512 = vmatpush1.bf16.msra.mxu0 0
      %8513 = vmatprep.subr.bf16.mxu0 0
      %8514 = vmatpush1.bf16.msra.mxu0 0
      %8515 = vmatprep.subr.bf16.mxu0 0
      %8516 = vmatpush1.bf16.msra.mxu0 0
      %8517 = vmatprep.subr.bf16.mxu0 0
      %8518 = vmatpush1.bf16.msra.mxu0 0
      %8519 = vmatprep.subr.bf16.mxu0 0
      %8520 = vmatpush1.bf16.msra.mxu0 0
      %8521 = vmatprep.subr.bf16.mxu0 0
      %8522 = vmatpush1.bf16.msra.mxu0 0
      %8523 = vmatprep.subr.bf16.mxu0 0
      %8524 = vmatpush1.bf16.msra.mxu0 0
      %8525 = vmatprep.subr.bf16.mxu0 0
      %8526 = vmatpush1.bf16.msra.mxu0 0
      %8527 = vmatprep.subr.bf16.mxu0 0
      %8528 = vmatpush1.bf16.msra.mxu0 0
      %8529 = vmatprep.subr.bf16.mxu0 0
      %8530 = vmatpush1.bf16.msra.mxu0 0
      %8531 = vmatprep.subr.bf16.mxu0 0
      %8532 = vmatpush1.bf16.msra.mxu0 0
      %8533 = vmatprep.subr.bf16.mxu0 0
      %8534 = vmatpush1.bf16.msra.mxu0 0
      %8535 = vmatprep.subr.bf16.mxu0 0
      %8536 = vmatpush1.bf16.msra.mxu0 0
      %8537 = vmatprep.mubr.bf16.mxu0 0
      %8538 = vmatmul.mubr.bf16.gmra.mrb[0].mxu0 %v8500
      %v8539 = vpop.f32.mrb[0].mxu0
      %v8540 = vadd.f32 %v2202, %v8539
      %v8541 = vpop.f32.mrb[0].mxu0
      %v8542 = vpop.f32.mrb[0].mxu0
      %v8543 = vpop.f32.mrb[0].mxu0
      %8544 = vdwg.mxu0
      %v8550 = vunpack.c.l.b16 %v847
      %v8551 = vunpack.c.l.b16 %v848
      %v8552 = vunpack.c.l.b16 %v849
      %v8553 = vunpack.c.l.b16 %v850
      %v8554 = vunpack.c.l.b16 %v851
      %v8555 = vpack.c.b16 %v8551, %v8550
      %v8556 = vpack.c.b16 %v8553, %v8552
      %v8557 = vpack.c.b16 %v8554, %v8554
      %v8561 = vsel %vm2458, %v319, 0
      %v8564 = vsel %vm2462, %v8557, 0
      %8566 = vmatprep.subr.bf16.mxu0 0
      %8567 = vmatpush1.bf16.msra.mxu0 %v8555
      %8568 = vmatprep.subr.bf16.mxu0 0
      %8569 = vmatpush1.bf16.msra.mxu0 %v8556
      %8570 = vmatprep.subr.bf16.mxu0 0
      %8571 = vmatpush1.bf16.msra.mxu0 %v8564
      %8572 = vmatprep.subr.bf16.mxu0 0
      %8573 = vmatpush1.bf16.msra.mxu0 0
      %8574 = vmatprep.subr.bf16.mxu0 0
      %8575 = vmatpush1.bf16.msra.mxu0 0
      %8576 = vmatprep.subr.bf16.mxu0 0
      %8577 = vmatpush1.bf16.msra.mxu0 0
      %8578 = vmatprep.subr.bf16.mxu0 0
      %8579 = vmatpush1.bf16.msra.mxu0 0
      %8580 = vmatprep.subr.bf16.mxu0 0
      %8581 = vmatpush1.bf16.msra.mxu0 0
      %8582 = vmatprep.subr.bf16.mxu0 0
      %8583 = vmatpush1.bf16.msra.mxu0 0
      %8584 = vmatprep.subr.bf16.mxu0 0
      %8585 = vmatpush1.bf16.msra.mxu0 0
      %8586 = vmatprep.subr.bf16.mxu0 0
      %8587 = vmatpush1.bf16.msra.mxu0 0
      %8588 = vmatprep.subr.bf16.mxu0 0
      %8589 = vmatpush1.bf16.msra.mxu0 0
      %8590 = vmatprep.subr.bf16.mxu0 0
      %8591 = vmatpush1.bf16.msra.mxu0 0
      %8592 = vmatprep.subr.bf16.mxu0 0
      %8593 = vmatpush1.bf16.msra.mxu0 0
      %8594 = vmatprep.subr.bf16.mxu0 0
      %8595 = vmatpush1.bf16.msra.mxu0 0
      %8596 = vmatprep.subr.bf16.mxu0 0
      %8597 = vmatpush1.bf16.msra.mxu0 0
      %8598 = vmatprep.mubr.bf16.mxu0 0
      %8599 = vmatmul.mubr.bf16.gmra.mrb[0].mxu0 %v8561
      %v8600 = vpop.f32.mrb[0].mxu0
      %v8601 = vadd.f32 %v2206, %v8600
      %v8602 = vpop.f32.mrb[0].mxu0
      %v8603 = vpop.f32.mrb[0].mxu0
      %v8604 = vpop.f32.mrb[0].mxu0
      %8605 = vdwg.mxu0
      %v8611 = vunpack.c.l.b16 %v852
      %v8612 = vunpack.c.l.b16 %v853
      %v8613 = vunpack.c.l.b16 %v854
      %v8614 = vunpack.c.l.b16 %v855
      %v8615 = vunpack.c.l.b16 %v856
      %v8616 = vpack.c.b16 %v8612, %v8611
      %v8617 = vpack.c.b16 %v8614, %v8613
      %v8618 = vpack.c.b16 %v8615, %v8615
      %v8622 = vsel %vm2458, %v320, 0
      %v8625 = vsel %vm2462, %v8618, 0
      %8627 = vmatprep.subr.bf16.mxu0 0
      %8628 = vmatpush1.bf16.msra.mxu0 %v8616
      %8629 = vmatprep.subr.bf16.mxu0 0
      %8630 = vmatpush1.bf16.msra.mxu0 %v8617
      %8631 = vmatprep.subr.bf16.mxu0 0
      %8632 = vmatpush1.bf16.msra.mxu0 %v8625
      %8633 = vmatprep.subr.bf16.mxu0 0
      %8634 = vmatpush1.bf16.msra.mxu0 0
      %8635 = vmatprep.subr.bf16.mxu0 0
      %8636 = vmatpush1.bf16.msra.mxu0 0
      %8637 = vmatprep.subr.bf16.mxu0 0
      %8638 = vmatpush1.bf16.msra.mxu0 0
      %8639 = vmatprep.subr.bf16.mxu0 0
      %8640 = vmatpush1.bf16.msra.mxu0 0
      %8641 = vmatprep.subr.bf16.mxu0 0
      %8642 = vmatpush1.bf16.msra.mxu0 0
      %8643 = vmatprep.subr.bf16.mxu0 0
      %8644 = vmatpush1.bf16.msra.mxu0 0
      %8645 = vmatprep.subr.bf16.mxu0 0
      %8646 = vmatpush1.bf16.msra.mxu0 0
      %8647 = vmatprep.subr.bf16.mxu0 0
      %8648 = vmatpush1.bf16.msra.mxu0 0
      %8649 = vmatprep.subr.bf16.mxu0 0
      %8650 = vmatpush1.bf16.msra.mxu0 0
      %8651 = vmatprep.subr.bf16.mxu0 0
      %8652 = vmatpush1.bf16.msra.mxu0 0
      %8653 = vmatprep.subr.bf16.mxu0 0
      %8654 = vmatpush1.bf16.msra.mxu0 0
      %8655 = vmatprep.subr.bf16.mxu0 0
      %8656 = vmatpush1.bf16.msra.mxu0 0
      %8657 = vmatprep.subr.bf16.mxu0 0
      %8658 = vmatpush1.bf16.msra.mxu0 0
      %8659 = vmatprep.mubr.bf16.mxu0 0
      %8660 = vmatmul.mubr.bf16.gmra.mrb[0].mxu0 %v8622
      %v8661 = vpop.f32.mrb[0].mxu0
      %v8662 = vadd.f32 %v2210, %v8661
      %v8663 = vpop.f32.mrb[0].mxu0
      %v8664 = vpop.f32.mrb[0].mxu0
      %v8665 = vpop.f32.mrb[0].mxu0
      %8666 = vdwg.mxu0
      %v8672 = vunpack.c.l.b16 %v857
      %v8673 = vunpack.c.l.b16 %v858
      %v8674 = vunpack.c.l.b16 %v859
      %v8675 = vunpack.c.l.b16 %v860
      %v8676 = vunpack.c.l.b16 %v861
      %v8677 = vpack.c.b16 %v8673, %v8672
      %v8678 = vpack.c.b16 %v8675, %v8674
      %v8679 = vpack.c.b16 %v8676, %v8676
      %v8683 = vsel %vm2458, %v321, 0
      %v8686 = vsel %vm2462, %v8679, 0
      %8688 = vmatprep.subr.bf16.mxu0 0
      %8689 = vmatpush1.bf16.msra.mxu0 %v8677
      %8690 = vmatprep.subr.bf16.mxu0 0
      %8691 = vmatpush1.bf16.msra.mxu0 %v8678
      %8692 = vmatprep.subr.bf16.mxu0 0
      %8693 = vmatpush1.bf16.msra.mxu0 %v8686
      %8694 = vmatprep.subr.bf16.mxu0 0
      %8695 = vmatpush1.bf16.msra.mxu0 0
      %8696 = vmatprep.subr.bf16.mxu0 0
      %8697 = vmatpush1.bf16.msra.mxu0 0
      %8698 = vmatprep.subr.bf16.mxu0 0
      %8699 = vmatpush1.bf16.msra.mxu0 0
      %8700 = vmatprep.subr.bf16.mxu0 0
      %8701 = vmatpush1.bf16.msra.mxu0 0
      %8702 = vmatprep.subr.bf16.mxu0 0
      %8703 = vmatpush1.bf16.msra.mxu0 0
      %8704 = vmatprep.subr.bf16.mxu0 0
      %8705 = vmatpush1.bf16.msra.mxu0 0
      %8706 = vmatprep.subr.bf16.mxu0 0
      %8707 = vmatpush1.bf16.msra.mxu0 0
      %8708 = vmatprep.subr.bf16.mxu0 0
      %8709 = vmatpush1.bf16.msra.mxu0 0
      %8710 = vmatprep.subr.bf16.mxu0 0
      %8711 = vmatpush1.bf16.msra.mxu0 0
      %8712 = vmatprep.subr.bf16.mxu0 0
      %8713 = vmatpush1.bf16.msra.mxu0 0
      %8714 = vmatprep.subr.bf16.mxu0 0
      %8715 = vmatpush1.bf16.msra.mxu0 0
      %8716 = vmatprep.subr.bf16.mxu0 0
      %8717 = vmatpush1.bf16.msra.mxu0 0
      %8718 = vmatprep.subr.bf16.mxu0 0
      %8719 = vmatpush1.bf16.msra.mxu0 0
      %8720 = vmatprep.mubr.bf16.mxu0 0
      %8721 = vmatmul.mubr.bf16.gmra.mrb[0].mxu0 %v8683
      %v8722 = vpop.f32.mrb[0].mxu0
      %v8723 = vadd.f32 %v2214, %v8722
      %v8724 = vpop.f32.mrb[0].mxu0
      %v8725 = vpop.f32.mrb[0].mxu0
      %v8726 = vpop.f32.mrb[0].mxu0
      %8727 = vdwg.mxu0
      %v8733 = vunpack.c.l.b16 %v862
      %v8734 = vunpack.c.l.b16 %v863
      %v8735 = vunpack.c.l.b16 %v864
      %v8736 = vunpack.c.l.b16 %v865
      %v8737 = vunpack.c.l.b16 %v866
      %v8738 = vpack.c.b16 %v8734, %v8733
      %v8739 = vpack.c.b16 %v8736, %v8735
      %v8740 = vpack.c.b16 %v8737, %v8737
      %v8744 = vsel %vm2458, %v322, 0
      %v8747 = vsel %vm2462, %v8740, 0
      %8749 = vmatprep.subr.bf16.mxu0 0
      %8750 = vmatpush1.bf16.msra.mxu0 %v8738
      %8751 = vmatprep.subr.bf16.mxu0 0
      %8752 = vmatpush1.bf16.msra.mxu0 %v8739
      %8753 = vmatprep.subr.bf16.mxu0 0
      %8754 = vmatpush1.bf16.msra.mxu0 %v8747
      %8755 = vmatprep.subr.bf16.mxu0 0
      %8756 = vmatpush1.bf16.msra.mxu0 0
      %8757 = vmatprep.subr.bf16.mxu0 0
      %8758 = vmatpush1.bf16.msra.mxu0 0
      %8759 = vmatprep.subr.bf16.mxu0 0
      %8760 = vmatpush1.bf16.msra.mxu0 0
      %8761 = vmatprep.subr.bf16.mxu0 0
      %8762 = vmatpush1.bf16.msra.mxu0 0
      %8763 = vmatprep.subr.bf16.mxu0 0
      %8764 = vmatpush1.bf16.msra.mxu0 0
      %8765 = vmatprep.subr.bf16.mxu0 0
      %8766 = vmatpush1.bf16.msra.mxu0 0
      %8767 = vmatprep.subr.bf16.mxu0 0
      %8768 = vmatpush1.bf16.msra.mxu0 0
      %8769 = vmatprep.subr.bf16.mxu0 0
      %8770 = vmatpush1.bf16.msra.mxu0 0
      %8771 = vmatprep.subr.bf16.mxu0 0
      %8772 = vmatpush1.bf16.msra.mxu0 0
      %8773 = vmatprep.subr.bf16.mxu0 0
      %8774 = vmatpush1.bf16.msra.mxu0 0
      %8775 = vmatprep.subr.bf16.mxu0 0
      %8776 = vmatpush1.bf16.msra.mxu0 0
      %8777 = vmatprep.subr.bf16.mxu0 0
      %8778 = vmatpush1.bf16.msra.mxu0 0
      %8779 = vmatprep.subr.bf16.mxu0 0
      %8780 = vmatpush1.bf16.msra.mxu0 0
      %8781 = vmatprep.mubr.bf16.mxu0 0
      %8782 = vmatmul.mubr.bf16.gmra.mrb[0].mxu0 %v8744
      %v8783 = vpop.f32.mrb[0].mxu0
      %v8784 = vadd.f32 %v2218, %v8783
      %v8785 = vpop.f32.mrb[0].mxu0
      %v8786 = vpop.f32.mrb[0].mxu0
      %v8787 = vpop.f32.mrb[0].mxu0
      %8788 = vdwg.mxu0
      %v8794 = vunpack.c.l.b16 %v867
      %v8795 = vunpack.c.l.b16 %v868
      %v8796 = vunpack.c.l.b16 %v869
      %v8797 = vunpack.c.l.b16 %v870
      %v8798 = vunpack.c.l.b16 %v871
      %v8799 = vpack.c.b16 %v8795, %v8794
      %v8800 = vpack.c.b16 %v8797, %v8796
      %v8801 = vpack.c.b16 %v8798, %v8798
      %v8805 = vsel %vm2458, %v323, 0
      %v8808 = vsel %vm2462, %v8801, 0
      %8810 = vmatprep.subr.bf16.mxu0 0
      %8811 = vmatpush1.bf16.msra.mxu0 %v8799
      %8812 = vmatprep.subr.bf16.mxu0 0
      %8813 = vmatpush1.bf16.msra.mxu0 %v8800
      %8814 = vmatprep.subr.bf16.mxu0 0
      %8815 = vmatpush1.bf16.msra.mxu0 %v8808
      %8816 = vmatprep.subr.bf16.mxu0 0
      %8817 = vmatpush1.bf16.msra.mxu0 0
      %8818 = vmatprep.subr.bf16.mxu0 0
      %8819 = vmatpush1.bf16.msra.mxu0 0
      %8820 = vmatprep.subr.bf16.mxu0 0
      %8821 = vmatpush1.bf16.msra.mxu0 0
      %8822 = vmatprep.subr.bf16.mxu0 0
      %8823 = vmatpush1.bf16.msra.mxu0 0
      %8824 = vmatprep.subr.bf16.mxu0 0
      %8825 = vmatpush1.bf16.msra.mxu0 0
      %8826 = vmatprep.subr.bf16.mxu0 0
      %8827 = vmatpush1.bf16.msra.mxu0 0
      %8828 = vmatprep.subr.bf16.mxu0 0
      %8829 = vmatpush1.bf16.msra.mxu0 0
      %8830 = vmatprep.subr.bf16.mxu0 0
      %8831 = vmatpush1.bf16.msra.mxu0 0
      %8832 = vmatprep.subr.bf16.mxu0 0
      %8833 = vmatpush1.bf16.msra.mxu0 0
      %8834 = vmatprep.subr.bf16.mxu0 0
      %8835 = vmatpush1.bf16.msra.mxu0 0
      %8836 = vmatprep.subr.bf16.mxu0 0
      %8837 = vmatpush1.bf16.msra.mxu0 0
      %8838 = vmatprep.subr.bf16.mxu0 0
      %8839 = vmatpush1.bf16.msra.mxu0 0
      %8840 = vmatprep.subr.bf16.mxu0 0
      %8841 = vmatpush1.bf16.msra.mxu0 0
      %8842 = vmatprep.mubr.bf16.mxu0 0
      %8843 = vmatmul.mubr.bf16.gmra.mrb[0].mxu0 %v8805
      %v8844 = vpop.f32.mrb[0].mxu0
      %v8845 = vadd.f32 %v2222, %v8844
      %v8846 = vpop.f32.mrb[0].mxu0
      %v8847 = vpop.f32.mrb[0].mxu0
      %v8848 = vpop.f32.mrb[0].mxu0
      %8849 = vdwg.mxu0
      %v8855 = vunpack.c.l.b16 %v872
      %v8856 = vunpack.c.l.b16 %v873
      %v8857 = vunpack.c.l.b16 %v874
      %v8858 = vunpack.c.l.b16 %v875
      %v8859 = vunpack.c.l.b16 %v876
      %v8860 = vpack.c.b16 %v8856, %v8855
      %v8861 = vpack.c.b16 %v8858, %v8857
      %v8862 = vpack.c.b16 %v8859, %v8859
      %v8866 = vsel %vm2458, %v324, 0
      %v8869 = vsel %vm2462, %v8862, 0
      %8871 = vmatprep.subr.bf16.mxu0 0
      %8872 = vmatpush1.bf16.msra.mxu0 %v8860
      %8873 = vmatprep.subr.bf16.mxu0 0
      %8874 = vmatpush1.bf16.msra.mxu0 %v8861
      %8875 = vmatprep.subr.bf16.mxu0 0
      %8876 = vmatpush1.bf16.msra.mxu0 %v8869
      %8877 = vmatprep.subr.bf16.mxu0 0
      %8878 = vmatpush1.bf16.msra.mxu0 0
      %8879 = vmatprep.subr.bf16.mxu0 0
      %8880 = vmatpush1.bf16.msra.mxu0 0
      %8881 = vmatprep.subr.bf16.mxu0 0
      %8882 = vmatpush1.bf16.msra.mxu0 0
      %8883 = vmatprep.subr.bf16.mxu0 0
      %8884 = vmatpush1.bf16.msra.mxu0 0
      %8885 = vmatprep.subr.bf16.mxu0 0
      %8886 = vmatpush1.bf16.msra.mxu0 0
      %8887 = vmatprep.subr.bf16.mxu0 0
      %8888 = vmatpush1.bf16.msra.mxu0 0
      %8889 = vmatprep.subr.bf16.mxu0 0
      %8890 = vmatpush1.bf16.msra.mxu0 0
      %8891 = vmatprep.subr.bf16.mxu0 0
      %8892 = vmatpush1.bf16.msra.mxu0 0
      %8893 = vmatprep.subr.bf16.mxu0 0
      %8894 = vmatpush1.bf16.msra.mxu0 0
      %8895 = vmatprep.subr.bf16.mxu0 0
      %8896 = vmatpush1.bf16.msra.mxu0 0
      %8897 = vmatprep.subr.bf16.mxu0 0
      %8898 = vmatpush1.bf16.msra.mxu0 0
      %8899 = vmatprep.subr.bf16.mxu0 0
      %8900 = vmatpush1.bf16.msra.mxu0 0
      %8901 = vmatprep.subr.bf16.mxu0 0
      %8902 = vmatpush1.bf16.msra.mxu0 0
      %8903 = vmatprep.mubr.bf16.mxu0 0
      %8904 = vmatmul.mubr.bf16.gmra.mrb[0].mxu0 %v8866
      %v8905 = vpop.f32.mrb[0].mxu0
      %v8906 = vadd.f32 %v2226, %v8905
      %v8907 = vpop.f32.mrb[0].mxu0
      %v8908 = vpop.f32.mrb[0].mxu0
      %v8909 = vpop.f32.mrb[0].mxu0
      %8910 = vdwg.mxu0
      %v8916 = vunpack.c.l.b16 %v877
      %v8917 = vunpack.c.l.b16 %v878
      %v8918 = vunpack.c.l.b16 %v879
      %v8919 = vunpack.c.l.b16 %v880
      %v8920 = vunpack.c.l.b16 %v881
      %v8921 = vpack.c.b16 %v8917, %v8916
      %v8922 = vpack.c.b16 %v8919, %v8918
      %v8923 = vpack.c.b16 %v8920, %v8920
      %v8927 = vsel %vm2458, %v325, 0
      %v8930 = vsel %vm2462, %v8923, 0
      %8932 = vmatprep.subr.bf16.mxu0 0
      %8933 = vmatpush1.bf16.msra.mxu0 %v8921
      %8934 = vmatprep.subr.bf16.mxu0 0
      %8935 = vmatpush1.bf16.msra.mxu0 %v8922
      %8936 = vmatprep.subr.bf16.mxu0 0
      %8937 = vmatpush1.bf16.msra.mxu0 %v8930
      %8938 = vmatprep.subr.bf16.mxu0 0
      %8939 = vmatpush1.bf16.msra.mxu0 0
      %8940 = vmatprep.subr.bf16.mxu0 0
      %8941 = vmatpush1.bf16.msra.mxu0 0
      %8942 = vmatprep.subr.bf16.mxu0 0
      %8943 = vmatpush1.bf16.msra.mxu0 0
      %8944 = vmatprep.subr.bf16.mxu0 0
      %8945 = vmatpush1.bf16.msra.mxu0 0
      %8946 = vmatprep.subr.bf16.mxu0 0
      %8947 = vmatpush1.bf16.msra.mxu0 0
      %8948 = vmatprep.subr.bf16.mxu0 0
      %8949 = vmatpush1.bf16.msra.mxu0 0
      %8950 = vmatprep.subr.bf16.mxu0 0
      %8951 = vmatpush1.bf16.msra.mxu0 0
      %8952 = vmatprep.subr.bf16.mxu0 0
      %8953 = vmatpush1.bf16.msra.mxu0 0
      %8954 = vmatprep.subr.bf16.mxu0 0
      %8955 = vmatpush1.bf16.msra.mxu0 0
      %8956 = vmatprep.subr.bf16.mxu0 0
      %8957 = vmatpush1.bf16.msra.mxu0 0
      %8958 = vmatprep.subr.bf16.mxu0 0
      %8959 = vmatpush1.bf16.msra.mxu0 0
      %8960 = vmatprep.subr.bf16.mxu0 0
      %8961 = vmatpush1.bf16.msra.mxu0 0
      %8962 = vmatprep.subr.bf16.mxu0 0
      %8963 = vmatpush1.bf16.msra.mxu0 0
      %8964 = vmatprep.mubr.bf16.mxu0 0
      %8965 = vmatmul.mubr.bf16.gmra.mrb[0].mxu0 %v8927
      %v8966 = vpop.f32.mrb[0].mxu0
      %v8967 = vadd.f32 %v2230, %v8966
      %v8968 = vpop.f32.mrb[0].mxu0
      %v8969 = vpop.f32.mrb[0].mxu0
      %v8970 = vpop.f32.mrb[0].mxu0
      %8971 = vdwg.mxu0
      %v8977 = vunpack.c.l.b16 %v882
      %v8978 = vunpack.c.l.b16 %v883
      %v8979 = vunpack.c.l.b16 %v884
      %v8980 = vunpack.c.l.b16 %v885
      %v8981 = vunpack.c.l.b16 %v886
      %v8982 = vpack.c.b16 %v8978, %v8977
      %v8983 = vpack.c.b16 %v8980, %v8979
      %v8984 = vpack.c.b16 %v8981, %v8981
      %v8988 = vsel %vm2458, %v326, 0
      %v8991 = vsel %vm2462, %v8984, 0
      %8993 = vmatprep.subr.bf16.mxu0 0
      %8994 = vmatpush1.bf16.msra.mxu0 %v8982
      %8995 = vmatprep.subr.bf16.mxu0 0
      %8996 = vmatpush1.bf16.msra.mxu0 %v8983
      %8997 = vmatprep.subr.bf16.mxu0 0
      %8998 = vmatpush1.bf16.msra.mxu0 %v8991
      %8999 = vmatprep.subr.bf16.mxu0 0
      %9000 = vmatpush1.bf16.msra.mxu0 0
      %9001 = vmatprep.subr.bf16.mxu0 0
      %9002 = vmatpush1.bf16.msra.mxu0 0
      %9003 = vmatprep.subr.bf16.mxu0 0
      %9004 = vmatpush1.bf16.msra.mxu0 0
      %9005 = vmatprep.subr.bf16.mxu0 0
      %9006 = vmatpush1.bf16.msra.mxu0 0
      %9007 = vmatprep.subr.bf16.mxu0 0
      %9008 = vmatpush1.bf16.msra.mxu0 0
      %9009 = vmatprep.subr.bf16.mxu0 0
      %9010 = vmatpush1.bf16.msra.mxu0 0
      %9011 = vmatprep.subr.bf16.mxu0 0
      %9012 = vmatpush1.bf16.msra.mxu0 0
      %9013 = vmatprep.subr.bf16.mxu0 0
      %9014 = vmatpush1.bf16.msra.mxu0 0
      %9015 = vmatprep.subr.bf16.mxu0 0
      %9016 = vmatpush1.bf16.msra.mxu0 0
      %9017 = vmatprep.subr.bf16.mxu0 0
      %9018 = vmatpush1.bf16.msra.mxu0 0
      %9019 = vmatprep.subr.bf16.mxu0 0
      %9020 = vmatpush1.bf16.msra.mxu0 0
      %9021 = vmatprep.subr.bf16.mxu0 0
      %9022 = vmatpush1.bf16.msra.mxu0 0
      %9023 = vmatprep.subr.bf16.mxu0 0
      %9024 = vmatpush1.bf16.msra.mxu0 0
      %9025 = vmatprep.mubr.bf16.mxu0 0
      %9026 = vmatmul.mubr.bf16.gmra.mrb[0].mxu0 %v8988
      %v9027 = vpop.f32.mrb[0].mxu0
      %v9028 = vadd.f32 %v2234, %v9027
      %v9029 = vpop.f32.mrb[0].mxu0
      %v9030 = vpop.f32.mrb[0].mxu0
      %v9031 = vpop.f32.mrb[0].mxu0
      %9032 = vdwg.mxu0
      %v9038 = vunpack.c.l.b16 %v887
      %v9039 = vunpack.c.l.b16 %v888
      %v9040 = vunpack.c.l.b16 %v889
      %v9041 = vunpack.c.l.b16 %v890
      %v9042 = vunpack.c.l.b16 %v891
      %v9043 = vpack.c.b16 %v9039, %v9038
      %v9044 = vpack.c.b16 %v9041, %v9040
      %v9045 = vpack.c.b16 %v9042, %v9042
      %v9049 = vsel %vm2458, %v327, 0
      %v9052 = vsel %vm2462, %v9045, 0
      %9054 = vmatprep.subr.bf16.mxu0 0
      %9055 = vmatpush1.bf16.msra.mxu0 %v9043
      %9056 = vmatprep.subr.bf16.mxu0 0
      %9057 = vmatpush1.bf16.msra.mxu0 %v9044
      %9058 = vmatprep.subr.bf16.mxu0 0
      %9059 = vmatpush1.bf16.msra.mxu0 %v9052
      %9060 = vmatprep.subr.bf16.mxu0 0
      %9061 = vmatpush1.bf16.msra.mxu0 0
      %9062 = vmatprep.subr.bf16.mxu0 0
      %9063 = vmatpush1.bf16.msra.mxu0 0
      %9064 = vmatprep.subr.bf16.mxu0 0
      %9065 = vmatpush1.bf16.msra.mxu0 0
      %9066 = vmatprep.subr.bf16.mxu0 0
      %9067 = vmatpush1.bf16.msra.mxu0 0
      %9068 = vmatprep.subr.bf16.mxu0 0
      %9069 = vmatpush1.bf16.msra.mxu0 0
      %9070 = vmatprep.subr.bf16.mxu0 0
      %9071 = vmatpush1.bf16.msra.mxu0 0
      %9072 = vmatprep.subr.bf16.mxu0 0
      %9073 = vmatpush1.bf16.msra.mxu0 0
      %9074 = vmatprep.subr.bf16.mxu0 0
      %9075 = vmatpush1.bf16.msra.mxu0 0
      %9076 = vmatprep.subr.bf16.mxu0 0
      %9077 = vmatpush1.bf16.msra.mxu0 0
      %9078 = vmatprep.subr.bf16.mxu0 0
      %9079 = vmatpush1.bf16.msra.mxu0 0
      %9080 = vmatprep.subr.bf16.mxu0 0
      %9081 = vmatpush1.bf16.msra.mxu0 0
      %9082 = vmatprep.subr.bf16.mxu0 0
      %9083 = vmatpush1.bf16.msra.mxu0 0
      %9084 = vmatprep.subr.bf16.mxu0 0
      %9085 = vmatpush1.bf16.msra.mxu0 0
      %9086 = vmatprep.mubr.bf16.mxu0 0
      %9087 = vmatmul.mubr.bf16.gmra.mrb[0].mxu0 %v9049
      %v9088 = vpop.f32.mrb[0].mxu0
      %v9089 = vadd.f32 %v2238, %v9088
      %v9090 = vpop.f32.mrb[0].mxu0
      %v9091 = vpop.f32.mrb[0].mxu0
      %v9092 = vpop.f32.mrb[0].mxu0
      %9093 = vdwg.mxu0
      %v9099 = vunpack.c.l.b16 %v892
      %v9100 = vunpack.c.l.b16 %v893
      %v9101 = vunpack.c.l.b16 %v894
      %v9102 = vunpack.c.l.b16 %v895
      %v9103 = vunpack.c.l.b16 %v896
      %v9104 = vpack.c.b16 %v9100, %v9099
      %v9105 = vpack.c.b16 %v9102, %v9101
      %v9106 = vpack.c.b16 %v9103, %v9103
      %v9110 = vsel %vm2458, %v328, 0
      %v9113 = vsel %vm2462, %v9106, 0
      %9115 = vmatprep.subr.bf16.mxu0 0
      %9116 = vmatpush1.bf16.msra.mxu0 %v9104
      %9117 = vmatprep.subr.bf16.mxu0 0
      %9118 = vmatpush1.bf16.msra.mxu0 %v9105
      %9119 = vmatprep.subr.bf16.mxu0 0
      %9120 = vmatpush1.bf16.msra.mxu0 %v9113
      %9121 = vmatprep.subr.bf16.mxu0 0
      %9122 = vmatpush1.bf16.msra.mxu0 0
      %9123 = vmatprep.subr.bf16.mxu0 0
      %9124 = vmatpush1.bf16.msra.mxu0 0
      %9125 = vmatprep.subr.bf16.mxu0 0
      %9126 = vmatpush1.bf16.msra.mxu0 0
      %9127 = vmatprep.subr.bf16.mxu0 0
      %9128 = vmatpush1.bf16.msra.mxu0 0
      %9129 = vmatprep.subr.bf16.mxu0 0
      %9130 = vmatpush1.bf16.msra.mxu0 0
      %9131 = vmatprep.subr.bf16.mxu0 0
      %9132 = vmatpush1.bf16.msra.mxu0 0
      %9133 = vmatprep.subr.bf16.mxu0 0
      %9134 = vmatpush1.bf16.msra.mxu0 0
      %9135 = vmatprep.subr.bf16.mxu0 0
      %9136 = vmatpush1.bf16.msra.mxu0 0
      %9137 = vmatprep.subr.bf16.mxu0 0
      %9138 = vmatpush1.bf16.msra.mxu0 0
      %9139 = vmatprep.subr.bf16.mxu0 0
      %9140 = vmatpush1.bf16.msra.mxu0 0
      %9141 = vmatprep.subr.bf16.mxu0 0
      %9142 = vmatpush1.bf16.msra.mxu0 0
      %9143 = vmatprep.subr.bf16.mxu0 0
      %9144 = vmatpush1.bf16.msra.mxu0 0
      %9145 = vmatprep.subr.bf16.mxu0 0
      %9146 = vmatpush1.bf16.msra.mxu0 0
      %9147 = vmatprep.mubr.bf16.mxu0 0
      %9148 = vmatmul.mubr.bf16.gmra.mrb[0].mxu0 %v9110
      %v9149 = vpop.f32.mrb[0].mxu0
      %v9150 = vadd.f32 %v2242, %v9149
      %v9151 = vpop.f32.mrb[0].mxu0
      %v9152 = vpop.f32.mrb[0].mxu0
      %v9153 = vpop.f32.mrb[0].mxu0
      %9154 = vdwg.mxu0
      %v9160 = vunpack.c.l.b16 %v897
      %v9161 = vunpack.c.l.b16 %v898
      %v9162 = vunpack.c.l.b16 %v899
      %v9163 = vunpack.c.l.b16 %v900
      %v9164 = vunpack.c.l.b16 %v901
      %v9165 = vpack.c.b16 %v9161, %v9160
      %v9166 = vpack.c.b16 %v9163, %v9162
      %v9167 = vpack.c.b16 %v9164, %v9164
      %v9171 = vsel %vm2458, %v329, 0
      %v9174 = vsel %vm2462, %v9167, 0
      %9176 = vmatprep.subr.bf16.mxu0 0
      %9177 = vmatpush1.bf16.msra.mxu0 %v9165
      %9178 = vmatprep.subr.bf16.mxu0 0
      %9179 = vmatpush1.bf16.msra.mxu0 %v9166
      %9180 = vmatprep.subr.bf16.mxu0 0
      %9181 = vmatpush1.bf16.msra.mxu0 %v9174
      %9182 = vmatprep.subr.bf16.mxu0 0
      %9183 = vmatpush1.bf16.msra.mxu0 0
      %9184 = vmatprep.subr.bf16.mxu0 0
      %9185 = vmatpush1.bf16.msra.mxu0 0
      %9186 = vmatprep.subr.bf16.mxu0 0
      %9187 = vmatpush1.bf16.msra.mxu0 0
      %9188 = vmatprep.subr.bf16.mxu0 0
      %9189 = vmatpush1.bf16.msra.mxu0 0
      %9190 = vmatprep.subr.bf16.mxu0 0
      %9191 = vmatpush1.bf16.msra.mxu0 0
      %9192 = vmatprep.subr.bf16.mxu0 0
      %9193 = vmatpush1.bf16.msra.mxu0 0
      %9194 = vmatprep.subr.bf16.mxu0 0
      %9195 = vmatpush1.bf16.msra.mxu0 0
      %9196 = vmatprep.subr.bf16.mxu0 0
      %9197 = vmatpush1.bf16.msra.mxu0 0
      %9198 = vmatprep.subr.bf16.mxu0 0
      %9199 = vmatpush1.bf16.msra.mxu0 0
      %9200 = vmatprep.subr.bf16.mxu0 0
      %9201 = vmatpush1.bf16.msra.mxu0 0
      %9202 = vmatprep.subr.bf16.mxu0 0
      %9203 = vmatpush1.bf16.msra.mxu0 0
      %9204 = vmatprep.subr.bf16.mxu0 0
      %9205 = vmatpush1.bf16.msra.mxu0 0
      %9206 = vmatprep.subr.bf16.mxu0 0
      %9207 = vmatpush1.bf16.msra.mxu0 0
      %9208 = vmatprep.mubr.bf16.mxu0 0
      %9209 = vmatmul.mubr.bf16.gmra.mrb[0].mxu0 %v9171
      %v9210 = vpop.f32.mrb[0].mxu0
      %v9211 = vadd.f32 %v2246, %v9210
      %v9212 = vpop.f32.mrb[0].mxu0
      %v9213 = vpop.f32.mrb[0].mxu0
      %v9214 = vpop.f32.mrb[0].mxu0
      %9215 = vdwg.mxu0
      %v9221 = vunpack.c.l.b16 %v902
      %v9222 = vunpack.c.l.b16 %v903
      %v9223 = vunpack.c.l.b16 %v904
      %v9224 = vunpack.c.l.b16 %v905
      %v9225 = vunpack.c.l.b16 %v906
      %v9226 = vpack.c.b16 %v9222, %v9221
      %v9227 = vpack.c.b16 %v9224, %v9223
      %v9228 = vpack.c.b16 %v9225, %v9225
      %v9232 = vsel %vm2458, %v330, 0
      %v9235 = vsel %vm2462, %v9228, 0
      %9237 = vmatprep.subr.bf16.mxu0 0
      %9238 = vmatpush1.bf16.msra.mxu0 %v9226
      %9239 = vmatprep.subr.bf16.mxu0 0
      %9240 = vmatpush1.bf16.msra.mxu0 %v9227
      %9241 = vmatprep.subr.bf16.mxu0 0
      %9242 = vmatpush1.bf16.msra.mxu0 %v9235
      %9243 = vmatprep.subr.bf16.mxu0 0
      %9244 = vmatpush1.bf16.msra.mxu0 0
      %9245 = vmatprep.subr.bf16.mxu0 0
      %9246 = vmatpush1.bf16.msra.mxu0 0
      %9247 = vmatprep.subr.bf16.mxu0 0
      %9248 = vmatpush1.bf16.msra.mxu0 0
      %9249 = vmatprep.subr.bf16.mxu0 0
      %9250 = vmatpush1.bf16.msra.mxu0 0
      %9251 = vmatprep.subr.bf16.mxu0 0
      %9252 = vmatpush1.bf16.msra.mxu0 0
      %9253 = vmatprep.subr.bf16.mxu0 0
      %9254 = vmatpush1.bf16.msra.mxu0 0
      %9255 = vmatprep.subr.bf16.mxu0 0
      %9256 = vmatpush1.bf16.msra.mxu0 0
      %9257 = vmatprep.subr.bf16.mxu0 0
      %9258 = vmatpush1.bf16.msra.mxu0 0
      %9259 = vmatprep.subr.bf16.mxu0 0
      %9260 = vmatpush1.bf16.msra.mxu0 0
      %9261 = vmatprep.subr.bf16.mxu0 0
      %9262 = vmatpush1.bf16.msra.mxu0 0
      %9263 = vmatprep.subr.bf16.mxu0 0
      %9264 = vmatpush1.bf16.msra.mxu0 0
      %9265 = vmatprep.subr.bf16.mxu0 0
      %9266 = vmatpush1.bf16.msra.mxu0 0
      %9267 = vmatprep.subr.bf16.mxu0 0
      %9268 = vmatpush1.bf16.msra.mxu0 0
      %9269 = vmatprep.mubr.bf16.mxu0 0
      %9270 = vmatmul.mubr.bf16.gmra.mrb[0].mxu0 %v9232
      %v9271 = vpop.f32.mrb[0].mxu0
      %v9272 = vadd.f32 %v2250, %v9271
      %v9273 = vpop.f32.mrb[0].mxu0
      %v9274 = vpop.f32.mrb[0].mxu0
      %v9275 = vpop.f32.mrb[0].mxu0
      %9276 = vdwg.mxu0
      %v9282 = vunpack.c.l.b16 %v907
      %v9283 = vunpack.c.l.b16 %v908
      %v9284 = vunpack.c.l.b16 %v909
      %v9285 = vunpack.c.l.b16 %v910
      %v9286 = vunpack.c.l.b16 %v911
      %v9287 = vpack.c.b16 %v9283, %v9282
      %v9288 = vpack.c.b16 %v9285, %v9284
      %v9289 = vpack.c.b16 %v9286, %v9286
      %v9293 = vsel %vm2458, %v331, 0
      %v9296 = vsel %vm2462, %v9289, 0
      %9298 = vmatprep.subr.bf16.mxu0 0
      %9299 = vmatpush1.bf16.msra.mxu0 %v9287
      %9300 = vmatprep.subr.bf16.mxu0 0
      %9301 = vmatpush1.bf16.msra.mxu0 %v9288
      %9302 = vmatprep.subr.bf16.mxu0 0
      %9303 = vmatpush1.bf16.msra.mxu0 %v9296
      %9304 = vmatprep.subr.bf16.mxu0 0
      %9305 = vmatpush1.bf16.msra.mxu0 0
      %9306 = vmatprep.subr.bf16.mxu0 0
      %9307 = vmatpush1.bf16.msra.mxu0 0
      %9308 = vmatprep.subr.bf16.mxu0 0
      %9309 = vmatpush1.bf16.msra.mxu0 0
      %9310 = vmatprep.subr.bf16.mxu0 0
      %9311 = vmatpush1.bf16.msra.mxu0 0
      %9312 = vmatprep.subr.bf16.mxu0 0
      %9313 = vmatpush1.bf16.msra.mxu0 0
      %9314 = vmatprep.subr.bf16.mxu0 0
      %9315 = vmatpush1.bf16.msra.mxu0 0
      %9316 = vmatprep.subr.bf16.mxu0 0
      %9317 = vmatpush1.bf16.msra.mxu0 0
      %9318 = vmatprep.subr.bf16.mxu0 0
      %9319 = vmatpush1.bf16.msra.mxu0 0
      %9320 = vmatprep.subr.bf16.mxu0 0
      %9321 = vmatpush1.bf16.msra.mxu0 0
      %9322 = vmatprep.subr.bf16.mxu0 0
      %9323 = vmatpush1.bf16.msra.mxu0 0
      %9324 = vmatprep.subr.bf16.mxu0 0
      %9325 = vmatpush1.bf16.msra.mxu0 0
      %9326 = vmatprep.subr.bf16.mxu0 0
      %9327 = vmatpush1.bf16.msra.mxu0 0
      %9328 = vmatprep.subr.bf16.mxu0 0
      %9329 = vmatpush1.bf16.msra.mxu0 0
      %9330 = vmatprep.mubr.bf16.mxu0 0
      %9331 = vmatmul.mubr.bf16.gmra.mrb[0].mxu0 %v9293
      %v9332 = vpop.f32.mrb[0].mxu0
      %v9333 = vadd.f32 %v2254, %v9332
      %v9334 = vpop.f32.mrb[0].mxu0
      %v9335 = vpop.f32.mrb[0].mxu0
      %v9336 = vpop.f32.mrb[0].mxu0
      %9337 = vdwg.mxu0
      %v9343 = vunpack.c.l.b16 %v912
      %v9344 = vunpack.c.l.b16 %v913
      %v9345 = vunpack.c.l.b16 %v914
      %v9346 = vunpack.c.l.b16 %v915
      %v9347 = vunpack.c.l.b16 %v916
      %v9348 = vpack.c.b16 %v9344, %v9343
      %v9349 = vpack.c.b16 %v9346, %v9345
      %v9350 = vpack.c.b16 %v9347, %v9347
      %v9354 = vsel %vm2458, %v332, 0
      %v9357 = vsel %vm2462, %v9350, 0
      %9359 = vmatprep.subr.bf16.mxu0 0
      %9360 = vmatpush1.bf16.msra.mxu0 %v9348
      %9361 = vmatprep.subr.bf16.mxu0 0
      %9362 = vmatpush1.bf16.msra.mxu0 %v9349
      %9363 = vmatprep.subr.bf16.mxu0 0
      %9364 = vmatpush1.bf16.msra.mxu0 %v9357
      %9365 = vmatprep.subr.bf16.mxu0 0
      %9366 = vmatpush1.bf16.msra.mxu0 0
      %9367 = vmatprep.subr.bf16.mxu0 0
      %9368 = vmatpush1.bf16.msra.mxu0 0
      %9369 = vmatprep.subr.bf16.mxu0 0
      %9370 = vmatpush1.bf16.msra.mxu0 0
      %9371 = vmatprep.subr.bf16.mxu0 0
      %9372 = vmatpush1.bf16.msra.mxu0 0
      %9373 = vmatprep.subr.bf16.mxu0 0
      %9374 = vmatpush1.bf16.msra.mxu0 0
      %9375 = vmatprep.subr.bf16.mxu0 0
      %9376 = vmatpush1.bf16.msra.mxu0 0
      %9377 = vmatprep.subr.bf16.mxu0 0
      %9378 = vmatpush1.bf16.msra.mxu0 0
      %9379 = vmatprep.subr.bf16.mxu0 0
      %9380 = vmatpush1.bf16.msra.mxu0 0
      %9381 = vmatprep.subr.bf16.mxu0 0
      %9382 = vmatpush1.bf16.msra.mxu0 0
      %9383 = vmatprep.subr.bf16.mxu0 0
      %9384 = vmatpush1.bf16.msra.mxu0 0
      %9385 = vmatprep.subr.bf16.mxu0 0
      %9386 = vmatpush1.bf16.msra.mxu0 0
      %9387 = vmatprep.subr.bf16.mxu0 0
      %9388 = vmatpush1.bf16.msra.mxu0 0
      %9389 = vmatprep.subr.bf16.mxu0 0
      %9390 = vmatpush1.bf16.msra.mxu0 0
      %9391 = vmatprep.mubr.bf16.mxu0 0
      %9392 = vmatmul.mubr.bf16.gmra.mrb[0].mxu0 %v9354
      %v9393 = vpop.f32.mrb[0].mxu0
      %v9394 = vadd.f32 %v2258, %v9393
      %v9395 = vpop.f32.mrb[0].mxu0
      %v9396 = vpop.f32.mrb[0].mxu0
      %v9397 = vpop.f32.mrb[0].mxu0
      %9398 = vdwg.mxu0
      %v9404 = vunpack.c.l.b16 %v917
      %v9405 = vunpack.c.l.b16 %v918
      %v9406 = vunpack.c.l.b16 %v919
      %v9407 = vunpack.c.l.b16 %v920
      %v9408 = vunpack.c.l.b16 %v921
      %v9409 = vpack.c.b16 %v9405, %v9404
      %v9410 = vpack.c.b16 %v9407, %v9406
      %v9411 = vpack.c.b16 %v9408, %v9408
      %v9415 = vsel %vm2458, %v333, 0
      %v9418 = vsel %vm2462, %v9411, 0
      %9420 = vmatprep.subr.bf16.mxu0 0
      %9421 = vmatpush1.bf16.msra.mxu0 %v9409
      %9422 = vmatprep.subr.bf16.mxu0 0
      %9423 = vmatpush1.bf16.msra.mxu0 %v9410
      %9424 = vmatprep.subr.bf16.mxu0 0
      %9425 = vmatpush1.bf16.msra.mxu0 %v9418
      %9426 = vmatprep.subr.bf16.mxu0 0
      %9427 = vmatpush1.bf16.msra.mxu0 0
      %9428 = vmatprep.subr.bf16.mxu0 0
      %9429 = vmatpush1.bf16.msra.mxu0 0
      %9430 = vmatprep.subr.bf16.mxu0 0
      %9431 = vmatpush1.bf16.msra.mxu0 0
      %9432 = vmatprep.subr.bf16.mxu0 0
      %9433 = vmatpush1.bf16.msra.mxu0 0
      %9434 = vmatprep.subr.bf16.mxu0 0
      %9435 = vmatpush1.bf16.msra.mxu0 0
      %9436 = vmatprep.subr.bf16.mxu0 0
      %9437 = vmatpush1.bf16.msra.mxu0 0
      %9438 = vmatprep.subr.bf16.mxu0 0
      %9439 = vmatpush1.bf16.msra.mxu0 0
      %9440 = vmatprep.subr.bf16.mxu0 0
      %9441 = vmatpush1.bf16.msra.mxu0 0
      %9442 = vmatprep.subr.bf16.mxu0 0
      %9443 = vmatpush1.bf16.msra.mxu0 0
      %9444 = vmatprep.subr.bf16.mxu0 0
      %9445 = vmatpush1.bf16.msra.mxu0 0
      %9446 = vmatprep.subr.bf16.mxu0 0
      %9447 = vmatpush1.bf16.msra.mxu0 0
      %9448 = vmatprep.subr.bf16.mxu0 0
      %9449 = vmatpush1.bf16.msra.mxu0 0
      %9450 = vmatprep.subr.bf16.mxu0 0
      %9451 = vmatpush1.bf16.msra.mxu0 0
      %9452 = vmatprep.mubr.bf16.mxu0 0
      %9453 = vmatmul.mubr.bf16.gmra.mrb[0].mxu0 %v9415
      %v9454 = vpop.f32.mrb[0].mxu0
      %v9455 = vadd.f32 %v2262, %v9454
      %v9456 = vpop.f32.mrb[0].mxu0
      %v9457 = vpop.f32.mrb[0].mxu0
      %v9458 = vpop.f32.mrb[0].mxu0
      %9459 = vdwg.mxu0
      %v9465 = vunpack.c.l.b16 %v922
      %v9466 = vunpack.c.l.b16 %v923
      %v9467 = vunpack.c.l.b16 %v924
      %v9468 = vunpack.c.l.b16 %v925
      %v9469 = vunpack.c.l.b16 %v926
      %v9470 = vpack.c.b16 %v9466, %v9465
      %v9471 = vpack.c.b16 %v9468, %v9467
      %v9472 = vpack.c.b16 %v9469, %v9469
      %v9476 = vsel %vm2458, %v334, 0
      %v9479 = vsel %vm2462, %v9472, 0
      %9481 = vmatprep.subr.bf16.mxu0 0
      %9482 = vmatpush1.bf16.msra.mxu0 %v9470
      %9483 = vmatprep.subr.bf16.mxu0 0
      %9484 = vmatpush1.bf16.msra.mxu0 %v9471
      %9485 = vmatprep.subr.bf16.mxu0 0
      %9486 = vmatpush1.bf16.msra.mxu0 %v9479
      %9487 = vmatprep.subr.bf16.mxu0 0
      %9488 = vmatpush1.bf16.msra.mxu0 0
      %9489 = vmatprep.subr.bf16.mxu0 0
      %9490 = vmatpush1.bf16.msra.mxu0 0
      %9491 = vmatprep.subr.bf16.mxu0 0
      %9492 = vmatpush1.bf16.msra.mxu0 0
      %9493 = vmatprep.subr.bf16.mxu0 0
      %9494 = vmatpush1.bf16.msra.mxu0 0
      %9495 = vmatprep.subr.bf16.mxu0 0
      %9496 = vmatpush1.bf16.msra.mxu0 0
      %9497 = vmatprep.subr.bf16.mxu0 0
      %9498 = vmatpush1.bf16.msra.mxu0 0
      %9499 = vmatprep.subr.bf16.mxu0 0
      %9500 = vmatpush1.bf16.msra.mxu0 0
      %9501 = vmatprep.subr.bf16.mxu0 0
      %9502 = vmatpush1.bf16.msra.mxu0 0
      %9503 = vmatprep.subr.bf16.mxu0 0
      %9504 = vmatpush1.bf16.msra.mxu0 0
      %9505 = vmatprep.subr.bf16.mxu0 0
      %9506 = vmatpush1.bf16.msra.mxu0 0
      %9507 = vmatprep.subr.bf16.mxu0 0
      %9508 = vmatpush1.bf16.msra.mxu0 0
      %9509 = vmatprep.subr.bf16.mxu0 0
      %9510 = vmatpush1.bf16.msra.mxu0 0
      %9511 = vmatprep.subr.bf16.mxu0 0
      %9512 = vmatpush1.bf16.msra.mxu0 0
      %9513 = vmatprep.mubr.bf16.mxu0 0
      %9514 = vmatmul.mubr.bf16.gmra.mrb[0].mxu0 %v9476
      %v9515 = vpop.f32.mrb[0].mxu0
      %v9516 = vadd.f32 %v2266, %v9515
      %v9517 = vpop.f32.mrb[0].mxu0
      %v9518 = vpop.f32.mrb[0].mxu0
      %v9519 = vpop.f32.mrb[0].mxu0
      %9520 = vdwg.mxu0
      %v9526 = vunpack.c.l.b16 %v927
      %v9527 = vunpack.c.l.b16 %v928
      %v9528 = vunpack.c.l.b16 %v929
      %v9529 = vunpack.c.l.b16 %v930
      %v9530 = vunpack.c.l.b16 %v931
      %v9531 = vpack.c.b16 %v9527, %v9526
      %v9532 = vpack.c.b16 %v9529, %v9528
      %v9533 = vpack.c.b16 %v9530, %v9530
      %v9537 = vsel %vm2458, %v335, 0
      %v9540 = vsel %vm2462, %v9533, 0
      %9542 = vmatprep.subr.bf16.mxu0 0
      %9543 = vmatpush1.bf16.msra.mxu0 %v9531
      %9544 = vmatprep.subr.bf16.mxu0 0
      %9545 = vmatpush1.bf16.msra.mxu0 %v9532
      %9546 = vmatprep.subr.bf16.mxu0 0
      %9547 = vmatpush1.bf16.msra.mxu0 %v9540
      %9548 = vmatprep.subr.bf16.mxu0 0
      %9549 = vmatpush1.bf16.msra.mxu0 0
      %9550 = vmatprep.subr.bf16.mxu0 0
      %9551 = vmatpush1.bf16.msra.mxu0 0
      %9552 = vmatprep.subr.bf16.mxu0 0
      %9553 = vmatpush1.bf16.msra.mxu0 0
      %9554 = vmatprep.subr.bf16.mxu0 0
      %9555 = vmatpush1.bf16.msra.mxu0 0
      %9556 = vmatprep.subr.bf16.mxu0 0
      %9557 = vmatpush1.bf16.msra.mxu0 0
      %9558 = vmatprep.subr.bf16.mxu0 0
      %9559 = vmatpush1.bf16.msra.mxu0 0
      %9560 = vmatprep.subr.bf16.mxu0 0
      %9561 = vmatpush1.bf16.msra.mxu0 0
      %9562 = vmatprep.subr.bf16.mxu0 0
      %9563 = vmatpush1.bf16.msra.mxu0 0
      %9564 = vmatprep.subr.bf16.mxu0 0
      %9565 = vmatpush1.bf16.msra.mxu0 0
      %9566 = vmatprep.subr.bf16.mxu0 0
      %9567 = vmatpush1.bf16.msra.mxu0 0
      %9568 = vmatprep.subr.bf16.mxu0 0
      %9569 = vmatpush1.bf16.msra.mxu0 0
      %9570 = vmatprep.subr.bf16.mxu0 0
      %9571 = vmatpush1.bf16.msra.mxu0 0
      %9572 = vmatprep.subr.bf16.mxu0 0
      %9573 = vmatpush1.bf16.msra.mxu0 0
      %9574 = vmatprep.mubr.bf16.mxu0 0
      %9575 = vmatmul.mubr.bf16.gmra.mrb[0].mxu0 %v9537
      %v9576 = vpop.f32.mrb[0].mxu0
      %v9577 = vadd.f32 %v2270, %v9576
      %v9578 = vpop.f32.mrb[0].mxu0
      %v9579 = vpop.f32.mrb[0].mxu0
      %v9580 = vpop.f32.mrb[0].mxu0
      %9581 = vdwg.mxu0
      %v9587 = vunpack.c.l.b16 %v932
      %v9588 = vunpack.c.l.b16 %v933
      %v9589 = vunpack.c.l.b16 %v934
      %v9590 = vunpack.c.l.b16 %v935
      %v9591 = vunpack.c.l.b16 %v936
      %v9592 = vpack.c.b16 %v9588, %v9587
      %v9593 = vpack.c.b16 %v9590, %v9589
      %v9594 = vpack.c.b16 %v9591, %v9591
      %v9598 = vsel %vm2458, %v336, 0
      %v9601 = vsel %vm2462, %v9594, 0
      %9603 = vmatprep.subr.bf16.mxu0 0
      %9604 = vmatpush1.bf16.msra.mxu0 %v9592
      %9605 = vmatprep.subr.bf16.mxu0 0
      %9606 = vmatpush1.bf16.msra.mxu0 %v9593
      %9607 = vmatprep.subr.bf16.mxu0 0
      %9608 = vmatpush1.bf16.msra.mxu0 %v9601
      %9609 = vmatprep.subr.bf16.mxu0 0
      %9610 = vmatpush1.bf16.msra.mxu0 0
      %9611 = vmatprep.subr.bf16.mxu0 0
      %9612 = vmatpush1.bf16.msra.mxu0 0
      %9613 = vmatprep.subr.bf16.mxu0 0
      %9614 = vmatpush1.bf16.msra.mxu0 0
      %9615 = vmatprep.subr.bf16.mxu0 0
      %9616 = vmatpush1.bf16.msra.mxu0 0
      %9617 = vmatprep.subr.bf16.mxu0 0
      %9618 = vmatpush1.bf16.msra.mxu0 0
      %9619 = vmatprep.subr.bf16.mxu0 0
      %9620 = vmatpush1.bf16.msra.mxu0 0
      %9621 = vmatprep.subr.bf16.mxu0 0
      %9622 = vmatpush1.bf16.msra.mxu0 0
      %9623 = vmatprep.subr.bf16.mxu0 0
      %9624 = vmatpush1.bf16.msra.mxu0 0
      %9625 = vmatprep.subr.bf16.mxu0 0
      %9626 = vmatpush1.bf16.msra.mxu0 0
      %9627 = vmatprep.subr.bf16.mxu0 0
      %9628 = vmatpush1.bf16.msra.mxu0 0
      %9629 = vmatprep.subr.bf16.mxu0 0
      %9630 = vmatpush1.bf16.msra.mxu0 0
      %9631 = vmatprep.subr.bf16.mxu0 0
      %9632 = vmatpush1.bf16.msra.mxu0 0
      %9633 = vmatprep.subr.bf16.mxu0 0
      %9634 = vmatpush1.bf16.msra.mxu0 0
      %9635 = vmatprep.mubr.bf16.mxu0 0
      %9636 = vmatmul.mubr.bf16.gmra.mrb[0].mxu0 %v9598
      %v9637 = vpop.f32.mrb[0].mxu0
      %v9638 = vadd.f32 %v2274, %v9637
      %v9639 = vpop.f32.mrb[0].mxu0
      %v9640 = vpop.f32.mrb[0].mxu0
      %v9641 = vpop.f32.mrb[0].mxu0
      %9642 = vdwg.mxu0
      %v9648 = vunpack.c.l.b16 %v937
      %v9649 = vunpack.c.l.b16 %v938
      %v9650 = vunpack.c.l.b16 %v939
      %v9651 = vunpack.c.l.b16 %v940
      %v9652 = vunpack.c.l.b16 %v941
      %v9653 = vpack.c.b16 %v9649, %v9648
      %v9654 = vpack.c.b16 %v9651, %v9650
      %v9655 = vpack.c.b16 %v9652, %v9652
      %v9659 = vsel %vm2458, %v337, 0
      %v9662 = vsel %vm2462, %v9655, 0
      %9664 = vmatprep.subr.bf16.mxu0 0
      %9665 = vmatpush1.bf16.msra.mxu0 %v9653
      %9666 = vmatprep.subr.bf16.mxu0 0
      %9667 = vmatpush1.bf16.msra.mxu0 %v9654
      %9668 = vmatprep.subr.bf16.mxu0 0
      %9669 = vmatpush1.bf16.msra.mxu0 %v9662
      %9670 = vmatprep.subr.bf16.mxu0 0
      %9671 = vmatpush1.bf16.msra.mxu0 0
      %9672 = vmatprep.subr.bf16.mxu0 0
      %9673 = vmatpush1.bf16.msra.mxu0 0
      %9674 = vmatprep.subr.bf16.mxu0 0
      %9675 = vmatpush1.bf16.msra.mxu0 0
      %9676 = vmatprep.subr.bf16.mxu0 0
      %9677 = vmatpush1.bf16.msra.mxu0 0
      %9678 = vmatprep.subr.bf16.mxu0 0
      %9679 = vmatpush1.bf16.msra.mxu0 0
      %9680 = vmatprep.subr.bf16.mxu0 0
      %9681 = vmatpush1.bf16.msra.mxu0 0
      %9682 = vmatprep.subr.bf16.mxu0 0
      %9683 = vmatpush1.bf16.msra.mxu0 0
      %9684 = vmatprep.subr.bf16.mxu0 0
      %9685 = vmatpush1.bf16.msra.mxu0 0
      %9686 = vmatprep.subr.bf16.mxu0 0
      %9687 = vmatpush1.bf16.msra.mxu0 0
      %9688 = vmatprep.subr.bf16.mxu0 0
      %9689 = vmatpush1.bf16.msra.mxu0 0
      %9690 = vmatprep.subr.bf16.mxu0 0
      %9691 = vmatpush1.bf16.msra.mxu0 0
      %9692 = vmatprep.subr.bf16.mxu0 0
      %9693 = vmatpush1.bf16.msra.mxu0 0
      %9694 = vmatprep.subr.bf16.mxu0 0
      %9695 = vmatpush1.bf16.msra.mxu0 0
      %9696 = vmatprep.mubr.bf16.mxu0 0
      %9697 = vmatmul.mubr.bf16.gmra.mrb[0].mxu0 %v9659
      %v9698 = vpop.f32.mrb[0].mxu0
      %v9699 = vadd.f32 %v2278, %v9698
      %v9700 = vpop.f32.mrb[0].mxu0
      %v9701 = vpop.f32.mrb[0].mxu0
      %v9702 = vpop.f32.mrb[0].mxu0
      %9703 = vdwg.mxu0
      %v9709 = vunpack.c.l.b16 %v942
      %v9710 = vunpack.c.l.b16 %v943
      %v9711 = vunpack.c.l.b16 %v944
      %v9712 = vunpack.c.l.b16 %v945
      %v9713 = vunpack.c.l.b16 %v946
      %v9714 = vpack.c.b16 %v9710, %v9709
      %v9715 = vpack.c.b16 %v9712, %v9711
      %v9716 = vpack.c.b16 %v9713, %v9713
      %v9720 = vsel %vm2458, %v338, 0
      %v9723 = vsel %vm2462, %v9716, 0
      %9725 = vmatprep.subr.bf16.mxu0 0
      %9726 = vmatpush1.bf16.msra.mxu0 %v9714
      %9727 = vmatprep.subr.bf16.mxu0 0
      %9728 = vmatpush1.bf16.msra.mxu0 %v9715
      %9729 = vmatprep.subr.bf16.mxu0 0
      %9730 = vmatpush1.bf16.msra.mxu0 %v9723
      %9731 = vmatprep.subr.bf16.mxu0 0
      %9732 = vmatpush1.bf16.msra.mxu0 0
      %9733 = vmatprep.subr.bf16.mxu0 0
      %9734 = vmatpush1.bf16.msra.mxu0 0
      %9735 = vmatprep.subr.bf16.mxu0 0
      %9736 = vmatpush1.bf16.msra.mxu0 0
      %9737 = vmatprep.subr.bf16.mxu0 0
      %9738 = vmatpush1.bf16.msra.mxu0 0
      %9739 = vmatprep.subr.bf16.mxu0 0
      %9740 = vmatpush1.bf16.msra.mxu0 0
      %9741 = vmatprep.subr.bf16.mxu0 0
      %9742 = vmatpush1.bf16.msra.mxu0 0
      %9743 = vmatprep.subr.bf16.mxu0 0
      %9744 = vmatpush1.bf16.msra.mxu0 0
      %9745 = vmatprep.subr.bf16.mxu0 0
      %9746 = vmatpush1.bf16.msra.mxu0 0
      %9747 = vmatprep.subr.bf16.mxu0 0
      %9748 = vmatpush1.bf16.msra.mxu0 0
      %9749 = vmatprep.subr.bf16.mxu0 0
      %9750 = vmatpush1.bf16.msra.mxu0 0
      %9751 = vmatprep.subr.bf16.mxu0 0
      %9752 = vmatpush1.bf16.msra.mxu0 0
      %9753 = vmatprep.subr.bf16.mxu0 0
      %9754 = vmatpush1.bf16.msra.mxu0 0
      %9755 = vmatprep.subr.bf16.mxu0 0
      %9756 = vmatpush1.bf16.msra.mxu0 0
      %9757 = vmatprep.mubr.bf16.mxu0 0
      %9758 = vmatmul.mubr.bf16.gmra.mrb[0].mxu0 %v9720
      %v9759 = vpop.f32.mrb[0].mxu0
      %v9760 = vadd.f32 %v2282, %v9759
      %v9761 = vpop.f32.mrb[0].mxu0
      %v9762 = vpop.f32.mrb[0].mxu0
      %v9763 = vpop.f32.mrb[0].mxu0
      %9764 = vdwg.mxu0
      %v9770 = vunpack.c.l.b16 %v947
      %v9771 = vunpack.c.l.b16 %v948
      %v9772 = vunpack.c.l.b16 %v949
      %v9773 = vunpack.c.l.b16 %v950
      %v9774 = vunpack.c.l.b16 %v951
      %v9775 = vpack.c.b16 %v9771, %v9770
      %v9776 = vpack.c.b16 %v9773, %v9772
      %v9777 = vpack.c.b16 %v9774, %v9774
      %v9781 = vsel %vm2458, %v339, 0
      %v9784 = vsel %vm2462, %v9777, 0
      %9786 = vmatprep.subr.bf16.mxu0 0
      %9787 = vmatpush1.bf16.msra.mxu0 %v9775
      %9788 = vmatprep.subr.bf16.mxu0 0
      %9789 = vmatpush1.bf16.msra.mxu0 %v9776
      %9790 = vmatprep.subr.bf16.mxu0 0
      %9791 = vmatpush1.bf16.msra.mxu0 %v9784
      %9792 = vmatprep.subr.bf16.mxu0 0
      %9793 = vmatpush1.bf16.msra.mxu0 0
      %9794 = vmatprep.subr.bf16.mxu0 0
      %9795 = vmatpush1.bf16.msra.mxu0 0
      %9796 = vmatprep.subr.bf16.mxu0 0
      %9797 = vmatpush1.bf16.msra.mxu0 0
      %9798 = vmatprep.subr.bf16.mxu0 0
      %9799 = vmatpush1.bf16.msra.mxu0 0
      %9800 = vmatprep.subr.bf16.mxu0 0
      %9801 = vmatpush1.bf16.msra.mxu0 0
      %9802 = vmatprep.subr.bf16.mxu0 0
      %9803 = vmatpush1.bf16.msra.mxu0 0
      %9804 = vmatprep.subr.bf16.mxu0 0
      %9805 = vmatpush1.bf16.msra.mxu0 0
      %9806 = vmatprep.subr.bf16.mxu0 0
      %9807 = vmatpush1.bf16.msra.mxu0 0
      %9808 = vmatprep.subr.bf16.mxu0 0
      %9809 = vmatpush1.bf16.msra.mxu0 0
      %9810 = vmatprep.subr.bf16.mxu0 0
      %9811 = vmatpush1.bf16.msra.mxu0 0
      %9812 = vmatprep.subr.bf16.mxu0 0
      %9813 = vmatpush1.bf16.msra.mxu0 0
      %9814 = vmatprep.subr.bf16.mxu0 0
      %9815 = vmatpush1.bf16.msra.mxu0 0
      %9816 = vmatprep.subr.bf16.mxu0 0
      %9817 = vmatpush1.bf16.msra.mxu0 0
      %9818 = vmatprep.mubr.bf16.mxu0 0
      %9819 = vmatmul.mubr.bf16.gmra.mrb[0].mxu0 %v9781
      %v9820 = vpop.f32.mrb[0].mxu0
      %v9821 = vadd.f32 %v2286, %v9820
      %v9822 = vpop.f32.mrb[0].mxu0
      %v9823 = vpop.f32.mrb[0].mxu0
      %v9824 = vpop.f32.mrb[0].mxu0
      %9825 = vdwg.mxu0
      %v9831 = vunpack.c.l.b16 %v952
      %v9832 = vunpack.c.l.b16 %v953
      %v9833 = vunpack.c.l.b16 %v954
      %v9834 = vunpack.c.l.b16 %v955
      %v9835 = vunpack.c.l.b16 %v956
      %v9836 = vpack.c.b16 %v9832, %v9831
      %v9837 = vpack.c.b16 %v9834, %v9833
      %v9838 = vpack.c.b16 %v9835, %v9835
      %v9842 = vsel %vm2458, %v340, 0
      %v9845 = vsel %vm2462, %v9838, 0
      %9847 = vmatprep.subr.bf16.mxu0 0
      %9848 = vmatpush1.bf16.msra.mxu0 %v9836
      %9849 = vmatprep.subr.bf16.mxu0 0
      %9850 = vmatpush1.bf16.msra.mxu0 %v9837
      %9851 = vmatprep.subr.bf16.mxu0 0
      %9852 = vmatpush1.bf16.msra.mxu0 %v9845
      %9853 = vmatprep.subr.bf16.mxu0 0
      %9854 = vmatpush1.bf16.msra.mxu0 0
      %9855 = vmatprep.subr.bf16.mxu0 0
      %9856 = vmatpush1.bf16.msra.mxu0 0
      %9857 = vmatprep.subr.bf16.mxu0 0
      %9858 = vmatpush1.bf16.msra.mxu0 0
      %9859 = vmatprep.subr.bf16.mxu0 0
      %9860 = vmatpush1.bf16.msra.mxu0 0
      %9861 = vmatprep.subr.bf16.mxu0 0
      %9862 = vmatpush1.bf16.msra.mxu0 0
      %9863 = vmatprep.subr.bf16.mxu0 0
      %9864 = vmatpush1.bf16.msra.mxu0 0
      %9865 = vmatprep.subr.bf16.mxu0 0
      %9866 = vmatpush1.bf16.msra.mxu0 0
      %9867 = vmatprep.subr.bf16.mxu0 0
      %9868 = vmatpush1.bf16.msra.mxu0 0
      %9869 = vmatprep.subr.bf16.mxu0 0
      %9870 = vmatpush1.bf16.msra.mxu0 0
      %9871 = vmatprep.subr.bf16.mxu0 0
      %9872 = vmatpush1.bf16.msra.mxu0 0
      %9873 = vmatprep.subr.bf16.mxu0 0
      %9874 = vmatpush1.bf16.msra.mxu0 0
      %9875 = vmatprep.subr.bf16.mxu0 0
      %9876 = vmatpush1.bf16.msra.mxu0 0
      %9877 = vmatprep.subr.bf16.mxu0 0
      %9878 = vmatpush1.bf16.msra.mxu0 0
      %9879 = vmatprep.mubr.bf16.mxu0 0
      %9880 = vmatmul.mubr.bf16.gmra.mrb[0].mxu0 %v9842
      %v9881 = vpop.f32.mrb[0].mxu0
      %v9882 = vadd.f32 %v2290, %v9881
      %v9883 = vpop.f32.mrb[0].mxu0
      %v9884 = vpop.f32.mrb[0].mxu0
      %v9885 = vpop.f32.mrb[0].mxu0
      %9886 = vdwg.mxu0
      %v9892 = vunpack.c.l.b16 %v957
      %v9893 = vunpack.c.l.b16 %v958
      %v9894 = vunpack.c.l.b16 %v959
      %v9895 = vunpack.c.l.b16 %v960
      %v9896 = vunpack.c.l.b16 %v961
      %v9897 = vpack.c.b16 %v9893, %v9892
      %v9898 = vpack.c.b16 %v9895, %v9894
      %v9899 = vpack.c.b16 %v9896, %v9896
      %v9903 = vsel %vm2458, %v341, 0
      %v9906 = vsel %vm2462, %v9899, 0
      %9908 = vmatprep.subr.bf16.mxu0 0
      %9909 = vmatpush1.bf16.msra.mxu0 %v9897
      %9910 = vmatprep.subr.bf16.mxu0 0
      %9911 = vmatpush1.bf16.msra.mxu0 %v9898
      %9912 = vmatprep.subr.bf16.mxu0 0
      %9913 = vmatpush1.bf16.msra.mxu0 %v9906
      %9914 = vmatprep.subr.bf16.mxu0 0
      %9915 = vmatpush1.bf16.msra.mxu0 0
      %9916 = vmatprep.subr.bf16.mxu0 0
      %9917 = vmatpush1.bf16.msra.mxu0 0
      %9918 = vmatprep.subr.bf16.mxu0 0
      %9919 = vmatpush1.bf16.msra.mxu0 0
      %9920 = vmatprep.subr.bf16.mxu0 0
      %9921 = vmatpush1.bf16.msra.mxu0 0
      %9922 = vmatprep.subr.bf16.mxu0 0
      %9923 = vmatpush1.bf16.msra.mxu0 0
      %9924 = vmatprep.subr.bf16.mxu0 0
      %9925 = vmatpush1.bf16.msra.mxu0 0
      %9926 = vmatprep.subr.bf16.mxu0 0
      %9927 = vmatpush1.bf16.msra.mxu0 0
      %9928 = vmatprep.subr.bf16.mxu0 0
      %9929 = vmatpush1.bf16.msra.mxu0 0
      %9930 = vmatprep.subr.bf16.mxu0 0
      %9931 = vmatpush1.bf16.msra.mxu0 0
      %9932 = vmatprep.subr.bf16.mxu0 0
      %9933 = vmatpush1.bf16.msra.mxu0 0
      %9934 = vmatprep.subr.bf16.mxu0 0
      %9935 = vmatpush1.bf16.msra.mxu0 0
      %9936 = vmatprep.subr.bf16.mxu0 0
      %9937 = vmatpush1.bf16.msra.mxu0 0
      %9938 = vmatprep.subr.bf16.mxu0 0
      %9939 = vmatpush1.bf16.msra.mxu0 0
      %9940 = vmatprep.mubr.bf16.mxu0 0
      %9941 = vmatmul.mubr.bf16.gmra.mrb[0].mxu0 %v9903
      %v9942 = vpop.f32.mrb[0].mxu0
      %v9943 = vadd.f32 %v2294, %v9942
      %v9944 = vpop.f32.mrb[0].mxu0
      %v9945 = vpop.f32.mrb[0].mxu0
      %v9946 = vpop.f32.mrb[0].mxu0
      %9947 = vdwg.mxu0
      %v9953 = vunpack.c.l.b16 %v962
      %v9954 = vunpack.c.l.b16 %v963
      %v9955 = vunpack.c.l.b16 %v964
      %v9956 = vunpack.c.l.b16 %v965
      %v9957 = vunpack.c.l.b16 %v966
      %v9958 = vpack.c.b16 %v9954, %v9953
      %v9959 = vpack.c.b16 %v9956, %v9955
      %v9960 = vpack.c.b16 %v9957, %v9957
      %v9964 = vsel %vm2458, %v342, 0
      %v9967 = vsel %vm2462, %v9960, 0
      %9969 = vmatprep.subr.bf16.mxu0 0
      %9970 = vmatpush1.bf16.msra.mxu0 %v9958
      %9971 = vmatprep.subr.bf16.mxu0 0
      %9972 = vmatpush1.bf16.msra.mxu0 %v9959
      %9973 = vmatprep.subr.bf16.mxu0 0
      %9974 = vmatpush1.bf16.msra.mxu0 %v9967
      %9975 = vmatprep.subr.bf16.mxu0 0
      %9976 = vmatpush1.bf16.msra.mxu0 0
      %9977 = vmatprep.subr.bf16.mxu0 0
      %9978 = vmatpush1.bf16.msra.mxu0 0
      %9979 = vmatprep.subr.bf16.mxu0 0
      %9980 = vmatpush1.bf16.msra.mxu0 0
      %9981 = vmatprep.subr.bf16.mxu0 0
      %9982 = vmatpush1.bf16.msra.mxu0 0
      %9983 = vmatprep.subr.bf16.mxu0 0
      %9984 = vmatpush1.bf16.msra.mxu0 0
      %9985 = vmatprep.subr.bf16.mxu0 0
      %9986 = vmatpush1.bf16.msra.mxu0 0
      %9987 = vmatprep.subr.bf16.mxu0 0
      %9988 = vmatpush1.bf16.msra.mxu0 0
      %9989 = vmatprep.subr.bf16.mxu0 0
      %9990 = vmatpush1.bf16.msra.mxu0 0
      %9991 = vmatprep.subr.bf16.mxu0 0
      %9992 = vmatpush1.bf16.msra.mxu0 0
      %9993 = vmatprep.subr.bf16.mxu0 0
      %9994 = vmatpush1.bf16.msra.mxu0 0
      %9995 = vmatprep.subr.bf16.mxu0 0
      %9996 = vmatpush1.bf16.msra.mxu0 0
      %9997 = vmatprep.subr.bf16.mxu0 0
      %9998 = vmatpush1.bf16.msra.mxu0 0
      %9999 = vmatprep.subr.bf16.mxu0 0
      %10000 = vmatpush1.bf16.msra.mxu0 0
      %10001 = vmatprep.mubr.bf16.mxu0 0
      %10002 = vmatmul.mubr.bf16.gmra.mrb[0].mxu0 %v9964
      %v10003 = vpop.f32.mrb[0].mxu0
      %v10004 = vadd.f32 %v2298, %v10003
      %v10005 = vpop.f32.mrb[0].mxu0
      %v10006 = vpop.f32.mrb[0].mxu0
      %v10007 = vpop.f32.mrb[0].mxu0
      %10008 = vdwg.mxu0
      %v10014 = vunpack.c.l.b16 %v967
      %v10015 = vunpack.c.l.b16 %v968
      %v10016 = vunpack.c.l.b16 %v969
      %v10017 = vunpack.c.l.b16 %v970
      %v10018 = vunpack.c.l.b16 %v971
      %v10019 = vpack.c.b16 %v10015, %v10014
      %v10020 = vpack.c.b16 %v10017, %v10016
      %v10021 = vpack.c.b16 %v10018, %v10018
      %v10025 = vsel %vm2458, %v343, 0
      %v10028 = vsel %vm2462, %v10021, 0
      %10030 = vmatprep.subr.bf16.mxu0 0
      %10031 = vmatpush1.bf16.msra.mxu0 %v10019
      %10032 = vmatprep.subr.bf16.mxu0 0
      %10033 = vmatpush1.bf16.msra.mxu0 %v10020
      %10034 = vmatprep.subr.bf16.mxu0 0
      %10035 = vmatpush1.bf16.msra.mxu0 %v10028
      %10036 = vmatprep.subr.bf16.mxu0 0
      %10037 = vmatpush1.bf16.msra.mxu0 0
      %10038 = vmatprep.subr.bf16.mxu0 0
      %10039 = vmatpush1.bf16.msra.mxu0 0
      %10040 = vmatprep.subr.bf16.mxu0 0
      %10041 = vmatpush1.bf16.msra.mxu0 0
      %10042 = vmatprep.subr.bf16.mxu0 0
      %10043 = vmatpush1.bf16.msra.mxu0 0
      %10044 = vmatprep.subr.bf16.mxu0 0
      %10045 = vmatpush1.bf16.msra.mxu0 0
      %10046 = vmatprep.subr.bf16.mxu0 0
      %10047 = vmatpush1.bf16.msra.mxu0 0
      %10048 = vmatprep.subr.bf16.mxu0 0
      %10049 = vmatpush1.bf16.msra.mxu0 0
      %10050 = vmatprep.subr.bf16.mxu0 0
      %10051 = vmatpush1.bf16.msra.mxu0 0
      %10052 = vmatprep.subr.bf16.mxu0 0
      %10053 = vmatpush1.bf16.msra.mxu0 0
      %10054 = vmatprep.subr.bf16.mxu0 0
      %10055 = vmatpush1.bf16.msra.mxu0 0
      %10056 = vmatprep.subr.bf16.mxu0 0
      %10057 = vmatpush1.bf16.msra.mxu0 0
      %10058 = vmatprep.subr.bf16.mxu0 0
      %10059 = vmatpush1.bf16.msra.mxu0 0
      %10060 = vmatprep.subr.bf16.mxu0 0
      %10061 = vmatpush1.bf16.msra.mxu0 0
      %10062 = vmatprep.mubr.bf16.mxu0 0
      %10063 = vmatmul.mubr.bf16.gmra.mrb[0].mxu0 %v10025
      %v10064 = vpop.f32.mrb[0].mxu0
      %v10065 = vadd.f32 %v2302, %v10064
      %v10066 = vpop.f32.mrb[0].mxu0
      %v10067 = vpop.f32.mrb[0].mxu0
      %v10068 = vpop.f32.mrb[0].mxu0
      %10069 = vdwg.mxu0
      %v10075 = vunpack.c.l.b16 %v972
      %v10076 = vunpack.c.l.b16 %v973
      %v10077 = vunpack.c.l.b16 %v974
      %v10078 = vunpack.c.l.b16 %v975
      %v10079 = vunpack.c.l.b16 %v976
      %v10080 = vpack.c.b16 %v10076, %v10075
      %v10081 = vpack.c.b16 %v10078, %v10077
      %v10082 = vpack.c.b16 %v10079, %v10079
      %v10086 = vsel %vm2458, %v344, 0
      %v10089 = vsel %vm2462, %v10082, 0
      %10091 = vmatprep.subr.bf16.mxu0 0
      %10092 = vmatpush1.bf16.msra.mxu0 %v10080
      %10093 = vmatprep.subr.bf16.mxu0 0
      %10094 = vmatpush1.bf16.msra.mxu0 %v10081
      %10095 = vmatprep.subr.bf16.mxu0 0
      %10096 = vmatpush1.bf16.msra.mxu0 %v10089
      %10097 = vmatprep.subr.bf16.mxu0 0
      %10098 = vmatpush1.bf16.msra.mxu0 0
      %10099 = vmatprep.subr.bf16.mxu0 0
      %10100 = vmatpush1.bf16.msra.mxu0 0
      %10101 = vmatprep.subr.bf16.mxu0 0
      %10102 = vmatpush1.bf16.msra.mxu0 0
      %10103 = vmatprep.subr.bf16.mxu0 0
      %10104 = vmatpush1.bf16.msra.mxu0 0
      %10105 = vmatprep.subr.bf16.mxu0 0
      %10106 = vmatpush1.bf16.msra.mxu0 0
      %10107 = vmatprep.subr.bf16.mxu0 0
      %10108 = vmatpush1.bf16.msra.mxu0 0
      %10109 = vmatprep.subr.bf16.mxu0 0
      %10110 = vmatpush1.bf16.msra.mxu0 0
      %10111 = vmatprep.subr.bf16.mxu0 0
      %10112 = vmatpush1.bf16.msra.mxu0 0
      %10113 = vmatprep.subr.bf16.mxu0 0
      %10114 = vmatpush1.bf16.msra.mxu0 0
      %10115 = vmatprep.subr.bf16.mxu0 0
      %10116 = vmatpush1.bf16.msra.mxu0 0
      %10117 = vmatprep.subr.bf16.mxu0 0
      %10118 = vmatpush1.bf16.msra.mxu0 0
      %10119 = vmatprep.subr.bf16.mxu0 0
      %10120 = vmatpush1.bf16.msra.mxu0 0
      %10121 = vmatprep.subr.bf16.mxu0 0
      %10122 = vmatpush1.bf16.msra.mxu0 0
      %10123 = vmatprep.mubr.bf16.mxu0 0
      %10124 = vmatmul.mubr.bf16.gmra.mrb[0].mxu0 %v10086
      %v10125 = vpop.f32.mrb[0].mxu0
      %v10126 = vadd.f32 %v2306, %v10125
      %v10127 = vpop.f32.mrb[0].mxu0
      %v10128 = vpop.f32.mrb[0].mxu0
      %v10129 = vpop.f32.mrb[0].mxu0
      %10130 = vdwg.mxu0
      %v10136 = vunpack.c.l.b16 %v977
      %v10137 = vunpack.c.l.b16 %v978
      %v10138 = vunpack.c.l.b16 %v979
      %v10139 = vunpack.c.l.b16 %v980
      %v10140 = vunpack.c.l.b16 %v981
      %v10141 = vpack.c.b16 %v10137, %v10136
      %v10142 = vpack.c.b16 %v10139, %v10138
      %v10143 = vpack.c.b16 %v10140, %v10140
      %v10147 = vsel %vm2458, %v345, 0
      %v10150 = vsel %vm2462, %v10143, 0
      %10152 = vmatprep.subr.bf16.mxu0 0
      %10153 = vmatpush1.bf16.msra.mxu0 %v10141
      %10154 = vmatprep.subr.bf16.mxu0 0
      %10155 = vmatpush1.bf16.msra.mxu0 %v10142
      %10156 = vmatprep.subr.bf16.mxu0 0
      %10157 = vmatpush1.bf16.msra.mxu0 %v10150
      %10158 = vmatprep.subr.bf16.mxu0 0
      %10159 = vmatpush1.bf16.msra.mxu0 0
      %10160 = vmatprep.subr.bf16.mxu0 0
      %10161 = vmatpush1.bf16.msra.mxu0 0
      %10162 = vmatprep.subr.bf16.mxu0 0
      %10163 = vmatpush1.bf16.msra.mxu0 0
      %10164 = vmatprep.subr.bf16.mxu0 0
      %10165 = vmatpush1.bf16.msra.mxu0 0
      %10166 = vmatprep.subr.bf16.mxu0 0
      %10167 = vmatpush1.bf16.msra.mxu0 0
      %10168 = vmatprep.subr.bf16.mxu0 0
      %10169 = vmatpush1.bf16.msra.mxu0 0
      %10170 = vmatprep.subr.bf16.mxu0 0
      %10171 = vmatpush1.bf16.msra.mxu0 0
      %10172 = vmatprep.subr.bf16.mxu0 0
      %10173 = vmatpush1.bf16.msra.mxu0 0
      %10174 = vmatprep.subr.bf16.mxu0 0
      %10175 = vmatpush1.bf16.msra.mxu0 0
      %10176 = vmatprep.subr.bf16.mxu0 0
      %10177 = vmatpush1.bf16.msra.mxu0 0
      %10178 = vmatprep.subr.bf16.mxu0 0
      %10179 = vmatpush1.bf16.msra.mxu0 0
      %10180 = vmatprep.subr.bf16.mxu0 0
      %10181 = vmatpush1.bf16.msra.mxu0 0
      %10182 = vmatprep.subr.bf16.mxu0 0
      %10183 = vmatpush1.bf16.msra.mxu0 0
      %10184 = vmatprep.mubr.bf16.mxu0 0
      %10185 = vmatmul.mubr.bf16.gmra.mrb[0].mxu0 %v10147
      %v10186 = vpop.f32.mrb[0].mxu0
      %v10187 = vadd.f32 %v2310, %v10186
      %v10188 = vpop.f32.mrb[0].mxu0
      %v10189 = vpop.f32.mrb[0].mxu0
      %v10190 = vpop.f32.mrb[0].mxu0
      %10191 = vdwg.mxu0
      %v10197 = vunpack.c.l.b16 %v982
      %v10198 = vunpack.c.l.b16 %v983
      %v10199 = vunpack.c.l.b16 %v984
      %v10200 = vunpack.c.l.b16 %v985
      %v10201 = vunpack.c.l.b16 %v986
      %v10202 = vpack.c.b16 %v10198, %v10197
      %v10203 = vpack.c.b16 %v10200, %v10199
      %v10204 = vpack.c.b16 %v10201, %v10201
      %v10208 = vsel %vm2458, %v346, 0
      %v10211 = vsel %vm2462, %v10204, 0
      %10213 = vmatprep.subr.bf16.mxu0 0
      %10214 = vmatpush1.bf16.msra.mxu0 %v10202
      %10215 = vmatprep.subr.bf16.mxu0 0
      %10216 = vmatpush1.bf16.msra.mxu0 %v10203
      %10217 = vmatprep.subr.bf16.mxu0 0
      %10218 = vmatpush1.bf16.msra.mxu0 %v10211
      %10219 = vmatprep.subr.bf16.mxu0 0
      %10220 = vmatpush1.bf16.msra.mxu0 0
      %10221 = vmatprep.subr.bf16.mxu0 0
      %10222 = vmatpush1.bf16.msra.mxu0 0
      %10223 = vmatprep.subr.bf16.mxu0 0
      %10224 = vmatpush1.bf16.msra.mxu0 0
      %10225 = vmatprep.subr.bf16.mxu0 0
      %10226 = vmatpush1.bf16.msra.mxu0 0
      %10227 = vmatprep.subr.bf16.mxu0 0
      %10228 = vmatpush1.bf16.msra.mxu0 0
      %10229 = vmatprep.subr.bf16.mxu0 0
      %10230 = vmatpush1.bf16.msra.mxu0 0
      %10231 = vmatprep.subr.bf16.mxu0 0
      %10232 = vmatpush1.bf16.msra.mxu0 0
      %10233 = vmatprep.subr.bf16.mxu0 0
      %10234 = vmatpush1.bf16.msra.mxu0 0
      %10235 = vmatprep.subr.bf16.mxu0 0
      %10236 = vmatpush1.bf16.msra.mxu0 0
      %10237 = vmatprep.subr.bf16.mxu0 0
      %10238 = vmatpush1.bf16.msra.mxu0 0
      %10239 = vmatprep.subr.bf16.mxu0 0
      %10240 = vmatpush1.bf16.msra.mxu0 0
      %10241 = vmatprep.subr.bf16.mxu0 0
      %10242 = vmatpush1.bf16.msra.mxu0 0
      %10243 = vmatprep.subr.bf16.mxu0 0
      %10244 = vmatpush1.bf16.msra.mxu0 0
      %10245 = vmatprep.mubr.bf16.mxu0 0
      %10246 = vmatmul.mubr.bf16.gmra.mrb[0].mxu0 %v10208
      %v10247 = vpop.f32.mrb[0].mxu0
      %v10248 = vadd.f32 %v2314, %v10247
      %v10249 = vpop.f32.mrb[0].mxu0
      %v10250 = vpop.f32.mrb[0].mxu0
      %v10251 = vpop.f32.mrb[0].mxu0
      %10252 = vdwg.mxu0
      %vm10253 = vcmask 25600
      %10254 = vst.msk [vmem:[%s216] sm:$0x3] %vm10253, %v2501
      %10255 = vst.msk [vmem:[%s216 + $0x2] sm:$0x3] %vm10253, %v2562
      %10256 = vst.msk [vmem:[%s216 + $0x4] sm:$0x3] %vm10253, %v2623
      %10257 = vst.msk [vmem:[%s216 + $0x6] sm:$0x3] %vm10253, %v2684
      %10258 = vst.msk [vmem:[%s216 + $0x8] sm:$0x3] %vm10253, %v2745
      %10259 = vst.msk [vmem:[%s216 + $0xa] sm:$0x3] %vm10253, %v2806
      %10260 = vst.msk [vmem:[%s216 + $0xc] sm:$0x3] %vm10253, %v2867
      %10261 = vst.msk [vmem:[%s216 + $0xe] sm:$0x3] %vm10253, %v2928
      %10262 = vst.msk [vmem:[%s216 + $0x10] sm:$0x3] %vm10253, %v2989
      %10263 = vst.msk [vmem:[%s216 + $0x12] sm:$0x3] %vm10253, %v3050
      %10264 = vst.msk [vmem:[%s216 + $0x14] sm:$0x3] %vm10253, %v3111
      %10265 = vst.msk [vmem:[%s216 + $0x16] sm:$0x3] %vm10253, %v3172
      %10266 = vst.msk [vmem:[%s216 + $0x18] sm:$0x3] %vm10253, %v3233
      %10267 = vst.msk [vmem:[%s216 + $0x1a] sm:$0x3] %vm10253, %v3294
      %10268 = vst.msk [vmem:[%s216 + $0x1c] sm:$0x3] %vm10253, %v3355
      %10269 = vst.msk [vmem:[%s216 + $0x1e] sm:$0x3] %vm10253, %v3416
      %10270 = vst.msk [vmem:[%s216 + $0x20] sm:$0x3] %vm10253, %v3477
      %10271 = vst.msk [vmem:[%s216 + $0x22] sm:$0x3] %vm10253, %v3538
      %10272 = vst.msk [vmem:[%s216 + $0x24] sm:$0x3] %vm10253, %v3599
      %10273 = vst.msk [vmem:[%s216 + $0x26] sm:$0x3] %vm10253, %v3660
      %10274 = vst.msk [vmem:[%s216 + $0x28] sm:$0x3] %vm10253, %v3721
      %10275 = vst.msk [vmem:[%s216 + $0x2a] sm:$0x3] %vm10253, %v3782
      %10276 = vst.msk [vmem:[%s216 + $0x2c] sm:$0x3] %vm10253, %v3843
      %10277 = vst.msk [vmem:[%s216 + $0x2e] sm:$0x3] %vm10253, %v3904
      %10278 = vst.msk [vmem:[%s216 + $0x30] sm:$0x3] %vm10253, %v3965
      %10279 = vst.msk [vmem:[%s216 + $0x32] sm:$0x3] %vm10253, %v4026
      %10280 = vst.msk [vmem:[%s216 + $0x34] sm:$0x3] %vm10253, %v4087
      %10281 = vst.msk [vmem:[%s216 + $0x36] sm:$0x3] %vm10253, %v4148
      %10282 = vst.msk [vmem:[%s216 + $0x38] sm:$0x3] %vm10253, %v4209
      %10283 = vst.msk [vmem:[%s216 + $0x3a] sm:$0x3] %vm10253, %v4270
      %10284 = vst.msk [vmem:[%s216 + $0x3c] sm:$0x3] %vm10253, %v4331
      %10285 = vst.msk [vmem:[%s216 + $0x3e] sm:$0x3] %vm10253, %v4392
      %10286 = vst.msk [vmem:[%s216 + $0x40] sm:$0x3] %vm10253, %v4453
      %10287 = vst.msk [vmem:[%s216 + $0x42] sm:$0x3] %vm10253, %v4514
      %10288 = vst.msk [vmem:[%s216 + $0x44] sm:$0x3] %vm10253, %v4575
      %10289 = vst.msk [vmem:[%s216 + $0x46] sm:$0x3] %vm10253, %v4636
      %10290 = vst.msk [vmem:[%s216 + $0x48] sm:$0x3] %vm10253, %v4697
      %10291 = vst.msk [vmem:[%s216 + $0x4a] sm:$0x3] %vm10253, %v4758
      %10292 = vst.msk [vmem:[%s216 + $0x4c] sm:$0x3] %vm10253, %v4819
      %10293 = vst.msk [vmem:[%s216 + $0x4e] sm:$0x3] %vm10253, %v4880
      %10294 = vst.msk [vmem:[%s216 + $0x50] sm:$0x3] %vm10253, %v4941
      %10295 = vst.msk [vmem:[%s216 + $0x52] sm:$0x3] %vm10253, %v5002
      %10296 = vst.msk [vmem:[%s216 + $0x54] sm:$0x3] %vm10253, %v5063
      %10297 = vst.msk [vmem:[%s216 + $0x56] sm:$0x3] %vm10253, %v5124
      %10298 = vst.msk [vmem:[%s216 + $0x58] sm:$0x3] %vm10253, %v5185
      %10299 = vst.msk [vmem:[%s216 + $0x5a] sm:$0x3] %vm10253, %v5246
      %10300 = vst.msk [vmem:[%s216 + $0x5c] sm:$0x3] %vm10253, %v5307
      %10301 = vst.msk [vmem:[%s216 + $0x5e] sm:$0x3] %vm10253, %v5368
      %10302 = vst.msk [vmem:[%s216 + $0x60] sm:$0x3] %vm10253, %v5429
      %10303 = vst.msk [vmem:[%s216 + $0x62] sm:$0x3] %vm10253, %v5490
      %10304 = vst.msk [vmem:[%s216 + $0x64] sm:$0x3] %vm10253, %v5551
      %10305 = vst.msk [vmem:[%s216 + $0x66] sm:$0x3] %vm10253, %v5612
      %10306 = vst.msk [vmem:[%s216 + $0x68] sm:$0x3] %vm10253, %v5673
      %10307 = vst.msk [vmem:[%s216 + $0x6a] sm:$0x3] %vm10253, %v5734
      %10308 = vst.msk [vmem:[%s216 + $0x6c] sm:$0x3] %vm10253, %v5795
      %10309 = vst.msk [vmem:[%s216 + $0x6e] sm:$0x3] %vm10253, %v5856
      %10310 = vst.msk [vmem:[%s216 + $0x70] sm:$0x3] %vm10253, %v5917
      %10311 = vst.msk [vmem:[%s216 + $0x72] sm:$0x3] %vm10253, %v5978
      %10312 = vst.msk [vmem:[%s216 + $0x74] sm:$0x3] %vm10253, %v6039
      %10313 = vst.msk [vmem:[%s216 + $0x76] sm:$0x3] %vm10253, %v6100
      %10314 = vst.msk [vmem:[%s216 + $0x78] sm:$0x3] %vm10253, %v6161
      %10315 = vst.msk [vmem:[%s216 + $0x7a] sm:$0x3] %vm10253, %v6222
      %10316 = vst.msk [vmem:[%s216 + $0x7c] sm:$0x3] %vm10253, %v6283
      %10317 = vst.msk [vmem:[%s216 + $0x7e] sm:$0x3] %vm10253, %v6344
      %10318 = vst.msk [vmem:[%s216 + $0x80] sm:$0x3] %vm10253, %v6405
      %10319 = vst.msk [vmem:[%s216 + $0x82] sm:$0x3] %vm10253, %v6466
      %10320 = vst.msk [vmem:[%s216 + $0x84] sm:$0x3] %vm10253, %v6527
      %10321 = vst.msk [vmem:[%s216 + $0x86] sm:$0x3] %vm10253, %v6588
      %10322 = vst.msk [vmem:[%s216 + $0x88] sm:$0x3] %vm10253, %v6649
      %10323 = vst.msk [vmem:[%s216 + $0x8a] sm:$0x3] %vm10253, %v6710
      %10324 = vst.msk [vmem:[%s216 + $0x8c] sm:$0x3] %vm10253, %v6771
      %10325 = vst.msk [vmem:[%s216 + $0x8e] sm:$0x3] %vm10253, %v6832
      %10326 = vst.msk [vmem:[%s216 + $0x90] sm:$0x3] %vm10253, %v6893
      %10327 = vst.msk [vmem:[%s216 + $0x92] sm:$0x3] %vm10253, %v6954
      %10328 = vst.msk [vmem:[%s216 + $0x94] sm:$0x3] %vm10253, %v7015
      %10329 = vst.msk [vmem:[%s216 + $0x96] sm:$0x3] %vm10253, %v7076
      %10330 = vst.msk [vmem:[%s216 + $0x98] sm:$0x3] %vm10253, %v7137
      %10331 = vst.msk [vmem:[%s216 + $0x9a] sm:$0x3] %vm10253, %v7198
      %10332 = vst.msk [vmem:[%s216 + $0x9c] sm:$0x3] %vm10253, %v7259
      %10333 = vst.msk [vmem:[%s216 + $0x9e] sm:$0x3] %vm10253, %v7320
      %10334 = vst.msk [vmem:[%s216 + $0xa0] sm:$0x3] %vm10253, %v7381
      %10335 = vst.msk [vmem:[%s216 + $0xa2] sm:$0x3] %vm10253, %v7442
      %10336 = vst.msk [vmem:[%s216 + $0xa4] sm:$0x3] %vm10253, %v7503
      %10337 = vst.msk [vmem:[%s216 + $0xa6] sm:$0x3] %vm10253, %v7564
      %10338 = vst.msk [vmem:[%s216 + $0xa8] sm:$0x3] %vm10253, %v7625
      %10339 = vst.msk [vmem:[%s216 + $0xaa] sm:$0x3] %vm10253, %v7686
      %10340 = vst.msk [vmem:[%s216 + $0xac] sm:$0x3] %vm10253, %v7747
      %10341 = vst.msk [vmem:[%s216 + $0xae] sm:$0x3] %vm10253, %v7808
      %10342 = vst.msk [vmem:[%s216 + $0xb0] sm:$0x3] %vm10253, %v7869
      %10343 = vst.msk [vmem:[%s216 + $0xb2] sm:$0x3] %vm10253, %v7930
      %10344 = vst.msk [vmem:[%s216 + $0xb4] sm:$0x3] %vm10253, %v7991
      %10345 = vst.msk [vmem:[%s216 + $0xb6] sm:$0x3] %vm10253, %v8052
      %10346 = vst.msk [vmem:[%s216 + $0xb8] sm:$0x3] %vm10253, %v8113
      %10347 = vst.msk [vmem:[%s216 + $0xba] sm:$0x3] %vm10253, %v8174
      %10348 = vst.msk [vmem:[%s216 + $0xbc] sm:$0x3] %vm10253, %v8235
      %10349 = vst.msk [vmem:[%s216 + $0xbe] sm:$0x3] %vm10253, %v8296
      %10350 = vst.msk [vmem:[%s216 + $0xc0] sm:$0x3] %vm10253, %v8357
      %10351 = vst.msk [vmem:[%s216 + $0xc2] sm:$0x3] %vm10253, %v8418
      %10352 = vst.msk [vmem:[%s216 + $0xc4] sm:$0x3] %vm10253, %v8479
      %10353 = vst.msk [vmem:[%s216 + $0xc6] sm:$0x3] %vm10253, %v8540
      %10354 = vst.msk [vmem:[%s216 + $0xc8] sm:$0x3] %vm10253, %v8601
      %10355 = vst.msk [vmem:[%s216 + $0xca] sm:$0x3] %vm10253, %v8662
      %10356 = vst.msk [vmem:[%s216 + $0xcc] sm:$0x3] %vm10253, %v8723
      %10357 = vst.msk [vmem:[%s216 + $0xce] sm:$0x3] %vm10253, %v8784
      %10358 = vst.msk [vmem:[%s216 + $0xd0] sm:$0x3] %vm10253, %v8845
      %10359 = vst.msk [vmem:[%s216 + $0xd2] sm:$0x3] %vm10253, %v8906
      %10360 = vst.msk [vmem:[%s216 + $0xd4] sm:$0x3] %vm10253, %v8967
      %10361 = vst.msk [vmem:[%s216 + $0xd6] sm:$0x3] %vm10253, %v9028
      %10362 = vst.msk [vmem:[%s216 + $0xd8] sm:$0x3] %vm10253, %v9089
      %10363 = vst.msk [vmem:[%s216 + $0xda] sm:$0x3] %vm10253, %v9150
      %10364 = vst.msk [vmem:[%s216 + $0xdc] sm:$0x3] %vm10253, %v9211
      %10365 = vst.msk [vmem:[%s216 + $0xde] sm:$0x3] %vm10253, %v9272
      %10366 = vst.msk [vmem:[%s216 + $0xe0] sm:$0x3] %vm10253, %v9333
      %10367 = vst.msk [vmem:[%s216 + $0xe2] sm:$0x3] %vm10253, %v9394
      %10368 = vst.msk [vmem:[%s216 + $0xe4] sm:$0x3] %vm10253, %v9455
      %10369 = vst.msk [vmem:[%s216 + $0xe6] sm:$0x3] %vm10253, %v9516
      %10370 = vst.msk [vmem:[%s216 + $0xe8] sm:$0x3] %vm10253, %v9577
      %10371 = vst.msk [vmem:[%s216 + $0xea] sm:$0x3] %vm10253, %v9638
      %10372 = vst.msk [vmem:[%s216 + $0xec] sm:$0x3] %vm10253, %v9699
      %10373 = vst.msk [vmem:[%s216 + $0xee] sm:$0x3] %vm10253, %v9760
      %10374 = vst.msk [vmem:[%s216 + $0xf0] sm:$0x3] %vm10253, %v9821
      %10375 = vst.msk [vmem:[%s216 + $0xf2] sm:$0x3] %vm10253, %v9882
      %10376 = vst.msk [vmem:[%s216 + $0xf4] sm:$0x3] %vm10253, %v9943
      %10377 = vst.msk [vmem:[%s216 + $0xf6] sm:$0x3] %vm10253, %v10004
      %10378 = vst.msk [vmem:[%s216 + $0xf8] sm:$0x3] %vm10253, %v10065
      %10379 = vst.msk [vmem:[%s216 + $0xfa] sm:$0x3] %vm10253, %v10126
      %10380 = vst.msk [vmem:[%s216 + $0xfc] sm:$0x3] %vm10253, %v10187
      %10381 = vst.msk [vmem:[%s216 + $0xfe] sm:$0x3] %vm10253, %v10248
      %s10382 = smul.u32 128, %s14
      %p10383 = scmp.lt.s32.totalorder %s10382, 255
      %s10384 = scalar_select %p10383, %s10382, 255
      %s10385 = smul.addr %s10384, 2
      %s10386 = scalar_lea.vmem %s3, %s10385
      // Predicated region
      $region33: #{tpu_custom_call.1} parent=31 // pred_check
        %p10387 = pneg %p110
      $region34: #{tpu_custom_call.1} parent=31 // pred_check_branch
        %10389 = sbr.rel (%p10387) target = $region36
      $region35: #{tpu_custom_call.1} parent=31 // pred_region
        %s10390 = smul.u32 128, %s14
      $region36: #{tpu_custom_call.1} parent=31 // pred_fallthru
        _
    $region32: #{tpu_custom_call.1} parent=5 // pred_fallthru
      _
    %p10391 = scmp.le.s32.totalorder 2, %s9
    // Predicated region
    $region37: #{tpu_custom_call.1} parent=5 // pred_check
      %p10392 = pneg %p10391
    $region38: #{tpu_custom_call.1} parent=5 // pred_check_branch
      %10394 = sbr.rel (%p10392) target = $region40
    $region39: #{tpu_custom_call.1} parent=5 // pred_region
      %s10395 = ssub.s32 %s9, 2
      // Predicated region
      $region41: #{tpu_custom_call.1} parent=39 // pred_check
        %p10396 = pneg %p116
      $region42: #{tpu_custom_call.1} parent=39 // pred_check_branch
        %10398 = sbr.rel (%p10396) target = $region44
      $region43: #{tpu_custom_call.1} parent=39 // pred_region
        %s10399 = smul.u32 128, %s15
        %p10400 = scmp.lt.s32.totalorder %s10399, 255
        %s10401 = scalar_select %p10400, %s10399, 255
        %s10402 = smul.addr %s10401, 2
        %s10403 = scalar_lea.vmem %s3, %s10402
      $region44: #{tpu_custom_call.1} parent=39 // pred_fallthru
        _
    $region40: #{tpu_custom_call.1} parent=5 // pred_fallthru
      _
  $region6: #{tpu_custom_call.1} parent=0 // loop_footer
    %s13 = sadd.s32 1, %s9
  $region7: #{tpu_custom_call.1} parent=0 // loop_footer_branch
    %8 = sbr.rel target = $region3
  $region8: #{tpu_custom_call.1} parent=0 // loop_exit
    _

</llo_original>
